<compile_context>
chip_gen: v6e
topology: v6e:2x2x1
jax: 0.10.0
libtpu: 0.0.40
codegen_flags: <defaults>
</compile_context>

<pallas_src>
import jax
import jax.numpy as jnp
from jax.experimental import pallas as pl
from jax.experimental.pallas import tpu as pltpu


IN_FEATURES = 784
IN_PAD = 896            # 7 * 128, lane-aligned contraction dim for layer 1
HIDDEN = 1024
NUM_CLASSES = 10
OUT_PAD = 128           # lane-aligned class dim
NEG_BIG = -1.0e30       # bias for padded class columns (kills them in logsumexp)


def mlp_kernel(x_ref, w1_ref, b1_ref, w2_ref, b2_ref, w3_ref, b3_ref, o_ref):
    # Full 3-layer MLP + log_softmax for one batch tile, all in VMEM.
    x = x_ref[...]                                                       # (TB, 896) bf16
    h1 = jnp.dot(x, w1_ref[...], preferred_element_type=jnp.float32) + b1_ref[...]
    h1 = jnp.maximum(h1, 0.0).astype(jnp.bfloat16)                       # ReLU, bf16 for MXU
    h2 = jnp.dot(h1, w2_ref[...], preferred_element_type=jnp.float32) + b2_ref[...]
    h2 = jnp.maximum(h2, 0.0).astype(jnp.bfloat16)                       # ReLU, bf16 for MXU
    logits = jnp.dot(h2, w3_ref[...], preferred_element_type=jnp.float32) + b3_ref[...]
    # log_softmax over the (padded) class dim; padded columns carry -1e30 bias
    # so exp() underflows to 0 and they do not perturb the logsumexp.
    m = jnp.max(logits, axis=-1, keepdims=True)
    shifted = logits - m
    lse = jnp.log(jnp.sum(jnp.exp(shifted), axis=-1, keepdims=True))
    o_ref[...] = (shifted - lse).astype(o_ref.dtype)


def net_forward(x, params, *, tile_b=128):
    """x: [B, ...] with prod(...) == 784 (e.g. [B, 1, 28, 28]). Returns [B, 10] log-probs."""
    w1, b1, w2, b2, w3, b3 = params
    B = x.shape[0]
    x2d = x.reshape(B, -1).astype(jnp.float32)                           # x.view(B, -1)
    assert x2d.shape[1] == IN_FEATURES

    # Pad feature dim 784 -> 896 and batch to a multiple of tile_b (zeros are inert).
    b_pad = pl.cdiv(B, tile_b) * tile_b
    x2d = jnp.pad(x2d, ((0, b_pad - B), (0, IN_PAD - IN_FEATURES)))
    x_bf = x2d.astype(jnp.bfloat16)

    # Prepare weights: bf16 for the MXU, padded to lane-aligned shapes.
    w1p = jnp.pad(w1, ((0, IN_PAD - IN_FEATURES), (0, 0))).astype(jnp.bfloat16)   # (896, 1024)
    w2p = w2.astype(jnp.bfloat16)                                                 # (1024, 1024)
    w3p = jnp.pad(w3, ((0, 0), (0, OUT_PAD - NUM_CLASSES))).astype(jnp.bfloat16)  # (1024, 128)
    b1p = b1.astype(jnp.float32)                                                  # (1, 1024)
    b2p = b2.astype(jnp.float32)                                                  # (1, 1024)
    b3p = jnp.pad(b3.astype(jnp.float32), ((0, 0), (0, OUT_PAD - NUM_CLASSES)),
                  constant_values=NEG_BIG)                                        # (1, 128)

    grid = (b_pad // tile_b,)
    full = lambda i: (0, 0)  # weights/biases: same full block every grid step (DMA'd once)

    out = pl.pallas_call(
        mlp_kernel,
        out_shape=jax.ShapeDtypeStruct((b_pad, OUT_PAD), jnp.float32),
        grid_spec=pltpu.PrefetchScalarGridSpec(
            num_scalar_prefetch=0,
            grid=grid,
            in_specs=[
                pl.BlockSpec((tile_b, IN_PAD), lambda i: (i, 0)),    # x tile
                pl.BlockSpec((IN_PAD, HIDDEN), full),                # W1
                pl.BlockSpec((1, HIDDEN), full),                     # b1
                pl.BlockSpec((HIDDEN, HIDDEN), full),                # W2
                pl.BlockSpec((1, HIDDEN), full),                     # b2
                pl.BlockSpec((HIDDEN, OUT_PAD), full),               # W3 (class-padded)
                pl.BlockSpec((1, OUT_PAD), full),                    # b3 (class-padded)
            ],
            out_specs=pl.BlockSpec((tile_b, OUT_PAD), lambda i: (i, 0)),
        ),
        compiler_params=pltpu.CompilerParams(
            dimension_semantics=("parallel",),
            vmem_limit_bytes=32 << 20,
        ),
    )(x_bf, w1p, b1p, w2p, b2p, w3p, b3p)

    return out[:B, :NUM_CLASSES]


def init_params(key):
    """Deterministic init matching nn.Linear shapes (weights stored [in, out], f32)."""
    ks = jax.random.split(key, 6)

    def linear(kw, kb, fan_in, fan_out):
        bound = 1.0 / jnp.sqrt(fan_in)
        w = jax.random.uniform(kw, (fan_in, fan_out), jnp.float32, -bound, bound)
        b = jax.random.uniform(kb, (1, fan_out), jnp.float32, -bound, bound)
        return w, b

    w1, b1 = linear(ks[0], ks[1], IN_FEATURES, HIDDEN)
    w2, b2 = linear(ks[2], ks[3], HIDDEN, HIDDEN)
    w3, b3 = linear(ks[4], ks[5], HIDDEN, NUM_CLASSES)
    return (w1, b1, w2, b2, w3, b3)


def _reference(x, params):
    w1, b1, w2, b2, w3, b3 = params
    h = x.reshape(x.shape[0], -1).astype(jnp.float32)
    h = jnp.maximum(h @ w1 + b1, 0.0)
    h = jnp.maximum(h @ w2 + b2, 0.0)
    logits = h @ w3 + b3
    return jax.nn.log_softmax(logits, axis=1)


if __name__ == "__main__":
    key = jax.random.PRNGKey(0)
    kx, kp = jax.random.split(key)
    params = init_params(kp)

    # MNIST-like input: 1x28x28 = 784 features. Batch 256 -> grid of 2 parallel
    # steps at tile_b=128 (keeps both v7x TensorCores busy) while staying small.
    B = 256
    x = jax.random.normal(kx, (B, 1, 28, 28), jnp.float32)

    out = net_forward(x, params, tile_b=128)
    out = jax.block_until_ready(out)

    ref = _reference(x, params)
    assert out.shape == (B, NUM_CLASSES)
    # bf16 MXU inputs (f32 accumulation) -> loosened tolerance vs the f32 reference.
    assert jnp.allclose(out, ref, atol=5e-2, rtol=5e-2), float(jnp.max(jnp.abs(out - ref)))
    print("KERNEL_OK")
</pallas_src>

<mosaic_0001>
module attributes {stable_mosaic.version = 11 : i64} {
  func.func @mlp_kernel(%arg0: i32, %arg1: memref<128x896xbf16, #tpu.memory_space<vmem>>, %arg2: memref<896x1024xbf16, #tpu.memory_space<vmem>>, %arg3: memref<1x1024xf32, #tpu.memory_space<vmem>>, %arg4: memref<1024x1024xbf16, #tpu.memory_space<vmem>>, %arg5: memref<1x1024xf32, #tpu.memory_space<vmem>>, %arg6: memref<1024x128xbf16, #tpu.memory_space<vmem>>, %arg7: memref<1x128xf32, #tpu.memory_space<vmem>>, %arg8: memref<128x128xf32, #tpu.memory_space<vmem>>) attributes {dimension_semantics = [#tpu.dimension_semantics<parallel>], iteration_bounds = array<i64: 2>, scalar_prefetch = 0 : i64, scratch_operands = 0 : i64, tpu.core_type = #tpu.core_type<tc>, window_params = [{transform_indices = @transform_0, window_bounds = array<i64: 128, 896>}, {pipeline_mode = #tpu.pipeline_mode<synchronous>, transform_indices = @transform_1, window_bounds = array<i64: 896, 1024>}, {pipeline_mode = #tpu.pipeline_mode<synchronous>, transform_indices = @transform_2, window_bounds = array<i64: 1, 1024>}, {pipeline_mode = #tpu.pipeline_mode<synchronous>, transform_indices = @transform_3, window_bounds = array<i64: 1024, 1024>}, {pipeline_mode = #tpu.pipeline_mode<synchronous>, transform_indices = @transform_4, window_bounds = array<i64: 1, 1024>}, {pipeline_mode = #tpu.pipeline_mode<synchronous>, transform_indices = @transform_5, window_bounds = array<i64: 1024, 128>}, {pipeline_mode = #tpu.pipeline_mode<synchronous>, transform_indices = @transform_6, window_bounds = array<i64: 1, 128>}, {transform_indices = @transform_7, window_bounds = array<i64: 128, 128>}]} {
    %c0 = arith.constant 0 : index
    %c0_0 = arith.constant 0 : index
    %0 = vector.load %arg1[%c0, %c0_0] : memref<128x896xbf16, #tpu.memory_space<vmem>>, vector<128x896xbf16>
    %c0_1 = arith.constant 0 : index
    %c0_2 = arith.constant 0 : index
    %1 = vector.load %arg2[%c0_1, %c0_2] : memref<896x1024xbf16, #tpu.memory_space<vmem>>, vector<896x1024xbf16>
    %cst = arith.constant dense<0.000000e+00> : vector<128x1024xf32>
    %2 = tpu.matmul %0, %1, %cst {dimension_numbers = #tpu.dot_dimension_numbers<[1], [0], [0], [1], [0, 0, 1, 1], [], []>} : vector<128x896xbf16>, vector<896x1024xbf16>, vector<128x1024xf32> -> vector<128x1024xf32>
    %c0_3 = arith.constant 0 : index
    %c0_4 = arith.constant 0 : index
    %3 = vector.load %arg3[%c0_3, %c0_4] : memref<1x1024xf32, #tpu.memory_space<vmem>>, vector<1x1024xf32>
    %4 = vector.broadcast %3 : vector<1x1024xf32> to vector<128x1024xf32>
    %5 = arith.addf %2, %4 : vector<128x1024xf32>
    %cst_5 = arith.constant 0.000000e+00 : f32
    %6 = vector.broadcast %cst_5 : f32 to vector<128x1024xf32>
    %7 = arith.maximumf %5, %6 : vector<128x1024xf32>
    %8 = arith.truncf %7 : vector<128x1024xf32> to vector<128x1024xbf16>
    %c0_6 = arith.constant 0 : index
    %c0_7 = arith.constant 0 : index
    %9 = vector.load %arg4[%c0_6, %c0_7] : memref<1024x1024xbf16, #tpu.memory_space<vmem>>, vector<1024x1024xbf16>
    %cst_8 = arith.constant dense<0.000000e+00> : vector<128x1024xf32>
    %10 = tpu.matmul %8, %9, %cst_8 {dimension_numbers = #tpu.dot_dimension_numbers<[1], [0], [0], [1], [0, 0, 1, 1], [], []>} : vector<128x1024xbf16>, vector<1024x1024xbf16>, vector<128x1024xf32> -> vector<128x1024xf32>
    %c0_9 = arith.constant 0 : index
    %c0_10 = arith.constant 0 : index
    %11 = vector.load %arg5[%c0_9, %c0_10] : memref<1x1024xf32, #tpu.memory_space<vmem>>, vector<1x1024xf32>
    %12 = vector.broadcast %11 : vector<1x1024xf32> to vector<128x1024xf32>
    %13 = arith.addf %10, %12 : vector<128x1024xf32>
    %cst_11 = arith.constant 0.000000e+00 : f32
    %14 = vector.broadcast %cst_11 : f32 to vector<128x1024xf32>
    %15 = arith.maximumf %13, %14 : vector<128x1024xf32>
    %16 = arith.truncf %15 : vector<128x1024xf32> to vector<128x1024xbf16>
    %c0_12 = arith.constant 0 : index
    %c0_13 = arith.constant 0 : index
    %17 = vector.load %arg6[%c0_12, %c0_13] : memref<1024x128xbf16, #tpu.memory_space<vmem>>, vector<1024x128xbf16>
    %cst_14 = arith.constant dense<0.000000e+00> : vector<128x128xf32>
    %18 = tpu.matmul %16, %17, %cst_14 {dimension_numbers = #tpu.dot_dimension_numbers<[1], [0], [0], [1], [0, 0, 1, 1], [], []>} : vector<128x1024xbf16>, vector<1024x128xbf16>, vector<128x128xf32> -> vector<128x128xf32>
    %c0_15 = arith.constant 0 : index
    %c0_16 = arith.constant 0 : index
    %19 = vector.load %arg7[%c0_15, %c0_16] : memref<1x128xf32, #tpu.memory_space<vmem>>, vector<1x128xf32>
    %20 = vector.broadcast %19 : vector<1x128xf32> to vector<128x128xf32>
    %21 = arith.addf %18, %20 : vector<128x128xf32>
    %cst_17 = arith.constant dense<0xFF800000> : vector<128xf32>
    %22 = vector.multi_reduction <maximumf>, %21, %cst_17 [1] : vector<128x128xf32> to vector<128xf32>
    %23 = vector.shape_cast %22 : vector<128xf32> to vector<128x1xf32>
    %24 = vector.broadcast %23 : vector<128x1xf32> to vector<128x128xf32>
    %25 = arith.subf %21, %24 : vector<128x128xf32>
    %26 = math.exp %25 : vector<128x128xf32>
    %cst_18 = arith.constant dense<0.000000e+00> : vector<128xf32>
    %27 = vector.multi_reduction <add>, %26, %cst_18 [1] : vector<128x128xf32> to vector<128xf32>
    %28 = vector.shape_cast %27 : vector<128xf32> to vector<128x1xf32>
    %29 = math.log %28 : vector<128x1xf32>
    %30 = vector.broadcast %29 : vector<128x1xf32> to vector<128x128xf32>
    %31 = arith.subf %25, %30 : vector<128x128xf32>
    %c0_19 = arith.constant 0 : index
    %c0_20 = arith.constant 0 : index
    %32 = vector.load %arg8[%c0_19, %c0_20] : memref<128x128xf32, #tpu.memory_space<vmem>>, vector<128x128xf32>
    tpu.vector_store %arg8[%c0_19, %c0_20], %31 {strides = array<i32>} : memref<128x128xf32, #tpu.memory_space<vmem>>, vector<128x128xf32>,
    return
  }
  func.func @transform_0(%arg0: i32) -> (i32, i32) {
    %c0_i32 = arith.constant 0 : i32
    %c0_i32_0 = arith.constant 0 : i32
    return %arg0, %c0_i32 : i32, i32
  }
  func.func @transform_1(%arg0: i32) -> (i32, i32) {
    %c0_i32 = arith.constant 0 : i32
    %c0_i32_0 = arith.constant 0 : i32
    %c0_i32_1 = arith.constant 0 : i32
    return %c0_i32, %c0_i32_0 : i32, i32
  }
  func.func @transform_2(%arg0: i32) -> (i32, i32) {
    %c0_i32 = arith.constant 0 : i32
    %c0_i32_0 = arith.constant 0 : i32
    %c0_i32_1 = arith.constant 0 : i32
    return %c0_i32, %c0_i32_0 : i32, i32
  }
  func.func @transform_3(%arg0: i32) -> (i32, i32) {
    %c0_i32 = arith.constant 0 : i32
    %c0_i32_0 = arith.constant 0 : i32
    %c0_i32_1 = arith.constant 0 : i32
    return %c0_i32, %c0_i32_0 : i32, i32
  }
  func.func @transform_4(%arg0: i32) -> (i32, i32) {
    %c0_i32 = arith.constant 0 : i32
    %c0_i32_0 = arith.constant 0 : i32
    %c0_i32_1 = arith.constant 0 : i32
    return %c0_i32, %c0_i32_0 : i32, i32
  }
  func.func @transform_5(%arg0: i32) -> (i32, i32) {
    %c0_i32 = arith.constant 0 : i32
    %c0_i32_0 = arith.constant 0 : i32
    %c0_i32_1 = arith.constant 0 : i32
    return %c0_i32, %c0_i32_0 : i32, i32
  }
  func.func @transform_6(%arg0: i32) -> (i32, i32) {
    %c0_i32 = arith.constant 0 : i32
    %c0_i32_0 = arith.constant 0 : i32
    %c0_i32_1 = arith.constant 0 : i32
    return %c0_i32, %c0_i32_0 : i32, i32
  }
  func.func @transform_7(%arg0: i32) -> (i32, i32) {
    %c0_i32 = arith.constant 0 : i32
    %c0_i32_0 = arith.constant 0 : i32
    return %arg0, %c0_i32 : i32, i32
  }
}

</mosaic_0001>

<llo_original>
// kernel: tpu_custom_call.1
$region0: #{tpu_custom_call.1}
  #allocation0 [shape = 'u32[]', space=smem, size = 0x4, offset = 0x4, fixed_abs, tag = 'smem constant byte address 0x4 - core index']
  #allocation1 [shape = 'u32[144,128]{1,0:T(1,128)}', space=vmem, size = 0x12000, scoped, tag = 'internal scratch']
  %s0 = inlined_call_operand.hbm [shape: bf16[256,896], index: 0, kind: input, shape index: {}]
  %s1 = inlined_call_operand.hbm [shape: bf16[896,1024], index: 1, kind: input, shape index: {}]
  %s2 = inlined_call_operand.hbm [shape: f32[1,1024], index: 2, kind: input, shape index: {}]
  %s3 = inlined_call_operand.hbm [shape: bf16[1024,1024], index: 3, kind: input, shape index: {}]
  %s4 = inlined_call_operand.hbm [shape: f32[1,1024], index: 4, kind: input, shape index: {}]
  %s5 = inlined_call_operand.hbm [shape: bf16[1024,128], index: 5, kind: input, shape index: {}]
  %s6 = inlined_call_operand.hbm [shape: f32[1,128], index: 6, kind: input, shape index: {}]
  %s7 = inlined_call_operand.hbm [shape: f32[256,128], index: 7, kind: output, shape index: {}]
  %s8 = sld [smem:[#allocation0]]
  $region89: #{tpu_custom_call.1} parent=0
    _
  %s10 = ssub.s32 1, %s8
  %s11 = scalar_select 0, %s10, %s8
  $region1: #{tpu_custom_call.1} parent=0
    #allocation2 [shape = 'u8[458752]{0}', space=vmem, size = 0x70000, scoped, tag = 'input window, operand 0']
    #allocation3 [shape = 's32[2]{0}', space=sflag, size = 0x8, scoped, tag = 'scoped memory for tpu_custom_call.1']
    #allocation4 [shape = 's32[2]{0}', space=sflag, size = 0x8, scoped, tag = 'scoped memory for tpu_custom_call.1']
    #allocation5 [shape = 'u8[1835008]{0}', space=vmem, size = 0x1c0000, scoped, tag = 'input window, operand 1, single buffered']
    #allocation6 [shape = 's32[1]{0}', space=sflag, size = 0x4, scoped, tag = 'scoped memory for tpu_custom_call.1']
    #allocation7 [shape = 'u8[4096]{0}', space=vmem, size = 0x1000, scoped, tag = 'input window, operand 2, single buffered']
    #allocation8 [shape = 'u8[2097152]{0}', space=vmem, size = 0x200000, scoped, tag = 'input window, operand 3, single buffered']
    #allocation9 [shape = 's32[1]{0}', space=sflag, size = 0x4, scoped, tag = 'scoped memory for tpu_custom_call.1']
    #allocation10 [shape = 'u8[4096]{0}', space=vmem, size = 0x1000, scoped, tag = 'input window, operand 4, single buffered']
    #allocation11 [shape = 'u8[262144]{0}', space=vmem, size = 0x40000, scoped, tag = 'input window, operand 5, single buffered']
    #allocation12 [shape = 's32[1]{0}', space=sflag, size = 0x4, scoped, tag = 'scoped memory for tpu_custom_call.1']
    #allocation13 [shape = 'u8[512]{0}', space=vmem, size = 0x400, scoped, tag = 'input window, operand 6, single buffered']
    #allocation14 [shape = 'u8[131072]{0}', space=vmem, size = 0x20000, scoped, tag = 'output window, operand 0']
    %12 = vsyncpa [#allocation3], 0
    %s13 = scalar_lea.sflag [#allocation3], 1
    %14 = vsyncpa %s13, 0
    %15 = vsyncpa [#allocation6], 0
    %16 = vsyncpa [#allocation9], 0
    %17 = vsyncpa [#allocation12], 0
    %18 = vsyncpa [#allocation4], 0
    %s19 = scalar_lea.sflag [#allocation4], 1
    %20 = vsyncpa %s19, 0
    loop: start=0, step=1, limit=4
    $region2: #{tpu_custom_call.1} parent=1 // loop_pre_header
      _
    $region3: #{tpu_custom_call.1} parent=1 // loop_header
      %s22 = sphi 0, %s26
      %p23 = scmp.ge.s32.totalorder %s22, 4
      %s32 = sphi 0, %s34
      %s35 = sphi 0, %s32
      %s36 = sphi 0, %s35
      %s52 = sphi 0, %s36
      %s56 = sphi 0, %s56
      %s58 = sphi 0, %s56
      %s59 = sphi 0, %s58
      %s73 = sphi 0, %s59
      %s77 = sphi 0, %s77
      %s79 = sphi 0, %s77
      %s80 = sphi 0, %s79
      %s94 = sphi 0, %s80
      %s98 = sphi 0, %s98
      %s100 = sphi 0, %s98
      %s101 = sphi 0, %s100
      %s115 = sphi 0, %s101
      %s119 = sphi 0, %s119
      %s121 = sphi 0, %s119
      %s122 = sphi 0, %s121
      %s136 = sphi 0, %s122
      %s140 = sphi 0, %s140
      %s142 = sphi 0, %s140
      %s143 = sphi 0, %s142
      %s157 = sphi 0, %s143
      %s161 = sphi 0, %s161
      %s163 = sphi 0, %s161
      %s164 = sphi 0, %s163
      %s178 = sphi 0, %s164
      %s184 = sphi 0, %s186
      %s187 = sphi 0, %s184
      %s188 = sphi 0, %s187
      %s204 = sphi 0, %s188
    $region4: #{tpu_custom_call.1} parent=1 // loop_header_branch
      %25 = sbr.rel (%p23) target = $region8
    $region5: #{tpu_custom_call.1} parent=1 // loop_body
      %s27 = ssub.s32 %s22, 1
      %s28 = ssub.s32 %s22, 2
      %s29 = sadd.s32 %s22, 1
      %s30 = ssub.s32 %s22, %s29
      %p31 = scmp.eq.s32.totalorder %s30, 0
      %s33 = sadd.s32 %s32, 1
      %s34 = scalar_select %p31, %s32, %s33
      %p37 = pneg %p31
      %p38 = scmp.eq.s32.totalorder %s22, 1
      %p39 = por %p37, %p38
      %p40 = scmp.ne.s32.totalorder %s32, %s35
      %p41 = scmp.eq.s32.totalorder %s22, 0
      %p42 = por %p40, %p41
      %p43 = scmp.ne.s32.totalorder %s32, %s35
      %p44 = scmp.eq.s32.totalorder %s27, 1
      %p45 = por %p43, %p44
      %p46 = scmp.ne.s32.totalorder %s35, %s36
      %p47 = scmp.eq.s32.totalorder %s27, 0
      %p48 = por %p46, %p47
      %p49 = scmp.ne.s32.totalorder %s35, %s36
      %p50 = scmp.eq.s32.totalorder %s28, 1
      %p51 = por %p49, %p50
      %p53 = scmp.ne.s32.totalorder %s36, %s52
      %p54 = scmp.eq.s32.totalorder %s28, 0
      %p55 = por %p53, %p54
      %s57 = sadd.s32 %s56, 1
      %p60 = scmp.eq.s32.totalorder %s22, 1
      %p61 = scmp.ne.s32.totalorder %s56, %s58
      %p62 = scmp.eq.s32.totalorder %s22, 0
      %p63 = por %p61, %p62
      %p64 = scmp.ne.s32.totalorder %s56, %s58
      %p65 = scmp.eq.s32.totalorder %s27, 1
      %p66 = por %p64, %p65
      %p67 = scmp.ne.s32.totalorder %s58, %s59
      %p68 = scmp.eq.s32.totalorder %s27, 0
      %p69 = por %p67, %p68
      %p70 = scmp.ne.s32.totalorder %s58, %s59
      %p71 = scmp.eq.s32.totalorder %s28, 1
      %p72 = por %p70, %p71
      %p74 = scmp.ne.s32.totalorder %s59, %s73
      %p75 = scmp.eq.s32.totalorder %s28, 0
      %p76 = por %p74, %p75
      %s78 = sadd.s32 %s77, 1
      %p81 = scmp.eq.s32.totalorder %s22, 1
      %p82 = scmp.ne.s32.totalorder %s77, %s79
      %p83 = scmp.eq.s32.totalorder %s22, 0
      %p84 = por %p82, %p83
      %p85 = scmp.ne.s32.totalorder %s77, %s79
      %p86 = scmp.eq.s32.totalorder %s27, 1
      %p87 = por %p85, %p86
      %p88 = scmp.ne.s32.totalorder %s79, %s80
      %p89 = scmp.eq.s32.totalorder %s27, 0
      %p90 = por %p88, %p89
      %p91 = scmp.ne.s32.totalorder %s79, %s80
      %p92 = scmp.eq.s32.totalorder %s28, 1
      %p93 = por %p91, %p92
      %p95 = scmp.ne.s32.totalorder %s80, %s94
      %p96 = scmp.eq.s32.totalorder %s28, 0
      %p97 = por %p95, %p96
      %s99 = sadd.s32 %s98, 1
      %p102 = scmp.eq.s32.totalorder %s22, 1
      %p103 = scmp.ne.s32.totalorder %s98, %s100
      %p104 = scmp.eq.s32.totalorder %s22, 0
      %p105 = por %p103, %p104
      %p106 = scmp.ne.s32.totalorder %s98, %s100
      %p107 = scmp.eq.s32.totalorder %s27, 1
      %p108 = por %p106, %p107
      %p109 = scmp.ne.s32.totalorder %s100, %s101
      %p110 = scmp.eq.s32.totalorder %s27, 0
      %p111 = por %p109, %p110
      %p112 = scmp.ne.s32.totalorder %s100, %s101
      %p113 = scmp.eq.s32.totalorder %s28, 1
      %p114 = por %p112, %p113
      %p116 = scmp.ne.s32.totalorder %s101, %s115
      %p117 = scmp.eq.s32.totalorder %s28, 0
      %p118 = por %p116, %p117
      %s120 = sadd.s32 %s119, 1
      %p123 = scmp.eq.s32.totalorder %s22, 1
      %p124 = scmp.ne.s32.totalorder %s119, %s121
      %p125 = scmp.eq.s32.totalorder %s22, 0
      %p126 = por %p124, %p125
      %p127 = scmp.ne.s32.totalorder %s119, %s121
      %p128 = scmp.eq.s32.totalorder %s27, 1
      %p129 = por %p127, %p128
      %p130 = scmp.ne.s32.totalorder %s121, %s122
      %p131 = scmp.eq.s32.totalorder %s27, 0
      %p132 = por %p130, %p131
      %p133 = scmp.ne.s32.totalorder %s121, %s122
      %p134 = scmp.eq.s32.totalorder %s28, 1
      %p135 = por %p133, %p134
      %p137 = scmp.ne.s32.totalorder %s122, %s136
      %p138 = scmp.eq.s32.totalorder %s28, 0
      %p139 = por %p137, %p138
      %s141 = sadd.s32 %s140, 1
      %p144 = scmp.eq.s32.totalorder %s22, 1
      %p145 = scmp.ne.s32.totalorder %s140, %s142
      %p146 = scmp.eq.s32.totalorder %s22, 0
      %p147 = por %p145, %p146
      %p148 = scmp.ne.s32.totalorder %s140, %s142
      %p149 = scmp.eq.s32.totalorder %s27, 1
      %p150 = por %p148, %p149
      %p151 = scmp.ne.s32.totalorder %s142, %s143
      %p152 = scmp.eq.s32.totalorder %s27, 0
      %p153 = por %p151, %p152
      %p154 = scmp.ne.s32.totalorder %s142, %s143
      %p155 = scmp.eq.s32.totalorder %s28, 1
      %p156 = por %p154, %p155
      %p158 = scmp.ne.s32.totalorder %s143, %s157
      %p159 = scmp.eq.s32.totalorder %s28, 0
      %p160 = por %p158, %p159
      %s162 = sadd.s32 %s161, 1
      %p165 = scmp.eq.s32.totalorder %s22, 1
      %p166 = scmp.ne.s32.totalorder %s161, %s163
      %p167 = scmp.eq.s32.totalorder %s22, 0
      %p168 = por %p166, %p167
      %p169 = scmp.ne.s32.totalorder %s161, %s163
      %p170 = scmp.eq.s32.totalorder %s27, 1
      %p171 = por %p169, %p170
      %p172 = scmp.ne.s32.totalorder %s163, %s164
      %p173 = scmp.eq.s32.totalorder %s27, 0
      %p174 = por %p172, %p173
      %p175 = scmp.ne.s32.totalorder %s163, %s164
      %p176 = scmp.eq.s32.totalorder %s28, 1
      %p177 = por %p175, %p176
      %p179 = scmp.ne.s32.totalorder %s164, %s178
      %p180 = scmp.eq.s32.totalorder %s28, 0
      %p181 = por %p179, %p180
      %s182 = ssub.s32 %s22, %s29
      %p183 = scmp.eq.s32.totalorder %s182, 0
      %s185 = sadd.s32 %s184, 1
      %s186 = scalar_select %p183, %s184, %s185
      %p189 = pneg %p183
      %p190 = scmp.eq.s32.totalorder %s22, 1
      %p191 = por %p189, %p190
      %p192 = scmp.ne.s32.totalorder %s184, %s187
      %p193 = scmp.eq.s32.totalorder %s22, 0
      %p194 = por %p192, %p193
      %p195 = scmp.ne.s32.totalorder %s184, %s187
      %p196 = scmp.eq.s32.totalorder %s27, 1
      %p197 = por %p195, %p196
      %p198 = scmp.ne.s32.totalorder %s187, %s188
      %p199 = scmp.eq.s32.totalorder %s27, 0
      %p200 = por %p198, %p199
      %p201 = scmp.ne.s32.totalorder %s187, %s188
      %p202 = scmp.eq.s32.totalorder %s28, 1
      %p203 = por %p201, %p202
      %p205 = scmp.ne.s32.totalorder %s188, %s204
      %p206 = scmp.eq.s32.totalorder %s28, 0
      %p207 = por %p205, %p206
      %p208 = scmp.le.s32.totalorder 1, %s22
      %p209 = scmp.lt.s32.totalorder %s22, 3
      %p210 = pnand %p208, %p209
      %p211 = pneg %p210
      // Predicated region
      $region9: #{tpu_custom_call.1} parent=5 // pred_check
        _
      $region10: #{tpu_custom_call.1} parent=5 // pred_check_branch
        %213 = sbr.rel (%p210) target = $region12
      $region11: #{tpu_custom_call.1} parent=5 // pred_region
        %s214 = ssub.s32 %s22, 1
        // Predicated region
        $region13: #{tpu_custom_call.1} parent=11 // pred_check
          %p215 = pneg %p69
        $region14: #{tpu_custom_call.1} parent=11 // pred_check_branch
          %217 = sbr.rel (%p215) target = $region16
        $region15: #{tpu_custom_call.1} parent=11 // pred_region
          %s219 = ssub.s32 57344, 57344
          %220 = vsyncadd [#allocation6], %s219
          %s221 = sshll.u32 [#allocation5], 4
          %s222 = int_to_ptr.vmem [resolvable:$true] %s221
          %227 = dma.hbm_to_vmem [thread:$0]  %s1, 57344, %s222, [#allocation6], 512, 512, 32
        $region16: #{tpu_custom_call.1} parent=11 // pred_fallthru
          _
        // Predicated region
        $region17: #{tpu_custom_call.1} parent=11 // pred_check
          %p228 = pneg %p90
        $region18: #{tpu_custom_call.1} parent=11 // pred_check_branch
          %230 = sbr.rel (%p228) target = $region20
        $region19: #{tpu_custom_call.1} parent=11 // pred_region
          %s232 = ssub.s32 128, 128
          %233 = vsyncadd [#allocation6], %s232
          %s235 = sshll.u32 [#allocation7], 4
          %s236 = int_to_ptr.vmem [resolvable:$true] %s235
          %238 = dma.hbm_to_vmem [thread:$0]  %s2, 128, %s236, [#allocation6]
        $region20: #{tpu_custom_call.1} parent=11 // pred_fallthru
          _
        // Predicated region
        $region21: #{tpu_custom_call.1} parent=11 // pred_check
          %p239 = pneg %p111
        $region22: #{tpu_custom_call.1} parent=11 // pred_check_branch
          %241 = sbr.rel (%p239) target = $region24
        $region23: #{tpu_custom_call.1} parent=11 // pred_region
          %s243 = ssub.s32 65536, 65536
          %244 = vsyncadd [#allocation9], %s243
          %s245 = sshll.u32 [#allocation8], 4
          %s246 = int_to_ptr.vmem [resolvable:$true] %s245
          %251 = dma.hbm_to_vmem [thread:$0]  %s3, 65536, %s246, [#allocation9], 512, 512, 32
        $region24: #{tpu_custom_call.1} parent=11 // pred_fallthru
          _
        // Predicated region
        $region25: #{tpu_custom_call.1} parent=11 // pred_check
          %p252 = pneg %p132
        $region26: #{tpu_custom_call.1} parent=11 // pred_check_branch
          %254 = sbr.rel (%p252) target = $region28
        $region27: #{tpu_custom_call.1} parent=11 // pred_region
          %s256 = ssub.s32 128, 128
          %257 = vsyncadd [#allocation9], %s256
          %s259 = sshll.u32 [#allocation10], 4
          %s260 = int_to_ptr.vmem [resolvable:$true] %s259
          %262 = dma.hbm_to_vmem [thread:$0]  %s4, 128, %s260, [#allocation9]
        $region28: #{tpu_custom_call.1} parent=11 // pred_fallthru
          _
        // Predicated region
        $region29: #{tpu_custom_call.1} parent=11 // pred_check
          %p263 = pneg %p153
        $region30: #{tpu_custom_call.1} parent=11 // pred_check_branch
          %265 = sbr.rel (%p263) target = $region32
        $region31: #{tpu_custom_call.1} parent=11 // pred_region
          %s267 = ssub.s32 8192, 8192
          %268 = vsyncadd [#allocation12], %s267
          %s269 = sshll.u32 [#allocation11], 4
          %s270 = int_to_ptr.vmem [resolvable:$true] %s269
          %275 = dma.hbm_to_vmem [thread:$0]  %s5, 8192, %s270, [#allocation12], 64, 64, 4
        $region32: #{tpu_custom_call.1} parent=11 // pred_fallthru
          _
        // Predicated region
        $region33: #{tpu_custom_call.1} parent=11 // pred_check
          %p276 = pneg %p174
        $region34: #{tpu_custom_call.1} parent=11 // pred_check_branch
          %278 = sbr.rel (%p276) target = $region36
        $region35: #{tpu_custom_call.1} parent=11 // pred_region
          %s280 = ssub.s32 16, 16
          %281 = vsyncadd [#allocation12], %s280
          %s283 = sshll.u32 [#allocation13], 4
          %s284 = int_to_ptr.vmem [resolvable:$true] %s283
          %286 = dma.hbm_to_vmem [thread:$0]  %s6, 16, %s284, [#allocation12]
        $region36: #{tpu_custom_call.1} parent=11 // pred_fallthru
          _
      $region12: #{tpu_custom_call.1} parent=5 // pred_fallthru
        _
      %p287 = scmp.lt.s32.totalorder %s22, 2
      // Predicated region
      $region37: #{tpu_custom_call.1} parent=5 // pred_check
        %p288 = pneg %p287
      $region38: #{tpu_custom_call.1} parent=5 // pred_check_branch
        %290 = sbr.rel (%p288) target = $region40
      $region39: #{tpu_custom_call.1} parent=5 // pred_region
        // Predicated region
        $region41: #{tpu_custom_call.1} parent=39 // pred_check
          %p291 = pneg %p42
        $region42: #{tpu_custom_call.1} parent=39 // pred_check_branch
          %293 = sbr.rel (%p291) target = $region44
        $region43: #{tpu_custom_call.1} parent=39 // pred_region
          %s294 = sand.u32 %s32, 1
          %s295 = scalar_lea.sflag [#allocation3], %s294
          %s296 = sand.u32 %s32, 1
          %s297 = smul.addr %s296, 448
          %s298 = scalar_lea.vmem [#allocation2], %s297
          %s299 = smul.u32 16, %s22
          %s301 = ssub.s32 7168, 7168
          %302 = vsyncadd %s295, %s301
          %s303 = smul.addr %s299, 7
          %s304 = smul.addr %s303, 64
          %s305 = scalar_lea.hbm %s0, %s304
          %s306 = sshll.u32 %s298, 4
          %s307 = int_to_ptr.vmem [resolvable:$true] %s306
          %312 = dma.hbm_to_vmem [thread:$0]  %s305, 7168, %s307, %s295, 448, 448, 28
        $region44: #{tpu_custom_call.1} parent=39 // pred_fallthru
          _
      $region40: #{tpu_custom_call.1} parent=5 // pred_fallthru
        _
      %p313 = scmp.le.s32.totalorder 1, %s22
      %p314 = scmp.lt.s32.totalorder %s22, 3
      %p315 = pnand %p313, %p314
      %p316 = pneg %p315
      // Predicated region
      $region45: #{tpu_custom_call.1} parent=5 // pred_check
        _
      $region46: #{tpu_custom_call.1} parent=5 // pred_check_branch
        %318 = sbr.rel (%p315) target = $region48
      $region47: #{tpu_custom_call.1} parent=5 // pred_region
        %s319 = ssub.s32 %s22, 1
        %s320 = sand.u32 %s35, 1
        %s321 = scalar_lea.sflag [#allocation3], %s320
        %s322 = sand.u32 %s35, 1
        %s323 = smul.addr %s322, 448
        %s324 = scalar_lea.vmem [#allocation2], %s323
        // Predicated region
        $region49: #{tpu_custom_call.1} parent=47 // pred_check
          %p325 = pneg %p48
        $region50: #{tpu_custom_call.1} parent=47 // pred_check_branch
          %327 = sbr.rel (%p325) target = $region52
        $region51: #{tpu_custom_call.1} parent=47 // pred_region
          %328 = dma.done %s321, 7168
        $region52: #{tpu_custom_call.1} parent=47 // pred_fallthru
          _
        // Predicated region
        $region53: #{tpu_custom_call.1} parent=47 // pred_check
          %p329 = pneg %p69
        $region54: #{tpu_custom_call.1} parent=47 // pred_check_branch
          %331 = sbr.rel (%p329) target = $region56
        $region55: #{tpu_custom_call.1} parent=47 // pred_region
          %332 = dma.done [#allocation6], 57344
        $region56: #{tpu_custom_call.1} parent=47 // pred_fallthru
          _
        // Predicated region
        $region57: #{tpu_custom_call.1} parent=47 // pred_check
          %p333 = pneg %p90
        $region58: #{tpu_custom_call.1} parent=47 // pred_check_branch
          %335 = sbr.rel (%p333) target = $region60
        $region59: #{tpu_custom_call.1} parent=47 // pred_region
          %336 = dma.done [#allocation6], 128
        $region60: #{tpu_custom_call.1} parent=47 // pred_fallthru
          _
        // Predicated region
        $region61: #{tpu_custom_call.1} parent=47 // pred_check
          %p337 = pneg %p111
        $region62: #{tpu_custom_call.1} parent=47 // pred_check_branch
          %339 = sbr.rel (%p337) target = $region64
        $region63: #{tpu_custom_call.1} parent=47 // pred_region
          %340 = dma.done [#allocation9], 65536
        $region64: #{tpu_custom_call.1} parent=47 // pred_fallthru
          _
        // Predicated region
        $region65: #{tpu_custom_call.1} parent=47 // pred_check
          %p341 = pneg %p132
        $region66: #{tpu_custom_call.1} parent=47 // pred_check_branch
          %343 = sbr.rel (%p341) target = $region68
        $region67: #{tpu_custom_call.1} parent=47 // pred_region
          %344 = dma.done [#allocation9], 128
        $region68: #{tpu_custom_call.1} parent=47 // pred_fallthru
          _
        // Predicated region
        $region69: #{tpu_custom_call.1} parent=47 // pred_check
          %p345 = pneg %p153
        $region70: #{tpu_custom_call.1} parent=47 // pred_check_branch
          %347 = sbr.rel (%p345) target = $region72
        $region71: #{tpu_custom_call.1} parent=47 // pred_region
          %348 = dma.done [#allocation12], 8192
        $region72: #{tpu_custom_call.1} parent=47 // pred_fallthru
          _
        // Predicated region
        $region73: #{tpu_custom_call.1} parent=47 // pred_check
          %p349 = pneg %p174
        $region74: #{tpu_custom_call.1} parent=47 // pred_check_branch
          %351 = sbr.rel (%p349) target = $region76
        $region75: #{tpu_custom_call.1} parent=47 // pred_region
          %352 = dma.done [#allocation12], 16
        $region76: #{tpu_custom_call.1} parent=47 // pred_fallthru
          _
        %s353 = sand.u32 %s35, 1
        %s354 = scalar_lea.sflag [#allocation3], %s353
        %s355 = sand.u32 %s35, 1
        %s356 = smul.addr %s355, 448
        %s357 = scalar_lea.vmem [#allocation2], %s356
        %p358 = pneg %p48
        %p359 = pneg %p45
        %p360 = pneg %p69
        %p361 = pneg %p66
        %p362 = pneg %p90
        %p363 = pneg %p87
        %p364 = pneg %p111
        %p365 = pneg %p108
        %p366 = pneg %p132
        %p367 = pneg %p129
        %p368 = pneg %p153
        %p369 = pneg %p150
        %p370 = pneg %p174
        %p371 = pneg %p171
        %p372 = pneg %p200
        %p373 = pneg %p197
        %s374 = sand.u32 %s187, 1
        %s375 = scalar_lea.sflag [#allocation4], %s374
        %s376 = sand.u32 %s187, 1
        %s377 = smul.addr %s376, 128
        %s378 = scalar_lea.vmem [#allocation14], %s377
        %s379 = smul.u32 16, %s27
        %s380 = smul.u32 16, %s27
        %v382 = vld [vmem:[%s324] sm:$0xff]
        %v383 = vld [vmem:[%s324 + $0x8] sm:$0xff]
        %v384 = vld [vmem:[%s324 + $0x10] sm:$0xff]
        %v385 = vld [vmem:[%s324 + $0x18] sm:$0xf]
        %v386 = vld [vmem:[%s324 + $0x1c] sm:$0xff]
        %v387 = vld [vmem:[%s324 + $0x24] sm:$0xff]
        %v388 = vld [vmem:[%s324 + $0x2c] sm:$0xff]
        %v389 = vld [vmem:[%s324 + $0x34] sm:$0xf]
        %v390 = vld [vmem:[%s324 + $0x38] sm:$0xff]
        %v391 = vld [vmem:[%s324 + $0x40] sm:$0xff]
        %v392 = vld [vmem:[%s324 + $0x48] sm:$0xff]
        %v393 = vld [vmem:[%s324 + $0x50] sm:$0xf]
        %v394 = vld [vmem:[%s324 + $0x54] sm:$0xff]
        %v395 = vld [vmem:[%s324 + $0x5c] sm:$0xff]
        %v396 = vld [vmem:[%s324 + $0x64] sm:$0xff]
        %v397 = vld [vmem:[%s324 + $0x6c] sm:$0xf]
        %v398 = vld [vmem:[%s324 + $0x70] sm:$0xff]
        %v399 = vld [vmem:[%s324 + $0x78] sm:$0xff]
        %v400 = vld [vmem:[%s324 + $0x80] sm:$0xff]
        %v401 = vld [vmem:[%s324 + $0x88] sm:$0xf]
        %v402 = vld [vmem:[%s324 + $0x8c] sm:$0xff]
        %v403 = vld [vmem:[%s324 + $0x94] sm:$0xff]
        %v404 = vld [vmem:[%s324 + $0x9c] sm:$0xff]
        %v405 = vld [vmem:[%s324 + $0xa4] sm:$0xf]
        %v406 = vld [vmem:[%s324 + $0xa8] sm:$0xff]
        %v407 = vld [vmem:[%s324 + $0xb0] sm:$0xff]
        %v408 = vld [vmem:[%s324 + $0xb8] sm:$0xff]
        %v409 = vld [vmem:[%s324 + $0xc0] sm:$0xf]
        %v410 = vld [vmem:[%s324 + $0xc4] sm:$0xff]
        %v411 = vld [vmem:[%s324 + $0xcc] sm:$0xff]
        %v412 = vld [vmem:[%s324 + $0xd4] sm:$0xff]
        %v413 = vld [vmem:[%s324 + $0xdc] sm:$0xf]
        %v414 = vld [vmem:[%s324 + $0xe0] sm:$0xff]
        %v415 = vld [vmem:[%s324 + $0xe8] sm:$0xff]
        %v416 = vld [vmem:[%s324 + $0xf0] sm:$0xff]
        %v417 = vld [vmem:[%s324 + $0xf8] sm:$0xf]
        %v418 = vld [vmem:[%s324 + $0xfc] sm:$0xff]
        %v419 = vld [vmem:[%s324 + $0x104] sm:$0xff]
        %v420 = vld [vmem:[%s324 + $0x10c] sm:$0xff]
        %v421 = vld [vmem:[%s324 + $0x114] sm:$0xf]
        %v422 = vld [vmem:[%s324 + $0x118] sm:$0xff]
        %v423 = vld [vmem:[%s324 + $0x120] sm:$0xff]
        %v424 = vld [vmem:[%s324 + $0x128] sm:$0xff]
        %v425 = vld [vmem:[%s324 + $0x130] sm:$0xf]
        %v426 = vld [vmem:[%s324 + $0x134] sm:$0xff]
        %v427 = vld [vmem:[%s324 + $0x13c] sm:$0xff]
        %v428 = vld [vmem:[%s324 + $0x144] sm:$0xff]
        %v429 = vld [vmem:[%s324 + $0x14c] sm:$0xf]
        %v430 = vld [vmem:[%s324 + $0x150] sm:$0xff]
        %v431 = vld [vmem:[%s324 + $0x158] sm:$0xff]
        %v432 = vld [vmem:[%s324 + $0x160] sm:$0xff]
        %v433 = vld [vmem:[%s324 + $0x168] sm:$0xf]
        %v434 = vld [vmem:[%s324 + $0x16c] sm:$0xff]
        %v435 = vld [vmem:[%s324 + $0x174] sm:$0xff]
        %v436 = vld [vmem:[%s324 + $0x17c] sm:$0xff]
        %v437 = vld [vmem:[%s324 + $0x184] sm:$0xf]
        %v438 = vld [vmem:[%s324 + $0x188] sm:$0xff]
        %v439 = vld [vmem:[%s324 + $0x190] sm:$0xff]
        %v440 = vld [vmem:[%s324 + $0x198] sm:$0xff]
        %v441 = vld [vmem:[%s324 + $0x1a0] sm:$0xf]
        %v442 = vld [vmem:[%s324 + $0x1a4] sm:$0xff]
        %v443 = vld [vmem:[%s324 + $0x1ac] sm:$0xff]
        %v444 = vld [vmem:[%s324 + $0x1b4] sm:$0xff]
        %v445 = vld [vmem:[%s324 + $0x1bc] sm:$0xf]
        %v446 = vld [vmem:[#allocation5] sm:$0xff]
        %v447 = vld [vmem:[#allocation5 + $0x8] sm:$0xff]
        %v448 = vld [vmem:[#allocation5 + $0x10] sm:$0xff]
        %v449 = vld [vmem:[#allocation5 + $0x18] sm:$0xff]
        %v450 = vld [vmem:[#allocation5 + $0x20] sm:$0xff]
        %v451 = vld [vmem:[#allocation5 + $0x28] sm:$0xff]
        %v452 = vld [vmem:[#allocation5 + $0x30] sm:$0xff]
        %v453 = vld [vmem:[#allocation5 + $0x38] sm:$0xff]
        %v454 = vld [vmem:[#allocation5 + $0x40] sm:$0xff]
        %v455 = vld [vmem:[#allocation5 + $0x48] sm:$0xff]
        %v456 = vld [vmem:[#allocation5 + $0x50] sm:$0xff]
        %v457 = vld [vmem:[#allocation5 + $0x58] sm:$0xff]
        %v458 = vld [vmem:[#allocation5 + $0x60] sm:$0xff]
        %v459 = vld [vmem:[#allocation5 + $0x68] sm:$0xff]
        %v460 = vld [vmem:[#allocation5 + $0x70] sm:$0xff]
        %v461 = vld [vmem:[#allocation5 + $0x78] sm:$0xff]
        %v462 = vld [vmem:[#allocation5 + $0x80] sm:$0xff]
        %v463 = vld [vmem:[#allocation5 + $0x88] sm:$0xff]
        %v464 = vld [vmem:[#allocation5 + $0x90] sm:$0xff]
        %v465 = vld [vmem:[#allocation5 + $0x98] sm:$0xff]
        %v466 = vld [vmem:[#allocation5 + $0xa0] sm:$0xff]
        %v467 = vld [vmem:[#allocation5 + $0xa8] sm:$0xff]
        %v468 = vld [vmem:[#allocation5 + $0xb0] sm:$0xff]
        %v469 = vld [vmem:[#allocation5 + $0xb8] sm:$0xff]
        %v470 = vld [vmem:[#allocation5 + $0xc0] sm:$0xff]
        %v471 = vld [vmem:[#allocation5 + $0xc8] sm:$0xff]
        %v472 = vld [vmem:[#allocation5 + $0xd0] sm:$0xff]
        %v473 = vld [vmem:[#allocation5 + $0xd8] sm:$0xff]
        %v474 = vld [vmem:[#allocation5 + $0xe0] sm:$0xff]
        %v475 = vld [vmem:[#allocation5 + $0xe8] sm:$0xff]
        %v476 = vld [vmem:[#allocation5 + $0xf0] sm:$0xff]
        %v477 = vld [vmem:[#allocation5 + $0xf8] sm:$0xff]
        %v478 = vld [vmem:[#allocation5 + $0x100] sm:$0xff]
        %v479 = vld [vmem:[#allocation5 + $0x108] sm:$0xff]
        %v480 = vld [vmem:[#allocation5 + $0x110] sm:$0xff]
        %v481 = vld [vmem:[#allocation5 + $0x118] sm:$0xff]
        %v482 = vld [vmem:[#allocation5 + $0x120] sm:$0xff]
        %v483 = vld [vmem:[#allocation5 + $0x128] sm:$0xff]
        %v484 = vld [vmem:[#allocation5 + $0x130] sm:$0xff]
        %v485 = vld [vmem:[#allocation5 + $0x138] sm:$0xff]
        %v486 = vld [vmem:[#allocation5 + $0x140] sm:$0xff]
        %v487 = vld [vmem:[#allocation5 + $0x148] sm:$0xff]
        %v488 = vld [vmem:[#allocation5 + $0x150] sm:$0xff]
        %v489 = vld [vmem:[#allocation5 + $0x158] sm:$0xff]
        %v490 = vld [vmem:[#allocation5 + $0x160] sm:$0xff]
        %v491 = vld [vmem:[#allocation5 + $0x168] sm:$0xff]
        %v492 = vld [vmem:[#allocation5 + $0x170] sm:$0xff]
        %v493 = vld [vmem:[#allocation5 + $0x178] sm:$0xff]
        %v494 = vld [vmem:[#allocation5 + $0x180] sm:$0xff]
        %v495 = vld [vmem:[#allocation5 + $0x188] sm:$0xff]
        %v496 = vld [vmem:[#allocation5 + $0x190] sm:$0xff]
        %v497 = vld [vmem:[#allocation5 + $0x198] sm:$0xff]
        %v498 = vld [vmem:[#allocation5 + $0x1a0] sm:$0xff]
        %v499 = vld [vmem:[#allocation5 + $0x1a8] sm:$0xff]
        %v500 = vld [vmem:[#allocation5 + $0x1b0] sm:$0xff]
        %v501 = vld [vmem:[#allocation5 + $0x1b8] sm:$0xff]
        %v502 = vld [vmem:[#allocation5 + $0x1c0] sm:$0xff]
        %v503 = vld [vmem:[#allocation5 + $0x1c8] sm:$0xff]
        %v504 = vld [vmem:[#allocation5 + $0x1d0] sm:$0xff]
        %v505 = vld [vmem:[#allocation5 + $0x1d8] sm:$0xff]
        %v506 = vld [vmem:[#allocation5 + $0x1e0] sm:$0xff]
        %v507 = vld [vmem:[#allocation5 + $0x1e8] sm:$0xff]
        %v508 = vld [vmem:[#allocation5 + $0x1f0] sm:$0xff]
        %v509 = vld [vmem:[#allocation5 + $0x1f8] sm:$0xff]
        %v510 = vld [vmem:[#allocation5 + $0x200] sm:$0xff]
        %v511 = vld [vmem:[#allocation5 + $0x208] sm:$0xff]
        %v512 = vld [vmem:[#allocation5 + $0x210] sm:$0xff]
        %v513 = vld [vmem:[#allocation5 + $0x218] sm:$0xff]
        %v514 = vld [vmem:[#allocation5 + $0x220] sm:$0xff]
        %v515 = vld [vmem:[#allocation5 + $0x228] sm:$0xff]
        %v516 = vld [vmem:[#allocation5 + $0x230] sm:$0xff]
        %v517 = vld [vmem:[#allocation5 + $0x238] sm:$0xff]
        %v518 = vld [vmem:[#allocation5 + $0x240] sm:$0xff]
        %v519 = vld [vmem:[#allocation5 + $0x248] sm:$0xff]
        %v520 = vld [vmem:[#allocation5 + $0x250] sm:$0xff]
        %v521 = vld [vmem:[#allocation5 + $0x258] sm:$0xff]
        %v522 = vld [vmem:[#allocation5 + $0x260] sm:$0xff]
        %v523 = vld [vmem:[#allocation5 + $0x268] sm:$0xff]
        %v524 = vld [vmem:[#allocation5 + $0x270] sm:$0xff]
        %v525 = vld [vmem:[#allocation5 + $0x278] sm:$0xff]
        %v526 = vld [vmem:[#allocation5 + $0x280] sm:$0xff]
        %v527 = vld [vmem:[#allocation5 + $0x288] sm:$0xff]
        %v528 = vld [vmem:[#allocation5 + $0x290] sm:$0xff]
        %v529 = vld [vmem:[#allocation5 + $0x298] sm:$0xff]
        %v530 = vld [vmem:[#allocation5 + $0x2a0] sm:$0xff]
        %v531 = vld [vmem:[#allocation5 + $0x2a8] sm:$0xff]
        %v532 = vld [vmem:[#allocation5 + $0x2b0] sm:$0xff]
        %v533 = vld [vmem:[#allocation5 + $0x2b8] sm:$0xff]
        %v534 = vld [vmem:[#allocation5 + $0x2c0] sm:$0xff]
        %v535 = vld [vmem:[#allocation5 + $0x2c8] sm:$0xff]
        %v536 = vld [vmem:[#allocation5 + $0x2d0] sm:$0xff]
        %v537 = vld [vmem:[#allocation5 + $0x2d8] sm:$0xff]
        %v538 = vld [vmem:[#allocation5 + $0x2e0] sm:$0xff]
        %v539 = vld [vmem:[#allocation5 + $0x2e8] sm:$0xff]
        %v540 = vld [vmem:[#allocation5 + $0x2f0] sm:$0xff]
        %v541 = vld [vmem:[#allocation5 + $0x2f8] sm:$0xff]
        %v542 = vld [vmem:[#allocation5 + $0x300] sm:$0xff]
        %v543 = vld [vmem:[#allocation5 + $0x308] sm:$0xff]
        %v544 = vld [vmem:[#allocation5 + $0x310] sm:$0xff]
        %v545 = vld [vmem:[#allocation5 + $0x318] sm:$0xff]
        %v546 = vld [vmem:[#allocation5 + $0x320] sm:$0xff]
        %v547 = vld [vmem:[#allocation5 + $0x328] sm:$0xff]
        %v548 = vld [vmem:[#allocation5 + $0x330] sm:$0xff]
        %v549 = vld [vmem:[#allocation5 + $0x338] sm:$0xff]
        %v550 = vld [vmem:[#allocation5 + $0x340] sm:$0xff]
        %v551 = vld [vmem:[#allocation5 + $0x348] sm:$0xff]
        %v552 = vld [vmem:[#allocation5 + $0x350] sm:$0xff]
        %v553 = vld [vmem:[#allocation5 + $0x358] sm:$0xff]
        %v554 = vld [vmem:[#allocation5 + $0x360] sm:$0xff]
        %v555 = vld [vmem:[#allocation5 + $0x368] sm:$0xff]
        %v556 = vld [vmem:[#allocation5 + $0x370] sm:$0xff]
        %v557 = vld [vmem:[#allocation5 + $0x378] sm:$0xff]
        %v558 = vld [vmem:[#allocation5 + $0x380] sm:$0xff]
        %v559 = vld [vmem:[#allocation5 + $0x388] sm:$0xff]
        %v560 = vld [vmem:[#allocation5 + $0x390] sm:$0xff]
        %v561 = vld [vmem:[#allocation5 + $0x398] sm:$0xff]
        %v562 = vld [vmem:[#allocation5 + $0x3a0] sm:$0xff]
        %v563 = vld [vmem:[#allocation5 + $0x3a8] sm:$0xff]
        %v564 = vld [vmem:[#allocation5 + $0x3b0] sm:$0xff]
        %v565 = vld [vmem:[#allocation5 + $0x3b8] sm:$0xff]
        %v566 = vld [vmem:[#allocation5 + $0x3c0] sm:$0xff]
        %v567 = vld [vmem:[#allocation5 + $0x3c8] sm:$0xff]
        %v568 = vld [vmem:[#allocation5 + $0x3d0] sm:$0xff]
        %v569 = vld [vmem:[#allocation5 + $0x3d8] sm:$0xff]
        %v570 = vld [vmem:[#allocation5 + $0x3e0] sm:$0xff]
        %v571 = vld [vmem:[#allocation5 + $0x3e8] sm:$0xff]
        %v572 = vld [vmem:[#allocation5 + $0x3f0] sm:$0xff]
        %v573 = vld [vmem:[#allocation5 + $0x3f8] sm:$0xff]
        %v574 = vld [vmem:[#allocation5 + $0x400] sm:$0xff]
        %v575 = vld [vmem:[#allocation5 + $0x408] sm:$0xff]
        %v576 = vld [vmem:[#allocation5 + $0x410] sm:$0xff]
        %v577 = vld [vmem:[#allocation5 + $0x418] sm:$0xff]
        %v578 = vld [vmem:[#allocation5 + $0x420] sm:$0xff]
        %v579 = vld [vmem:[#allocation5 + $0x428] sm:$0xff]
        %v580 = vld [vmem:[#allocation5 + $0x430] sm:$0xff]
        %v581 = vld [vmem:[#allocation5 + $0x438] sm:$0xff]
        %v582 = vld [vmem:[#allocation5 + $0x440] sm:$0xff]
        %v583 = vld [vmem:[#allocation5 + $0x448] sm:$0xff]
        %v584 = vld [vmem:[#allocation5 + $0x450] sm:$0xff]
        %v585 = vld [vmem:[#allocation5 + $0x458] sm:$0xff]
        %v586 = vld [vmem:[#allocation5 + $0x460] sm:$0xff]
        %v587 = vld [vmem:[#allocation5 + $0x468] sm:$0xff]
        %v588 = vld [vmem:[#allocation5 + $0x470] sm:$0xff]
        %v589 = vld [vmem:[#allocation5 + $0x478] sm:$0xff]
        %v590 = vld [vmem:[#allocation5 + $0x480] sm:$0xff]
        %v591 = vld [vmem:[#allocation5 + $0x488] sm:$0xff]
        %v592 = vld [vmem:[#allocation5 + $0x490] sm:$0xff]
        %v593 = vld [vmem:[#allocation5 + $0x498] sm:$0xff]
        %v594 = vld [vmem:[#allocation5 + $0x4a0] sm:$0xff]
        %v595 = vld [vmem:[#allocation5 + $0x4a8] sm:$0xff]
        %v596 = vld [vmem:[#allocation5 + $0x4b0] sm:$0xff]
        %v597 = vld [vmem:[#allocation5 + $0x4b8] sm:$0xff]
        %v598 = vld [vmem:[#allocation5 + $0x4c0] sm:$0xff]
        %v599 = vld [vmem:[#allocation5 + $0x4c8] sm:$0xff]
        %v600 = vld [vmem:[#allocation5 + $0x4d0] sm:$0xff]
        %v601 = vld [vmem:[#allocation5 + $0x4d8] sm:$0xff]
        %v602 = vld [vmem:[#allocation5 + $0x4e0] sm:$0xff]
        %v603 = vld [vmem:[#allocation5 + $0x4e8] sm:$0xff]
        %v604 = vld [vmem:[#allocation5 + $0x4f0] sm:$0xff]
        %v605 = vld [vmem:[#allocation5 + $0x4f8] sm:$0xff]
        %v606 = vld [vmem:[#allocation5 + $0x500] sm:$0xff]
        %v607 = vld [vmem:[#allocation5 + $0x508] sm:$0xff]
        %v608 = vld [vmem:[#allocation5 + $0x510] sm:$0xff]
        %v609 = vld [vmem:[#allocation5 + $0x518] sm:$0xff]
        %v610 = vld [vmem:[#allocation5 + $0x520] sm:$0xff]
        %v611 = vld [vmem:[#allocation5 + $0x528] sm:$0xff]
        %v612 = vld [vmem:[#allocation5 + $0x530] sm:$0xff]
        %v613 = vld [vmem:[#allocation5 + $0x538] sm:$0xff]
        %v614 = vld [vmem:[#allocation5 + $0x540] sm:$0xff]
        %v615 = vld [vmem:[#allocation5 + $0x548] sm:$0xff]
        %v616 = vld [vmem:[#allocation5 + $0x550] sm:$0xff]
        %v617 = vld [vmem:[#allocation5 + $0x558] sm:$0xff]
        %v618 = vld [vmem:[#allocation5 + $0x560] sm:$0xff]
        %v619 = vld [vmem:[#allocation5 + $0x568] sm:$0xff]
        %v620 = vld [vmem:[#allocation5 + $0x570] sm:$0xff]
        %v621 = vld [vmem:[#allocation5 + $0x578] sm:$0xff]
        %v622 = vld [vmem:[#allocation5 + $0x580] sm:$0xff]
        %v623 = vld [vmem:[#allocation5 + $0x588] sm:$0xff]
        %v624 = vld [vmem:[#allocation5 + $0x590] sm:$0xff]
        %v625 = vld [vmem:[#allocation5 + $0x598] sm:$0xff]
        %v626 = vld [vmem:[#allocation5 + $0x5a0] sm:$0xff]
        %v627 = vld [vmem:[#allocation5 + $0x5a8] sm:$0xff]
        %v628 = vld [vmem:[#allocation5 + $0x5b0] sm:$0xff]
        %v629 = vld [vmem:[#allocation5 + $0x5b8] sm:$0xff]
        %v630 = vld [vmem:[#allocation5 + $0x5c0] sm:$0xff]
        %v631 = vld [vmem:[#allocation5 + $0x5c8] sm:$0xff]
        %v632 = vld [vmem:[#allocation5 + $0x5d0] sm:$0xff]
        %v633 = vld [vmem:[#allocation5 + $0x5d8] sm:$0xff]
        %v634 = vld [vmem:[#allocation5 + $0x5e0] sm:$0xff]
        %v635 = vld [vmem:[#allocation5 + $0x5e8] sm:$0xff]
        %v636 = vld [vmem:[#allocation5 + $0x5f0] sm:$0xff]
        %v637 = vld [vmem:[#allocation5 + $0x5f8] sm:$0xff]
        %v638 = vld [vmem:[#allocation5 + $0x600] sm:$0xff]
        %v639 = vld [vmem:[#allocation5 + $0x608] sm:$0xff]
        %v640 = vld [vmem:[#allocation5 + $0x610] sm:$0xff]
        %v641 = vld [vmem:[#allocation5 + $0x618] sm:$0xff]
        %v642 = vld [vmem:[#allocation5 + $0x620] sm:$0xff]
        %v643 = vld [vmem:[#allocation5 + $0x628] sm:$0xff]
        %v644 = vld [vmem:[#allocation5 + $0x630] sm:$0xff]
        %v645 = vld [vmem:[#allocation5 + $0x638] sm:$0xff]
        %v646 = vld [vmem:[#allocation5 + $0x640] sm:$0xff]
        %v647 = vld [vmem:[#allocation5 + $0x648] sm:$0xff]
        %v648 = vld [vmem:[#allocation5 + $0x650] sm:$0xff]
        %v649 = vld [vmem:[#allocation5 + $0x658] sm:$0xff]
        %v650 = vld [vmem:[#allocation5 + $0x660] sm:$0xff]
        %v651 = vld [vmem:[#allocation5 + $0x668] sm:$0xff]
        %v652 = vld [vmem:[#allocation5 + $0x670] sm:$0xff]
        %v653 = vld [vmem:[#allocation5 + $0x678] sm:$0xff]
        %v654 = vld [vmem:[#allocation5 + $0x680] sm:$0xff]
        %v655 = vld [vmem:[#allocation5 + $0x688] sm:$0xff]
        %v656 = vld [vmem:[#allocation5 + $0x690] sm:$0xff]
        %v657 = vld [vmem:[#allocation5 + $0x698] sm:$0xff]
        %v658 = vld [vmem:[#allocation5 + $0x6a0] sm:$0xff]
        %v659 = vld [vmem:[#allocation5 + $0x6a8] sm:$0xff]
        %v660 = vld [vmem:[#allocation5 + $0x6b0] sm:$0xff]
        %v661 = vld [vmem:[#allocation5 + $0x6b8] sm:$0xff]
        %v662 = vld [vmem:[#allocation5 + $0x6c0] sm:$0xff]
        %v663 = vld [vmem:[#allocation5 + $0x6c8] sm:$0xff]
        %v664 = vld [vmem:[#allocation5 + $0x6d0] sm:$0xff]
        %v665 = vld [vmem:[#allocation5 + $0x6d8] sm:$0xff]
        %v666 = vld [vmem:[#allocation5 + $0x6e0] sm:$0xff]
        %v667 = vld [vmem:[#allocation5 + $0x6e8] sm:$0xff]
        %v668 = vld [vmem:[#allocation5 + $0x6f0] sm:$0xff]
        %v669 = vld [vmem:[#allocation5 + $0x6f8] sm:$0xff]
        %v670 = vld [vmem:[#allocation5 + $0x700] sm:$0xff]
        %v671 = vld [vmem:[#allocation5 + $0x708] sm:$0xff]
        %v672 = vld [vmem:[#allocation5 + $0x710] sm:$0xff]
        %v673 = vld [vmem:[#allocation5 + $0x718] sm:$0xff]
        %v674 = vld [vmem:[#allocation5 + $0x720] sm:$0xff]
        %v675 = vld [vmem:[#allocation5 + $0x728] sm:$0xff]
        %v676 = vld [vmem:[#allocation5 + $0x730] sm:$0xff]
        %v677 = vld [vmem:[#allocation5 + $0x738] sm:$0xff]
        %v678 = vld [vmem:[#allocation5 + $0x740] sm:$0xff]
        %v679 = vld [vmem:[#allocation5 + $0x748] sm:$0xff]
        %v680 = vld [vmem:[#allocation5 + $0x750] sm:$0xff]
        %v681 = vld [vmem:[#allocation5 + $0x758] sm:$0xff]
        %v682 = vld [vmem:[#allocation5 + $0x760] sm:$0xff]
        %v683 = vld [vmem:[#allocation5 + $0x768] sm:$0xff]
        %v684 = vld [vmem:[#allocation5 + $0x770] sm:$0xff]
        %v685 = vld [vmem:[#allocation5 + $0x778] sm:$0xff]
        %v686 = vld [vmem:[#allocation5 + $0x780] sm:$0xff]
        %v687 = vld [vmem:[#allocation5 + $0x788] sm:$0xff]
        %v688 = vld [vmem:[#allocation5 + $0x790] sm:$0xff]
        %v689 = vld [vmem:[#allocation5 + $0x798] sm:$0xff]
        %v690 = vld [vmem:[#allocation5 + $0x7a0] sm:$0xff]
        %v691 = vld [vmem:[#allocation5 + $0x7a8] sm:$0xff]
        %v692 = vld [vmem:[#allocation5 + $0x7b0] sm:$0xff]
        %v693 = vld [vmem:[#allocation5 + $0x7b8] sm:$0xff]
        %v694 = vld [vmem:[#allocation5 + $0x7c0] sm:$0xff]
        %v695 = vld [vmem:[#allocation5 + $0x7c8] sm:$0xff]
        %v696 = vld [vmem:[#allocation5 + $0x7d0] sm:$0xff]
        %v697 = vld [vmem:[#allocation5 + $0x7d8] sm:$0xff]
        %v698 = vld [vmem:[#allocation5 + $0x7e0] sm:$0xff]
        %v699 = vld [vmem:[#allocation5 + $0x7e8] sm:$0xff]
        %v700 = vld [vmem:[#allocation5 + $0x7f0] sm:$0xff]
        %v701 = vld [vmem:[#allocation5 + $0x7f8] sm:$0xff]
        %v702 = vld [vmem:[#allocation5 + $0x800] sm:$0xff]
        %v703 = vld [vmem:[#allocation5 + $0x808] sm:$0xff]
        %v704 = vld [vmem:[#allocation5 + $0x810] sm:$0xff]
        %v705 = vld [vmem:[#allocation5 + $0x818] sm:$0xff]
        %v706 = vld [vmem:[#allocation5 + $0x820] sm:$0xff]
        %v707 = vld [vmem:[#allocation5 + $0x828] sm:$0xff]
        %v708 = vld [vmem:[#allocation5 + $0x830] sm:$0xff]
        %v709 = vld [vmem:[#allocation5 + $0x838] sm:$0xff]
        %v710 = vld [vmem:[#allocation5 + $0x840] sm:$0xff]
        %v711 = vld [vmem:[#allocation5 + $0x848] sm:$0xff]
        %v712 = vld [vmem:[#allocation5 + $0x850] sm:$0xff]
        %v713 = vld [vmem:[#allocation5 + $0x858] sm:$0xff]
        %v714 = vld [vmem:[#allocation5 + $0x860] sm:$0xff]
        %v715 = vld [vmem:[#allocation5 + $0x868] sm:$0xff]
        %v716 = vld [vmem:[#allocation5 + $0x870] sm:$0xff]
        %v717 = vld [vmem:[#allocation5 + $0x878] sm:$0xff]
        %v718 = vld [vmem:[#allocation5 + $0x880] sm:$0xff]
        %v719 = vld [vmem:[#allocation5 + $0x888] sm:$0xff]
        %v720 = vld [vmem:[#allocation5 + $0x890] sm:$0xff]
        %v721 = vld [vmem:[#allocation5 + $0x898] sm:$0xff]
        %v722 = vld [vmem:[#allocation5 + $0x8a0] sm:$0xff]
        %v723 = vld [vmem:[#allocation5 + $0x8a8] sm:$0xff]
        %v724 = vld [vmem:[#allocation5 + $0x8b0] sm:$0xff]
        %v725 = vld [vmem:[#allocation5 + $0x8b8] sm:$0xff]
        %v726 = vld [vmem:[#allocation5 + $0x8c0] sm:$0xff]
        %v727 = vld [vmem:[#allocation5 + $0x8c8] sm:$0xff]
        %v728 = vld [vmem:[#allocation5 + $0x8d0] sm:$0xff]
        %v729 = vld [vmem:[#allocation5 + $0x8d8] sm:$0xff]
        %v730 = vld [vmem:[#allocation5 + $0x8e0] sm:$0xff]
        %v731 = vld [vmem:[#allocation5 + $0x8e8] sm:$0xff]
        %v732 = vld [vmem:[#allocation5 + $0x8f0] sm:$0xff]
        %v733 = vld [vmem:[#allocation5 + $0x8f8] sm:$0xff]
        %v734 = vld [vmem:[#allocation5 + $0x900] sm:$0xff]
        %v735 = vld [vmem:[#allocation5 + $0x908] sm:$0xff]
        %v736 = vld [vmem:[#allocation5 + $0x910] sm:$0xff]
        %v737 = vld [vmem:[#allocation5 + $0x918] sm:$0xff]
        %v738 = vld [vmem:[#allocation5 + $0x920] sm:$0xff]
        %v739 = vld [vmem:[#allocation5 + $0x928] sm:$0xff]
        %v740 = vld [vmem:[#allocation5 + $0x930] sm:$0xff]
        %v741 = vld [vmem:[#allocation5 + $0x938] sm:$0xff]
        %v742 = vld [vmem:[#allocation5 + $0x940] sm:$0xff]
        %v743 = vld [vmem:[#allocation5 + $0x948] sm:$0xff]
        %v744 = vld [vmem:[#allocation5 + $0x950] sm:$0xff]
        %v745 = vld [vmem:[#allocation5 + $0x958] sm:$0xff]
        %v746 = vld [vmem:[#allocation5 + $0x960] sm:$0xff]
        %v747 = vld [vmem:[#allocation5 + $0x968] sm:$0xff]
        %v748 = vld [vmem:[#allocation5 + $0x970] sm:$0xff]
        %v749 = vld [vmem:[#allocation5 + $0x978] sm:$0xff]
        %v750 = vld [vmem:[#allocation5 + $0x980] sm:$0xff]
        %v751 = vld [vmem:[#allocation5 + $0x988] sm:$0xff]
        %v752 = vld [vmem:[#allocation5 + $0x990] sm:$0xff]
        %v753 = vld [vmem:[#allocation5 + $0x998] sm:$0xff]
        %v754 = vld [vmem:[#allocation5 + $0x9a0] sm:$0xff]
        %v755 = vld [vmem:[#allocation5 + $0x9a8] sm:$0xff]
        %v756 = vld [vmem:[#allocation5 + $0x9b0] sm:$0xff]
        %v757 = vld [vmem:[#allocation5 + $0x9b8] sm:$0xff]
        %v758 = vld [vmem:[#allocation5 + $0x9c0] sm:$0xff]
        %v759 = vld [vmem:[#allocation5 + $0x9c8] sm:$0xff]
        %v760 = vld [vmem:[#allocation5 + $0x9d0] sm:$0xff]
        %v761 = vld [vmem:[#allocation5 + $0x9d8] sm:$0xff]
        %v762 = vld [vmem:[#allocation5 + $0x9e0] sm:$0xff]
        %v763 = vld [vmem:[#allocation5 + $0x9e8] sm:$0xff]
        %v764 = vld [vmem:[#allocation5 + $0x9f0] sm:$0xff]
        %v765 = vld [vmem:[#allocation5 + $0x9f8] sm:$0xff]
        %v766 = vld [vmem:[#allocation5 + $0xa00] sm:$0xff]
        %v767 = vld [vmem:[#allocation5 + $0xa08] sm:$0xff]
        %v768 = vld [vmem:[#allocation5 + $0xa10] sm:$0xff]
        %v769 = vld [vmem:[#allocation5 + $0xa18] sm:$0xff]
        %v770 = vld [vmem:[#allocation5 + $0xa20] sm:$0xff]
        %v771 = vld [vmem:[#allocation5 + $0xa28] sm:$0xff]
        %v772 = vld [vmem:[#allocation5 + $0xa30] sm:$0xff]
        %v773 = vld [vmem:[#allocation5 + $0xa38] sm:$0xff]
        %v774 = vld [vmem:[#allocation5 + $0xa40] sm:$0xff]
        %v775 = vld [vmem:[#allocation5 + $0xa48] sm:$0xff]
        %v776 = vld [vmem:[#allocation5 + $0xa50] sm:$0xff]
        %v777 = vld [vmem:[#allocation5 + $0xa58] sm:$0xff]
        %v778 = vld [vmem:[#allocation5 + $0xa60] sm:$0xff]
        %v779 = vld [vmem:[#allocation5 + $0xa68] sm:$0xff]
        %v780 = vld [vmem:[#allocation5 + $0xa70] sm:$0xff]
        %v781 = vld [vmem:[#allocation5 + $0xa78] sm:$0xff]
        %v782 = vld [vmem:[#allocation5 + $0xa80] sm:$0xff]
        %v783 = vld [vmem:[#allocation5 + $0xa88] sm:$0xff]
        %v784 = vld [vmem:[#allocation5 + $0xa90] sm:$0xff]
        %v785 = vld [vmem:[#allocation5 + $0xa98] sm:$0xff]
        %v786 = vld [vmem:[#allocation5 + $0xaa0] sm:$0xff]
        %v787 = vld [vmem:[#allocation5 + $0xaa8] sm:$0xff]
        %v788 = vld [vmem:[#allocation5 + $0xab0] sm:$0xff]
        %v789 = vld [vmem:[#allocation5 + $0xab8] sm:$0xff]
        %v790 = vld [vmem:[#allocation5 + $0xac0] sm:$0xff]
        %v791 = vld [vmem:[#allocation5 + $0xac8] sm:$0xff]
        %v792 = vld [vmem:[#allocation5 + $0xad0] sm:$0xff]
        %v793 = vld [vmem:[#allocation5 + $0xad8] sm:$0xff]
        %v794 = vld [vmem:[#allocation5 + $0xae0] sm:$0xff]
        %v795 = vld [vmem:[#allocation5 + $0xae8] sm:$0xff]
        %v796 = vld [vmem:[#allocation5 + $0xaf0] sm:$0xff]
        %v797 = vld [vmem:[#allocation5 + $0xaf8] sm:$0xff]
        %v798 = vld [vmem:[#allocation5 + $0xb00] sm:$0xff]
        %v799 = vld [vmem:[#allocation5 + $0xb08] sm:$0xff]
        %v800 = vld [vmem:[#allocation5 + $0xb10] sm:$0xff]
        %v801 = vld [vmem:[#allocation5 + $0xb18] sm:$0xff]
        %v802 = vld [vmem:[#allocation5 + $0xb20] sm:$0xff]
        %v803 = vld [vmem:[#allocation5 + $0xb28] sm:$0xff]
        %v804 = vld [vmem:[#allocation5 + $0xb30] sm:$0xff]
        %v805 = vld [vmem:[#allocation5 + $0xb38] sm:$0xff]
        %v806 = vld [vmem:[#allocation5 + $0xb40] sm:$0xff]
        %v807 = vld [vmem:[#allocation5 + $0xb48] sm:$0xff]
        %v808 = vld [vmem:[#allocation5 + $0xb50] sm:$0xff]
        %v809 = vld [vmem:[#allocation5 + $0xb58] sm:$0xff]
        %v810 = vld [vmem:[#allocation5 + $0xb60] sm:$0xff]
        %v811 = vld [vmem:[#allocation5 + $0xb68] sm:$0xff]
        %v812 = vld [vmem:[#allocation5 + $0xb70] sm:$0xff]
        %v813 = vld [vmem:[#allocation5 + $0xb78] sm:$0xff]
        %v814 = vld [vmem:[#allocation5 + $0xb80] sm:$0xff]
        %v815 = vld [vmem:[#allocation5 + $0xb88] sm:$0xff]
        %v816 = vld [vmem:[#allocation5 + $0xb90] sm:$0xff]
        %v817 = vld [vmem:[#allocation5 + $0xb98] sm:$0xff]
        %v818 = vld [vmem:[#allocation5 + $0xba0] sm:$0xff]
        %v819 = vld [vmem:[#allocation5 + $0xba8] sm:$0xff]
        %v820 = vld [vmem:[#allocation5 + $0xbb0] sm:$0xff]
        %v821 = vld [vmem:[#allocation5 + $0xbb8] sm:$0xff]
        %v822 = vld [vmem:[#allocation5 + $0xbc0] sm:$0xff]
        %v823 = vld [vmem:[#allocation5 + $0xbc8] sm:$0xff]
        %v824 = vld [vmem:[#allocation5 + $0xbd0] sm:$0xff]
        %v825 = vld [vmem:[#allocation5 + $0xbd8] sm:$0xff]
        %v826 = vld [vmem:[#allocation5 + $0xbe0] sm:$0xff]
        %v827 = vld [vmem:[#allocation5 + $0xbe8] sm:$0xff]
        %v828 = vld [vmem:[#allocation5 + $0xbf0] sm:$0xff]
        %v829 = vld [vmem:[#allocation5 + $0xbf8] sm:$0xff]
        %v830 = vld [vmem:[#allocation5 + $0xc00] sm:$0xff]
        %v831 = vld [vmem:[#allocation5 + $0xc08] sm:$0xff]
        %v832 = vld [vmem:[#allocation5 + $0xc10] sm:$0xff]
        %v833 = vld [vmem:[#allocation5 + $0xc18] sm:$0xff]
        %v834 = vld [vmem:[#allocation5 + $0xc20] sm:$0xff]
        %v835 = vld [vmem:[#allocation5 + $0xc28] sm:$0xff]
        %v836 = vld [vmem:[#allocation5 + $0xc30] sm:$0xff]
        %v837 = vld [vmem:[#allocation5 + $0xc38] sm:$0xff]
        %v838 = vld [vmem:[#allocation5 + $0xc40] sm:$0xff]
        %v839 = vld [vmem:[#allocation5 + $0xc48] sm:$0xff]
        %v840 = vld [vmem:[#allocation5 + $0xc50] sm:$0xff]
        %v841 = vld [vmem:[#allocation5 + $0xc58] sm:$0xff]
        %v842 = vld [vmem:[#allocation5 + $0xc60] sm:$0xff]
        %v843 = vld [vmem:[#allocation5 + $0xc68] sm:$0xff]
        %v844 = vld [vmem:[#allocation5 + $0xc70] sm:$0xff]
        %v845 = vld [vmem:[#allocation5 + $0xc78] sm:$0xff]
        %v846 = vld [vmem:[#allocation5 + $0xc80] sm:$0xff]
        %v847 = vld [vmem:[#allocation5 + $0xc88] sm:$0xff]
        %v848 = vld [vmem:[#allocation5 + $0xc90] sm:$0xff]
        %v849 = vld [vmem:[#allocation5 + $0xc98] sm:$0xff]
        %v850 = vld [vmem:[#allocation5 + $0xca0] sm:$0xff]
        %v851 = vld [vmem:[#allocation5 + $0xca8] sm:$0xff]
        %v852 = vld [vmem:[#allocation5 + $0xcb0] sm:$0xff]
        %v853 = vld [vmem:[#allocation5 + $0xcb8] sm:$0xff]
        %v854 = vld [vmem:[#allocation5 + $0xcc0] sm:$0xff]
        %v855 = vld [vmem:[#allocation5 + $0xcc8] sm:$0xff]
        %v856 = vld [vmem:[#allocation5 + $0xcd0] sm:$0xff]
        %v857 = vld [vmem:[#allocation5 + $0xcd8] sm:$0xff]
        %v858 = vld [vmem:[#allocation5 + $0xce0] sm:$0xff]
        %v859 = vld [vmem:[#allocation5 + $0xce8] sm:$0xff]
        %v860 = vld [vmem:[#allocation5 + $0xcf0] sm:$0xff]
        %v861 = vld [vmem:[#allocation5 + $0xcf8] sm:$0xff]
        %v862 = vld [vmem:[#allocation5 + $0xd00] sm:$0xff]
        %v863 = vld [vmem:[#allocation5 + $0xd08] sm:$0xff]
        %v864 = vld [vmem:[#allocation5 + $0xd10] sm:$0xff]
        %v865 = vld [vmem:[#allocation5 + $0xd18] sm:$0xff]
        %v866 = vld [vmem:[#allocation5 + $0xd20] sm:$0xff]
        %v867 = vld [vmem:[#allocation5 + $0xd28] sm:$0xff]
        %v868 = vld [vmem:[#allocation5 + $0xd30] sm:$0xff]
        %v869 = vld [vmem:[#allocation5 + $0xd38] sm:$0xff]
        %v870 = vld [vmem:[#allocation5 + $0xd40] sm:$0xff]
        %v871 = vld [vmem:[#allocation5 + $0xd48] sm:$0xff]
        %v872 = vld [vmem:[#allocation5 + $0xd50] sm:$0xff]
        %v873 = vld [vmem:[#allocation5 + $0xd58] sm:$0xff]
        %v874 = vld [vmem:[#allocation5 + $0xd60] sm:$0xff]
        %v875 = vld [vmem:[#allocation5 + $0xd68] sm:$0xff]
        %v876 = vld [vmem:[#allocation5 + $0xd70] sm:$0xff]
        %v877 = vld [vmem:[#allocation5 + $0xd78] sm:$0xff]
        %v878 = vld [vmem:[#allocation5 + $0xd80] sm:$0xff]
        %v879 = vld [vmem:[#allocation5 + $0xd88] sm:$0xff]
        %v880 = vld [vmem:[#allocation5 + $0xd90] sm:$0xff]
        %v881 = vld [vmem:[#allocation5 + $0xd98] sm:$0xff]
        %v882 = vld [vmem:[#allocation5 + $0xda0] sm:$0xff]
        %v883 = vld [vmem:[#allocation5 + $0xda8] sm:$0xff]
        %v884 = vld [vmem:[#allocation5 + $0xdb0] sm:$0xff]
        %v885 = vld [vmem:[#allocation5 + $0xdb8] sm:$0xff]
        %v886 = vld [vmem:[#allocation5 + $0xdc0] sm:$0xff]
        %v887 = vld [vmem:[#allocation5 + $0xdc8] sm:$0xff]
        %v888 = vld [vmem:[#allocation5 + $0xdd0] sm:$0xff]
        %v889 = vld [vmem:[#allocation5 + $0xdd8] sm:$0xff]
        %v890 = vld [vmem:[#allocation5 + $0xde0] sm:$0xff]
        %v891 = vld [vmem:[#allocation5 + $0xde8] sm:$0xff]
        %v892 = vld [vmem:[#allocation5 + $0xdf0] sm:$0xff]
        %v893 = vld [vmem:[#allocation5 + $0xdf8] sm:$0xff]
        %v894 = vld [vmem:[#allocation7] sm:$0xff]
        %v896 = vlaneseq
        %v897 = vshrl.u32 %v896, 7
        %v898 = vsub.s32 0, %v897
        %v899 = vrot.slane %v894, %v898
        %v900 = vlaneseq
        %v901 = vshrl.u32 %v900, 7
        %v902 = vsub.s32 1, %v901
        %v903 = vrot.slane %v894, %v902
        %v904 = vlaneseq
        %v905 = vshrl.u32 %v904, 7
        %v906 = vsub.s32 2, %v905
        %v907 = vrot.slane %v894, %v906
        %v908 = vlaneseq
        %v909 = vshrl.u32 %v908, 7
        %v910 = vsub.s32 3, %v909
        %v911 = vrot.slane %v894, %v910
        %v912 = vlaneseq
        %v913 = vshrl.u32 %v912, 7
        %v914 = vsub.s32 4, %v913
        %v915 = vrot.slane %v894, %v914
        %v916 = vlaneseq
        %v917 = vshrl.u32 %v916, 7
        %v918 = vsub.s32 5, %v917
        %v919 = vrot.slane %v894, %v918
        %v920 = vlaneseq
        %v921 = vshrl.u32 %v920, 7
        %v922 = vsub.s32 6, %v921
        %v923 = vrot.slane %v894, %v922
        %v924 = vlaneseq
        %v925 = vshrl.u32 %v924, 7
        %v926 = vsub.s32 7, %v925
        %v927 = vrot.slane %v894, %v926
        %v1000 = vunpack.c.l.b16 %v382
        %v1001 = vunpack.c.h.b16 %v382
        %v1002 = vunpack.c.l.b16 %v383
        %v1003 = vunpack.c.h.b16 %v383
        %v1004 = vunpack.c.l.b16 %v384
        %v1005 = vunpack.c.h.b16 %v384
        %v1006 = vunpack.c.l.b16 %v385
        %v1007 = vunpack.c.l.b16 %v386
        %v1008 = vunpack.c.h.b16 %v386
        %v1009 = vunpack.c.l.b16 %v387
        %v1010 = vunpack.c.h.b16 %v387
        %v1011 = vunpack.c.l.b16 %v388
        %v1012 = vunpack.c.h.b16 %v388
        %v1013 = vunpack.c.l.b16 %v389
        %v1014 = vunpack.c.l.b16 %v390
        %v1015 = vunpack.c.h.b16 %v390
        %v1016 = vunpack.c.l.b16 %v391
        %v1017 = vunpack.c.h.b16 %v391
        %v1018 = vunpack.c.l.b16 %v392
        %v1019 = vunpack.c.h.b16 %v392
        %v1020 = vunpack.c.l.b16 %v393
        %v1021 = vunpack.c.l.b16 %v394
        %v1022 = vunpack.c.h.b16 %v394
        %v1023 = vunpack.c.l.b16 %v395
        %v1024 = vunpack.c.h.b16 %v395
        %v1025 = vunpack.c.l.b16 %v396
        %v1026 = vunpack.c.h.b16 %v396
        %v1027 = vunpack.c.l.b16 %v397
        %v1028 = vunpack.c.l.b16 %v398
        %v1029 = vunpack.c.h.b16 %v398
        %v1030 = vunpack.c.l.b16 %v399
        %v1031 = vunpack.c.h.b16 %v399
        %v1032 = vunpack.c.l.b16 %v400
        %v1033 = vunpack.c.h.b16 %v400
        %v1034 = vunpack.c.l.b16 %v401
        %v1035 = vunpack.c.l.b16 %v402
        %v1036 = vunpack.c.h.b16 %v402
        %v1037 = vunpack.c.l.b16 %v403
        %v1038 = vunpack.c.h.b16 %v403
        %v1039 = vunpack.c.l.b16 %v404
        %v1040 = vunpack.c.h.b16 %v404
        %v1041 = vunpack.c.l.b16 %v405
        %v1042 = vunpack.c.l.b16 %v406
        %v1043 = vunpack.c.h.b16 %v406
        %v1044 = vunpack.c.l.b16 %v407
        %v1045 = vunpack.c.h.b16 %v407
        %v1046 = vunpack.c.l.b16 %v408
        %v1047 = vunpack.c.h.b16 %v408
        %v1048 = vunpack.c.l.b16 %v409
        %v1049 = vunpack.c.l.b16 %v410
        %v1050 = vunpack.c.h.b16 %v410
        %v1051 = vunpack.c.l.b16 %v411
        %v1052 = vunpack.c.h.b16 %v411
        %v1053 = vunpack.c.l.b16 %v412
        %v1054 = vunpack.c.h.b16 %v412
        %v1055 = vunpack.c.l.b16 %v413
        %v1056 = vunpack.c.l.b16 %v414
        %v1057 = vunpack.c.h.b16 %v414
        %v1058 = vunpack.c.l.b16 %v415
        %v1059 = vunpack.c.h.b16 %v415
        %v1060 = vunpack.c.l.b16 %v416
        %v1061 = vunpack.c.h.b16 %v416
        %v1062 = vunpack.c.l.b16 %v417
        %v1063 = vunpack.c.l.b16 %v418
        %v1064 = vunpack.c.h.b16 %v418
        %v1065 = vunpack.c.l.b16 %v419
        %v1066 = vunpack.c.h.b16 %v419
        %v1067 = vunpack.c.l.b16 %v420
        %v1068 = vunpack.c.h.b16 %v420
        %v1069 = vunpack.c.l.b16 %v421
        %v1070 = vunpack.c.l.b16 %v422
        %v1071 = vunpack.c.h.b16 %v422
        %v1072 = vunpack.c.l.b16 %v423
        %v1073 = vunpack.c.h.b16 %v423
        %v1074 = vunpack.c.l.b16 %v424
        %v1075 = vunpack.c.h.b16 %v424
        %v1076 = vunpack.c.l.b16 %v425
        %v1077 = vunpack.c.l.b16 %v426
        %v1078 = vunpack.c.h.b16 %v426
        %v1079 = vunpack.c.l.b16 %v427
        %v1080 = vunpack.c.h.b16 %v427
        %v1081 = vunpack.c.l.b16 %v428
        %v1082 = vunpack.c.h.b16 %v428
        %v1083 = vunpack.c.l.b16 %v429
        %v1084 = vunpack.c.l.b16 %v430
        %v1085 = vunpack.c.h.b16 %v430
        %v1086 = vunpack.c.l.b16 %v431
        %v1087 = vunpack.c.h.b16 %v431
        %v1088 = vunpack.c.l.b16 %v432
        %v1089 = vunpack.c.h.b16 %v432
        %v1090 = vunpack.c.l.b16 %v433
        %v1091 = vunpack.c.l.b16 %v434
        %v1092 = vunpack.c.h.b16 %v434
        %v1093 = vunpack.c.l.b16 %v435
        %v1094 = vunpack.c.h.b16 %v435
        %v1095 = vunpack.c.l.b16 %v436
        %v1096 = vunpack.c.h.b16 %v436
        %v1097 = vunpack.c.l.b16 %v437
        %v1098 = vunpack.c.l.b16 %v438
        %v1099 = vunpack.c.h.b16 %v438
        %v1100 = vunpack.c.l.b16 %v439
        %v1101 = vunpack.c.h.b16 %v439
        %v1102 = vunpack.c.l.b16 %v440
        %v1103 = vunpack.c.h.b16 %v440
        %v1104 = vunpack.c.l.b16 %v441
        %v1105 = vunpack.c.l.b16 %v442
        %v1106 = vunpack.c.h.b16 %v442
        %v1107 = vunpack.c.l.b16 %v443
        %v1108 = vunpack.c.h.b16 %v443
        %v1109 = vunpack.c.l.b16 %v444
        %v1110 = vunpack.c.h.b16 %v444
        %v1111 = vunpack.c.l.b16 %v445
        %v1112 = vpack.c.b16 %v1007, %v1000
        %v1113 = vpack.c.b16 %v1008, %v1001
        %v1114 = vpack.c.b16 %v1009, %v1002
        %v1115 = vpack.c.b16 %v1010, %v1003
        %v1116 = vpack.c.b16 %v1011, %v1004
        %v1117 = vpack.c.b16 %v1012, %v1005
        %v1118 = vpack.c.b16 %v1013, %v1006
        %v1119 = vpack.c.b16 %v1021, %v1014
        %v1120 = vpack.c.b16 %v1022, %v1015
        %v1121 = vpack.c.b16 %v1023, %v1016
        %v1122 = vpack.c.b16 %v1024, %v1017
        %v1123 = vpack.c.b16 %v1025, %v1018
        %v1124 = vpack.c.b16 %v1026, %v1019
        %v1125 = vpack.c.b16 %v1027, %v1020
        %v1126 = vpack.c.b16 %v1035, %v1028
        %v1127 = vpack.c.b16 %v1036, %v1029
        %v1128 = vpack.c.b16 %v1037, %v1030
        %v1129 = vpack.c.b16 %v1038, %v1031
        %v1130 = vpack.c.b16 %v1039, %v1032
        %v1131 = vpack.c.b16 %v1040, %v1033
        %v1132 = vpack.c.b16 %v1041, %v1034
        %v1133 = vpack.c.b16 %v1049, %v1042
        %v1134 = vpack.c.b16 %v1050, %v1043
        %v1135 = vpack.c.b16 %v1051, %v1044
        %v1136 = vpack.c.b16 %v1052, %v1045
        %v1137 = vpack.c.b16 %v1053, %v1046
        %v1138 = vpack.c.b16 %v1054, %v1047
        %v1139 = vpack.c.b16 %v1055, %v1048
        %v1140 = vpack.c.b16 %v1063, %v1056
        %v1141 = vpack.c.b16 %v1064, %v1057
        %v1142 = vpack.c.b16 %v1065, %v1058
        %v1143 = vpack.c.b16 %v1066, %v1059
        %v1144 = vpack.c.b16 %v1067, %v1060
        %v1145 = vpack.c.b16 %v1068, %v1061
        %v1146 = vpack.c.b16 %v1069, %v1062
        %v1147 = vpack.c.b16 %v1077, %v1070
        %v1148 = vpack.c.b16 %v1078, %v1071
        %v1149 = vpack.c.b16 %v1079, %v1072
        %v1150 = vpack.c.b16 %v1080, %v1073
        %v1151 = vpack.c.b16 %v1081, %v1074
        %v1152 = vpack.c.b16 %v1082, %v1075
        %v1153 = vpack.c.b16 %v1083, %v1076
        %v1154 = vpack.c.b16 %v1091, %v1084
        %v1155 = vpack.c.b16 %v1092, %v1085
        %v1156 = vpack.c.b16 %v1093, %v1086
        %v1157 = vpack.c.b16 %v1094, %v1087
        %v1158 = vpack.c.b16 %v1095, %v1088
        %v1159 = vpack.c.b16 %v1096, %v1089
        %v1160 = vpack.c.b16 %v1097, %v1090
        %v1161 = vpack.c.b16 %v1105, %v1098
        %v1162 = vpack.c.b16 %v1106, %v1099
        %v1163 = vpack.c.b16 %v1107, %v1100
        %v1164 = vpack.c.b16 %v1108, %v1101
        %v1165 = vpack.c.b16 %v1109, %v1102
        %v1166 = vpack.c.b16 %v1110, %v1103
        %v1167 = vpack.c.b16 %v1111, %v1104
        %v1672 = vunpack.c.l.b16 %v446
        %v1673 = vunpack.c.h.b16 %v446
        %v1674 = vunpack.c.l.b16 %v447
        %v1675 = vunpack.c.h.b16 %v447
        %v1676 = vunpack.c.l.b16 %v448
        %v1677 = vunpack.c.h.b16 %v448
        %v1678 = vunpack.c.l.b16 %v449
        %v1679 = vunpack.c.h.b16 %v449
        %v1680 = vunpack.c.l.b16 %v450
        %v1681 = vunpack.c.h.b16 %v450
        %v1682 = vunpack.c.l.b16 %v451
        %v1683 = vunpack.c.h.b16 %v451
        %v1684 = vunpack.c.l.b16 %v452
        %v1685 = vunpack.c.h.b16 %v452
        %v1686 = vunpack.c.l.b16 %v453
        %v1687 = vunpack.c.h.b16 %v453
        %v1688 = vunpack.c.l.b16 %v454
        %v1689 = vunpack.c.h.b16 %v454
        %v1690 = vunpack.c.l.b16 %v455
        %v1691 = vunpack.c.h.b16 %v455
        %v1692 = vunpack.c.l.b16 %v456
        %v1693 = vunpack.c.h.b16 %v456
        %v1694 = vunpack.c.l.b16 %v457
        %v1695 = vunpack.c.h.b16 %v457
        %v1696 = vunpack.c.l.b16 %v458
        %v1697 = vunpack.c.h.b16 %v458
        %v1698 = vunpack.c.l.b16 %v459
        %v1699 = vunpack.c.h.b16 %v459
        %v1700 = vunpack.c.l.b16 %v460
        %v1701 = vunpack.c.h.b16 %v460
        %v1702 = vunpack.c.l.b16 %v461
        %v1703 = vunpack.c.h.b16 %v461
        %v1704 = vunpack.c.l.b16 %v462
        %v1705 = vunpack.c.h.b16 %v462
        %v1706 = vunpack.c.l.b16 %v463
        %v1707 = vunpack.c.h.b16 %v463
        %v1708 = vunpack.c.l.b16 %v464
        %v1709 = vunpack.c.h.b16 %v464
        %v1710 = vunpack.c.l.b16 %v465
        %v1711 = vunpack.c.h.b16 %v465
        %v1712 = vunpack.c.l.b16 %v466
        %v1713 = vunpack.c.h.b16 %v466
        %v1714 = vunpack.c.l.b16 %v467
        %v1715 = vunpack.c.h.b16 %v467
        %v1716 = vunpack.c.l.b16 %v468
        %v1717 = vunpack.c.h.b16 %v468
        %v1718 = vunpack.c.l.b16 %v469
        %v1719 = vunpack.c.h.b16 %v469
        %v1720 = vunpack.c.l.b16 %v470
        %v1721 = vunpack.c.h.b16 %v470
        %v1722 = vunpack.c.l.b16 %v471
        %v1723 = vunpack.c.h.b16 %v471
        %v1724 = vunpack.c.l.b16 %v472
        %v1725 = vunpack.c.h.b16 %v472
        %v1726 = vunpack.c.l.b16 %v473
        %v1727 = vunpack.c.h.b16 %v473
        %v1728 = vunpack.c.l.b16 %v474
        %v1729 = vunpack.c.h.b16 %v474
        %v1730 = vunpack.c.l.b16 %v475
        %v1731 = vunpack.c.h.b16 %v475
        %v1732 = vunpack.c.l.b16 %v476
        %v1733 = vunpack.c.h.b16 %v476
        %v1734 = vunpack.c.l.b16 %v477
        %v1735 = vunpack.c.h.b16 %v477
        %v1736 = vunpack.c.l.b16 %v478
        %v1737 = vunpack.c.h.b16 %v478
        %v1738 = vunpack.c.l.b16 %v479
        %v1739 = vunpack.c.h.b16 %v479
        %v1740 = vunpack.c.l.b16 %v480
        %v1741 = vunpack.c.h.b16 %v480
        %v1742 = vunpack.c.l.b16 %v481
        %v1743 = vunpack.c.h.b16 %v481
        %v1744 = vunpack.c.l.b16 %v482
        %v1745 = vunpack.c.h.b16 %v482
        %v1746 = vunpack.c.l.b16 %v483
        %v1747 = vunpack.c.h.b16 %v483
        %v1748 = vunpack.c.l.b16 %v484
        %v1749 = vunpack.c.h.b16 %v484
        %v1750 = vunpack.c.l.b16 %v485
        %v1751 = vunpack.c.h.b16 %v485
        %v1752 = vunpack.c.l.b16 %v486
        %v1753 = vunpack.c.h.b16 %v486
        %v1754 = vunpack.c.l.b16 %v487
        %v1755 = vunpack.c.h.b16 %v487
        %v1756 = vunpack.c.l.b16 %v488
        %v1757 = vunpack.c.h.b16 %v488
        %v1758 = vunpack.c.l.b16 %v489
        %v1759 = vunpack.c.h.b16 %v489
        %v1760 = vunpack.c.l.b16 %v490
        %v1761 = vunpack.c.h.b16 %v490
        %v1762 = vunpack.c.l.b16 %v491
        %v1763 = vunpack.c.h.b16 %v491
        %v1764 = vunpack.c.l.b16 %v492
        %v1765 = vunpack.c.h.b16 %v492
        %v1766 = vunpack.c.l.b16 %v493
        %v1767 = vunpack.c.h.b16 %v493
        %v1768 = vunpack.c.l.b16 %v494
        %v1769 = vunpack.c.h.b16 %v494
        %v1770 = vunpack.c.l.b16 %v495
        %v1771 = vunpack.c.h.b16 %v495
        %v1772 = vunpack.c.l.b16 %v496
        %v1773 = vunpack.c.h.b16 %v496
        %v1774 = vunpack.c.l.b16 %v497
        %v1775 = vunpack.c.h.b16 %v497
        %v1776 = vunpack.c.l.b16 %v498
        %v1777 = vunpack.c.h.b16 %v498
        %v1778 = vunpack.c.l.b16 %v499
        %v1779 = vunpack.c.h.b16 %v499
        %v1780 = vunpack.c.l.b16 %v500
        %v1781 = vunpack.c.h.b16 %v500
        %v1782 = vunpack.c.l.b16 %v501
        %v1783 = vunpack.c.h.b16 %v501
        %v1784 = vunpack.c.l.b16 %v502
        %v1785 = vunpack.c.h.b16 %v502
        %v1786 = vunpack.c.l.b16 %v503
        %v1787 = vunpack.c.h.b16 %v503
        %v1788 = vunpack.c.l.b16 %v504
        %v1789 = vunpack.c.h.b16 %v504
        %v1790 = vunpack.c.l.b16 %v505
        %v1791 = vunpack.c.h.b16 %v505
        %v1792 = vunpack.c.l.b16 %v506
        %v1793 = vunpack.c.h.b16 %v506
        %v1794 = vunpack.c.l.b16 %v507
        %v1795 = vunpack.c.h.b16 %v507
        %v1796 = vunpack.c.l.b16 %v508
        %v1797 = vunpack.c.h.b16 %v508
        %v1798 = vunpack.c.l.b16 %v509
        %v1799 = vunpack.c.h.b16 %v509
        %v1800 = vunpack.c.l.b16 %v510
        %v1801 = vunpack.c.h.b16 %v510
        %v1802 = vunpack.c.l.b16 %v511
        %v1803 = vunpack.c.h.b16 %v511
        %v1804 = vunpack.c.l.b16 %v512
        %v1805 = vunpack.c.h.b16 %v512
        %v1806 = vunpack.c.l.b16 %v513
        %v1807 = vunpack.c.h.b16 %v513
        %v1808 = vunpack.c.l.b16 %v514
        %v1809 = vunpack.c.h.b16 %v514
        %v1810 = vunpack.c.l.b16 %v515
        %v1811 = vunpack.c.h.b16 %v515
        %v1812 = vunpack.c.l.b16 %v516
        %v1813 = vunpack.c.h.b16 %v516
        %v1814 = vunpack.c.l.b16 %v517
        %v1815 = vunpack.c.h.b16 %v517
        %v1816 = vunpack.c.l.b16 %v518
        %v1817 = vunpack.c.h.b16 %v518
        %v1818 = vunpack.c.l.b16 %v519
        %v1819 = vunpack.c.h.b16 %v519
        %v1820 = vunpack.c.l.b16 %v520
        %v1821 = vunpack.c.h.b16 %v520
        %v1822 = vunpack.c.l.b16 %v521
        %v1823 = vunpack.c.h.b16 %v521
        %v1824 = vunpack.c.l.b16 %v522
        %v1825 = vunpack.c.h.b16 %v522
        %v1826 = vunpack.c.l.b16 %v523
        %v1827 = vunpack.c.h.b16 %v523
        %v1828 = vunpack.c.l.b16 %v524
        %v1829 = vunpack.c.h.b16 %v524
        %v1830 = vunpack.c.l.b16 %v525
        %v1831 = vunpack.c.h.b16 %v525
        %v1832 = vunpack.c.l.b16 %v526
        %v1833 = vunpack.c.h.b16 %v526
        %v1834 = vunpack.c.l.b16 %v527
        %v1835 = vunpack.c.h.b16 %v527
        %v1836 = vunpack.c.l.b16 %v528
        %v1837 = vunpack.c.h.b16 %v528
        %v1838 = vunpack.c.l.b16 %v529
        %v1839 = vunpack.c.h.b16 %v529
        %v1840 = vunpack.c.l.b16 %v530
        %v1841 = vunpack.c.h.b16 %v530
        %v1842 = vunpack.c.l.b16 %v531
        %v1843 = vunpack.c.h.b16 %v531
        %v1844 = vunpack.c.l.b16 %v532
        %v1845 = vunpack.c.h.b16 %v532
        %v1846 = vunpack.c.l.b16 %v533
        %v1847 = vunpack.c.h.b16 %v533
        %v1848 = vunpack.c.l.b16 %v534
        %v1849 = vunpack.c.h.b16 %v534
        %v1850 = vunpack.c.l.b16 %v535
        %v1851 = vunpack.c.h.b16 %v535
        %v1852 = vunpack.c.l.b16 %v536
        %v1853 = vunpack.c.h.b16 %v536
        %v1854 = vunpack.c.l.b16 %v537
        %v1855 = vunpack.c.h.b16 %v537
        %v1856 = vunpack.c.l.b16 %v538
        %v1857 = vunpack.c.h.b16 %v538
        %v1858 = vunpack.c.l.b16 %v539
        %v1859 = vunpack.c.h.b16 %v539
        %v1860 = vunpack.c.l.b16 %v540
        %v1861 = vunpack.c.h.b16 %v540
        %v1862 = vunpack.c.l.b16 %v541
        %v1863 = vunpack.c.h.b16 %v541
        %v1864 = vunpack.c.l.b16 %v542
        %v1865 = vunpack.c.h.b16 %v542
        %v1866 = vunpack.c.l.b16 %v543
        %v1867 = vunpack.c.h.b16 %v543
        %v1868 = vunpack.c.l.b16 %v544
        %v1869 = vunpack.c.h.b16 %v544
        %v1870 = vunpack.c.l.b16 %v545
        %v1871 = vunpack.c.h.b16 %v545
        %v1872 = vunpack.c.l.b16 %v546
        %v1873 = vunpack.c.h.b16 %v546
        %v1874 = vunpack.c.l.b16 %v547
        %v1875 = vunpack.c.h.b16 %v547
        %v1876 = vunpack.c.l.b16 %v548
        %v1877 = vunpack.c.h.b16 %v548
        %v1878 = vunpack.c.l.b16 %v549
        %v1879 = vunpack.c.h.b16 %v549
        %v1880 = vunpack.c.l.b16 %v550
        %v1881 = vunpack.c.h.b16 %v550
        %v1882 = vunpack.c.l.b16 %v551
        %v1883 = vunpack.c.h.b16 %v551
        %v1884 = vunpack.c.l.b16 %v552
        %v1885 = vunpack.c.h.b16 %v552
        %v1886 = vunpack.c.l.b16 %v553
        %v1887 = vunpack.c.h.b16 %v553
        %v1888 = vunpack.c.l.b16 %v554
        %v1889 = vunpack.c.h.b16 %v554
        %v1890 = vunpack.c.l.b16 %v555
        %v1891 = vunpack.c.h.b16 %v555
        %v1892 = vunpack.c.l.b16 %v556
        %v1893 = vunpack.c.h.b16 %v556
        %v1894 = vunpack.c.l.b16 %v557
        %v1895 = vunpack.c.h.b16 %v557
        %v1896 = vunpack.c.l.b16 %v558
        %v1897 = vunpack.c.h.b16 %v558
        %v1898 = vunpack.c.l.b16 %v559
        %v1899 = vunpack.c.h.b16 %v559
        %v1900 = vunpack.c.l.b16 %v560
        %v1901 = vunpack.c.h.b16 %v560
        %v1902 = vunpack.c.l.b16 %v561
        %v1903 = vunpack.c.h.b16 %v561
        %v1904 = vunpack.c.l.b16 %v562
        %v1905 = vunpack.c.h.b16 %v562
        %v1906 = vunpack.c.l.b16 %v563
        %v1907 = vunpack.c.h.b16 %v563
        %v1908 = vunpack.c.l.b16 %v564
        %v1909 = vunpack.c.h.b16 %v564
        %v1910 = vunpack.c.l.b16 %v565
        %v1911 = vunpack.c.h.b16 %v565
        %v1912 = vunpack.c.l.b16 %v566
        %v1913 = vunpack.c.h.b16 %v566
        %v1914 = vunpack.c.l.b16 %v567
        %v1915 = vunpack.c.h.b16 %v567
        %v1916 = vunpack.c.l.b16 %v568
        %v1917 = vunpack.c.h.b16 %v568
        %v1918 = vunpack.c.l.b16 %v569
        %v1919 = vunpack.c.h.b16 %v569
        %v1920 = vunpack.c.l.b16 %v570
        %v1921 = vunpack.c.h.b16 %v570
        %v1922 = vunpack.c.l.b16 %v571
        %v1923 = vunpack.c.h.b16 %v571
        %v1924 = vunpack.c.l.b16 %v572
        %v1925 = vunpack.c.h.b16 %v572
        %v1926 = vunpack.c.l.b16 %v573
        %v1927 = vunpack.c.h.b16 %v573
        %v1928 = vunpack.c.l.b16 %v574
        %v1929 = vunpack.c.h.b16 %v574
        %v1930 = vunpack.c.l.b16 %v575
        %v1931 = vunpack.c.h.b16 %v575
        %v1932 = vunpack.c.l.b16 %v576
        %v1933 = vunpack.c.h.b16 %v576
        %v1934 = vunpack.c.l.b16 %v577
        %v1935 = vunpack.c.h.b16 %v577
        %v1936 = vunpack.c.l.b16 %v578
        %v1937 = vunpack.c.h.b16 %v578
        %v1938 = vunpack.c.l.b16 %v579
        %v1939 = vunpack.c.h.b16 %v579
        %v1940 = vunpack.c.l.b16 %v580
        %v1941 = vunpack.c.h.b16 %v580
        %v1942 = vunpack.c.l.b16 %v581
        %v1943 = vunpack.c.h.b16 %v581
        %v1944 = vunpack.c.l.b16 %v582
        %v1945 = vunpack.c.h.b16 %v582
        %v1946 = vunpack.c.l.b16 %v583
        %v1947 = vunpack.c.h.b16 %v583
        %v1948 = vunpack.c.l.b16 %v584
        %v1949 = vunpack.c.h.b16 %v584
        %v1950 = vunpack.c.l.b16 %v585
        %v1951 = vunpack.c.h.b16 %v585
        %v1952 = vunpack.c.l.b16 %v586
        %v1953 = vunpack.c.h.b16 %v586
        %v1954 = vunpack.c.l.b16 %v587
        %v1955 = vunpack.c.h.b16 %v587
        %v1956 = vunpack.c.l.b16 %v588
        %v1957 = vunpack.c.h.b16 %v588
        %v1958 = vunpack.c.l.b16 %v589
        %v1959 = vunpack.c.h.b16 %v589
        %v1960 = vunpack.c.l.b16 %v590
        %v1961 = vunpack.c.h.b16 %v590
        %v1962 = vunpack.c.l.b16 %v591
        %v1963 = vunpack.c.h.b16 %v591
        %v1964 = vunpack.c.l.b16 %v592
        %v1965 = vunpack.c.h.b16 %v592
        %v1966 = vunpack.c.l.b16 %v593
        %v1967 = vunpack.c.h.b16 %v593
        %v1968 = vunpack.c.l.b16 %v594
        %v1969 = vunpack.c.h.b16 %v594
        %v1970 = vunpack.c.l.b16 %v595
        %v1971 = vunpack.c.h.b16 %v595
        %v1972 = vunpack.c.l.b16 %v596
        %v1973 = vunpack.c.h.b16 %v596
        %v1974 = vunpack.c.l.b16 %v597
        %v1975 = vunpack.c.h.b16 %v597
        %v1976 = vunpack.c.l.b16 %v598
        %v1977 = vunpack.c.h.b16 %v598
        %v1978 = vunpack.c.l.b16 %v599
        %v1979 = vunpack.c.h.b16 %v599
        %v1980 = vunpack.c.l.b16 %v600
        %v1981 = vunpack.c.h.b16 %v600
        %v1982 = vunpack.c.l.b16 %v601
        %v1983 = vunpack.c.h.b16 %v601
        %v1984 = vunpack.c.l.b16 %v602
        %v1985 = vunpack.c.h.b16 %v602
        %v1986 = vunpack.c.l.b16 %v603
        %v1987 = vunpack.c.h.b16 %v603
        %v1988 = vunpack.c.l.b16 %v604
        %v1989 = vunpack.c.h.b16 %v604
        %v1990 = vunpack.c.l.b16 %v605
        %v1991 = vunpack.c.h.b16 %v605
        %v1992 = vunpack.c.l.b16 %v606
        %v1993 = vunpack.c.h.b16 %v606
        %v1994 = vunpack.c.l.b16 %v607
        %v1995 = vunpack.c.h.b16 %v607
        %v1996 = vunpack.c.l.b16 %v608
        %v1997 = vunpack.c.h.b16 %v608
        %v1998 = vunpack.c.l.b16 %v609
        %v1999 = vunpack.c.h.b16 %v609
        %v2000 = vunpack.c.l.b16 %v610
        %v2001 = vunpack.c.h.b16 %v610
        %v2002 = vunpack.c.l.b16 %v611
        %v2003 = vunpack.c.h.b16 %v611
        %v2004 = vunpack.c.l.b16 %v612
        %v2005 = vunpack.c.h.b16 %v612
        %v2006 = vunpack.c.l.b16 %v613
        %v2007 = vunpack.c.h.b16 %v613
        %v2008 = vunpack.c.l.b16 %v614
        %v2009 = vunpack.c.h.b16 %v614
        %v2010 = vunpack.c.l.b16 %v615
        %v2011 = vunpack.c.h.b16 %v615
        %v2012 = vunpack.c.l.b16 %v616
        %v2013 = vunpack.c.h.b16 %v616
        %v2014 = vunpack.c.l.b16 %v617
        %v2015 = vunpack.c.h.b16 %v617
        %v2016 = vunpack.c.l.b16 %v618
        %v2017 = vunpack.c.h.b16 %v618
        %v2018 = vunpack.c.l.b16 %v619
        %v2019 = vunpack.c.h.b16 %v619
        %v2020 = vunpack.c.l.b16 %v620
        %v2021 = vunpack.c.h.b16 %v620
        %v2022 = vunpack.c.l.b16 %v621
        %v2023 = vunpack.c.h.b16 %v621
        %v2024 = vunpack.c.l.b16 %v622
        %v2025 = vunpack.c.h.b16 %v622
        %v2026 = vunpack.c.l.b16 %v623
        %v2027 = vunpack.c.h.b16 %v623
        %v2028 = vunpack.c.l.b16 %v624
        %v2029 = vunpack.c.h.b16 %v624
        %v2030 = vunpack.c.l.b16 %v625
        %v2031 = vunpack.c.h.b16 %v625
        %v2032 = vunpack.c.l.b16 %v626
        %v2033 = vunpack.c.h.b16 %v626
        %v2034 = vunpack.c.l.b16 %v627
        %v2035 = vunpack.c.h.b16 %v627
        %v2036 = vunpack.c.l.b16 %v628
        %v2037 = vunpack.c.h.b16 %v628
        %v2038 = vunpack.c.l.b16 %v629
        %v2039 = vunpack.c.h.b16 %v629
        %v2040 = vunpack.c.l.b16 %v630
        %v2041 = vunpack.c.h.b16 %v630
        %v2042 = vunpack.c.l.b16 %v631
        %v2043 = vunpack.c.h.b16 %v631
        %v2044 = vunpack.c.l.b16 %v632
        %v2045 = vunpack.c.h.b16 %v632
        %v2046 = vunpack.c.l.b16 %v633
        %v2047 = vunpack.c.h.b16 %v633
        %v2048 = vunpack.c.l.b16 %v634
        %v2049 = vunpack.c.h.b16 %v634
        %v2050 = vunpack.c.l.b16 %v635
        %v2051 = vunpack.c.h.b16 %v635
        %v2052 = vunpack.c.l.b16 %v636
        %v2053 = vunpack.c.h.b16 %v636
        %v2054 = vunpack.c.l.b16 %v637
        %v2055 = vunpack.c.h.b16 %v637
        %v2056 = vunpack.c.l.b16 %v638
        %v2057 = vunpack.c.h.b16 %v638
        %v2058 = vunpack.c.l.b16 %v639
        %v2059 = vunpack.c.h.b16 %v639
        %v2060 = vunpack.c.l.b16 %v640
        %v2061 = vunpack.c.h.b16 %v640
        %v2062 = vunpack.c.l.b16 %v641
        %v2063 = vunpack.c.h.b16 %v641
        %v2064 = vunpack.c.l.b16 %v642
        %v2065 = vunpack.c.h.b16 %v642
        %v2066 = vunpack.c.l.b16 %v643
        %v2067 = vunpack.c.h.b16 %v643
        %v2068 = vunpack.c.l.b16 %v644
        %v2069 = vunpack.c.h.b16 %v644
        %v2070 = vunpack.c.l.b16 %v645
        %v2071 = vunpack.c.h.b16 %v645
        %v2072 = vunpack.c.l.b16 %v646
        %v2073 = vunpack.c.h.b16 %v646
        %v2074 = vunpack.c.l.b16 %v647
        %v2075 = vunpack.c.h.b16 %v647
        %v2076 = vunpack.c.l.b16 %v648
        %v2077 = vunpack.c.h.b16 %v648
        %v2078 = vunpack.c.l.b16 %v649
        %v2079 = vunpack.c.h.b16 %v649
        %v2080 = vunpack.c.l.b16 %v650
        %v2081 = vunpack.c.h.b16 %v650
        %v2082 = vunpack.c.l.b16 %v651
        %v2083 = vunpack.c.h.b16 %v651
        %v2084 = vunpack.c.l.b16 %v652
        %v2085 = vunpack.c.h.b16 %v652
        %v2086 = vunpack.c.l.b16 %v653
        %v2087 = vunpack.c.h.b16 %v653
        %v2088 = vunpack.c.l.b16 %v654
        %v2089 = vunpack.c.h.b16 %v654
        %v2090 = vunpack.c.l.b16 %v655
        %v2091 = vunpack.c.h.b16 %v655
        %v2092 = vunpack.c.l.b16 %v656
        %v2093 = vunpack.c.h.b16 %v656
        %v2094 = vunpack.c.l.b16 %v657
        %v2095 = vunpack.c.h.b16 %v657
        %v2096 = vunpack.c.l.b16 %v658
        %v2097 = vunpack.c.h.b16 %v658
        %v2098 = vunpack.c.l.b16 %v659
        %v2099 = vunpack.c.h.b16 %v659
        %v2100 = vunpack.c.l.b16 %v660
        %v2101 = vunpack.c.h.b16 %v660
        %v2102 = vunpack.c.l.b16 %v661
        %v2103 = vunpack.c.h.b16 %v661
        %v2104 = vunpack.c.l.b16 %v662
        %v2105 = vunpack.c.h.b16 %v662
        %v2106 = vunpack.c.l.b16 %v663
        %v2107 = vunpack.c.h.b16 %v663
        %v2108 = vunpack.c.l.b16 %v664
        %v2109 = vunpack.c.h.b16 %v664
        %v2110 = vunpack.c.l.b16 %v665
        %v2111 = vunpack.c.h.b16 %v665
        %v2112 = vunpack.c.l.b16 %v666
        %v2113 = vunpack.c.h.b16 %v666
        %v2114 = vunpack.c.l.b16 %v667
        %v2115 = vunpack.c.h.b16 %v667
        %v2116 = vunpack.c.l.b16 %v668
        %v2117 = vunpack.c.h.b16 %v668
        %v2118 = vunpack.c.l.b16 %v669
        %v2119 = vunpack.c.h.b16 %v669
        %v2120 = vunpack.c.l.b16 %v670
        %v2121 = vunpack.c.h.b16 %v670
        %v2122 = vunpack.c.l.b16 %v671
        %v2123 = vunpack.c.h.b16 %v671
        %v2124 = vunpack.c.l.b16 %v672
        %v2125 = vunpack.c.h.b16 %v672
        %v2126 = vunpack.c.l.b16 %v673
        %v2127 = vunpack.c.h.b16 %v673
        %v2128 = vunpack.c.l.b16 %v674
        %v2129 = vunpack.c.h.b16 %v674
        %v2130 = vunpack.c.l.b16 %v675
        %v2131 = vunpack.c.h.b16 %v675
        %v2132 = vunpack.c.l.b16 %v676
        %v2133 = vunpack.c.h.b16 %v676
        %v2134 = vunpack.c.l.b16 %v677
        %v2135 = vunpack.c.h.b16 %v677
        %v2136 = vunpack.c.l.b16 %v678
        %v2137 = vunpack.c.h.b16 %v678
        %v2138 = vunpack.c.l.b16 %v679
        %v2139 = vunpack.c.h.b16 %v679
        %v2140 = vunpack.c.l.b16 %v680
        %v2141 = vunpack.c.h.b16 %v680
        %v2142 = vunpack.c.l.b16 %v681
        %v2143 = vunpack.c.h.b16 %v681
        %v2144 = vunpack.c.l.b16 %v682
        %v2145 = vunpack.c.h.b16 %v682
        %v2146 = vunpack.c.l.b16 %v683
        %v2147 = vunpack.c.h.b16 %v683
        %v2148 = vunpack.c.l.b16 %v684
        %v2149 = vunpack.c.h.b16 %v684
        %v2150 = vunpack.c.l.b16 %v685
        %v2151 = vunpack.c.h.b16 %v685
        %v2152 = vunpack.c.l.b16 %v686
        %v2153 = vunpack.c.h.b16 %v686
        %v2154 = vunpack.c.l.b16 %v687
        %v2155 = vunpack.c.h.b16 %v687
        %v2156 = vunpack.c.l.b16 %v688
        %v2157 = vunpack.c.h.b16 %v688
        %v2158 = vunpack.c.l.b16 %v689
        %v2159 = vunpack.c.h.b16 %v689
        %v2160 = vunpack.c.l.b16 %v690
        %v2161 = vunpack.c.h.b16 %v690
        %v2162 = vunpack.c.l.b16 %v691
        %v2163 = vunpack.c.h.b16 %v691
        %v2164 = vunpack.c.l.b16 %v692
        %v2165 = vunpack.c.h.b16 %v692
        %v2166 = vunpack.c.l.b16 %v693
        %v2167 = vunpack.c.h.b16 %v693
        %v2168 = vunpack.c.l.b16 %v694
        %v2169 = vunpack.c.h.b16 %v694
        %v2170 = vunpack.c.l.b16 %v695
        %v2171 = vunpack.c.h.b16 %v695
        %v2172 = vunpack.c.l.b16 %v696
        %v2173 = vunpack.c.h.b16 %v696
        %v2174 = vunpack.c.l.b16 %v697
        %v2175 = vunpack.c.h.b16 %v697
        %v2176 = vunpack.c.l.b16 %v698
        %v2177 = vunpack.c.h.b16 %v698
        %v2178 = vunpack.c.l.b16 %v699
        %v2179 = vunpack.c.h.b16 %v699
        %v2180 = vunpack.c.l.b16 %v700
        %v2181 = vunpack.c.h.b16 %v700
        %v2182 = vunpack.c.l.b16 %v701
        %v2183 = vunpack.c.h.b16 %v701
        %v2184 = vunpack.c.l.b16 %v702
        %v2185 = vunpack.c.h.b16 %v702
        %v2186 = vunpack.c.l.b16 %v703
        %v2187 = vunpack.c.h.b16 %v703
        %v2188 = vunpack.c.l.b16 %v704
        %v2189 = vunpack.c.h.b16 %v704
        %v2190 = vunpack.c.l.b16 %v705
        %v2191 = vunpack.c.h.b16 %v705
        %v2192 = vunpack.c.l.b16 %v706
        %v2193 = vunpack.c.h.b16 %v706
        %v2194 = vunpack.c.l.b16 %v707
        %v2195 = vunpack.c.h.b16 %v707
        %v2196 = vunpack.c.l.b16 %v708
        %v2197 = vunpack.c.h.b16 %v708
        %v2198 = vunpack.c.l.b16 %v709
        %v2199 = vunpack.c.h.b16 %v709
        %v2200 = vunpack.c.l.b16 %v710
        %v2201 = vunpack.c.h.b16 %v710
        %v2202 = vunpack.c.l.b16 %v711
        %v2203 = vunpack.c.h.b16 %v711
        %v2204 = vunpack.c.l.b16 %v712
        %v2205 = vunpack.c.h.b16 %v712
        %v2206 = vunpack.c.l.b16 %v713
        %v2207 = vunpack.c.h.b16 %v713
        %v2208 = vunpack.c.l.b16 %v714
        %v2209 = vunpack.c.h.b16 %v714
        %v2210 = vunpack.c.l.b16 %v715
        %v2211 = vunpack.c.h.b16 %v715
        %v2212 = vunpack.c.l.b16 %v716
        %v2213 = vunpack.c.h.b16 %v716
        %v2214 = vunpack.c.l.b16 %v717
        %v2215 = vunpack.c.h.b16 %v717
        %v2216 = vunpack.c.l.b16 %v718
        %v2217 = vunpack.c.h.b16 %v718
        %v2218 = vunpack.c.l.b16 %v719
        %v2219 = vunpack.c.h.b16 %v719
        %v2220 = vunpack.c.l.b16 %v720
        %v2221 = vunpack.c.h.b16 %v720
        %v2222 = vunpack.c.l.b16 %v721
        %v2223 = vunpack.c.h.b16 %v721
        %v2224 = vunpack.c.l.b16 %v722
        %v2225 = vunpack.c.h.b16 %v722
        %v2226 = vunpack.c.l.b16 %v723
        %v2227 = vunpack.c.h.b16 %v723
        %v2228 = vunpack.c.l.b16 %v724
        %v2229 = vunpack.c.h.b16 %v724
        %v2230 = vunpack.c.l.b16 %v725
        %v2231 = vunpack.c.h.b16 %v725
        %v2232 = vunpack.c.l.b16 %v726
        %v2233 = vunpack.c.h.b16 %v726
        %v2234 = vunpack.c.l.b16 %v727
        %v2235 = vunpack.c.h.b16 %v727
        %v2236 = vunpack.c.l.b16 %v728
        %v2237 = vunpack.c.h.b16 %v728
        %v2238 = vunpack.c.l.b16 %v729
        %v2239 = vunpack.c.h.b16 %v729
        %v2240 = vunpack.c.l.b16 %v730
        %v2241 = vunpack.c.h.b16 %v730
        %v2242 = vunpack.c.l.b16 %v731
        %v2243 = vunpack.c.h.b16 %v731
        %v2244 = vunpack.c.l.b16 %v732
        %v2245 = vunpack.c.h.b16 %v732
        %v2246 = vunpack.c.l.b16 %v733
        %v2247 = vunpack.c.h.b16 %v733
        %v2248 = vunpack.c.l.b16 %v734
        %v2249 = vunpack.c.h.b16 %v734
        %v2250 = vunpack.c.l.b16 %v735
        %v2251 = vunpack.c.h.b16 %v735
        %v2252 = vunpack.c.l.b16 %v736
        %v2253 = vunpack.c.h.b16 %v736
        %v2254 = vunpack.c.l.b16 %v737
        %v2255 = vunpack.c.h.b16 %v737
        %v2256 = vunpack.c.l.b16 %v738
        %v2257 = vunpack.c.h.b16 %v738
        %v2258 = vunpack.c.l.b16 %v739
        %v2259 = vunpack.c.h.b16 %v739
        %v2260 = vunpack.c.l.b16 %v740
        %v2261 = vunpack.c.h.b16 %v740
        %v2262 = vunpack.c.l.b16 %v741
        %v2263 = vunpack.c.h.b16 %v741
        %v2264 = vunpack.c.l.b16 %v742
        %v2265 = vunpack.c.h.b16 %v742
        %v2266 = vunpack.c.l.b16 %v743
        %v2267 = vunpack.c.h.b16 %v743
        %v2268 = vunpack.c.l.b16 %v744
        %v2269 = vunpack.c.h.b16 %v744
        %v2270 = vunpack.c.l.b16 %v745
        %v2271 = vunpack.c.h.b16 %v745
        %v2272 = vunpack.c.l.b16 %v746
        %v2273 = vunpack.c.h.b16 %v746
        %v2274 = vunpack.c.l.b16 %v747
        %v2275 = vunpack.c.h.b16 %v747
        %v2276 = vunpack.c.l.b16 %v748
        %v2277 = vunpack.c.h.b16 %v748
        %v2278 = vunpack.c.l.b16 %v749
        %v2279 = vunpack.c.h.b16 %v749
        %v2280 = vunpack.c.l.b16 %v750
        %v2281 = vunpack.c.h.b16 %v750
        %v2282 = vunpack.c.l.b16 %v751
        %v2283 = vunpack.c.h.b16 %v751
        %v2284 = vunpack.c.l.b16 %v752
        %v2285 = vunpack.c.h.b16 %v752
        %v2286 = vunpack.c.l.b16 %v753
        %v2287 = vunpack.c.h.b16 %v753
        %v2288 = vunpack.c.l.b16 %v754
        %v2289 = vunpack.c.h.b16 %v754
        %v2290 = vunpack.c.l.b16 %v755
        %v2291 = vunpack.c.h.b16 %v755
        %v2292 = vunpack.c.l.b16 %v756
        %v2293 = vunpack.c.h.b16 %v756
        %v2294 = vunpack.c.l.b16 %v757
        %v2295 = vunpack.c.h.b16 %v757
        %v2296 = vunpack.c.l.b16 %v758
        %v2297 = vunpack.c.h.b16 %v758
        %v2298 = vunpack.c.l.b16 %v759
        %v2299 = vunpack.c.h.b16 %v759
        %v2300 = vunpack.c.l.b16 %v760
        %v2301 = vunpack.c.h.b16 %v760
        %v2302 = vunpack.c.l.b16 %v761
        %v2303 = vunpack.c.h.b16 %v761
        %v2304 = vunpack.c.l.b16 %v762
        %v2305 = vunpack.c.h.b16 %v762
        %v2306 = vunpack.c.l.b16 %v763
        %v2307 = vunpack.c.h.b16 %v763
        %v2308 = vunpack.c.l.b16 %v764
        %v2309 = vunpack.c.h.b16 %v764
        %v2310 = vunpack.c.l.b16 %v765
        %v2311 = vunpack.c.h.b16 %v765
        %v2312 = vunpack.c.l.b16 %v766
        %v2313 = vunpack.c.h.b16 %v766
        %v2314 = vunpack.c.l.b16 %v767
        %v2315 = vunpack.c.h.b16 %v767
        %v2316 = vunpack.c.l.b16 %v768
        %v2317 = vunpack.c.h.b16 %v768
        %v2318 = vunpack.c.l.b16 %v769
        %v2319 = vunpack.c.h.b16 %v769
        %v2320 = vunpack.c.l.b16 %v770
        %v2321 = vunpack.c.h.b16 %v770
        %v2322 = vunpack.c.l.b16 %v771
        %v2323 = vunpack.c.h.b16 %v771
        %v2324 = vunpack.c.l.b16 %v772
        %v2325 = vunpack.c.h.b16 %v772
        %v2326 = vunpack.c.l.b16 %v773
        %v2327 = vunpack.c.h.b16 %v773
        %v2328 = vunpack.c.l.b16 %v774
        %v2329 = vunpack.c.h.b16 %v774
        %v2330 = vunpack.c.l.b16 %v775
        %v2331 = vunpack.c.h.b16 %v775
        %v2332 = vunpack.c.l.b16 %v776
        %v2333 = vunpack.c.h.b16 %v776
        %v2334 = vunpack.c.l.b16 %v777
        %v2335 = vunpack.c.h.b16 %v777
        %v2336 = vunpack.c.l.b16 %v778
        %v2337 = vunpack.c.h.b16 %v778
        %v2338 = vunpack.c.l.b16 %v779
        %v2339 = vunpack.c.h.b16 %v779
        %v2340 = vunpack.c.l.b16 %v780
        %v2341 = vunpack.c.h.b16 %v780
        %v2342 = vunpack.c.l.b16 %v781
        %v2343 = vunpack.c.h.b16 %v781
        %v2344 = vunpack.c.l.b16 %v782
        %v2345 = vunpack.c.h.b16 %v782
        %v2346 = vunpack.c.l.b16 %v783
        %v2347 = vunpack.c.h.b16 %v783
        %v2348 = vunpack.c.l.b16 %v784
        %v2349 = vunpack.c.h.b16 %v784
        %v2350 = vunpack.c.l.b16 %v785
        %v2351 = vunpack.c.h.b16 %v785
        %v2352 = vunpack.c.l.b16 %v786
        %v2353 = vunpack.c.h.b16 %v786
        %v2354 = vunpack.c.l.b16 %v787
        %v2355 = vunpack.c.h.b16 %v787
        %v2356 = vunpack.c.l.b16 %v788
        %v2357 = vunpack.c.h.b16 %v788
        %v2358 = vunpack.c.l.b16 %v789
        %v2359 = vunpack.c.h.b16 %v789
        %v2360 = vunpack.c.l.b16 %v790
        %v2361 = vunpack.c.h.b16 %v790
        %v2362 = vunpack.c.l.b16 %v791
        %v2363 = vunpack.c.h.b16 %v791
        %v2364 = vunpack.c.l.b16 %v792
        %v2365 = vunpack.c.h.b16 %v792
        %v2366 = vunpack.c.l.b16 %v793
        %v2367 = vunpack.c.h.b16 %v793
        %v2368 = vunpack.c.l.b16 %v794
        %v2369 = vunpack.c.h.b16 %v794
        %v2370 = vunpack.c.l.b16 %v795
        %v2371 = vunpack.c.h.b16 %v795
        %v2372 = vunpack.c.l.b16 %v796
        %v2373 = vunpack.c.h.b16 %v796
        %v2374 = vunpack.c.l.b16 %v797
        %v2375 = vunpack.c.h.b16 %v797
        %v2376 = vunpack.c.l.b16 %v798
        %v2377 = vunpack.c.h.b16 %v798
        %v2378 = vunpack.c.l.b16 %v799
        %v2379 = vunpack.c.h.b16 %v799
        %v2380 = vunpack.c.l.b16 %v800
        %v2381 = vunpack.c.h.b16 %v800
        %v2382 = vunpack.c.l.b16 %v801
        %v2383 = vunpack.c.h.b16 %v801
        %v2384 = vunpack.c.l.b16 %v802
        %v2385 = vunpack.c.h.b16 %v802
        %v2386 = vunpack.c.l.b16 %v803
        %v2387 = vunpack.c.h.b16 %v803
        %v2388 = vunpack.c.l.b16 %v804
        %v2389 = vunpack.c.h.b16 %v804
        %v2390 = vunpack.c.l.b16 %v805
        %v2391 = vunpack.c.h.b16 %v805
        %v2392 = vunpack.c.l.b16 %v806
        %v2393 = vunpack.c.h.b16 %v806
        %v2394 = vunpack.c.l.b16 %v807
        %v2395 = vunpack.c.h.b16 %v807
        %v2396 = vunpack.c.l.b16 %v808
        %v2397 = vunpack.c.h.b16 %v808
        %v2398 = vunpack.c.l.b16 %v809
        %v2399 = vunpack.c.h.b16 %v809
        %v2400 = vunpack.c.l.b16 %v810
        %v2401 = vunpack.c.h.b16 %v810
        %v2402 = vunpack.c.l.b16 %v811
        %v2403 = vunpack.c.h.b16 %v811
        %v2404 = vunpack.c.l.b16 %v812
        %v2405 = vunpack.c.h.b16 %v812
        %v2406 = vunpack.c.l.b16 %v813
        %v2407 = vunpack.c.h.b16 %v813
        %v2408 = vunpack.c.l.b16 %v814
        %v2409 = vunpack.c.h.b16 %v814
        %v2410 = vunpack.c.l.b16 %v815
        %v2411 = vunpack.c.h.b16 %v815
        %v2412 = vunpack.c.l.b16 %v816
        %v2413 = vunpack.c.h.b16 %v816
        %v2414 = vunpack.c.l.b16 %v817
        %v2415 = vunpack.c.h.b16 %v817
        %v2416 = vunpack.c.l.b16 %v818
        %v2417 = vunpack.c.h.b16 %v818
        %v2418 = vunpack.c.l.b16 %v819
        %v2419 = vunpack.c.h.b16 %v819
        %v2420 = vunpack.c.l.b16 %v820
        %v2421 = vunpack.c.h.b16 %v820
        %v2422 = vunpack.c.l.b16 %v821
        %v2423 = vunpack.c.h.b16 %v821
        %v2424 = vunpack.c.l.b16 %v822
        %v2425 = vunpack.c.h.b16 %v822
        %v2426 = vunpack.c.l.b16 %v823
        %v2427 = vunpack.c.h.b16 %v823
        %v2428 = vunpack.c.l.b16 %v824
        %v2429 = vunpack.c.h.b16 %v824
        %v2430 = vunpack.c.l.b16 %v825
        %v2431 = vunpack.c.h.b16 %v825
        %v2432 = vunpack.c.l.b16 %v826
        %v2433 = vunpack.c.h.b16 %v826
        %v2434 = vunpack.c.l.b16 %v827
        %v2435 = vunpack.c.h.b16 %v827
        %v2436 = vunpack.c.l.b16 %v828
        %v2437 = vunpack.c.h.b16 %v828
        %v2438 = vunpack.c.l.b16 %v829
        %v2439 = vunpack.c.h.b16 %v829
        %v2440 = vunpack.c.l.b16 %v830
        %v2441 = vunpack.c.h.b16 %v830
        %v2442 = vunpack.c.l.b16 %v831
        %v2443 = vunpack.c.h.b16 %v831
        %v2444 = vunpack.c.l.b16 %v832
        %v2445 = vunpack.c.h.b16 %v832
        %v2446 = vunpack.c.l.b16 %v833
        %v2447 = vunpack.c.h.b16 %v833
        %v2448 = vunpack.c.l.b16 %v834
        %v2449 = vunpack.c.h.b16 %v834
        %v2450 = vunpack.c.l.b16 %v835
        %v2451 = vunpack.c.h.b16 %v835
        %v2452 = vunpack.c.l.b16 %v836
        %v2453 = vunpack.c.h.b16 %v836
        %v2454 = vunpack.c.l.b16 %v837
        %v2455 = vunpack.c.h.b16 %v837
        %v2456 = vunpack.c.l.b16 %v838
        %v2457 = vunpack.c.h.b16 %v838
        %v2458 = vunpack.c.l.b16 %v839
        %v2459 = vunpack.c.h.b16 %v839
        %v2460 = vunpack.c.l.b16 %v840
        %v2461 = vunpack.c.h.b16 %v840
        %v2462 = vunpack.c.l.b16 %v841
        %v2463 = vunpack.c.h.b16 %v841
        %v2464 = vunpack.c.l.b16 %v842
        %v2465 = vunpack.c.h.b16 %v842
        %v2466 = vunpack.c.l.b16 %v843
        %v2467 = vunpack.c.h.b16 %v843
        %v2468 = vunpack.c.l.b16 %v844
        %v2469 = vunpack.c.h.b16 %v844
        %v2470 = vunpack.c.l.b16 %v845
        %v2471 = vunpack.c.h.b16 %v845
        %v2472 = vunpack.c.l.b16 %v846
        %v2473 = vunpack.c.h.b16 %v846
        %v2474 = vunpack.c.l.b16 %v847
        %v2475 = vunpack.c.h.b16 %v847
        %v2476 = vunpack.c.l.b16 %v848
        %v2477 = vunpack.c.h.b16 %v848
        %v2478 = vunpack.c.l.b16 %v849
        %v2479 = vunpack.c.h.b16 %v849
        %v2480 = vunpack.c.l.b16 %v850
        %v2481 = vunpack.c.h.b16 %v850
        %v2482 = vunpack.c.l.b16 %v851
        %v2483 = vunpack.c.h.b16 %v851
        %v2484 = vunpack.c.l.b16 %v852
        %v2485 = vunpack.c.h.b16 %v852
        %v2486 = vunpack.c.l.b16 %v853
        %v2487 = vunpack.c.h.b16 %v853
        %v2488 = vunpack.c.l.b16 %v854
        %v2489 = vunpack.c.h.b16 %v854
        %v2490 = vunpack.c.l.b16 %v855
        %v2491 = vunpack.c.h.b16 %v855
        %v2492 = vunpack.c.l.b16 %v856
        %v2493 = vunpack.c.h.b16 %v856
        %v2494 = vunpack.c.l.b16 %v857
        %v2495 = vunpack.c.h.b16 %v857
        %v2496 = vunpack.c.l.b16 %v858
        %v2497 = vunpack.c.h.b16 %v858
        %v2498 = vunpack.c.l.b16 %v859
        %v2499 = vunpack.c.h.b16 %v859
        %v2500 = vunpack.c.l.b16 %v860
        %v2501 = vunpack.c.h.b16 %v860
        %v2502 = vunpack.c.l.b16 %v861
        %v2503 = vunpack.c.h.b16 %v861
        %v2504 = vunpack.c.l.b16 %v862
        %v2505 = vunpack.c.h.b16 %v862
        %v2506 = vunpack.c.l.b16 %v863
        %v2507 = vunpack.c.h.b16 %v863
        %v2508 = vunpack.c.l.b16 %v864
        %v2509 = vunpack.c.h.b16 %v864
        %v2510 = vunpack.c.l.b16 %v865
        %v2511 = vunpack.c.h.b16 %v865
        %v2512 = vunpack.c.l.b16 %v866
        %v2513 = vunpack.c.h.b16 %v866
        %v2514 = vunpack.c.l.b16 %v867
        %v2515 = vunpack.c.h.b16 %v867
        %v2516 = vunpack.c.l.b16 %v868
        %v2517 = vunpack.c.h.b16 %v868
        %v2518 = vunpack.c.l.b16 %v869
        %v2519 = vunpack.c.h.b16 %v869
        %v2520 = vunpack.c.l.b16 %v870
        %v2521 = vunpack.c.h.b16 %v870
        %v2522 = vunpack.c.l.b16 %v871
        %v2523 = vunpack.c.h.b16 %v871
        %v2524 = vunpack.c.l.b16 %v872
        %v2525 = vunpack.c.h.b16 %v872
        %v2526 = vunpack.c.l.b16 %v873
        %v2527 = vunpack.c.h.b16 %v873
        %v2528 = vunpack.c.l.b16 %v874
        %v2529 = vunpack.c.h.b16 %v874
        %v2530 = vunpack.c.l.b16 %v875
        %v2531 = vunpack.c.h.b16 %v875
        %v2532 = vunpack.c.l.b16 %v876
        %v2533 = vunpack.c.h.b16 %v876
        %v2534 = vunpack.c.l.b16 %v877
        %v2535 = vunpack.c.h.b16 %v877
        %v2536 = vunpack.c.l.b16 %v878
        %v2537 = vunpack.c.h.b16 %v878
        %v2538 = vunpack.c.l.b16 %v879
        %v2539 = vunpack.c.h.b16 %v879
        %v2540 = vunpack.c.l.b16 %v880
        %v2541 = vunpack.c.h.b16 %v880
        %v2542 = vunpack.c.l.b16 %v881
        %v2543 = vunpack.c.h.b16 %v881
        %v2544 = vunpack.c.l.b16 %v882
        %v2545 = vunpack.c.h.b16 %v882
        %v2546 = vunpack.c.l.b16 %v883
        %v2547 = vunpack.c.h.b16 %v883
        %v2548 = vunpack.c.l.b16 %v884
        %v2549 = vunpack.c.h.b16 %v884
        %v2550 = vunpack.c.l.b16 %v885
        %v2551 = vunpack.c.h.b16 %v885
        %v2552 = vunpack.c.l.b16 %v886
        %v2553 = vunpack.c.h.b16 %v886
        %v2554 = vunpack.c.l.b16 %v887
        %v2555 = vunpack.c.h.b16 %v887
        %v2556 = vunpack.c.l.b16 %v888
        %v2557 = vunpack.c.h.b16 %v888
        %v2558 = vunpack.c.l.b16 %v889
        %v2559 = vunpack.c.h.b16 %v889
        %v2560 = vunpack.c.l.b16 %v890
        %v2561 = vunpack.c.h.b16 %v890
        %v2562 = vunpack.c.l.b16 %v891
        %v2563 = vunpack.c.h.b16 %v891
        %v2564 = vunpack.c.l.b16 %v892
        %v2565 = vunpack.c.h.b16 %v892
        %v2566 = vunpack.c.l.b16 %v893
        %v2567 = vunpack.c.h.b16 %v893
        %v2568 = vpack.c.b16 %v1680, %v1672
        %v2569 = vpack.c.b16 %v1681, %v1673
        %v2570 = vpack.c.b16 %v1682, %v1674
        %v2571 = vpack.c.b16 %v1683, %v1675
        %v2572 = vpack.c.b16 %v1684, %v1676
        %v2573 = vpack.c.b16 %v1685, %v1677
        %v2574 = vpack.c.b16 %v1686, %v1678
        %v2575 = vpack.c.b16 %v1687, %v1679
        %v2576 = vpack.c.b16 %v1696, %v1688
        %v2577 = vpack.c.b16 %v1697, %v1689
        %v2578 = vpack.c.b16 %v1698, %v1690
        %v2579 = vpack.c.b16 %v1699, %v1691
        %v2580 = vpack.c.b16 %v1700, %v1692
        %v2581 = vpack.c.b16 %v1701, %v1693
        %v2582 = vpack.c.b16 %v1702, %v1694
        %v2583 = vpack.c.b16 %v1703, %v1695
        %v2584 = vpack.c.b16 %v1712, %v1704
        %v2585 = vpack.c.b16 %v1713, %v1705
        %v2586 = vpack.c.b16 %v1714, %v1706
        %v2587 = vpack.c.b16 %v1715, %v1707
        %v2588 = vpack.c.b16 %v1716, %v1708
        %v2589 = vpack.c.b16 %v1717, %v1709
        %v2590 = vpack.c.b16 %v1718, %v1710
        %v2591 = vpack.c.b16 %v1719, %v1711
        %v2592 = vpack.c.b16 %v1728, %v1720
        %v2593 = vpack.c.b16 %v1729, %v1721
        %v2594 = vpack.c.b16 %v1730, %v1722
        %v2595 = vpack.c.b16 %v1731, %v1723
        %v2596 = vpack.c.b16 %v1732, %v1724
        %v2597 = vpack.c.b16 %v1733, %v1725
        %v2598 = vpack.c.b16 %v1734, %v1726
        %v2599 = vpack.c.b16 %v1735, %v1727
        %v2600 = vpack.c.b16 %v1744, %v1736
        %v2601 = vpack.c.b16 %v1745, %v1737
        %v2602 = vpack.c.b16 %v1746, %v1738
        %v2603 = vpack.c.b16 %v1747, %v1739
        %v2604 = vpack.c.b16 %v1748, %v1740
        %v2605 = vpack.c.b16 %v1749, %v1741
        %v2606 = vpack.c.b16 %v1750, %v1742
        %v2607 = vpack.c.b16 %v1751, %v1743
        %v2608 = vpack.c.b16 %v1760, %v1752
        %v2609 = vpack.c.b16 %v1761, %v1753
        %v2610 = vpack.c.b16 %v1762, %v1754
        %v2611 = vpack.c.b16 %v1763, %v1755
        %v2612 = vpack.c.b16 %v1764, %v1756
        %v2613 = vpack.c.b16 %v1765, %v1757
        %v2614 = vpack.c.b16 %v1766, %v1758
        %v2615 = vpack.c.b16 %v1767, %v1759
        %v2616 = vpack.c.b16 %v1776, %v1768
        %v2617 = vpack.c.b16 %v1777, %v1769
        %v2618 = vpack.c.b16 %v1778, %v1770
        %v2619 = vpack.c.b16 %v1779, %v1771
        %v2620 = vpack.c.b16 %v1780, %v1772
        %v2621 = vpack.c.b16 %v1781, %v1773
        %v2622 = vpack.c.b16 %v1782, %v1774
        %v2623 = vpack.c.b16 %v1783, %v1775
        %v2624 = vpack.c.b16 %v1792, %v1784
        %v2625 = vpack.c.b16 %v1793, %v1785
        %v2626 = vpack.c.b16 %v1794, %v1786
        %v2627 = vpack.c.b16 %v1795, %v1787
        %v2628 = vpack.c.b16 %v1796, %v1788
        %v2629 = vpack.c.b16 %v1797, %v1789
        %v2630 = vpack.c.b16 %v1798, %v1790
        %v2631 = vpack.c.b16 %v1799, %v1791
        %v2632 = vpack.c.b16 %v1808, %v1800
        %v2633 = vpack.c.b16 %v1809, %v1801
        %v2634 = vpack.c.b16 %v1810, %v1802
        %v2635 = vpack.c.b16 %v1811, %v1803
        %v2636 = vpack.c.b16 %v1812, %v1804
        %v2637 = vpack.c.b16 %v1813, %v1805
        %v2638 = vpack.c.b16 %v1814, %v1806
        %v2639 = vpack.c.b16 %v1815, %v1807
        %v2640 = vpack.c.b16 %v1824, %v1816
        %v2641 = vpack.c.b16 %v1825, %v1817
        %v2642 = vpack.c.b16 %v1826, %v1818
        %v2643 = vpack.c.b16 %v1827, %v1819
        %v2644 = vpack.c.b16 %v1828, %v1820
        %v2645 = vpack.c.b16 %v1829, %v1821
        %v2646 = vpack.c.b16 %v1830, %v1822
        %v2647 = vpack.c.b16 %v1831, %v1823
        %v2648 = vpack.c.b16 %v1840, %v1832
        %v2649 = vpack.c.b16 %v1841, %v1833
        %v2650 = vpack.c.b16 %v1842, %v1834
        %v2651 = vpack.c.b16 %v1843, %v1835
        %v2652 = vpack.c.b16 %v1844, %v1836
        %v2653 = vpack.c.b16 %v1845, %v1837
        %v2654 = vpack.c.b16 %v1846, %v1838
        %v2655 = vpack.c.b16 %v1847, %v1839
        %v2656 = vpack.c.b16 %v1856, %v1848
        %v2657 = vpack.c.b16 %v1857, %v1849
        %v2658 = vpack.c.b16 %v1858, %v1850
        %v2659 = vpack.c.b16 %v1859, %v1851
        %v2660 = vpack.c.b16 %v1860, %v1852
        %v2661 = vpack.c.b16 %v1861, %v1853
        %v2662 = vpack.c.b16 %v1862, %v1854
        %v2663 = vpack.c.b16 %v1863, %v1855
        %v2664 = vpack.c.b16 %v1872, %v1864
        %v2665 = vpack.c.b16 %v1873, %v1865
        %v2666 = vpack.c.b16 %v1874, %v1866
        %v2667 = vpack.c.b16 %v1875, %v1867
        %v2668 = vpack.c.b16 %v1876, %v1868
        %v2669 = vpack.c.b16 %v1877, %v1869
        %v2670 = vpack.c.b16 %v1878, %v1870
        %v2671 = vpack.c.b16 %v1879, %v1871
        %v2672 = vpack.c.b16 %v1888, %v1880
        %v2673 = vpack.c.b16 %v1889, %v1881
        %v2674 = vpack.c.b16 %v1890, %v1882
        %v2675 = vpack.c.b16 %v1891, %v1883
        %v2676 = vpack.c.b16 %v1892, %v1884
        %v2677 = vpack.c.b16 %v1893, %v1885
        %v2678 = vpack.c.b16 %v1894, %v1886
        %v2679 = vpack.c.b16 %v1895, %v1887
        %v2680 = vpack.c.b16 %v1904, %v1896
        %v2681 = vpack.c.b16 %v1905, %v1897
        %v2682 = vpack.c.b16 %v1906, %v1898
        %v2683 = vpack.c.b16 %v1907, %v1899
        %v2684 = vpack.c.b16 %v1908, %v1900
        %v2685 = vpack.c.b16 %v1909, %v1901
        %v2686 = vpack.c.b16 %v1910, %v1902
        %v2687 = vpack.c.b16 %v1911, %v1903
        %v2688 = vpack.c.b16 %v1920, %v1912
        %v2689 = vpack.c.b16 %v1921, %v1913
        %v2690 = vpack.c.b16 %v1922, %v1914
        %v2691 = vpack.c.b16 %v1923, %v1915
        %v2692 = vpack.c.b16 %v1924, %v1916
        %v2693 = vpack.c.b16 %v1925, %v1917
        %v2694 = vpack.c.b16 %v1926, %v1918
        %v2695 = vpack.c.b16 %v1927, %v1919
        %v2696 = vpack.c.b16 %v1936, %v1928
        %v2697 = vpack.c.b16 %v1937, %v1929
        %v2698 = vpack.c.b16 %v1938, %v1930
        %v2699 = vpack.c.b16 %v1939, %v1931
        %v2700 = vpack.c.b16 %v1940, %v1932
        %v2701 = vpack.c.b16 %v1941, %v1933
        %v2702 = vpack.c.b16 %v1942, %v1934
        %v2703 = vpack.c.b16 %v1943, %v1935
        %v2704 = vpack.c.b16 %v1952, %v1944
        %v2705 = vpack.c.b16 %v1953, %v1945
        %v2706 = vpack.c.b16 %v1954, %v1946
        %v2707 = vpack.c.b16 %v1955, %v1947
        %v2708 = vpack.c.b16 %v1956, %v1948
        %v2709 = vpack.c.b16 %v1957, %v1949
        %v2710 = vpack.c.b16 %v1958, %v1950
        %v2711 = vpack.c.b16 %v1959, %v1951
        %v2712 = vpack.c.b16 %v1968, %v1960
        %v2713 = vpack.c.b16 %v1969, %v1961
        %v2714 = vpack.c.b16 %v1970, %v1962
        %v2715 = vpack.c.b16 %v1971, %v1963
        %v2716 = vpack.c.b16 %v1972, %v1964
        %v2717 = vpack.c.b16 %v1973, %v1965
        %v2718 = vpack.c.b16 %v1974, %v1966
        %v2719 = vpack.c.b16 %v1975, %v1967
        %v2720 = vpack.c.b16 %v1984, %v1976
        %v2721 = vpack.c.b16 %v1985, %v1977
        %v2722 = vpack.c.b16 %v1986, %v1978
        %v2723 = vpack.c.b16 %v1987, %v1979
        %v2724 = vpack.c.b16 %v1988, %v1980
        %v2725 = vpack.c.b16 %v1989, %v1981
        %v2726 = vpack.c.b16 %v1990, %v1982
        %v2727 = vpack.c.b16 %v1991, %v1983
        %v2728 = vpack.c.b16 %v2000, %v1992
        %v2729 = vpack.c.b16 %v2001, %v1993
        %v2730 = vpack.c.b16 %v2002, %v1994
        %v2731 = vpack.c.b16 %v2003, %v1995
        %v2732 = vpack.c.b16 %v2004, %v1996
        %v2733 = vpack.c.b16 %v2005, %v1997
        %v2734 = vpack.c.b16 %v2006, %v1998
        %v2735 = vpack.c.b16 %v2007, %v1999
        %v2736 = vpack.c.b16 %v2016, %v2008
        %v2737 = vpack.c.b16 %v2017, %v2009
        %v2738 = vpack.c.b16 %v2018, %v2010
        %v2739 = vpack.c.b16 %v2019, %v2011
        %v2740 = vpack.c.b16 %v2020, %v2012
        %v2741 = vpack.c.b16 %v2021, %v2013
        %v2742 = vpack.c.b16 %v2022, %v2014
        %v2743 = vpack.c.b16 %v2023, %v2015
        %v2744 = vpack.c.b16 %v2032, %v2024
        %v2745 = vpack.c.b16 %v2033, %v2025
        %v2746 = vpack.c.b16 %v2034, %v2026
        %v2747 = vpack.c.b16 %v2035, %v2027
        %v2748 = vpack.c.b16 %v2036, %v2028
        %v2749 = vpack.c.b16 %v2037, %v2029
        %v2750 = vpack.c.b16 %v2038, %v2030
        %v2751 = vpack.c.b16 %v2039, %v2031
        %v2752 = vpack.c.b16 %v2048, %v2040
        %v2753 = vpack.c.b16 %v2049, %v2041
        %v2754 = vpack.c.b16 %v2050, %v2042
        %v2755 = vpack.c.b16 %v2051, %v2043
        %v2756 = vpack.c.b16 %v2052, %v2044
        %v2757 = vpack.c.b16 %v2053, %v2045
        %v2758 = vpack.c.b16 %v2054, %v2046
        %v2759 = vpack.c.b16 %v2055, %v2047
        %v2760 = vpack.c.b16 %v2064, %v2056
        %v2761 = vpack.c.b16 %v2065, %v2057
        %v2762 = vpack.c.b16 %v2066, %v2058
        %v2763 = vpack.c.b16 %v2067, %v2059
        %v2764 = vpack.c.b16 %v2068, %v2060
        %v2765 = vpack.c.b16 %v2069, %v2061
        %v2766 = vpack.c.b16 %v2070, %v2062
        %v2767 = vpack.c.b16 %v2071, %v2063
        %v2768 = vpack.c.b16 %v2080, %v2072
        %v2769 = vpack.c.b16 %v2081, %v2073
        %v2770 = vpack.c.b16 %v2082, %v2074
        %v2771 = vpack.c.b16 %v2083, %v2075
        %v2772 = vpack.c.b16 %v2084, %v2076
        %v2773 = vpack.c.b16 %v2085, %v2077
        %v2774 = vpack.c.b16 %v2086, %v2078
        %v2775 = vpack.c.b16 %v2087, %v2079
        %v2776 = vpack.c.b16 %v2096, %v2088
        %v2777 = vpack.c.b16 %v2097, %v2089
        %v2778 = vpack.c.b16 %v2098, %v2090
        %v2779 = vpack.c.b16 %v2099, %v2091
        %v2780 = vpack.c.b16 %v2100, %v2092
        %v2781 = vpack.c.b16 %v2101, %v2093
        %v2782 = vpack.c.b16 %v2102, %v2094
        %v2783 = vpack.c.b16 %v2103, %v2095
        %v2784 = vpack.c.b16 %v2112, %v2104
        %v2785 = vpack.c.b16 %v2113, %v2105
        %v2786 = vpack.c.b16 %v2114, %v2106
        %v2787 = vpack.c.b16 %v2115, %v2107
        %v2788 = vpack.c.b16 %v2116, %v2108
        %v2789 = vpack.c.b16 %v2117, %v2109
        %v2790 = vpack.c.b16 %v2118, %v2110
        %v2791 = vpack.c.b16 %v2119, %v2111
        %v2792 = vpack.c.b16 %v2128, %v2120
        %v2793 = vpack.c.b16 %v2129, %v2121
        %v2794 = vpack.c.b16 %v2130, %v2122
        %v2795 = vpack.c.b16 %v2131, %v2123
        %v2796 = vpack.c.b16 %v2132, %v2124
        %v2797 = vpack.c.b16 %v2133, %v2125
        %v2798 = vpack.c.b16 %v2134, %v2126
        %v2799 = vpack.c.b16 %v2135, %v2127
        %v2800 = vpack.c.b16 %v2144, %v2136
        %v2801 = vpack.c.b16 %v2145, %v2137
        %v2802 = vpack.c.b16 %v2146, %v2138
        %v2803 = vpack.c.b16 %v2147, %v2139
        %v2804 = vpack.c.b16 %v2148, %v2140
        %v2805 = vpack.c.b16 %v2149, %v2141
        %v2806 = vpack.c.b16 %v2150, %v2142
        %v2807 = vpack.c.b16 %v2151, %v2143
        %v2808 = vpack.c.b16 %v2160, %v2152
        %v2809 = vpack.c.b16 %v2161, %v2153
        %v2810 = vpack.c.b16 %v2162, %v2154
        %v2811 = vpack.c.b16 %v2163, %v2155
        %v2812 = vpack.c.b16 %v2164, %v2156
        %v2813 = vpack.c.b16 %v2165, %v2157
        %v2814 = vpack.c.b16 %v2166, %v2158
        %v2815 = vpack.c.b16 %v2167, %v2159
        %v2816 = vpack.c.b16 %v2176, %v2168
        %v2817 = vpack.c.b16 %v2177, %v2169
        %v2818 = vpack.c.b16 %v2178, %v2170
        %v2819 = vpack.c.b16 %v2179, %v2171
        %v2820 = vpack.c.b16 %v2180, %v2172
        %v2821 = vpack.c.b16 %v2181, %v2173
        %v2822 = vpack.c.b16 %v2182, %v2174
        %v2823 = vpack.c.b16 %v2183, %v2175
        %v2824 = vpack.c.b16 %v2192, %v2184
        %v2825 = vpack.c.b16 %v2193, %v2185
        %v2826 = vpack.c.b16 %v2194, %v2186
        %v2827 = vpack.c.b16 %v2195, %v2187
        %v2828 = vpack.c.b16 %v2196, %v2188
        %v2829 = vpack.c.b16 %v2197, %v2189
        %v2830 = vpack.c.b16 %v2198, %v2190
        %v2831 = vpack.c.b16 %v2199, %v2191
        %v2832 = vpack.c.b16 %v2208, %v2200
        %v2833 = vpack.c.b16 %v2209, %v2201
        %v2834 = vpack.c.b16 %v2210, %v2202
        %v2835 = vpack.c.b16 %v2211, %v2203
        %v2836 = vpack.c.b16 %v2212, %v2204
        %v2837 = vpack.c.b16 %v2213, %v2205
        %v2838 = vpack.c.b16 %v2214, %v2206
        %v2839 = vpack.c.b16 %v2215, %v2207
        %v2840 = vpack.c.b16 %v2224, %v2216
        %v2841 = vpack.c.b16 %v2225, %v2217
        %v2842 = vpack.c.b16 %v2226, %v2218
        %v2843 = vpack.c.b16 %v2227, %v2219
        %v2844 = vpack.c.b16 %v2228, %v2220
        %v2845 = vpack.c.b16 %v2229, %v2221
        %v2846 = vpack.c.b16 %v2230, %v2222
        %v2847 = vpack.c.b16 %v2231, %v2223
        %v2848 = vpack.c.b16 %v2240, %v2232
        %v2849 = vpack.c.b16 %v2241, %v2233
        %v2850 = vpack.c.b16 %v2242, %v2234
        %v2851 = vpack.c.b16 %v2243, %v2235
        %v2852 = vpack.c.b16 %v2244, %v2236
        %v2853 = vpack.c.b16 %v2245, %v2237
        %v2854 = vpack.c.b16 %v2246, %v2238
        %v2855 = vpack.c.b16 %v2247, %v2239
        %v2856 = vpack.c.b16 %v2256, %v2248
        %v2857 = vpack.c.b16 %v2257, %v2249
        %v2858 = vpack.c.b16 %v2258, %v2250
        %v2859 = vpack.c.b16 %v2259, %v2251
        %v2860 = vpack.c.b16 %v2260, %v2252
        %v2861 = vpack.c.b16 %v2261, %v2253
        %v2862 = vpack.c.b16 %v2262, %v2254
        %v2863 = vpack.c.b16 %v2263, %v2255
        %v2864 = vpack.c.b16 %v2272, %v2264
        %v2865 = vpack.c.b16 %v2273, %v2265
        %v2866 = vpack.c.b16 %v2274, %v2266
        %v2867 = vpack.c.b16 %v2275, %v2267
        %v2868 = vpack.c.b16 %v2276, %v2268
        %v2869 = vpack.c.b16 %v2277, %v2269
        %v2870 = vpack.c.b16 %v2278, %v2270
        %v2871 = vpack.c.b16 %v2279, %v2271
        %v2872 = vpack.c.b16 %v2288, %v2280
        %v2873 = vpack.c.b16 %v2289, %v2281
        %v2874 = vpack.c.b16 %v2290, %v2282
        %v2875 = vpack.c.b16 %v2291, %v2283
        %v2876 = vpack.c.b16 %v2292, %v2284
        %v2877 = vpack.c.b16 %v2293, %v2285
        %v2878 = vpack.c.b16 %v2294, %v2286
        %v2879 = vpack.c.b16 %v2295, %v2287
        %v2880 = vpack.c.b16 %v2304, %v2296
        %v2881 = vpack.c.b16 %v2305, %v2297
        %v2882 = vpack.c.b16 %v2306, %v2298
        %v2883 = vpack.c.b16 %v2307, %v2299
        %v2884 = vpack.c.b16 %v2308, %v2300
        %v2885 = vpack.c.b16 %v2309, %v2301
        %v2886 = vpack.c.b16 %v2310, %v2302
        %v2887 = vpack.c.b16 %v2311, %v2303
        %v2888 = vpack.c.b16 %v2320, %v2312
        %v2889 = vpack.c.b16 %v2321, %v2313
        %v2890 = vpack.c.b16 %v2322, %v2314
        %v2891 = vpack.c.b16 %v2323, %v2315
        %v2892 = vpack.c.b16 %v2324, %v2316
        %v2893 = vpack.c.b16 %v2325, %v2317
        %v2894 = vpack.c.b16 %v2326, %v2318
        %v2895 = vpack.c.b16 %v2327, %v2319
        %v2896 = vpack.c.b16 %v2336, %v2328
        %v2897 = vpack.c.b16 %v2337, %v2329
        %v2898 = vpack.c.b16 %v2338, %v2330
        %v2899 = vpack.c.b16 %v2339, %v2331
        %v2900 = vpack.c.b16 %v2340, %v2332
        %v2901 = vpack.c.b16 %v2341, %v2333
        %v2902 = vpack.c.b16 %v2342, %v2334
        %v2903 = vpack.c.b16 %v2343, %v2335
        %v2904 = vpack.c.b16 %v2352, %v2344
        %v2905 = vpack.c.b16 %v2353, %v2345
        %v2906 = vpack.c.b16 %v2354, %v2346
        %v2907 = vpack.c.b16 %v2355, %v2347
        %v2908 = vpack.c.b16 %v2356, %v2348
        %v2909 = vpack.c.b16 %v2357, %v2349
        %v2910 = vpack.c.b16 %v2358, %v2350
        %v2911 = vpack.c.b16 %v2359, %v2351
        %v2912 = vpack.c.b16 %v2368, %v2360
        %v2913 = vpack.c.b16 %v2369, %v2361
        %v2914 = vpack.c.b16 %v2370, %v2362
        %v2915 = vpack.c.b16 %v2371, %v2363
        %v2916 = vpack.c.b16 %v2372, %v2364
        %v2917 = vpack.c.b16 %v2373, %v2365
        %v2918 = vpack.c.b16 %v2374, %v2366
        %v2919 = vpack.c.b16 %v2375, %v2367
        %v2920 = vpack.c.b16 %v2384, %v2376
        %v2921 = vpack.c.b16 %v2385, %v2377
        %v2922 = vpack.c.b16 %v2386, %v2378
        %v2923 = vpack.c.b16 %v2387, %v2379
        %v2924 = vpack.c.b16 %v2388, %v2380
        %v2925 = vpack.c.b16 %v2389, %v2381
        %v2926 = vpack.c.b16 %v2390, %v2382
        %v2927 = vpack.c.b16 %v2391, %v2383
        %v2928 = vpack.c.b16 %v2400, %v2392
        %v2929 = vpack.c.b16 %v2401, %v2393
        %v2930 = vpack.c.b16 %v2402, %v2394
        %v2931 = vpack.c.b16 %v2403, %v2395
        %v2932 = vpack.c.b16 %v2404, %v2396
        %v2933 = vpack.c.b16 %v2405, %v2397
        %v2934 = vpack.c.b16 %v2406, %v2398
        %v2935 = vpack.c.b16 %v2407, %v2399
        %v2936 = vpack.c.b16 %v2416, %v2408
        %v2937 = vpack.c.b16 %v2417, %v2409
        %v2938 = vpack.c.b16 %v2418, %v2410
        %v2939 = vpack.c.b16 %v2419, %v2411
        %v2940 = vpack.c.b16 %v2420, %v2412
        %v2941 = vpack.c.b16 %v2421, %v2413
        %v2942 = vpack.c.b16 %v2422, %v2414
        %v2943 = vpack.c.b16 %v2423, %v2415
        %v2944 = vpack.c.b16 %v2432, %v2424
        %v2945 = vpack.c.b16 %v2433, %v2425
        %v2946 = vpack.c.b16 %v2434, %v2426
        %v2947 = vpack.c.b16 %v2435, %v2427
        %v2948 = vpack.c.b16 %v2436, %v2428
        %v2949 = vpack.c.b16 %v2437, %v2429
        %v2950 = vpack.c.b16 %v2438, %v2430
        %v2951 = vpack.c.b16 %v2439, %v2431
        %v2952 = vpack.c.b16 %v2448, %v2440
        %v2953 = vpack.c.b16 %v2449, %v2441
        %v2954 = vpack.c.b16 %v2450, %v2442
        %v2955 = vpack.c.b16 %v2451, %v2443
        %v2956 = vpack.c.b16 %v2452, %v2444
        %v2957 = vpack.c.b16 %v2453, %v2445
        %v2958 = vpack.c.b16 %v2454, %v2446
        %v2959 = vpack.c.b16 %v2455, %v2447
        %v2960 = vpack.c.b16 %v2464, %v2456
        %v2961 = vpack.c.b16 %v2465, %v2457
        %v2962 = vpack.c.b16 %v2466, %v2458
        %v2963 = vpack.c.b16 %v2467, %v2459
        %v2964 = vpack.c.b16 %v2468, %v2460
        %v2965 = vpack.c.b16 %v2469, %v2461
        %v2966 = vpack.c.b16 %v2470, %v2462
        %v2967 = vpack.c.b16 %v2471, %v2463
        %v2968 = vpack.c.b16 %v2480, %v2472
        %v2969 = vpack.c.b16 %v2481, %v2473
        %v2970 = vpack.c.b16 %v2482, %v2474
        %v2971 = vpack.c.b16 %v2483, %v2475
        %v2972 = vpack.c.b16 %v2484, %v2476
        %v2973 = vpack.c.b16 %v2485, %v2477
        %v2974 = vpack.c.b16 %v2486, %v2478
        %v2975 = vpack.c.b16 %v2487, %v2479
        %v2976 = vpack.c.b16 %v2496, %v2488
        %v2977 = vpack.c.b16 %v2497, %v2489
        %v2978 = vpack.c.b16 %v2498, %v2490
        %v2979 = vpack.c.b16 %v2499, %v2491
        %v2980 = vpack.c.b16 %v2500, %v2492
        %v2981 = vpack.c.b16 %v2501, %v2493
        %v2982 = vpack.c.b16 %v2502, %v2494
        %v2983 = vpack.c.b16 %v2503, %v2495
        %v2984 = vpack.c.b16 %v2512, %v2504
        %v2985 = vpack.c.b16 %v2513, %v2505
        %v2986 = vpack.c.b16 %v2514, %v2506
        %v2987 = vpack.c.b16 %v2515, %v2507
        %v2988 = vpack.c.b16 %v2516, %v2508
        %v2989 = vpack.c.b16 %v2517, %v2509
        %v2990 = vpack.c.b16 %v2518, %v2510
        %v2991 = vpack.c.b16 %v2519, %v2511
        %v2992 = vpack.c.b16 %v2528, %v2520
        %v2993 = vpack.c.b16 %v2529, %v2521
        %v2994 = vpack.c.b16 %v2530, %v2522
        %v2995 = vpack.c.b16 %v2531, %v2523
        %v2996 = vpack.c.b16 %v2532, %v2524
        %v2997 = vpack.c.b16 %v2533, %v2525
        %v2998 = vpack.c.b16 %v2534, %v2526
        %v2999 = vpack.c.b16 %v2535, %v2527
        %v3000 = vpack.c.b16 %v2544, %v2536
        %v3001 = vpack.c.b16 %v2545, %v2537
        %v3002 = vpack.c.b16 %v2546, %v2538
        %v3003 = vpack.c.b16 %v2547, %v2539
        %v3004 = vpack.c.b16 %v2548, %v2540
        %v3005 = vpack.c.b16 %v2549, %v2541
        %v3006 = vpack.c.b16 %v2550, %v2542
        %v3007 = vpack.c.b16 %v2551, %v2543
        %v3008 = vpack.c.b16 %v2560, %v2552
        %v3009 = vpack.c.b16 %v2561, %v2553
        %v3010 = vpack.c.b16 %v2562, %v2554
        %v3011 = vpack.c.b16 %v2563, %v2555
        %v3012 = vpack.c.b16 %v2564, %v2556
        %v3013 = vpack.c.b16 %v2565, %v2557
        %v3014 = vpack.c.b16 %v2566, %v2558
        %v3015 = vpack.c.b16 %v2567, %v2559
        %3464 = vmatprep.subr.bf16.mxu0 %v2625
        %3465 = vmatpush1.bf16.msra.mxu0 %v2624
        %3466 = vmatprep.subr.bf16.mxu0 %v2617
        %3467 = vmatpush1.bf16.msra.mxu0 %v2616
        %3468 = vmatprep.subr.bf16.mxu0 %v2609
        %3469 = vmatpush1.bf16.msra.mxu0 %v2608
        %3470 = vmatprep.subr.bf16.mxu0 %v2601
        %3471 = vmatpush1.bf16.msra.mxu0 %v2600
        %3472 = vmatprep.subr.bf16.mxu0 %v2593
        %3473 = vmatpush1.bf16.msra.mxu0 %v2592
        %3474 = vmatprep.subr.bf16.mxu0 %v2585
        %3475 = vmatpush1.bf16.msra.mxu0 %v2584
        %3476 = vmatprep.subr.bf16.mxu0 %v2577
        %3477 = vmatpush1.bf16.msra.mxu0 %v2576
        %3478 = vmatprep.subr.bf16.mxu0 %v2569
        %3479 = vmatpush1.bf16.msra.mxu0 %v2568
        %3480 = vmatprep.subr.bf16.mxu0 %v2689
        %3481 = vmatpush2.bf16.msra.mxu0 %v2688
        %3482 = vmatprep.subr.bf16.mxu0 %v2681
        %3483 = vmatpush2.bf16.msra.mxu0 %v2680
        %3484 = vmatprep.subr.bf16.mxu0 %v2673
        %3485 = vmatpush2.bf16.msra.mxu0 %v2672
        %3486 = vmatprep.subr.bf16.mxu0 %v2665
        %3487 = vmatpush2.bf16.msra.mxu0 %v2664
        %3488 = vmatprep.subr.bf16.mxu0 %v2657
        %3489 = vmatpush2.bf16.msra.mxu0 %v2656
        %3490 = vmatprep.subr.bf16.mxu0 %v2649
        %3491 = vmatpush2.bf16.msra.mxu0 %v2648
        %3492 = vmatprep.subr.bf16.mxu0 %v2641
        %3493 = vmatpush2.bf16.msra.mxu0 %v2640
        %3494 = vmatprep.subr.bf16.mxu0 %v2633
        %3495 = vmatpush2.bf16.msra.mxu0 %v2632
        %3496 = vmatprep.mubr.bf16.mxu0 %v1113
        %3497 = vmatmul.mubr.bf16.gmra.mxu0 %v1112
        %v3498 = vpop.f32.mrf.mxu0
        %v3499 = vadd.f32 %v899, %v3498
        %v3500 = vpop.f32.mrf.mxu0
        %v3501 = vadd.f32 %v903, %v3500
        %v3502 = vpop.f32.mrf.mxu0
        %v3503 = vadd.f32 %v899, %v3502
        %v3504 = vpop.f32.mrf.mxu0
        %v3505 = vadd.f32 %v903, %v3504
        %3506 = vmatprep.mubr.bf16.mxu0 %v1120
        %3507 = vmatmul.mubr.bf16.gmra.mxu0 %v1119
        %v3508 = vpop.f32.mrf.mxu0
        %v3509 = vadd.f32 %v899, %v3508
        %v3510 = vpop.f32.mrf.mxu0
        %v3511 = vadd.f32 %v903, %v3510
        %v3512 = vpop.f32.mrf.mxu0
        %v3513 = vadd.f32 %v899, %v3512
        %v3514 = vpop.f32.mrf.mxu0
        %v3515 = vadd.f32 %v903, %v3514
        %3516 = vmatprep.mubr.bf16.mxu0 %v1127
        %3517 = vmatmul.mubr.bf16.gmra.mxu0 %v1126
        %v3518 = vpop.f32.mrf.mxu0
        %v3519 = vadd.f32 %v899, %v3518
        %v3520 = vpop.f32.mrf.mxu0
        %v3521 = vadd.f32 %v903, %v3520
        %v3522 = vpop.f32.mrf.mxu0
        %v3523 = vadd.f32 %v899, %v3522
        %v3524 = vpop.f32.mrf.mxu0
        %v3525 = vadd.f32 %v903, %v3524
        %3526 = vmatprep.mubr.bf16.mxu0 %v1134
        %3527 = vmatmul.mubr.bf16.gmra.mxu0 %v1133
        %v3528 = vpop.f32.mrf.mxu0
        %v3529 = vadd.f32 %v899, %v3528
        %v3530 = vpop.f32.mrf.mxu0
        %v3531 = vadd.f32 %v903, %v3530
        %v3532 = vpop.f32.mrf.mxu0
        %v3533 = vadd.f32 %v899, %v3532
        %v3534 = vpop.f32.mrf.mxu0
        %v3535 = vadd.f32 %v903, %v3534
        %3536 = vmatprep.mubr.bf16.mxu0 %v1141
        %3537 = vmatmul.mubr.bf16.gmra.mxu0 %v1140
        %v3538 = vpop.f32.mrf.mxu0
        %v3539 = vadd.f32 %v899, %v3538
        %v3540 = vpop.f32.mrf.mxu0
        %v3541 = vadd.f32 %v903, %v3540
        %v3542 = vpop.f32.mrf.mxu0
        %v3543 = vadd.f32 %v899, %v3542
        %v3544 = vpop.f32.mrf.mxu0
        %v3545 = vadd.f32 %v903, %v3544
        %3546 = vmatprep.mubr.bf16.mxu0 %v1148
        %3547 = vmatmul.mubr.bf16.gmra.mxu0 %v1147
        %v3548 = vpop.f32.mrf.mxu0
        %v3549 = vadd.f32 %v899, %v3548
        %v3550 = vpop.f32.mrf.mxu0
        %v3551 = vadd.f32 %v903, %v3550
        %v3552 = vpop.f32.mrf.mxu0
        %v3553 = vadd.f32 %v899, %v3552
        %v3554 = vpop.f32.mrf.mxu0
        %v3555 = vadd.f32 %v903, %v3554
        %3556 = vmatprep.mubr.bf16.mxu0 %v1155
        %3557 = vmatmul.mubr.bf16.gmra.mxu0 %v1154
        %v3558 = vpop.f32.mrf.mxu0
        %v3559 = vadd.f32 %v899, %v3558
        %v3560 = vpop.f32.mrf.mxu0
        %v3561 = vadd.f32 %v903, %v3560
        %v3562 = vpop.f32.mrf.mxu0
        %v3563 = vadd.f32 %v899, %v3562
        %v3564 = vpop.f32.mrf.mxu0
        %v3565 = vadd.f32 %v903, %v3564
        %3566 = vmatprep.mubr.bf16.mxu0 %v1162
        %3567 = vmatmul.mubr.bf16.gmra.mxu0 %v1161
        %v3568 = vpop.f32.mrf.mxu0
        %v3569 = vadd.f32 %v899, %v3568
        %v3570 = vpop.f32.mrf.mxu0
        %v3571 = vadd.f32 %v903, %v3570
        %v3572 = vpop.f32.mrf.mxu0
        %v3573 = vadd.f32 %v899, %v3572
        %v3574 = vpop.f32.mrf.mxu0
        %v3575 = vadd.f32 %v903, %v3574
        %3576 = vdwg.mxu0
        %3577 = vmatprep.subr.bf16.mxu0 %v2753
        %3578 = vmatpush1.bf16.msra.mxu0 %v2752
        %3579 = vmatprep.subr.bf16.mxu0 %v2745
        %3580 = vmatpush1.bf16.msra.mxu0 %v2744
        %3581 = vmatprep.subr.bf16.mxu0 %v2737
        %3582 = vmatpush1.bf16.msra.mxu0 %v2736
        %3583 = vmatprep.subr.bf16.mxu0 %v2729
        %3584 = vmatpush1.bf16.msra.mxu0 %v2728
        %3585 = vmatprep.subr.bf16.mxu0 %v2721
        %3586 = vmatpush1.bf16.msra.mxu0 %v2720
        %3587 = vmatprep.subr.bf16.mxu0 %v2713
        %3588 = vmatpush1.bf16.msra.mxu0 %v2712
        %3589 = vmatprep.subr.bf16.mxu0 %v2705
        %3590 = vmatpush1.bf16.msra.mxu0 %v2704
        %3591 = vmatprep.subr.bf16.mxu0 %v2697
        %3592 = vmatpush1.bf16.msra.mxu0 %v2696
        %3593 = vmatprep.subr.bf16.mxu0 %v2817
        %3594 = vmatpush2.bf16.msra.mxu0 %v2816
        %3595 = vmatprep.subr.bf16.mxu0 %v2809
        %3596 = vmatpush2.bf16.msra.mxu0 %v2808
        %3597 = vmatprep.subr.bf16.mxu0 %v2801
        %3598 = vmatpush2.bf16.msra.mxu0 %v2800
        %3599 = vmatprep.subr.bf16.mxu0 %v2793
        %3600 = vmatpush2.bf16.msra.mxu0 %v2792
        %3601 = vmatprep.subr.bf16.mxu0 %v2785
        %3602 = vmatpush2.bf16.msra.mxu0 %v2784
        %3603 = vmatprep.subr.bf16.mxu0 %v2777
        %3604 = vmatpush2.bf16.msra.mxu0 %v2776
        %3605 = vmatprep.subr.bf16.mxu0 %v2769
        %3606 = vmatpush2.bf16.msra.mxu0 %v2768
        %3607 = vmatprep.subr.bf16.mxu0 %v2761
        %3608 = vmatpush2.bf16.msra.mxu0 %v2760
        %3609 = vmatprep.mubr.bf16.mxu0 %v1115
        %3610 = vmatmul.mubr.bf16.gmra.mxu0 %v1114
        %v3611 = vpop.f32.mrf.mxu0
        %v3612 = vadd.f32 %v3499, %v3611
        %v3613 = vpop.f32.mrf.mxu0
        %v3614 = vadd.f32 %v3501, %v3613
        %v3615 = vpop.f32.mrf.mxu0
        %v3616 = vadd.f32 %v3503, %v3615
        %v3617 = vpop.f32.mrf.mxu0
        %v3618 = vadd.f32 %v3505, %v3617
        %3619 = vmatprep.mubr.bf16.mxu0 %v1122
        %3620 = vmatmul.mubr.bf16.gmra.mxu0 %v1121
        %v3621 = vpop.f32.mrf.mxu0
        %v3622 = vadd.f32 %v3509, %v3621
        %v3623 = vpop.f32.mrf.mxu0
        %v3624 = vadd.f32 %v3511, %v3623
        %v3625 = vpop.f32.mrf.mxu0
        %v3626 = vadd.f32 %v3513, %v3625
        %v3627 = vpop.f32.mrf.mxu0
        %v3628 = vadd.f32 %v3515, %v3627
        %3629 = vmatprep.mubr.bf16.mxu0 %v1129
        %3630 = vmatmul.mubr.bf16.gmra.mxu0 %v1128
        %v3631 = vpop.f32.mrf.mxu0
        %v3632 = vadd.f32 %v3519, %v3631
        %v3633 = vpop.f32.mrf.mxu0
        %v3634 = vadd.f32 %v3521, %v3633
        %v3635 = vpop.f32.mrf.mxu0
        %v3636 = vadd.f32 %v3523, %v3635
        %v3637 = vpop.f32.mrf.mxu0
        %v3638 = vadd.f32 %v3525, %v3637
        %3639 = vmatprep.mubr.bf16.mxu0 %v1136
        %3640 = vmatmul.mubr.bf16.gmra.mxu0 %v1135
        %v3641 = vpop.f32.mrf.mxu0
        %v3642 = vadd.f32 %v3529, %v3641
        %v3643 = vpop.f32.mrf.mxu0
        %v3644 = vadd.f32 %v3531, %v3643
        %v3645 = vpop.f32.mrf.mxu0
        %v3646 = vadd.f32 %v3533, %v3645
        %v3647 = vpop.f32.mrf.mxu0
        %v3648 = vadd.f32 %v3535, %v3647
        %3649 = vmatprep.mubr.bf16.mxu0 %v1143
        %3650 = vmatmul.mubr.bf16.gmra.mxu0 %v1142
        %v3651 = vpop.f32.mrf.mxu0
        %v3652 = vadd.f32 %v3539, %v3651
        %v3653 = vpop.f32.mrf.mxu0
        %v3654 = vadd.f32 %v3541, %v3653
        %v3655 = vpop.f32.mrf.mxu0
        %v3656 = vadd.f32 %v3543, %v3655
        %v3657 = vpop.f32.mrf.mxu0
        %v3658 = vadd.f32 %v3545, %v3657
        %3659 = vmatprep.mubr.bf16.mxu0 %v1150
        %3660 = vmatmul.mubr.bf16.gmra.mxu0 %v1149
        %v3661 = vpop.f32.mrf.mxu0
        %v3662 = vadd.f32 %v3549, %v3661
        %v3663 = vpop.f32.mrf.mxu0
        %v3664 = vadd.f32 %v3551, %v3663
        %v3665 = vpop.f32.mrf.mxu0
        %v3666 = vadd.f32 %v3553, %v3665
        %v3667 = vpop.f32.mrf.mxu0
        %v3668 = vadd.f32 %v3555, %v3667
        %3669 = vmatprep.mubr.bf16.mxu0 %v1157
        %3670 = vmatmul.mubr.bf16.gmra.mxu0 %v1156
        %v3671 = vpop.f32.mrf.mxu0
        %v3672 = vadd.f32 %v3559, %v3671
        %v3673 = vpop.f32.mrf.mxu0
        %v3674 = vadd.f32 %v3561, %v3673
        %v3675 = vpop.f32.mrf.mxu0
        %v3676 = vadd.f32 %v3563, %v3675
        %v3677 = vpop.f32.mrf.mxu0
        %v3678 = vadd.f32 %v3565, %v3677
        %3679 = vmatprep.mubr.bf16.mxu0 %v1164
        %3680 = vmatmul.mubr.bf16.gmra.mxu0 %v1163
        %v3681 = vpop.f32.mrf.mxu0
        %v3682 = vadd.f32 %v3569, %v3681
        %v3683 = vpop.f32.mrf.mxu0
        %v3684 = vadd.f32 %v3571, %v3683
        %v3685 = vpop.f32.mrf.mxu0
        %v3686 = vadd.f32 %v3573, %v3685
        %v3687 = vpop.f32.mrf.mxu0
        %v3688 = vadd.f32 %v3575, %v3687
        %3689 = vdwg.mxu0
        %3690 = vmatprep.subr.bf16.mxu0 %v2881
        %3691 = vmatpush1.bf16.msra.mxu0 %v2880
        %3692 = vmatprep.subr.bf16.mxu0 %v2873
        %3693 = vmatpush1.bf16.msra.mxu0 %v2872
        %3694 = vmatprep.subr.bf16.mxu0 %v2865
        %3695 = vmatpush1.bf16.msra.mxu0 %v2864
        %3696 = vmatprep.subr.bf16.mxu0 %v2857
        %3697 = vmatpush1.bf16.msra.mxu0 %v2856
        %3698 = vmatprep.subr.bf16.mxu0 %v2849
        %3699 = vmatpush1.bf16.msra.mxu0 %v2848
        %3700 = vmatprep.subr.bf16.mxu0 %v2841
        %3701 = vmatpush1.bf16.msra.mxu0 %v2840
        %3702 = vmatprep.subr.bf16.mxu0 %v2833
        %3703 = vmatpush1.bf16.msra.mxu0 %v2832
        %3704 = vmatprep.subr.bf16.mxu0 %v2825
        %3705 = vmatpush1.bf16.msra.mxu0 %v2824
        %3706 = vmatprep.subr.bf16.mxu0 %v2945
        %3707 = vmatpush2.bf16.msra.mxu0 %v2944
        %3708 = vmatprep.subr.bf16.mxu0 %v2937
        %3709 = vmatpush2.bf16.msra.mxu0 %v2936
        %3710 = vmatprep.subr.bf16.mxu0 %v2929
        %3711 = vmatpush2.bf16.msra.mxu0 %v2928
        %3712 = vmatprep.subr.bf16.mxu0 %v2921
        %3713 = vmatpush2.bf16.msra.mxu0 %v2920
        %3714 = vmatprep.subr.bf16.mxu0 %v2913
        %3715 = vmatpush2.bf16.msra.mxu0 %v2912
        %3716 = vmatprep.subr.bf16.mxu0 %v2905
        %3717 = vmatpush2.bf16.msra.mxu0 %v2904
        %3718 = vmatprep.subr.bf16.mxu0 %v2897
        %3719 = vmatpush2.bf16.msra.mxu0 %v2896
        %3720 = vmatprep.subr.bf16.mxu0 %v2889
        %3721 = vmatpush2.bf16.msra.mxu0 %v2888
        %3722 = vmatprep.mubr.bf16.mxu0 %v1117
        %3723 = vmatmul.mubr.bf16.gmra.mxu0 %v1116
        %v3724 = vpop.f32.mrf.mxu0
        %v3725 = vadd.f32 %v3612, %v3724
        %v3726 = vpop.f32.mrf.mxu0
        %v3727 = vadd.f32 %v3614, %v3726
        %v3728 = vpop.f32.mrf.mxu0
        %v3729 = vadd.f32 %v3616, %v3728
        %v3730 = vpop.f32.mrf.mxu0
        %v3731 = vadd.f32 %v3618, %v3730
        %3732 = vmatprep.mubr.bf16.mxu0 %v1124
        %3733 = vmatmul.mubr.bf16.gmra.mxu0 %v1123
        %v3734 = vpop.f32.mrf.mxu0
        %v3735 = vadd.f32 %v3622, %v3734
        %v3736 = vpop.f32.mrf.mxu0
        %v3737 = vadd.f32 %v3624, %v3736
        %v3738 = vpop.f32.mrf.mxu0
        %v3739 = vadd.f32 %v3626, %v3738
        %v3740 = vpop.f32.mrf.mxu0
        %v3741 = vadd.f32 %v3628, %v3740
        %3742 = vmatprep.mubr.bf16.mxu0 %v1131
        %3743 = vmatmul.mubr.bf16.gmra.mxu0 %v1130
        %v3744 = vpop.f32.mrf.mxu0
        %v3745 = vadd.f32 %v3632, %v3744
        %v3746 = vpop.f32.mrf.mxu0
        %v3747 = vadd.f32 %v3634, %v3746
        %v3748 = vpop.f32.mrf.mxu0
        %v3749 = vadd.f32 %v3636, %v3748
        %v3750 = vpop.f32.mrf.mxu0
        %v3751 = vadd.f32 %v3638, %v3750
        %3752 = vmatprep.mubr.bf16.mxu0 %v1138
        %3753 = vmatmul.mubr.bf16.gmra.mxu0 %v1137
        %v3754 = vpop.f32.mrf.mxu0
        %v3755 = vadd.f32 %v3642, %v3754
        %v3756 = vpop.f32.mrf.mxu0
        %v3757 = vadd.f32 %v3644, %v3756
        %v3758 = vpop.f32.mrf.mxu0
        %v3759 = vadd.f32 %v3646, %v3758
        %v3760 = vpop.f32.mrf.mxu0
        %v3761 = vadd.f32 %v3648, %v3760
        %3762 = vmatprep.mubr.bf16.mxu0 %v1145
        %3763 = vmatmul.mubr.bf16.gmra.mxu0 %v1144
        %v3764 = vpop.f32.mrf.mxu0
        %v3765 = vadd.f32 %v3652, %v3764
        %v3766 = vpop.f32.mrf.mxu0
        %v3767 = vadd.f32 %v3654, %v3766
        %v3768 = vpop.f32.mrf.mxu0
        %v3769 = vadd.f32 %v3656, %v3768
        %v3770 = vpop.f32.mrf.mxu0
        %v3771 = vadd.f32 %v3658, %v3770
        %3772 = vmatprep.mubr.bf16.mxu0 %v1152
        %3773 = vmatmul.mubr.bf16.gmra.mxu0 %v1151
        %v3774 = vpop.f32.mrf.mxu0
        %v3775 = vadd.f32 %v3662, %v3774
        %v3776 = vpop.f32.mrf.mxu0
        %v3777 = vadd.f32 %v3664, %v3776
        %v3778 = vpop.f32.mrf.mxu0
        %v3779 = vadd.f32 %v3666, %v3778
        %v3780 = vpop.f32.mrf.mxu0
        %v3781 = vadd.f32 %v3668, %v3780
        %3782 = vmatprep.mubr.bf16.mxu0 %v1159
        %3783 = vmatmul.mubr.bf16.gmra.mxu0 %v1158
        %v3784 = vpop.f32.mrf.mxu0
        %v3785 = vadd.f32 %v3672, %v3784
        %v3786 = vpop.f32.mrf.mxu0
        %v3787 = vadd.f32 %v3674, %v3786
        %v3788 = vpop.f32.mrf.mxu0
        %v3789 = vadd.f32 %v3676, %v3788
        %v3790 = vpop.f32.mrf.mxu0
        %v3791 = vadd.f32 %v3678, %v3790
        %3792 = vmatprep.mubr.bf16.mxu0 %v1166
        %3793 = vmatmul.mubr.bf16.gmra.mxu0 %v1165
        %v3794 = vpop.f32.mrf.mxu0
        %v3795 = vadd.f32 %v3682, %v3794
        %v3796 = vpop.f32.mrf.mxu0
        %v3797 = vadd.f32 %v3684, %v3796
        %v3798 = vpop.f32.mrf.mxu0
        %v3799 = vadd.f32 %v3686, %v3798
        %v3800 = vpop.f32.mrf.mxu0
        %v3801 = vadd.f32 %v3688, %v3800
        %3802 = vdwg.mxu0
        %3803 = vmatprep.subr.bf16.mxu0 %v3009
        %3804 = vmatpush1.bf16.msra.mxu0 %v3008
        %3805 = vmatprep.subr.bf16.mxu0 %v3001
        %3806 = vmatpush1.bf16.msra.mxu0 %v3000
        %3807 = vmatprep.subr.bf16.mxu0 %v2993
        %3808 = vmatpush1.bf16.msra.mxu0 %v2992
        %3809 = vmatprep.subr.bf16.mxu0 %v2985
        %3810 = vmatpush1.bf16.msra.mxu0 %v2984
        %3811 = vmatprep.subr.bf16.mxu0 %v2977
        %3812 = vmatpush1.bf16.msra.mxu0 %v2976
        %3813 = vmatprep.subr.bf16.mxu0 %v2969
        %3814 = vmatpush1.bf16.msra.mxu0 %v2968
        %3815 = vmatprep.subr.bf16.mxu0 %v2961
        %3816 = vmatpush1.bf16.msra.mxu0 %v2960
        %3817 = vmatprep.subr.bf16.mxu0 %v2953
        %3818 = vmatpush1.bf16.msra.mxu0 %v2952
        %3819 = vmatprep.subr.bf16.mxu0 0
        %3820 = vmatpush2.bf16.msra.mxu0 0
        %3821 = vmatprep.subr.bf16.mxu0 0
        %3822 = vmatpush2.bf16.msra.mxu0 0
        %3823 = vmatprep.subr.bf16.mxu0 0
        %3824 = vmatpush2.bf16.msra.mxu0 0
        %3825 = vmatprep.subr.bf16.mxu0 0
        %3826 = vmatpush2.bf16.msra.mxu0 0
        %3827 = vmatprep.subr.bf16.mxu0 0
        %3828 = vmatpush2.bf16.msra.mxu0 0
        %3829 = vmatprep.subr.bf16.mxu0 0
        %3830 = vmatpush2.bf16.msra.mxu0 0
        %3831 = vmatprep.subr.bf16.mxu0 0
        %3832 = vmatpush2.bf16.msra.mxu0 0
        %3833 = vmatprep.subr.bf16.mxu0 0
        %3834 = vmatpush2.bf16.msra.mxu0 0
        %3835 = vmatprep.mubr.bf16.mxu0 0
        %3836 = vmatmul.mubr.bf16.gmra.mxu0 %v1118
        %v3837 = vpop.f32.mrf.mxu0
        %v3838 = vadd.f32 %v3725, %v3837
        %v3839 = vpop.f32.mrf.mxu0
        %v3840 = vadd.f32 %v3727, %v3839
        %v3841 = vpop.f32.mrf.mxu0
        %v3842 = vadd.f32 %v3729, %v3841
        %v3843 = vpop.f32.mrf.mxu0
        %v3844 = vadd.f32 %v3731, %v3843
        %3845 = vmatprep.mubr.bf16.mxu0 0
        %3846 = vmatmul.mubr.bf16.gmra.mxu0 %v1125
        %v3847 = vpop.f32.mrf.mxu0
        %v3848 = vadd.f32 %v3735, %v3847
        %v3849 = vpop.f32.mrf.mxu0
        %v3850 = vadd.f32 %v3737, %v3849
        %v3851 = vpop.f32.mrf.mxu0
        %v3852 = vadd.f32 %v3739, %v3851
        %v3853 = vpop.f32.mrf.mxu0
        %v3854 = vadd.f32 %v3741, %v3853
        %3855 = vmatprep.mubr.bf16.mxu0 0
        %3856 = vmatmul.mubr.bf16.gmra.mxu0 %v1132
        %v3857 = vpop.f32.mrf.mxu0
        %v3858 = vadd.f32 %v3745, %v3857
        %v3859 = vpop.f32.mrf.mxu0
        %v3860 = vadd.f32 %v3747, %v3859
        %v3861 = vpop.f32.mrf.mxu0
        %v3862 = vadd.f32 %v3749, %v3861
        %v3863 = vpop.f32.mrf.mxu0
        %v3864 = vadd.f32 %v3751, %v3863
        %3865 = vmatprep.mubr.bf16.mxu0 0
        %3866 = vmatmul.mubr.bf16.gmra.mxu0 %v1139
        %v3867 = vpop.f32.mrf.mxu0
        %v3868 = vadd.f32 %v3755, %v3867
        %v3869 = vpop.f32.mrf.mxu0
        %v3870 = vadd.f32 %v3757, %v3869
        %v3871 = vpop.f32.mrf.mxu0
        %v3872 = vadd.f32 %v3759, %v3871
        %v3873 = vpop.f32.mrf.mxu0
        %v3874 = vadd.f32 %v3761, %v3873
        %3875 = vmatprep.mubr.bf16.mxu0 0
        %3876 = vmatmul.mubr.bf16.gmra.mxu0 %v1146
        %v3877 = vpop.f32.mrf.mxu0
        %v3878 = vadd.f32 %v3765, %v3877
        %v3879 = vpop.f32.mrf.mxu0
        %v3880 = vadd.f32 %v3767, %v3879
        %v3881 = vpop.f32.mrf.mxu0
        %v3882 = vadd.f32 %v3769, %v3881
        %v3883 = vpop.f32.mrf.mxu0
        %v3884 = vadd.f32 %v3771, %v3883
        %3885 = vmatprep.mubr.bf16.mxu0 0
        %3886 = vmatmul.mubr.bf16.gmra.mxu0 %v1153
        %v3887 = vpop.f32.mrf.mxu0
        %v3888 = vadd.f32 %v3775, %v3887
        %v3889 = vpop.f32.mrf.mxu0
        %v3890 = vadd.f32 %v3777, %v3889
        %v3891 = vpop.f32.mrf.mxu0
        %v3892 = vadd.f32 %v3779, %v3891
        %v3893 = vpop.f32.mrf.mxu0
        %v3894 = vadd.f32 %v3781, %v3893
        %3895 = vmatprep.mubr.bf16.mxu0 0
        %3896 = vmatmul.mubr.bf16.gmra.mxu0 %v1160
        %v3897 = vpop.f32.mrf.mxu0
        %v3898 = vadd.f32 %v3785, %v3897
        %v3899 = vpop.f32.mrf.mxu0
        %v3900 = vadd.f32 %v3787, %v3899
        %v3901 = vpop.f32.mrf.mxu0
        %v3902 = vadd.f32 %v3789, %v3901
        %v3903 = vpop.f32.mrf.mxu0
        %v3904 = vadd.f32 %v3791, %v3903
        %3905 = vmatprep.mubr.bf16.mxu0 0
        %3906 = vmatmul.mubr.bf16.gmra.mxu0 %v1167
        %v3907 = vpop.f32.mrf.mxu0
        %v3908 = vadd.f32 %v3795, %v3907
        %v3909 = vpop.f32.mrf.mxu0
        %v3910 = vadd.f32 %v3797, %v3909
        %v3911 = vpop.f32.mrf.mxu0
        %v3912 = vadd.f32 %v3799, %v3911
        %v3913 = vpop.f32.mrf.mxu0
        %v3914 = vadd.f32 %v3801, %v3913
        %3915 = vdwg.mxu0
        %3916 = vmatprep.subr.bf16.mxu0 %v2627
        %3917 = vmatpush1.bf16.msra.mxu0 %v2626
        %3918 = vmatprep.subr.bf16.mxu0 %v2619
        %3919 = vmatpush1.bf16.msra.mxu0 %v2618
        %3920 = vmatprep.subr.bf16.mxu0 %v2611
        %3921 = vmatpush1.bf16.msra.mxu0 %v2610
        %3922 = vmatprep.subr.bf16.mxu0 %v2603
        %3923 = vmatpush1.bf16.msra.mxu0 %v2602
        %3924 = vmatprep.subr.bf16.mxu0 %v2595
        %3925 = vmatpush1.bf16.msra.mxu0 %v2594
        %3926 = vmatprep.subr.bf16.mxu0 %v2587
        %3927 = vmatpush1.bf16.msra.mxu0 %v2586
        %3928 = vmatprep.subr.bf16.mxu0 %v2579
        %3929 = vmatpush1.bf16.msra.mxu0 %v2578
        %3930 = vmatprep.subr.bf16.mxu0 %v2571
        %3931 = vmatpush1.bf16.msra.mxu0 %v2570
        %3932 = vmatprep.subr.bf16.mxu0 %v2691
        %3933 = vmatpush2.bf16.msra.mxu0 %v2690
        %3934 = vmatprep.subr.bf16.mxu0 %v2683
        %3935 = vmatpush2.bf16.msra.mxu0 %v2682
        %3936 = vmatprep.subr.bf16.mxu0 %v2675
        %3937 = vmatpush2.bf16.msra.mxu0 %v2674
        %3938 = vmatprep.subr.bf16.mxu0 %v2667
        %3939 = vmatpush2.bf16.msra.mxu0 %v2666
        %3940 = vmatprep.subr.bf16.mxu0 %v2659
        %3941 = vmatpush2.bf16.msra.mxu0 %v2658
        %3942 = vmatprep.subr.bf16.mxu0 %v2651
        %3943 = vmatpush2.bf16.msra.mxu0 %v2650
        %3944 = vmatprep.subr.bf16.mxu0 %v2643
        %3945 = vmatpush2.bf16.msra.mxu0 %v2642
        %3946 = vmatprep.subr.bf16.mxu0 %v2635
        %3947 = vmatpush2.bf16.msra.mxu0 %v2634
        %3948 = vmatprep.mubr.bf16.mxu0 %v1113
        %3949 = vmatmul.mubr.bf16.gmra.mxu0 %v1112
        %v3950 = vpop.f32.mrf.mxu0
        %v3951 = vadd.f32 %v907, %v3950
        %v3952 = vpop.f32.mrf.mxu0
        %v3953 = vadd.f32 %v911, %v3952
        %v3954 = vpop.f32.mrf.mxu0
        %v3955 = vadd.f32 %v907, %v3954
        %v3956 = vpop.f32.mrf.mxu0
        %v3957 = vadd.f32 %v911, %v3956
        %3958 = vmatprep.mubr.bf16.mxu0 %v1120
        %3959 = vmatmul.mubr.bf16.gmra.mxu0 %v1119
        %v3960 = vpop.f32.mrf.mxu0
        %v3961 = vadd.f32 %v907, %v3960
        %v3962 = vpop.f32.mrf.mxu0
        %v3963 = vadd.f32 %v911, %v3962
        %v3964 = vpop.f32.mrf.mxu0
        %v3965 = vadd.f32 %v907, %v3964
        %v3966 = vpop.f32.mrf.mxu0
        %v3967 = vadd.f32 %v911, %v3966
        %3968 = vmatprep.mubr.bf16.mxu0 %v1127
        %3969 = vmatmul.mubr.bf16.gmra.mxu0 %v1126
        %v3970 = vpop.f32.mrf.mxu0
        %v3971 = vadd.f32 %v907, %v3970
        %v3972 = vpop.f32.mrf.mxu0
        %v3973 = vadd.f32 %v911, %v3972
        %v3974 = vpop.f32.mrf.mxu0
        %v3975 = vadd.f32 %v907, %v3974
        %v3976 = vpop.f32.mrf.mxu0
        %v3977 = vadd.f32 %v911, %v3976
        %3978 = vmatprep.mubr.bf16.mxu0 %v1134
        %3979 = vmatmul.mubr.bf16.gmra.mxu0 %v1133
        %v3980 = vpop.f32.mrf.mxu0
        %v3981 = vadd.f32 %v907, %v3980
        %v3982 = vpop.f32.mrf.mxu0
        %v3983 = vadd.f32 %v911, %v3982
        %v3984 = vpop.f32.mrf.mxu0
        %v3985 = vadd.f32 %v907, %v3984
        %v3986 = vpop.f32.mrf.mxu0
        %v3987 = vadd.f32 %v911, %v3986
        %3988 = vmatprep.mubr.bf16.mxu0 %v1141
        %3989 = vmatmul.mubr.bf16.gmra.mxu0 %v1140
        %v3990 = vpop.f32.mrf.mxu0
        %v3991 = vadd.f32 %v907, %v3990
        %v3992 = vpop.f32.mrf.mxu0
        %v3993 = vadd.f32 %v911, %v3992
        %v3994 = vpop.f32.mrf.mxu0
        %v3995 = vadd.f32 %v907, %v3994
        %v3996 = vpop.f32.mrf.mxu0
        %v3997 = vadd.f32 %v911, %v3996
        %3998 = vmatprep.mubr.bf16.mxu0 %v1148
        %3999 = vmatmul.mubr.bf16.gmra.mxu0 %v1147
        %v4000 = vpop.f32.mrf.mxu0
        %v4001 = vadd.f32 %v907, %v4000
        %v4002 = vpop.f32.mrf.mxu0
        %v4003 = vadd.f32 %v911, %v4002
        %v4004 = vpop.f32.mrf.mxu0
        %v4005 = vadd.f32 %v907, %v4004
        %v4006 = vpop.f32.mrf.mxu0
        %v4007 = vadd.f32 %v911, %v4006
        %4008 = vmatprep.mubr.bf16.mxu0 %v1155
        %4009 = vmatmul.mubr.bf16.gmra.mxu0 %v1154
        %v4010 = vpop.f32.mrf.mxu0
        %v4011 = vadd.f32 %v907, %v4010
        %v4012 = vpop.f32.mrf.mxu0
        %v4013 = vadd.f32 %v911, %v4012
        %v4014 = vpop.f32.mrf.mxu0
        %v4015 = vadd.f32 %v907, %v4014
        %v4016 = vpop.f32.mrf.mxu0
        %v4017 = vadd.f32 %v911, %v4016
        %4018 = vmatprep.mubr.bf16.mxu0 %v1162
        %4019 = vmatmul.mubr.bf16.gmra.mxu0 %v1161
        %v4020 = vpop.f32.mrf.mxu0
        %v4021 = vadd.f32 %v907, %v4020
        %v4022 = vpop.f32.mrf.mxu0
        %v4023 = vadd.f32 %v911, %v4022
        %v4024 = vpop.f32.mrf.mxu0
        %v4025 = vadd.f32 %v907, %v4024
        %v4026 = vpop.f32.mrf.mxu0
        %v4027 = vadd.f32 %v911, %v4026
        %4028 = vdwg.mxu0
        %4029 = vmatprep.subr.bf16.mxu0 %v2755
        %4030 = vmatpush1.bf16.msra.mxu0 %v2754
        %4031 = vmatprep.subr.bf16.mxu0 %v2747
        %4032 = vmatpush1.bf16.msra.mxu0 %v2746
        %4033 = vmatprep.subr.bf16.mxu0 %v2739
        %4034 = vmatpush1.bf16.msra.mxu0 %v2738
        %4035 = vmatprep.subr.bf16.mxu0 %v2731
        %4036 = vmatpush1.bf16.msra.mxu0 %v2730
        %4037 = vmatprep.subr.bf16.mxu0 %v2723
        %4038 = vmatpush1.bf16.msra.mxu0 %v2722
        %4039 = vmatprep.subr.bf16.mxu0 %v2715
        %4040 = vmatpush1.bf16.msra.mxu0 %v2714
        %4041 = vmatprep.subr.bf16.mxu0 %v2707
        %4042 = vmatpush1.bf16.msra.mxu0 %v2706
        %4043 = vmatprep.subr.bf16.mxu0 %v2699
        %4044 = vmatpush1.bf16.msra.mxu0 %v2698
        %4045 = vmatprep.subr.bf16.mxu0 %v2819
        %4046 = vmatpush2.bf16.msra.mxu0 %v2818
        %4047 = vmatprep.subr.bf16.mxu0 %v2811
        %4048 = vmatpush2.bf16.msra.mxu0 %v2810
        %4049 = vmatprep.subr.bf16.mxu0 %v2803
        %4050 = vmatpush2.bf16.msra.mxu0 %v2802
        %4051 = vmatprep.subr.bf16.mxu0 %v2795
        %4052 = vmatpush2.bf16.msra.mxu0 %v2794
        %4053 = vmatprep.subr.bf16.mxu0 %v2787
        %4054 = vmatpush2.bf16.msra.mxu0 %v2786
        %4055 = vmatprep.subr.bf16.mxu0 %v2779
        %4056 = vmatpush2.bf16.msra.mxu0 %v2778
        %4057 = vmatprep.subr.bf16.mxu0 %v2771
        %4058 = vmatpush2.bf16.msra.mxu0 %v2770
        %4059 = vmatprep.subr.bf16.mxu0 %v2763
        %4060 = vmatpush2.bf16.msra.mxu0 %v2762
        %4061 = vmatprep.mubr.bf16.mxu0 %v1115
        %4062 = vmatmul.mubr.bf16.gmra.mxu0 %v1114
        %v4063 = vpop.f32.mrf.mxu0
        %v4064 = vadd.f32 %v3951, %v4063
        %v4065 = vpop.f32.mrf.mxu0
        %v4066 = vadd.f32 %v3953, %v4065
        %v4067 = vpop.f32.mrf.mxu0
        %v4068 = vadd.f32 %v3955, %v4067
        %v4069 = vpop.f32.mrf.mxu0
        %v4070 = vadd.f32 %v3957, %v4069
        %4071 = vmatprep.mubr.bf16.mxu0 %v1122
        %4072 = vmatmul.mubr.bf16.gmra.mxu0 %v1121
        %v4073 = vpop.f32.mrf.mxu0
        %v4074 = vadd.f32 %v3961, %v4073
        %v4075 = vpop.f32.mrf.mxu0
        %v4076 = vadd.f32 %v3963, %v4075
        %v4077 = vpop.f32.mrf.mxu0
        %v4078 = vadd.f32 %v3965, %v4077
        %v4079 = vpop.f32.mrf.mxu0
        %v4080 = vadd.f32 %v3967, %v4079
        %4081 = vmatprep.mubr.bf16.mxu0 %v1129
        %4082 = vmatmul.mubr.bf16.gmra.mxu0 %v1128
        %v4083 = vpop.f32.mrf.mxu0
        %v4084 = vadd.f32 %v3971, %v4083
        %v4085 = vpop.f32.mrf.mxu0
        %v4086 = vadd.f32 %v3973, %v4085
        %v4087 = vpop.f32.mrf.mxu0
        %v4088 = vadd.f32 %v3975, %v4087
        %v4089 = vpop.f32.mrf.mxu0
        %v4090 = vadd.f32 %v3977, %v4089
        %4091 = vmatprep.mubr.bf16.mxu0 %v1136
        %4092 = vmatmul.mubr.bf16.gmra.mxu0 %v1135
        %v4093 = vpop.f32.mrf.mxu0
        %v4094 = vadd.f32 %v3981, %v4093
        %v4095 = vpop.f32.mrf.mxu0
        %v4096 = vadd.f32 %v3983, %v4095
        %v4097 = vpop.f32.mrf.mxu0
        %v4098 = vadd.f32 %v3985, %v4097
        %v4099 = vpop.f32.mrf.mxu0
        %v4100 = vadd.f32 %v3987, %v4099
        %4101 = vmatprep.mubr.bf16.mxu0 %v1143
        %4102 = vmatmul.mubr.bf16.gmra.mxu0 %v1142
        %v4103 = vpop.f32.mrf.mxu0
        %v4104 = vadd.f32 %v3991, %v4103
        %v4105 = vpop.f32.mrf.mxu0
        %v4106 = vadd.f32 %v3993, %v4105
        %v4107 = vpop.f32.mrf.mxu0
        %v4108 = vadd.f32 %v3995, %v4107
        %v4109 = vpop.f32.mrf.mxu0
        %v4110 = vadd.f32 %v3997, %v4109
        %4111 = vmatprep.mubr.bf16.mxu0 %v1150
        %4112 = vmatmul.mubr.bf16.gmra.mxu0 %v1149
        %v4113 = vpop.f32.mrf.mxu0
        %v4114 = vadd.f32 %v4001, %v4113
        %v4115 = vpop.f32.mrf.mxu0
        %v4116 = vadd.f32 %v4003, %v4115
        %v4117 = vpop.f32.mrf.mxu0
        %v4118 = vadd.f32 %v4005, %v4117
        %v4119 = vpop.f32.mrf.mxu0
        %v4120 = vadd.f32 %v4007, %v4119
        %4121 = vmatprep.mubr.bf16.mxu0 %v1157
        %4122 = vmatmul.mubr.bf16.gmra.mxu0 %v1156
        %v4123 = vpop.f32.mrf.mxu0
        %v4124 = vadd.f32 %v4011, %v4123
        %v4125 = vpop.f32.mrf.mxu0
        %v4126 = vadd.f32 %v4013, %v4125
        %v4127 = vpop.f32.mrf.mxu0
        %v4128 = vadd.f32 %v4015, %v4127
        %v4129 = vpop.f32.mrf.mxu0
        %v4130 = vadd.f32 %v4017, %v4129
        %4131 = vmatprep.mubr.bf16.mxu0 %v1164
        %4132 = vmatmul.mubr.bf16.gmra.mxu0 %v1163
        %v4133 = vpop.f32.mrf.mxu0
        %v4134 = vadd.f32 %v4021, %v4133
        %v4135 = vpop.f32.mrf.mxu0
        %v4136 = vadd.f32 %v4023, %v4135
        %v4137 = vpop.f32.mrf.mxu0
        %v4138 = vadd.f32 %v4025, %v4137
        %v4139 = vpop.f32.mrf.mxu0
        %v4140 = vadd.f32 %v4027, %v4139
        %4141 = vdwg.mxu0
        %4142 = vmatprep.subr.bf16.mxu0 %v2883
        %4143 = vmatpush1.bf16.msra.mxu0 %v2882
        %4144 = vmatprep.subr.bf16.mxu0 %v2875
        %4145 = vmatpush1.bf16.msra.mxu0 %v2874
        %4146 = vmatprep.subr.bf16.mxu0 %v2867
        %4147 = vmatpush1.bf16.msra.mxu0 %v2866
        %4148 = vmatprep.subr.bf16.mxu0 %v2859
        %4149 = vmatpush1.bf16.msra.mxu0 %v2858
        %4150 = vmatprep.subr.bf16.mxu0 %v2851
        %4151 = vmatpush1.bf16.msra.mxu0 %v2850
        %4152 = vmatprep.subr.bf16.mxu0 %v2843
        %4153 = vmatpush1.bf16.msra.mxu0 %v2842
        %4154 = vmatprep.subr.bf16.mxu0 %v2835
        %4155 = vmatpush1.bf16.msra.mxu0 %v2834
        %4156 = vmatprep.subr.bf16.mxu0 %v2827
        %4157 = vmatpush1.bf16.msra.mxu0 %v2826
        %4158 = vmatprep.subr.bf16.mxu0 %v2947
        %4159 = vmatpush2.bf16.msra.mxu0 %v2946
        %4160 = vmatprep.subr.bf16.mxu0 %v2939
        %4161 = vmatpush2.bf16.msra.mxu0 %v2938
        %4162 = vmatprep.subr.bf16.mxu0 %v2931
        %4163 = vmatpush2.bf16.msra.mxu0 %v2930
        %4164 = vmatprep.subr.bf16.mxu0 %v2923
        %4165 = vmatpush2.bf16.msra.mxu0 %v2922
        %4166 = vmatprep.subr.bf16.mxu0 %v2915
        %4167 = vmatpush2.bf16.msra.mxu0 %v2914
        %4168 = vmatprep.subr.bf16.mxu0 %v2907
        %4169 = vmatpush2.bf16.msra.mxu0 %v2906
        %4170 = vmatprep.subr.bf16.mxu0 %v2899
        %4171 = vmatpush2.bf16.msra.mxu0 %v2898
        %4172 = vmatprep.subr.bf16.mxu0 %v2891
        %4173 = vmatpush2.bf16.msra.mxu0 %v2890
        %4174 = vmatprep.mubr.bf16.mxu0 %v1117
        %4175 = vmatmul.mubr.bf16.gmra.mxu0 %v1116
        %v4176 = vpop.f32.mrf.mxu0
        %v4177 = vadd.f32 %v4064, %v4176
        %v4178 = vpop.f32.mrf.mxu0
        %v4179 = vadd.f32 %v4066, %v4178
        %v4180 = vpop.f32.mrf.mxu0
        %v4181 = vadd.f32 %v4068, %v4180
        %v4182 = vpop.f32.mrf.mxu0
        %v4183 = vadd.f32 %v4070, %v4182
        %4184 = vmatprep.mubr.bf16.mxu0 %v1124
        %4185 = vmatmul.mubr.bf16.gmra.mxu0 %v1123
        %v4186 = vpop.f32.mrf.mxu0
        %v4187 = vadd.f32 %v4074, %v4186
        %v4188 = vpop.f32.mrf.mxu0
        %v4189 = vadd.f32 %v4076, %v4188
        %v4190 = vpop.f32.mrf.mxu0
        %v4191 = vadd.f32 %v4078, %v4190
        %v4192 = vpop.f32.mrf.mxu0
        %v4193 = vadd.f32 %v4080, %v4192
        %4194 = vmatprep.mubr.bf16.mxu0 %v1131
        %4195 = vmatmul.mubr.bf16.gmra.mxu0 %v1130
        %v4196 = vpop.f32.mrf.mxu0
        %v4197 = vadd.f32 %v4084, %v4196
        %v4198 = vpop.f32.mrf.mxu0
        %v4199 = vadd.f32 %v4086, %v4198
        %v4200 = vpop.f32.mrf.mxu0
        %v4201 = vadd.f32 %v4088, %v4200
        %v4202 = vpop.f32.mrf.mxu0
        %v4203 = vadd.f32 %v4090, %v4202
        %4204 = vmatprep.mubr.bf16.mxu0 %v1138
        %4205 = vmatmul.mubr.bf16.gmra.mxu0 %v1137
        %v4206 = vpop.f32.mrf.mxu0
        %v4207 = vadd.f32 %v4094, %v4206
        %v4208 = vpop.f32.mrf.mxu0
        %v4209 = vadd.f32 %v4096, %v4208
        %v4210 = vpop.f32.mrf.mxu0
        %v4211 = vadd.f32 %v4098, %v4210
        %v4212 = vpop.f32.mrf.mxu0
        %v4213 = vadd.f32 %v4100, %v4212
        %4214 = vmatprep.mubr.bf16.mxu0 %v1145
        %4215 = vmatmul.mubr.bf16.gmra.mxu0 %v1144
        %v4216 = vpop.f32.mrf.mxu0
        %v4217 = vadd.f32 %v4104, %v4216
        %v4218 = vpop.f32.mrf.mxu0
        %v4219 = vadd.f32 %v4106, %v4218
        %v4220 = vpop.f32.mrf.mxu0
        %v4221 = vadd.f32 %v4108, %v4220
        %v4222 = vpop.f32.mrf.mxu0
        %v4223 = vadd.f32 %v4110, %v4222
        %4224 = vmatprep.mubr.bf16.mxu0 %v1152
        %4225 = vmatmul.mubr.bf16.gmra.mxu0 %v1151
        %v4226 = vpop.f32.mrf.mxu0
        %v4227 = vadd.f32 %v4114, %v4226
        %v4228 = vpop.f32.mrf.mxu0
        %v4229 = vadd.f32 %v4116, %v4228
        %v4230 = vpop.f32.mrf.mxu0
        %v4231 = vadd.f32 %v4118, %v4230
        %v4232 = vpop.f32.mrf.mxu0
        %v4233 = vadd.f32 %v4120, %v4232
        %4234 = vmatprep.mubr.bf16.mxu0 %v1159
        %4235 = vmatmul.mubr.bf16.gmra.mxu0 %v1158
        %v4236 = vpop.f32.mrf.mxu0
        %v4237 = vadd.f32 %v4124, %v4236
        %v4238 = vpop.f32.mrf.mxu0
        %v4239 = vadd.f32 %v4126, %v4238
        %v4240 = vpop.f32.mrf.mxu0
        %v4241 = vadd.f32 %v4128, %v4240
        %v4242 = vpop.f32.mrf.mxu0
        %v4243 = vadd.f32 %v4130, %v4242
        %4244 = vmatprep.mubr.bf16.mxu0 %v1166
        %4245 = vmatmul.mubr.bf16.gmra.mxu0 %v1165
        %v4246 = vpop.f32.mrf.mxu0
        %v4247 = vadd.f32 %v4134, %v4246
        %v4248 = vpop.f32.mrf.mxu0
        %v4249 = vadd.f32 %v4136, %v4248
        %v4250 = vpop.f32.mrf.mxu0
        %v4251 = vadd.f32 %v4138, %v4250
        %v4252 = vpop.f32.mrf.mxu0
        %v4253 = vadd.f32 %v4140, %v4252
        %4254 = vdwg.mxu0
        %4255 = vmatprep.subr.bf16.mxu0 %v3011
        %4256 = vmatpush1.bf16.msra.mxu0 %v3010
        %4257 = vmatprep.subr.bf16.mxu0 %v3003
        %4258 = vmatpush1.bf16.msra.mxu0 %v3002
        %4259 = vmatprep.subr.bf16.mxu0 %v2995
        %4260 = vmatpush1.bf16.msra.mxu0 %v2994
        %4261 = vmatprep.subr.bf16.mxu0 %v2987
        %4262 = vmatpush1.bf16.msra.mxu0 %v2986
        %4263 = vmatprep.subr.bf16.mxu0 %v2979
        %4264 = vmatpush1.bf16.msra.mxu0 %v2978
        %4265 = vmatprep.subr.bf16.mxu0 %v2971
        %4266 = vmatpush1.bf16.msra.mxu0 %v2970
        %4267 = vmatprep.subr.bf16.mxu0 %v2963
        %4268 = vmatpush1.bf16.msra.mxu0 %v2962
        %4269 = vmatprep.subr.bf16.mxu0 %v2955
        %4270 = vmatpush1.bf16.msra.mxu0 %v2954
        %4271 = vmatprep.subr.bf16.mxu0 0
        %4272 = vmatpush2.bf16.msra.mxu0 0
        %4273 = vmatprep.subr.bf16.mxu0 0
        %4274 = vmatpush2.bf16.msra.mxu0 0
        %4275 = vmatprep.subr.bf16.mxu0 0
        %4276 = vmatpush2.bf16.msra.mxu0 0
        %4277 = vmatprep.subr.bf16.mxu0 0
        %4278 = vmatpush2.bf16.msra.mxu0 0
        %4279 = vmatprep.subr.bf16.mxu0 0
        %4280 = vmatpush2.bf16.msra.mxu0 0
        %4281 = vmatprep.subr.bf16.mxu0 0
        %4282 = vmatpush2.bf16.msra.mxu0 0
        %4283 = vmatprep.subr.bf16.mxu0 0
        %4284 = vmatpush2.bf16.msra.mxu0 0
        %4285 = vmatprep.subr.bf16.mxu0 0
        %4286 = vmatpush2.bf16.msra.mxu0 0
        %4287 = vmatprep.mubr.bf16.mxu0 0
        %4288 = vmatmul.mubr.bf16.gmra.mxu0 %v1118
        %v4289 = vpop.f32.mrf.mxu0
        %v4290 = vadd.f32 %v4177, %v4289
        %v4291 = vpop.f32.mrf.mxu0
        %v4292 = vadd.f32 %v4179, %v4291
        %v4293 = vpop.f32.mrf.mxu0
        %v4294 = vadd.f32 %v4181, %v4293
        %v4295 = vpop.f32.mrf.mxu0
        %v4296 = vadd.f32 %v4183, %v4295
        %4297 = vmatprep.mubr.bf16.mxu0 0
        %4298 = vmatmul.mubr.bf16.gmra.mxu0 %v1125
        %v4299 = vpop.f32.mrf.mxu0
        %v4300 = vadd.f32 %v4187, %v4299
        %v4301 = vpop.f32.mrf.mxu0
        %v4302 = vadd.f32 %v4189, %v4301
        %v4303 = vpop.f32.mrf.mxu0
        %v4304 = vadd.f32 %v4191, %v4303
        %v4305 = vpop.f32.mrf.mxu0
        %v4306 = vadd.f32 %v4193, %v4305
        %4307 = vmatprep.mubr.bf16.mxu0 0
        %4308 = vmatmul.mubr.bf16.gmra.mxu0 %v1132
        %v4309 = vpop.f32.mrf.mxu0
        %v4310 = vadd.f32 %v4197, %v4309
        %v4311 = vpop.f32.mrf.mxu0
        %v4312 = vadd.f32 %v4199, %v4311
        %v4313 = vpop.f32.mrf.mxu0
        %v4314 = vadd.f32 %v4201, %v4313
        %v4315 = vpop.f32.mrf.mxu0
        %v4316 = vadd.f32 %v4203, %v4315
        %4317 = vmatprep.mubr.bf16.mxu0 0
        %4318 = vmatmul.mubr.bf16.gmra.mxu0 %v1139
        %v4319 = vpop.f32.mrf.mxu0
        %v4320 = vadd.f32 %v4207, %v4319
        %v4321 = vpop.f32.mrf.mxu0
        %v4322 = vadd.f32 %v4209, %v4321
        %v4323 = vpop.f32.mrf.mxu0
        %v4324 = vadd.f32 %v4211, %v4323
        %v4325 = vpop.f32.mrf.mxu0
        %v4326 = vadd.f32 %v4213, %v4325
        %4327 = vmatprep.mubr.bf16.mxu0 0
        %4328 = vmatmul.mubr.bf16.gmra.mxu0 %v1146
        %v4329 = vpop.f32.mrf.mxu0
        %v4330 = vadd.f32 %v4217, %v4329
        %v4331 = vpop.f32.mrf.mxu0
        %v4332 = vadd.f32 %v4219, %v4331
        %v4333 = vpop.f32.mrf.mxu0
        %v4334 = vadd.f32 %v4221, %v4333
        %v4335 = vpop.f32.mrf.mxu0
        %v4336 = vadd.f32 %v4223, %v4335
        %4337 = vmatprep.mubr.bf16.mxu0 0
        %4338 = vmatmul.mubr.bf16.gmra.mxu0 %v1153
        %v4339 = vpop.f32.mrf.mxu0
        %v4340 = vadd.f32 %v4227, %v4339
        %v4341 = vpop.f32.mrf.mxu0
        %v4342 = vadd.f32 %v4229, %v4341
        %v4343 = vpop.f32.mrf.mxu0
        %v4344 = vadd.f32 %v4231, %v4343
        %v4345 = vpop.f32.mrf.mxu0
        %v4346 = vadd.f32 %v4233, %v4345
        %4347 = vmatprep.mubr.bf16.mxu0 0
        %4348 = vmatmul.mubr.bf16.gmra.mxu0 %v1160
        %v4349 = vpop.f32.mrf.mxu0
        %v4350 = vadd.f32 %v4237, %v4349
        %v4351 = vpop.f32.mrf.mxu0
        %v4352 = vadd.f32 %v4239, %v4351
        %v4353 = vpop.f32.mrf.mxu0
        %v4354 = vadd.f32 %v4241, %v4353
        %v4355 = vpop.f32.mrf.mxu0
        %v4356 = vadd.f32 %v4243, %v4355
        %4357 = vmatprep.mubr.bf16.mxu0 0
        %4358 = vmatmul.mubr.bf16.gmra.mxu0 %v1167
        %v4359 = vpop.f32.mrf.mxu0
        %v4360 = vadd.f32 %v4247, %v4359
        %v4361 = vpop.f32.mrf.mxu0
        %v4362 = vadd.f32 %v4249, %v4361
        %v4363 = vpop.f32.mrf.mxu0
        %v4364 = vadd.f32 %v4251, %v4363
        %v4365 = vpop.f32.mrf.mxu0
        %v4366 = vadd.f32 %v4253, %v4365
        %4367 = vdwg.mxu0
        %4368 = vmatprep.subr.bf16.mxu0 %v2629
        %4369 = vmatpush1.bf16.msra.mxu0 %v2628
        %4370 = vmatprep.subr.bf16.mxu0 %v2621
        %4371 = vmatpush1.bf16.msra.mxu0 %v2620
        %4372 = vmatprep.subr.bf16.mxu0 %v2613
        %4373 = vmatpush1.bf16.msra.mxu0 %v2612
        %4374 = vmatprep.subr.bf16.mxu0 %v2605
        %4375 = vmatpush1.bf16.msra.mxu0 %v2604
        %4376 = vmatprep.subr.bf16.mxu0 %v2597
        %4377 = vmatpush1.bf16.msra.mxu0 %v2596
        %4378 = vmatprep.subr.bf16.mxu0 %v2589
        %4379 = vmatpush1.bf16.msra.mxu0 %v2588
        %4380 = vmatprep.subr.bf16.mxu0 %v2581
        %4381 = vmatpush1.bf16.msra.mxu0 %v2580
        %4382 = vmatprep.subr.bf16.mxu0 %v2573
        %4383 = vmatpush1.bf16.msra.mxu0 %v2572
        %4384 = vmatprep.subr.bf16.mxu0 %v2693
        %4385 = vmatpush2.bf16.msra.mxu0 %v2692
        %4386 = vmatprep.subr.bf16.mxu0 %v2685
        %4387 = vmatpush2.bf16.msra.mxu0 %v2684
        %4388 = vmatprep.subr.bf16.mxu0 %v2677
        %4389 = vmatpush2.bf16.msra.mxu0 %v2676
        %4390 = vmatprep.subr.bf16.mxu0 %v2669
        %4391 = vmatpush2.bf16.msra.mxu0 %v2668
        %4392 = vmatprep.subr.bf16.mxu0 %v2661
        %4393 = vmatpush2.bf16.msra.mxu0 %v2660
        %4394 = vmatprep.subr.bf16.mxu0 %v2653
        %4395 = vmatpush2.bf16.msra.mxu0 %v2652
        %4396 = vmatprep.subr.bf16.mxu0 %v2645
        %4397 = vmatpush2.bf16.msra.mxu0 %v2644
        %4398 = vmatprep.subr.bf16.mxu0 %v2637
        %4399 = vmatpush2.bf16.msra.mxu0 %v2636
        %4400 = vmatprep.mubr.bf16.mxu0 %v1113
        %4401 = vmatmul.mubr.bf16.gmra.mxu0 %v1112
        %v4402 = vpop.f32.mrf.mxu0
        %v4403 = vadd.f32 %v915, %v4402
        %v4404 = vpop.f32.mrf.mxu0
        %v4405 = vadd.f32 %v919, %v4404
        %v4406 = vpop.f32.mrf.mxu0
        %v4407 = vadd.f32 %v915, %v4406
        %v4408 = vpop.f32.mrf.mxu0
        %v4409 = vadd.f32 %v919, %v4408
        %4410 = vmatprep.mubr.bf16.mxu0 %v1120
        %4411 = vmatmul.mubr.bf16.gmra.mxu0 %v1119
        %v4412 = vpop.f32.mrf.mxu0
        %v4413 = vadd.f32 %v915, %v4412
        %v4414 = vpop.f32.mrf.mxu0
        %v4415 = vadd.f32 %v919, %v4414
        %v4416 = vpop.f32.mrf.mxu0
        %v4417 = vadd.f32 %v915, %v4416
        %v4418 = vpop.f32.mrf.mxu0
        %v4419 = vadd.f32 %v919, %v4418
        %4420 = vmatprep.mubr.bf16.mxu0 %v1127
        %4421 = vmatmul.mubr.bf16.gmra.mxu0 %v1126
        %v4422 = vpop.f32.mrf.mxu0
        %v4423 = vadd.f32 %v915, %v4422
        %v4424 = vpop.f32.mrf.mxu0
        %v4425 = vadd.f32 %v919, %v4424
        %v4426 = vpop.f32.mrf.mxu0
        %v4427 = vadd.f32 %v915, %v4426
        %v4428 = vpop.f32.mrf.mxu0
        %v4429 = vadd.f32 %v919, %v4428
        %4430 = vmatprep.mubr.bf16.mxu0 %v1134
        %4431 = vmatmul.mubr.bf16.gmra.mxu0 %v1133
        %v4432 = vpop.f32.mrf.mxu0
        %v4433 = vadd.f32 %v915, %v4432
        %v4434 = vpop.f32.mrf.mxu0
        %v4435 = vadd.f32 %v919, %v4434
        %v4436 = vpop.f32.mrf.mxu0
        %v4437 = vadd.f32 %v915, %v4436
        %v4438 = vpop.f32.mrf.mxu0
        %v4439 = vadd.f32 %v919, %v4438
        %4440 = vmatprep.mubr.bf16.mxu0 %v1141
        %4441 = vmatmul.mubr.bf16.gmra.mxu0 %v1140
        %v4442 = vpop.f32.mrf.mxu0
        %v4443 = vadd.f32 %v915, %v4442
        %v4444 = vpop.f32.mrf.mxu0
        %v4445 = vadd.f32 %v919, %v4444
        %v4446 = vpop.f32.mrf.mxu0
        %v4447 = vadd.f32 %v915, %v4446
        %v4448 = vpop.f32.mrf.mxu0
        %v4449 = vadd.f32 %v919, %v4448
        %4450 = vmatprep.mubr.bf16.mxu0 %v1148
        %4451 = vmatmul.mubr.bf16.gmra.mxu0 %v1147
        %v4452 = vpop.f32.mrf.mxu0
        %v4453 = vadd.f32 %v915, %v4452
        %v4454 = vpop.f32.mrf.mxu0
        %v4455 = vadd.f32 %v919, %v4454
        %v4456 = vpop.f32.mrf.mxu0
        %v4457 = vadd.f32 %v915, %v4456
        %v4458 = vpop.f32.mrf.mxu0
        %v4459 = vadd.f32 %v919, %v4458
        %4460 = vmatprep.mubr.bf16.mxu0 %v1155
        %4461 = vmatmul.mubr.bf16.gmra.mxu0 %v1154
        %v4462 = vpop.f32.mrf.mxu0
        %v4463 = vadd.f32 %v915, %v4462
        %v4464 = vpop.f32.mrf.mxu0
        %v4465 = vadd.f32 %v919, %v4464
        %v4466 = vpop.f32.mrf.mxu0
        %v4467 = vadd.f32 %v915, %v4466
        %v4468 = vpop.f32.mrf.mxu0
        %v4469 = vadd.f32 %v919, %v4468
        %4470 = vmatprep.mubr.bf16.mxu0 %v1162
        %4471 = vmatmul.mubr.bf16.gmra.mxu0 %v1161
        %v4472 = vpop.f32.mrf.mxu0
        %v4473 = vadd.f32 %v915, %v4472
        %v4474 = vpop.f32.mrf.mxu0
        %v4475 = vadd.f32 %v919, %v4474
        %v4476 = vpop.f32.mrf.mxu0
        %v4477 = vadd.f32 %v915, %v4476
        %v4478 = vpop.f32.mrf.mxu0
        %v4479 = vadd.f32 %v919, %v4478
        %4480 = vdwg.mxu0
        %4481 = vmatprep.subr.bf16.mxu0 %v2757
        %4482 = vmatpush1.bf16.msra.mxu0 %v2756
        %4483 = vmatprep.subr.bf16.mxu0 %v2749
        %4484 = vmatpush1.bf16.msra.mxu0 %v2748
        %4485 = vmatprep.subr.bf16.mxu0 %v2741
        %4486 = vmatpush1.bf16.msra.mxu0 %v2740
        %4487 = vmatprep.subr.bf16.mxu0 %v2733
        %4488 = vmatpush1.bf16.msra.mxu0 %v2732
        %4489 = vmatprep.subr.bf16.mxu0 %v2725
        %4490 = vmatpush1.bf16.msra.mxu0 %v2724
        %4491 = vmatprep.subr.bf16.mxu0 %v2717
        %4492 = vmatpush1.bf16.msra.mxu0 %v2716
        %4493 = vmatprep.subr.bf16.mxu0 %v2709
        %4494 = vmatpush1.bf16.msra.mxu0 %v2708
        %4495 = vmatprep.subr.bf16.mxu0 %v2701
        %4496 = vmatpush1.bf16.msra.mxu0 %v2700
        %4497 = vmatprep.subr.bf16.mxu0 %v2821
        %4498 = vmatpush2.bf16.msra.mxu0 %v2820
        %4499 = vmatprep.subr.bf16.mxu0 %v2813
        %4500 = vmatpush2.bf16.msra.mxu0 %v2812
        %4501 = vmatprep.subr.bf16.mxu0 %v2805
        %4502 = vmatpush2.bf16.msra.mxu0 %v2804
        %4503 = vmatprep.subr.bf16.mxu0 %v2797
        %4504 = vmatpush2.bf16.msra.mxu0 %v2796
        %4505 = vmatprep.subr.bf16.mxu0 %v2789
        %4506 = vmatpush2.bf16.msra.mxu0 %v2788
        %4507 = vmatprep.subr.bf16.mxu0 %v2781
        %4508 = vmatpush2.bf16.msra.mxu0 %v2780
        %4509 = vmatprep.subr.bf16.mxu0 %v2773
        %4510 = vmatpush2.bf16.msra.mxu0 %v2772
        %4511 = vmatprep.subr.bf16.mxu0 %v2765
        %4512 = vmatpush2.bf16.msra.mxu0 %v2764
        %4513 = vmatprep.mubr.bf16.mxu0 %v1115
        %4514 = vmatmul.mubr.bf16.gmra.mxu0 %v1114
        %v4515 = vpop.f32.mrf.mxu0
        %v4516 = vadd.f32 %v4403, %v4515
        %v4517 = vpop.f32.mrf.mxu0
        %v4518 = vadd.f32 %v4405, %v4517
        %v4519 = vpop.f32.mrf.mxu0
        %v4520 = vadd.f32 %v4407, %v4519
        %v4521 = vpop.f32.mrf.mxu0
        %v4522 = vadd.f32 %v4409, %v4521
        %4523 = vmatprep.mubr.bf16.mxu0 %v1122
        %4524 = vmatmul.mubr.bf16.gmra.mxu0 %v1121
        %v4525 = vpop.f32.mrf.mxu0
        %v4526 = vadd.f32 %v4413, %v4525
        %v4527 = vpop.f32.mrf.mxu0
        %v4528 = vadd.f32 %v4415, %v4527
        %v4529 = vpop.f32.mrf.mxu0
        %v4530 = vadd.f32 %v4417, %v4529
        %v4531 = vpop.f32.mrf.mxu0
        %v4532 = vadd.f32 %v4419, %v4531
        %4533 = vmatprep.mubr.bf16.mxu0 %v1129
        %4534 = vmatmul.mubr.bf16.gmra.mxu0 %v1128
        %v4535 = vpop.f32.mrf.mxu0
        %v4536 = vadd.f32 %v4423, %v4535
        %v4537 = vpop.f32.mrf.mxu0
        %v4538 = vadd.f32 %v4425, %v4537
        %v4539 = vpop.f32.mrf.mxu0
        %v4540 = vadd.f32 %v4427, %v4539
        %v4541 = vpop.f32.mrf.mxu0
        %v4542 = vadd.f32 %v4429, %v4541
        %4543 = vmatprep.mubr.bf16.mxu0 %v1136
        %4544 = vmatmul.mubr.bf16.gmra.mxu0 %v1135
        %v4545 = vpop.f32.mrf.mxu0
        %v4546 = vadd.f32 %v4433, %v4545
        %v4547 = vpop.f32.mrf.mxu0
        %v4548 = vadd.f32 %v4435, %v4547
        %v4549 = vpop.f32.mrf.mxu0
        %v4550 = vadd.f32 %v4437, %v4549
        %v4551 = vpop.f32.mrf.mxu0
        %v4552 = vadd.f32 %v4439, %v4551
        %4553 = vmatprep.mubr.bf16.mxu0 %v1143
        %4554 = vmatmul.mubr.bf16.gmra.mxu0 %v1142
        %v4555 = vpop.f32.mrf.mxu0
        %v4556 = vadd.f32 %v4443, %v4555
        %v4557 = vpop.f32.mrf.mxu0
        %v4558 = vadd.f32 %v4445, %v4557
        %v4559 = vpop.f32.mrf.mxu0
        %v4560 = vadd.f32 %v4447, %v4559
        %v4561 = vpop.f32.mrf.mxu0
        %v4562 = vadd.f32 %v4449, %v4561
        %4563 = vmatprep.mubr.bf16.mxu0 %v1150
        %4564 = vmatmul.mubr.bf16.gmra.mxu0 %v1149
        %v4565 = vpop.f32.mrf.mxu0
        %v4566 = vadd.f32 %v4453, %v4565
        %v4567 = vpop.f32.mrf.mxu0
        %v4568 = vadd.f32 %v4455, %v4567
        %v4569 = vpop.f32.mrf.mxu0
        %v4570 = vadd.f32 %v4457, %v4569
        %v4571 = vpop.f32.mrf.mxu0
        %v4572 = vadd.f32 %v4459, %v4571
        %4573 = vmatprep.mubr.bf16.mxu0 %v1157
        %4574 = vmatmul.mubr.bf16.gmra.mxu0 %v1156
        %v4575 = vpop.f32.mrf.mxu0
        %v4576 = vadd.f32 %v4463, %v4575
        %v4577 = vpop.f32.mrf.mxu0
        %v4578 = vadd.f32 %v4465, %v4577
        %v4579 = vpop.f32.mrf.mxu0
        %v4580 = vadd.f32 %v4467, %v4579
        %v4581 = vpop.f32.mrf.mxu0
        %v4582 = vadd.f32 %v4469, %v4581
        %4583 = vmatprep.mubr.bf16.mxu0 %v1164
        %4584 = vmatmul.mubr.bf16.gmra.mxu0 %v1163
        %v4585 = vpop.f32.mrf.mxu0
        %v4586 = vadd.f32 %v4473, %v4585
        %v4587 = vpop.f32.mrf.mxu0
        %v4588 = vadd.f32 %v4475, %v4587
        %v4589 = vpop.f32.mrf.mxu0
        %v4590 = vadd.f32 %v4477, %v4589
        %v4591 = vpop.f32.mrf.mxu0
        %v4592 = vadd.f32 %v4479, %v4591
        %4593 = vdwg.mxu0
        %4594 = vmatprep.subr.bf16.mxu0 %v2885
        %4595 = vmatpush1.bf16.msra.mxu0 %v2884
        %4596 = vmatprep.subr.bf16.mxu0 %v2877
        %4597 = vmatpush1.bf16.msra.mxu0 %v2876
        %4598 = vmatprep.subr.bf16.mxu0 %v2869
        %4599 = vmatpush1.bf16.msra.mxu0 %v2868
        %4600 = vmatprep.subr.bf16.mxu0 %v2861
        %4601 = vmatpush1.bf16.msra.mxu0 %v2860
        %4602 = vmatprep.subr.bf16.mxu0 %v2853
        %4603 = vmatpush1.bf16.msra.mxu0 %v2852
        %4604 = vmatprep.subr.bf16.mxu0 %v2845
        %4605 = vmatpush1.bf16.msra.mxu0 %v2844
        %4606 = vmatprep.subr.bf16.mxu0 %v2837
        %4607 = vmatpush1.bf16.msra.mxu0 %v2836
        %4608 = vmatprep.subr.bf16.mxu0 %v2829
        %4609 = vmatpush1.bf16.msra.mxu0 %v2828
        %4610 = vmatprep.subr.bf16.mxu0 %v2949
        %4611 = vmatpush2.bf16.msra.mxu0 %v2948
        %4612 = vmatprep.subr.bf16.mxu0 %v2941
        %4613 = vmatpush2.bf16.msra.mxu0 %v2940
        %4614 = vmatprep.subr.bf16.mxu0 %v2933
        %4615 = vmatpush2.bf16.msra.mxu0 %v2932
        %4616 = vmatprep.subr.bf16.mxu0 %v2925
        %4617 = vmatpush2.bf16.msra.mxu0 %v2924
        %4618 = vmatprep.subr.bf16.mxu0 %v2917
        %4619 = vmatpush2.bf16.msra.mxu0 %v2916
        %4620 = vmatprep.subr.bf16.mxu0 %v2909
        %4621 = vmatpush2.bf16.msra.mxu0 %v2908
        %4622 = vmatprep.subr.bf16.mxu0 %v2901
        %4623 = vmatpush2.bf16.msra.mxu0 %v2900
        %4624 = vmatprep.subr.bf16.mxu0 %v2893
        %4625 = vmatpush2.bf16.msra.mxu0 %v2892
        %4626 = vmatprep.mubr.bf16.mxu0 %v1117
        %4627 = vmatmul.mubr.bf16.gmra.mxu0 %v1116
        %v4628 = vpop.f32.mrf.mxu0
        %v4629 = vadd.f32 %v4516, %v4628
        %v4630 = vpop.f32.mrf.mxu0
        %v4631 = vadd.f32 %v4518, %v4630
        %v4632 = vpop.f32.mrf.mxu0
        %v4633 = vadd.f32 %v4520, %v4632
        %v4634 = vpop.f32.mrf.mxu0
        %v4635 = vadd.f32 %v4522, %v4634
        %4636 = vmatprep.mubr.bf16.mxu0 %v1124
        %4637 = vmatmul.mubr.bf16.gmra.mxu0 %v1123
        %v4638 = vpop.f32.mrf.mxu0
        %v4639 = vadd.f32 %v4526, %v4638
        %v4640 = vpop.f32.mrf.mxu0
        %v4641 = vadd.f32 %v4528, %v4640
        %v4642 = vpop.f32.mrf.mxu0
        %v4643 = vadd.f32 %v4530, %v4642
        %v4644 = vpop.f32.mrf.mxu0
        %v4645 = vadd.f32 %v4532, %v4644
        %4646 = vmatprep.mubr.bf16.mxu0 %v1131
        %4647 = vmatmul.mubr.bf16.gmra.mxu0 %v1130
        %v4648 = vpop.f32.mrf.mxu0
        %v4649 = vadd.f32 %v4536, %v4648
        %v4650 = vpop.f32.mrf.mxu0
        %v4651 = vadd.f32 %v4538, %v4650
        %v4652 = vpop.f32.mrf.mxu0
        %v4653 = vadd.f32 %v4540, %v4652
        %v4654 = vpop.f32.mrf.mxu0
        %v4655 = vadd.f32 %v4542, %v4654
        %4656 = vmatprep.mubr.bf16.mxu0 %v1138
        %4657 = vmatmul.mubr.bf16.gmra.mxu0 %v1137
        %v4658 = vpop.f32.mrf.mxu0
        %v4659 = vadd.f32 %v4546, %v4658
        %v4660 = vpop.f32.mrf.mxu0
        %v4661 = vadd.f32 %v4548, %v4660
        %v4662 = vpop.f32.mrf.mxu0
        %v4663 = vadd.f32 %v4550, %v4662
        %v4664 = vpop.f32.mrf.mxu0
        %v4665 = vadd.f32 %v4552, %v4664
        %4666 = vmatprep.mubr.bf16.mxu0 %v1145
        %4667 = vmatmul.mubr.bf16.gmra.mxu0 %v1144
        %v4668 = vpop.f32.mrf.mxu0
        %v4669 = vadd.f32 %v4556, %v4668
        %v4670 = vpop.f32.mrf.mxu0
        %v4671 = vadd.f32 %v4558, %v4670
        %v4672 = vpop.f32.mrf.mxu0
        %v4673 = vadd.f32 %v4560, %v4672
        %v4674 = vpop.f32.mrf.mxu0
        %v4675 = vadd.f32 %v4562, %v4674
        %4676 = vmatprep.mubr.bf16.mxu0 %v1152
        %4677 = vmatmul.mubr.bf16.gmra.mxu0 %v1151
        %v4678 = vpop.f32.mrf.mxu0
        %v4679 = vadd.f32 %v4566, %v4678
        %v4680 = vpop.f32.mrf.mxu0
        %v4681 = vadd.f32 %v4568, %v4680
        %v4682 = vpop.f32.mrf.mxu0
        %v4683 = vadd.f32 %v4570, %v4682
        %v4684 = vpop.f32.mrf.mxu0
        %v4685 = vadd.f32 %v4572, %v4684
        %4686 = vmatprep.mubr.bf16.mxu0 %v1159
        %4687 = vmatmul.mubr.bf16.gmra.mxu0 %v1158
        %v4688 = vpop.f32.mrf.mxu0
        %v4689 = vadd.f32 %v4576, %v4688
        %v4690 = vpop.f32.mrf.mxu0
        %v4691 = vadd.f32 %v4578, %v4690
        %v4692 = vpop.f32.mrf.mxu0
        %v4693 = vadd.f32 %v4580, %v4692
        %v4694 = vpop.f32.mrf.mxu0
        %v4695 = vadd.f32 %v4582, %v4694
        %4696 = vmatprep.mubr.bf16.mxu0 %v1166
        %4697 = vmatmul.mubr.bf16.gmra.mxu0 %v1165
        %v4698 = vpop.f32.mrf.mxu0
        %v4699 = vadd.f32 %v4586, %v4698
        %v4700 = vpop.f32.mrf.mxu0
        %v4701 = vadd.f32 %v4588, %v4700
        %v4702 = vpop.f32.mrf.mxu0
        %v4703 = vadd.f32 %v4590, %v4702
        %v4704 = vpop.f32.mrf.mxu0
        %v4705 = vadd.f32 %v4592, %v4704
        %4706 = vdwg.mxu0
        %4707 = vmatprep.subr.bf16.mxu0 %v3013
        %4708 = vmatpush1.bf16.msra.mxu0 %v3012
        %4709 = vmatprep.subr.bf16.mxu0 %v3005
        %4710 = vmatpush1.bf16.msra.mxu0 %v3004
        %4711 = vmatprep.subr.bf16.mxu0 %v2997
        %4712 = vmatpush1.bf16.msra.mxu0 %v2996
        %4713 = vmatprep.subr.bf16.mxu0 %v2989
        %4714 = vmatpush1.bf16.msra.mxu0 %v2988
        %4715 = vmatprep.subr.bf16.mxu0 %v2981
        %4716 = vmatpush1.bf16.msra.mxu0 %v2980
        %4717 = vmatprep.subr.bf16.mxu0 %v2973
        %4718 = vmatpush1.bf16.msra.mxu0 %v2972
        %4719 = vmatprep.subr.bf16.mxu0 %v2965
        %4720 = vmatpush1.bf16.msra.mxu0 %v2964
        %4721 = vmatprep.subr.bf16.mxu0 %v2957
        %4722 = vmatpush1.bf16.msra.mxu0 %v2956
        %4723 = vmatprep.subr.bf16.mxu0 0
        %4724 = vmatpush2.bf16.msra.mxu0 0
        %4725 = vmatprep.subr.bf16.mxu0 0
        %4726 = vmatpush2.bf16.msra.mxu0 0
        %4727 = vmatprep.subr.bf16.mxu0 0
        %4728 = vmatpush2.bf16.msra.mxu0 0
        %4729 = vmatprep.subr.bf16.mxu0 0
        %4730 = vmatpush2.bf16.msra.mxu0 0
        %4731 = vmatprep.subr.bf16.mxu0 0
        %4732 = vmatpush2.bf16.msra.mxu0 0
        %4733 = vmatprep.subr.bf16.mxu0 0
        %4734 = vmatpush2.bf16.msra.mxu0 0
        %4735 = vmatprep.subr.bf16.mxu0 0
        %4736 = vmatpush2.bf16.msra.mxu0 0
        %4737 = vmatprep.subr.bf16.mxu0 0
        %4738 = vmatpush2.bf16.msra.mxu0 0
        %4739 = vmatprep.mubr.bf16.mxu0 0
        %4740 = vmatmul.mubr.bf16.gmra.mxu0 %v1118
        %v4741 = vpop.f32.mrf.mxu0
        %v4742 = vadd.f32 %v4629, %v4741
        %v4743 = vpop.f32.mrf.mxu0
        %v4744 = vadd.f32 %v4631, %v4743
        %v4745 = vpop.f32.mrf.mxu0
        %v4746 = vadd.f32 %v4633, %v4745
        %v4747 = vpop.f32.mrf.mxu0
        %v4748 = vadd.f32 %v4635, %v4747
        %4749 = vmatprep.mubr.bf16.mxu0 0
        %4750 = vmatmul.mubr.bf16.gmra.mxu0 %v1125
        %v4751 = vpop.f32.mrf.mxu0
        %v4752 = vadd.f32 %v4639, %v4751
        %v4753 = vpop.f32.mrf.mxu0
        %v4754 = vadd.f32 %v4641, %v4753
        %v4755 = vpop.f32.mrf.mxu0
        %v4756 = vadd.f32 %v4643, %v4755
        %v4757 = vpop.f32.mrf.mxu0
        %v4758 = vadd.f32 %v4645, %v4757
        %4759 = vmatprep.mubr.bf16.mxu0 0
        %4760 = vmatmul.mubr.bf16.gmra.mxu0 %v1132
        %v4761 = vpop.f32.mrf.mxu0
        %v4762 = vadd.f32 %v4649, %v4761
        %v4763 = vpop.f32.mrf.mxu0
        %v4764 = vadd.f32 %v4651, %v4763
        %v4765 = vpop.f32.mrf.mxu0
        %v4766 = vadd.f32 %v4653, %v4765
        %v4767 = vpop.f32.mrf.mxu0
        %v4768 = vadd.f32 %v4655, %v4767
        %4769 = vmatprep.mubr.bf16.mxu0 0
        %4770 = vmatmul.mubr.bf16.gmra.mxu0 %v1139
        %v4771 = vpop.f32.mrf.mxu0
        %v4772 = vadd.f32 %v4659, %v4771
        %v4773 = vpop.f32.mrf.mxu0
        %v4774 = vadd.f32 %v4661, %v4773
        %v4775 = vpop.f32.mrf.mxu0
        %v4776 = vadd.f32 %v4663, %v4775
        %v4777 = vpop.f32.mrf.mxu0
        %v4778 = vadd.f32 %v4665, %v4777
        %4779 = vmatprep.mubr.bf16.mxu0 0
        %4780 = vmatmul.mubr.bf16.gmra.mxu0 %v1146
        %v4781 = vpop.f32.mrf.mxu0
        %v4782 = vadd.f32 %v4669, %v4781
        %v4783 = vpop.f32.mrf.mxu0
        %v4784 = vadd.f32 %v4671, %v4783
        %v4785 = vpop.f32.mrf.mxu0
        %v4786 = vadd.f32 %v4673, %v4785
        %v4787 = vpop.f32.mrf.mxu0
        %v4788 = vadd.f32 %v4675, %v4787
        %4789 = vmatprep.mubr.bf16.mxu0 0
        %4790 = vmatmul.mubr.bf16.gmra.mxu0 %v1153
        %v4791 = vpop.f32.mrf.mxu0
        %v4792 = vadd.f32 %v4679, %v4791
        %v4793 = vpop.f32.mrf.mxu0
        %v4794 = vadd.f32 %v4681, %v4793
        %v4795 = vpop.f32.mrf.mxu0
        %v4796 = vadd.f32 %v4683, %v4795
        %v4797 = vpop.f32.mrf.mxu0
        %v4798 = vadd.f32 %v4685, %v4797
        %4799 = vmatprep.mubr.bf16.mxu0 0
        %4800 = vmatmul.mubr.bf16.gmra.mxu0 %v1160
        %v4801 = vpop.f32.mrf.mxu0
        %v4802 = vadd.f32 %v4689, %v4801
        %v4803 = vpop.f32.mrf.mxu0
        %v4804 = vadd.f32 %v4691, %v4803
        %v4805 = vpop.f32.mrf.mxu0
        %v4806 = vadd.f32 %v4693, %v4805
        %v4807 = vpop.f32.mrf.mxu0
        %v4808 = vadd.f32 %v4695, %v4807
        %4809 = vmatprep.mubr.bf16.mxu0 0
        %4810 = vmatmul.mubr.bf16.gmra.mxu0 %v1167
        %v4811 = vpop.f32.mrf.mxu0
        %v4812 = vadd.f32 %v4699, %v4811
        %v4813 = vpop.f32.mrf.mxu0
        %v4814 = vadd.f32 %v4701, %v4813
        %v4815 = vpop.f32.mrf.mxu0
        %v4816 = vadd.f32 %v4703, %v4815
        %v4817 = vpop.f32.mrf.mxu0
        %v4818 = vadd.f32 %v4705, %v4817
        %4819 = vdwg.mxu0
        %4820 = vmatprep.subr.bf16.mxu0 %v2631
        %4821 = vmatpush1.bf16.msra.mxu0 %v2630
        %4822 = vmatprep.subr.bf16.mxu0 %v2623
        %4823 = vmatpush1.bf16.msra.mxu0 %v2622
        %4824 = vmatprep.subr.bf16.mxu0 %v2615
        %4825 = vmatpush1.bf16.msra.mxu0 %v2614
        %4826 = vmatprep.subr.bf16.mxu0 %v2607
        %4827 = vmatpush1.bf16.msra.mxu0 %v2606
        %4828 = vmatprep.subr.bf16.mxu0 %v2599
        %4829 = vmatpush1.bf16.msra.mxu0 %v2598
        %4830 = vmatprep.subr.bf16.mxu0 %v2591
        %4831 = vmatpush1.bf16.msra.mxu0 %v2590
        %4832 = vmatprep.subr.bf16.mxu0 %v2583
        %4833 = vmatpush1.bf16.msra.mxu0 %v2582
        %4834 = vmatprep.subr.bf16.mxu0 %v2575
        %4835 = vmatpush1.bf16.msra.mxu0 %v2574
        %4836 = vmatprep.subr.bf16.mxu0 %v2695
        %4837 = vmatpush2.bf16.msra.mxu0 %v2694
        %4838 = vmatprep.subr.bf16.mxu0 %v2687
        %4839 = vmatpush2.bf16.msra.mxu0 %v2686
        %4840 = vmatprep.subr.bf16.mxu0 %v2679
        %4841 = vmatpush2.bf16.msra.mxu0 %v2678
        %4842 = vmatprep.subr.bf16.mxu0 %v2671
        %4843 = vmatpush2.bf16.msra.mxu0 %v2670
        %4844 = vmatprep.subr.bf16.mxu0 %v2663
        %4845 = vmatpush2.bf16.msra.mxu0 %v2662
        %4846 = vmatprep.subr.bf16.mxu0 %v2655
        %4847 = vmatpush2.bf16.msra.mxu0 %v2654
        %4848 = vmatprep.subr.bf16.mxu0 %v2647
        %4849 = vmatpush2.bf16.msra.mxu0 %v2646
        %4850 = vmatprep.subr.bf16.mxu0 %v2639
        %4851 = vmatpush2.bf16.msra.mxu0 %v2638
        %4852 = vmatprep.mubr.bf16.mxu0 %v1113
        %4853 = vmatmul.mubr.bf16.gmra.mxu0 %v1112
        %v4854 = vpop.f32.mrf.mxu0
        %v4855 = vadd.f32 %v923, %v4854
        %v4856 = vpop.f32.mrf.mxu0
        %v4857 = vadd.f32 %v927, %v4856
        %v4858 = vpop.f32.mrf.mxu0
        %v4859 = vadd.f32 %v923, %v4858
        %v4860 = vpop.f32.mrf.mxu0
        %v4861 = vadd.f32 %v927, %v4860
        %4862 = vmatprep.mubr.bf16.mxu0 %v1120
        %4863 = vmatmul.mubr.bf16.gmra.mxu0 %v1119
        %v4864 = vpop.f32.mrf.mxu0
        %v4865 = vadd.f32 %v923, %v4864
        %v4866 = vpop.f32.mrf.mxu0
        %v4867 = vadd.f32 %v927, %v4866
        %v4868 = vpop.f32.mrf.mxu0
        %v4869 = vadd.f32 %v923, %v4868
        %v4870 = vpop.f32.mrf.mxu0
        %v4871 = vadd.f32 %v927, %v4870
        %4872 = vmatprep.mubr.bf16.mxu0 %v1127
        %4873 = vmatmul.mubr.bf16.gmra.mxu0 %v1126
        %v4874 = vpop.f32.mrf.mxu0
        %v4875 = vadd.f32 %v923, %v4874
        %v4876 = vpop.f32.mrf.mxu0
        %v4877 = vadd.f32 %v927, %v4876
        %v4878 = vpop.f32.mrf.mxu0
        %v4879 = vadd.f32 %v923, %v4878
        %v4880 = vpop.f32.mrf.mxu0
        %v4881 = vadd.f32 %v927, %v4880
        %4882 = vmatprep.mubr.bf16.mxu0 %v1134
        %4883 = vmatmul.mubr.bf16.gmra.mxu0 %v1133
        %v4884 = vpop.f32.mrf.mxu0
        %v4885 = vadd.f32 %v923, %v4884
        %v4886 = vpop.f32.mrf.mxu0
        %v4887 = vadd.f32 %v927, %v4886
        %v4888 = vpop.f32.mrf.mxu0
        %v4889 = vadd.f32 %v923, %v4888
        %v4890 = vpop.f32.mrf.mxu0
        %v4891 = vadd.f32 %v927, %v4890
        %4892 = vmatprep.mubr.bf16.mxu0 %v1141
        %4893 = vmatmul.mubr.bf16.gmra.mxu0 %v1140
        %v4894 = vpop.f32.mrf.mxu0
        %v4895 = vadd.f32 %v923, %v4894
        %v4896 = vpop.f32.mrf.mxu0
        %v4897 = vadd.f32 %v927, %v4896
        %v4898 = vpop.f32.mrf.mxu0
        %v4899 = vadd.f32 %v923, %v4898
        %v4900 = vpop.f32.mrf.mxu0
        %v4901 = vadd.f32 %v927, %v4900
        %4902 = vmatprep.mubr.bf16.mxu0 %v1148
        %4903 = vmatmul.mubr.bf16.gmra.mxu0 %v1147
        %v4904 = vpop.f32.mrf.mxu0
        %v4905 = vadd.f32 %v923, %v4904
        %v4906 = vpop.f32.mrf.mxu0
        %v4907 = vadd.f32 %v927, %v4906
        %v4908 = vpop.f32.mrf.mxu0
        %v4909 = vadd.f32 %v923, %v4908
        %v4910 = vpop.f32.mrf.mxu0
        %v4911 = vadd.f32 %v927, %v4910
        %4912 = vmatprep.mubr.bf16.mxu0 %v1155
        %4913 = vmatmul.mubr.bf16.gmra.mxu0 %v1154
        %v4914 = vpop.f32.mrf.mxu0
        %v4915 = vadd.f32 %v923, %v4914
        %v4916 = vpop.f32.mrf.mxu0
        %v4917 = vadd.f32 %v927, %v4916
        %v4918 = vpop.f32.mrf.mxu0
        %v4919 = vadd.f32 %v923, %v4918
        %v4920 = vpop.f32.mrf.mxu0
        %v4921 = vadd.f32 %v927, %v4920
        %4922 = vmatprep.mubr.bf16.mxu0 %v1162
        %4923 = vmatmul.mubr.bf16.gmra.mxu0 %v1161
        %v4924 = vpop.f32.mrf.mxu0
        %v4925 = vadd.f32 %v923, %v4924
        %v4926 = vpop.f32.mrf.mxu0
        %v4927 = vadd.f32 %v927, %v4926
        %v4928 = vpop.f32.mrf.mxu0
        %v4929 = vadd.f32 %v923, %v4928
        %v4930 = vpop.f32.mrf.mxu0
        %v4931 = vadd.f32 %v927, %v4930
        %4932 = vdwg.mxu0
        %4933 = vmatprep.subr.bf16.mxu0 %v2759
        %4934 = vmatpush1.bf16.msra.mxu0 %v2758
        %4935 = vmatprep.subr.bf16.mxu0 %v2751
        %4936 = vmatpush1.bf16.msra.mxu0 %v2750
        %4937 = vmatprep.subr.bf16.mxu0 %v2743
        %4938 = vmatpush1.bf16.msra.mxu0 %v2742
        %4939 = vmatprep.subr.bf16.mxu0 %v2735
        %4940 = vmatpush1.bf16.msra.mxu0 %v2734
        %4941 = vmatprep.subr.bf16.mxu0 %v2727
        %4942 = vmatpush1.bf16.msra.mxu0 %v2726
        %4943 = vmatprep.subr.bf16.mxu0 %v2719
        %4944 = vmatpush1.bf16.msra.mxu0 %v2718
        %4945 = vmatprep.subr.bf16.mxu0 %v2711
        %4946 = vmatpush1.bf16.msra.mxu0 %v2710
        %4947 = vmatprep.subr.bf16.mxu0 %v2703
        %4948 = vmatpush1.bf16.msra.mxu0 %v2702
        %4949 = vmatprep.subr.bf16.mxu0 %v2823
        %4950 = vmatpush2.bf16.msra.mxu0 %v2822
        %4951 = vmatprep.subr.bf16.mxu0 %v2815
        %4952 = vmatpush2.bf16.msra.mxu0 %v2814
        %4953 = vmatprep.subr.bf16.mxu0 %v2807
        %4954 = vmatpush2.bf16.msra.mxu0 %v2806
        %4955 = vmatprep.subr.bf16.mxu0 %v2799
        %4956 = vmatpush2.bf16.msra.mxu0 %v2798
        %4957 = vmatprep.subr.bf16.mxu0 %v2791
        %4958 = vmatpush2.bf16.msra.mxu0 %v2790
        %4959 = vmatprep.subr.bf16.mxu0 %v2783
        %4960 = vmatpush2.bf16.msra.mxu0 %v2782
        %4961 = vmatprep.subr.bf16.mxu0 %v2775
        %4962 = vmatpush2.bf16.msra.mxu0 %v2774
        %4963 = vmatprep.subr.bf16.mxu0 %v2767
        %4964 = vmatpush2.bf16.msra.mxu0 %v2766
        %4965 = vmatprep.mubr.bf16.mxu0 %v1115
        %4966 = vmatmul.mubr.bf16.gmra.mxu0 %v1114
        %v4967 = vpop.f32.mrf.mxu0
        %v4968 = vadd.f32 %v4855, %v4967
        %v4969 = vpop.f32.mrf.mxu0
        %v4970 = vadd.f32 %v4857, %v4969
        %v4971 = vpop.f32.mrf.mxu0
        %v4972 = vadd.f32 %v4859, %v4971
        %v4973 = vpop.f32.mrf.mxu0
        %v4974 = vadd.f32 %v4861, %v4973
        %4975 = vmatprep.mubr.bf16.mxu0 %v1122
        %4976 = vmatmul.mubr.bf16.gmra.mxu0 %v1121
        %v4977 = vpop.f32.mrf.mxu0
        %v4978 = vadd.f32 %v4865, %v4977
        %v4979 = vpop.f32.mrf.mxu0
        %v4980 = vadd.f32 %v4867, %v4979
        %v4981 = vpop.f32.mrf.mxu0
        %v4982 = vadd.f32 %v4869, %v4981
        %v4983 = vpop.f32.mrf.mxu0
        %v4984 = vadd.f32 %v4871, %v4983
        %4985 = vmatprep.mubr.bf16.mxu0 %v1129
        %4986 = vmatmul.mubr.bf16.gmra.mxu0 %v1128
        %v4987 = vpop.f32.mrf.mxu0
        %v4988 = vadd.f32 %v4875, %v4987
        %v4989 = vpop.f32.mrf.mxu0
        %v4990 = vadd.f32 %v4877, %v4989
        %v4991 = vpop.f32.mrf.mxu0
        %v4992 = vadd.f32 %v4879, %v4991
        %v4993 = vpop.f32.mrf.mxu0
        %v4994 = vadd.f32 %v4881, %v4993
        %4995 = vmatprep.mubr.bf16.mxu0 %v1136
        %4996 = vmatmul.mubr.bf16.gmra.mxu0 %v1135
        %v4997 = vpop.f32.mrf.mxu0
        %v4998 = vadd.f32 %v4885, %v4997
        %v4999 = vpop.f32.mrf.mxu0
        %v5000 = vadd.f32 %v4887, %v4999
        %v5001 = vpop.f32.mrf.mxu0
        %v5002 = vadd.f32 %v4889, %v5001
        %v5003 = vpop.f32.mrf.mxu0
        %v5004 = vadd.f32 %v4891, %v5003
        %5005 = vmatprep.mubr.bf16.mxu0 %v1143
        %5006 = vmatmul.mubr.bf16.gmra.mxu0 %v1142
        %v5007 = vpop.f32.mrf.mxu0
        %v5008 = vadd.f32 %v4895, %v5007
        %v5009 = vpop.f32.mrf.mxu0
        %v5010 = vadd.f32 %v4897, %v5009
        %v5011 = vpop.f32.mrf.mxu0
        %v5012 = vadd.f32 %v4899, %v5011
        %v5013 = vpop.f32.mrf.mxu0
        %v5014 = vadd.f32 %v4901, %v5013
        %5015 = vmatprep.mubr.bf16.mxu0 %v1150
        %5016 = vmatmul.mubr.bf16.gmra.mxu0 %v1149
        %v5017 = vpop.f32.mrf.mxu0
        %v5018 = vadd.f32 %v4905, %v5017
        %v5019 = vpop.f32.mrf.mxu0
        %v5020 = vadd.f32 %v4907, %v5019
        %v5021 = vpop.f32.mrf.mxu0
        %v5022 = vadd.f32 %v4909, %v5021
        %v5023 = vpop.f32.mrf.mxu0
        %v5024 = vadd.f32 %v4911, %v5023
        %5025 = vmatprep.mubr.bf16.mxu0 %v1157
        %5026 = vmatmul.mubr.bf16.gmra.mxu0 %v1156
        %v5027 = vpop.f32.mrf.mxu0
        %v5028 = vadd.f32 %v4915, %v5027
        %v5029 = vpop.f32.mrf.mxu0
        %v5030 = vadd.f32 %v4917, %v5029
        %v5031 = vpop.f32.mrf.mxu0
        %v5032 = vadd.f32 %v4919, %v5031
        %v5033 = vpop.f32.mrf.mxu0
        %v5034 = vadd.f32 %v4921, %v5033
        %5035 = vmatprep.mubr.bf16.mxu0 %v1164
        %5036 = vmatmul.mubr.bf16.gmra.mxu0 %v1163
        %v5037 = vpop.f32.mrf.mxu0
        %v5038 = vadd.f32 %v4925, %v5037
        %v5039 = vpop.f32.mrf.mxu0
        %v5040 = vadd.f32 %v4927, %v5039
        %v5041 = vpop.f32.mrf.mxu0
        %v5042 = vadd.f32 %v4929, %v5041
        %v5043 = vpop.f32.mrf.mxu0
        %v5044 = vadd.f32 %v4931, %v5043
        %5045 = vdwg.mxu0
        %5046 = vmatprep.subr.bf16.mxu0 %v2887
        %5047 = vmatpush1.bf16.msra.mxu0 %v2886
        %5048 = vmatprep.subr.bf16.mxu0 %v2879
        %5049 = vmatpush1.bf16.msra.mxu0 %v2878
        %5050 = vmatprep.subr.bf16.mxu0 %v2871
        %5051 = vmatpush1.bf16.msra.mxu0 %v2870
        %5052 = vmatprep.subr.bf16.mxu0 %v2863
        %5053 = vmatpush1.bf16.msra.mxu0 %v2862
        %5054 = vmatprep.subr.bf16.mxu0 %v2855
        %5055 = vmatpush1.bf16.msra.mxu0 %v2854
        %5056 = vmatprep.subr.bf16.mxu0 %v2847
        %5057 = vmatpush1.bf16.msra.mxu0 %v2846
        %5058 = vmatprep.subr.bf16.mxu0 %v2839
        %5059 = vmatpush1.bf16.msra.mxu0 %v2838
        %5060 = vmatprep.subr.bf16.mxu0 %v2831
        %5061 = vmatpush1.bf16.msra.mxu0 %v2830
        %5062 = vmatprep.subr.bf16.mxu0 %v2951
        %5063 = vmatpush2.bf16.msra.mxu0 %v2950
        %5064 = vmatprep.subr.bf16.mxu0 %v2943
        %5065 = vmatpush2.bf16.msra.mxu0 %v2942
        %5066 = vmatprep.subr.bf16.mxu0 %v2935
        %5067 = vmatpush2.bf16.msra.mxu0 %v2934
        %5068 = vmatprep.subr.bf16.mxu0 %v2927
        %5069 = vmatpush2.bf16.msra.mxu0 %v2926
        %5070 = vmatprep.subr.bf16.mxu0 %v2919
        %5071 = vmatpush2.bf16.msra.mxu0 %v2918
        %5072 = vmatprep.subr.bf16.mxu0 %v2911
        %5073 = vmatpush2.bf16.msra.mxu0 %v2910
        %5074 = vmatprep.subr.bf16.mxu0 %v2903
        %5075 = vmatpush2.bf16.msra.mxu0 %v2902
        %5076 = vmatprep.subr.bf16.mxu0 %v2895
        %5077 = vmatpush2.bf16.msra.mxu0 %v2894
        %5078 = vmatprep.mubr.bf16.mxu0 %v1117
        %5079 = vmatmul.mubr.bf16.gmra.mxu0 %v1116
        %v5080 = vpop.f32.mrf.mxu0
        %v5081 = vadd.f32 %v4968, %v5080
        %v5082 = vpop.f32.mrf.mxu0
        %v5083 = vadd.f32 %v4970, %v5082
        %v5084 = vpop.f32.mrf.mxu0
        %v5085 = vadd.f32 %v4972, %v5084
        %v5086 = vpop.f32.mrf.mxu0
        %v5087 = vadd.f32 %v4974, %v5086
        %5088 = vmatprep.mubr.bf16.mxu0 %v1124
        %5089 = vmatmul.mubr.bf16.gmra.mxu0 %v1123
        %v5090 = vpop.f32.mrf.mxu0
        %v5091 = vadd.f32 %v4978, %v5090
        %v5092 = vpop.f32.mrf.mxu0
        %v5093 = vadd.f32 %v4980, %v5092
        %v5094 = vpop.f32.mrf.mxu0
        %v5095 = vadd.f32 %v4982, %v5094
        %v5096 = vpop.f32.mrf.mxu0
        %v5097 = vadd.f32 %v4984, %v5096
        %5098 = vmatprep.mubr.bf16.mxu0 %v1131
        %5099 = vmatmul.mubr.bf16.gmra.mxu0 %v1130
        %v5100 = vpop.f32.mrf.mxu0
        %v5101 = vadd.f32 %v4988, %v5100
        %v5102 = vpop.f32.mrf.mxu0
        %v5103 = vadd.f32 %v4990, %v5102
        %v5104 = vpop.f32.mrf.mxu0
        %v5105 = vadd.f32 %v4992, %v5104
        %v5106 = vpop.f32.mrf.mxu0
        %v5107 = vadd.f32 %v4994, %v5106
        %5108 = vmatprep.mubr.bf16.mxu0 %v1138
        %5109 = vmatmul.mubr.bf16.gmra.mxu0 %v1137
        %v5110 = vpop.f32.mrf.mxu0
        %v5111 = vadd.f32 %v4998, %v5110
        %v5112 = vpop.f32.mrf.mxu0
        %v5113 = vadd.f32 %v5000, %v5112
        %v5114 = vpop.f32.mrf.mxu0
        %v5115 = vadd.f32 %v5002, %v5114
        %v5116 = vpop.f32.mrf.mxu0
        %v5117 = vadd.f32 %v5004, %v5116
        %5118 = vmatprep.mubr.bf16.mxu0 %v1145
        %5119 = vmatmul.mubr.bf16.gmra.mxu0 %v1144
        %v5120 = vpop.f32.mrf.mxu0
        %v5121 = vadd.f32 %v5008, %v5120
        %v5122 = vpop.f32.mrf.mxu0
        %v5123 = vadd.f32 %v5010, %v5122
        %v5124 = vpop.f32.mrf.mxu0
        %v5125 = vadd.f32 %v5012, %v5124
        %v5126 = vpop.f32.mrf.mxu0
        %v5127 = vadd.f32 %v5014, %v5126
        %5128 = vmatprep.mubr.bf16.mxu0 %v1152
        %5129 = vmatmul.mubr.bf16.gmra.mxu0 %v1151
        %v5130 = vpop.f32.mrf.mxu0
        %v5131 = vadd.f32 %v5018, %v5130
        %v5132 = vpop.f32.mrf.mxu0
        %v5133 = vadd.f32 %v5020, %v5132
        %v5134 = vpop.f32.mrf.mxu0
        %v5135 = vadd.f32 %v5022, %v5134
        %v5136 = vpop.f32.mrf.mxu0
        %v5137 = vadd.f32 %v5024, %v5136
        %5138 = vmatprep.mubr.bf16.mxu0 %v1159
        %5139 = vmatmul.mubr.bf16.gmra.mxu0 %v1158
        %v5140 = vpop.f32.mrf.mxu0
        %v5141 = vadd.f32 %v5028, %v5140
        %v5142 = vpop.f32.mrf.mxu0
        %v5143 = vadd.f32 %v5030, %v5142
        %v5144 = vpop.f32.mrf.mxu0
        %v5145 = vadd.f32 %v5032, %v5144
        %v5146 = vpop.f32.mrf.mxu0
        %v5147 = vadd.f32 %v5034, %v5146
        %5148 = vmatprep.mubr.bf16.mxu0 %v1166
        %5149 = vmatmul.mubr.bf16.gmra.mxu0 %v1165
        %v5150 = vpop.f32.mrf.mxu0
        %v5151 = vadd.f32 %v5038, %v5150
        %v5152 = vpop.f32.mrf.mxu0
        %v5153 = vadd.f32 %v5040, %v5152
        %v5154 = vpop.f32.mrf.mxu0
        %v5155 = vadd.f32 %v5042, %v5154
        %v5156 = vpop.f32.mrf.mxu0
        %v5157 = vadd.f32 %v5044, %v5156
        %5158 = vdwg.mxu0
        %5159 = vmatprep.subr.bf16.mxu0 %v3015
        %5160 = vmatpush1.bf16.msra.mxu0 %v3014
        %5161 = vmatprep.subr.bf16.mxu0 %v3007
        %5162 = vmatpush1.bf16.msra.mxu0 %v3006
        %5163 = vmatprep.subr.bf16.mxu0 %v2999
        %5164 = vmatpush1.bf16.msra.mxu0 %v2998
        %5165 = vmatprep.subr.bf16.mxu0 %v2991
        %5166 = vmatpush1.bf16.msra.mxu0 %v2990
        %5167 = vmatprep.subr.bf16.mxu0 %v2983
        %5168 = vmatpush1.bf16.msra.mxu0 %v2982
        %5169 = vmatprep.subr.bf16.mxu0 %v2975
        %5170 = vmatpush1.bf16.msra.mxu0 %v2974
        %5171 = vmatprep.subr.bf16.mxu0 %v2967
        %5172 = vmatpush1.bf16.msra.mxu0 %v2966
        %5173 = vmatprep.subr.bf16.mxu0 %v2959
        %5174 = vmatpush1.bf16.msra.mxu0 %v2958
        %5175 = vmatprep.subr.bf16.mxu0 0
        %5176 = vmatpush2.bf16.msra.mxu0 0
        %5177 = vmatprep.subr.bf16.mxu0 0
        %5178 = vmatpush2.bf16.msra.mxu0 0
        %5179 = vmatprep.subr.bf16.mxu0 0
        %5180 = vmatpush2.bf16.msra.mxu0 0
        %5181 = vmatprep.subr.bf16.mxu0 0
        %5182 = vmatpush2.bf16.msra.mxu0 0
        %5183 = vmatprep.subr.bf16.mxu0 0
        %5184 = vmatpush2.bf16.msra.mxu0 0
        %5185 = vmatprep.subr.bf16.mxu0 0
        %5186 = vmatpush2.bf16.msra.mxu0 0
        %5187 = vmatprep.subr.bf16.mxu0 0
        %5188 = vmatpush2.bf16.msra.mxu0 0
        %5189 = vmatprep.subr.bf16.mxu0 0
        %5190 = vmatpush2.bf16.msra.mxu0 0
        %5191 = vmatprep.mubr.bf16.mxu0 0
        %5192 = vmatmul.mubr.bf16.gmra.mxu0 %v1118
        %v5193 = vpop.f32.mrf.mxu0
        %v5194 = vadd.f32 %v5081, %v5193
        %v5195 = vpop.f32.mrf.mxu0
        %v5196 = vadd.f32 %v5083, %v5195
        %v5197 = vpop.f32.mrf.mxu0
        %v5198 = vadd.f32 %v5085, %v5197
        %v5199 = vpop.f32.mrf.mxu0
        %v5200 = vadd.f32 %v5087, %v5199
        %5201 = vmatprep.mubr.bf16.mxu0 0
        %5202 = vmatmul.mubr.bf16.gmra.mxu0 %v1125
        %v5203 = vpop.f32.mrf.mxu0
        %v5204 = vadd.f32 %v5091, %v5203
        %v5205 = vpop.f32.mrf.mxu0
        %v5206 = vadd.f32 %v5093, %v5205
        %v5207 = vpop.f32.mrf.mxu0
        %v5208 = vadd.f32 %v5095, %v5207
        %v5209 = vpop.f32.mrf.mxu0
        %v5210 = vadd.f32 %v5097, %v5209
        %5211 = vmatprep.mubr.bf16.mxu0 0
        %5212 = vmatmul.mubr.bf16.gmra.mxu0 %v1132
        %v5213 = vpop.f32.mrf.mxu0
        %v5214 = vadd.f32 %v5101, %v5213
        %v5215 = vpop.f32.mrf.mxu0
        %v5216 = vadd.f32 %v5103, %v5215
        %v5217 = vpop.f32.mrf.mxu0
        %v5218 = vadd.f32 %v5105, %v5217
        %v5219 = vpop.f32.mrf.mxu0
        %v5220 = vadd.f32 %v5107, %v5219
        %5221 = vmatprep.mubr.bf16.mxu0 0
        %5222 = vmatmul.mubr.bf16.gmra.mxu0 %v1139
        %v5223 = vpop.f32.mrf.mxu0
        %v5224 = vadd.f32 %v5111, %v5223
        %v5225 = vpop.f32.mrf.mxu0
        %v5226 = vadd.f32 %v5113, %v5225
        %v5227 = vpop.f32.mrf.mxu0
        %v5228 = vadd.f32 %v5115, %v5227
        %v5229 = vpop.f32.mrf.mxu0
        %v5230 = vadd.f32 %v5117, %v5229
        %5231 = vmatprep.mubr.bf16.mxu0 0
        %5232 = vmatmul.mubr.bf16.gmra.mxu0 %v1146
        %v5233 = vpop.f32.mrf.mxu0
        %v5234 = vadd.f32 %v5121, %v5233
        %v5235 = vpop.f32.mrf.mxu0
        %v5236 = vadd.f32 %v5123, %v5235
        %v5237 = vpop.f32.mrf.mxu0
        %v5238 = vadd.f32 %v5125, %v5237
        %v5239 = vpop.f32.mrf.mxu0
        %v5240 = vadd.f32 %v5127, %v5239
        %5241 = vmatprep.mubr.bf16.mxu0 0
        %5242 = vmatmul.mubr.bf16.gmra.mxu0 %v1153
        %v5243 = vpop.f32.mrf.mxu0
        %v5244 = vadd.f32 %v5131, %v5243
        %v5245 = vpop.f32.mrf.mxu0
        %v5246 = vadd.f32 %v5133, %v5245
        %v5247 = vpop.f32.mrf.mxu0
        %v5248 = vadd.f32 %v5135, %v5247
        %v5249 = vpop.f32.mrf.mxu0
        %v5250 = vadd.f32 %v5137, %v5249
        %5251 = vmatprep.mubr.bf16.mxu0 0
        %5252 = vmatmul.mubr.bf16.gmra.mxu0 %v1160
        %v5253 = vpop.f32.mrf.mxu0
        %v5254 = vadd.f32 %v5141, %v5253
        %v5255 = vpop.f32.mrf.mxu0
        %v5256 = vadd.f32 %v5143, %v5255
        %v5257 = vpop.f32.mrf.mxu0
        %v5258 = vadd.f32 %v5145, %v5257
        %v5259 = vpop.f32.mrf.mxu0
        %v5260 = vadd.f32 %v5147, %v5259
        %5261 = vmatprep.mubr.bf16.mxu0 0
        %5262 = vmatmul.mubr.bf16.gmra.mxu0 %v1167
        %v5263 = vpop.f32.mrf.mxu0
        %v5264 = vadd.f32 %v5151, %v5263
        %v5265 = vpop.f32.mrf.mxu0
        %v5266 = vadd.f32 %v5153, %v5265
        %v5267 = vpop.f32.mrf.mxu0
        %v5268 = vadd.f32 %v5155, %v5267
        %v5269 = vpop.f32.mrf.mxu0
        %v5270 = vadd.f32 %v5157, %v5269
        %5271 = vdwg.mxu0
        %v5272 = vmax.f32 %v3838, 0.0
        %v5273 = vmax.f32 %v3840, 0.0
        %v5274 = vmax.f32 %v4290, 0.0
        %v5275 = vmax.f32 %v4292, 0.0
        %v5276 = vmax.f32 %v4742, 0.0
        %v5277 = vmax.f32 %v4744, 0.0
        %v5278 = vmax.f32 %v5194, 0.0
        %v5279 = vmax.f32 %v5196, 0.0
        %v5280 = vmax.f32 %v3842, 0.0
        %v5281 = vmax.f32 %v3844, 0.0
        %v5282 = vmax.f32 %v4294, 0.0
        %v5283 = vmax.f32 %v4296, 0.0
        %v5284 = vmax.f32 %v4746, 0.0
        %v5285 = vmax.f32 %v4748, 0.0
        %v5286 = vmax.f32 %v5198, 0.0
        %v5287 = vmax.f32 %v5200, 0.0
        %v5288 = vmax.f32 %v3848, 0.0
        %v5289 = vmax.f32 %v3850, 0.0
        %v5290 = vmax.f32 %v4300, 0.0
        %v5291 = vmax.f32 %v4302, 0.0
        %v5292 = vmax.f32 %v4752, 0.0
        %v5293 = vmax.f32 %v4754, 0.0
        %v5294 = vmax.f32 %v5204, 0.0
        %v5295 = vmax.f32 %v5206, 0.0
        %v5296 = vmax.f32 %v3852, 0.0
        %v5297 = vmax.f32 %v3854, 0.0
        %v5298 = vmax.f32 %v4304, 0.0
        %v5299 = vmax.f32 %v4306, 0.0
        %v5300 = vmax.f32 %v4756, 0.0
        %v5301 = vmax.f32 %v4758, 0.0
        %v5302 = vmax.f32 %v5208, 0.0
        %v5303 = vmax.f32 %v5210, 0.0
        %v5304 = vmax.f32 %v3858, 0.0
        %v5305 = vmax.f32 %v3860, 0.0
        %v5306 = vmax.f32 %v4310, 0.0
        %v5307 = vmax.f32 %v4312, 0.0
        %v5308 = vmax.f32 %v4762, 0.0
        %v5309 = vmax.f32 %v4764, 0.0
        %v5310 = vmax.f32 %v5214, 0.0
        %v5311 = vmax.f32 %v5216, 0.0
        %v5312 = vmax.f32 %v3862, 0.0
        %v5313 = vmax.f32 %v3864, 0.0
        %v5314 = vmax.f32 %v4314, 0.0
        %v5315 = vmax.f32 %v4316, 0.0
        %v5316 = vmax.f32 %v4766, 0.0
        %v5317 = vmax.f32 %v4768, 0.0
        %v5318 = vmax.f32 %v5218, 0.0
        %v5319 = vmax.f32 %v5220, 0.0
        %v5320 = vmax.f32 %v3868, 0.0
        %v5321 = vmax.f32 %v3870, 0.0
        %v5322 = vmax.f32 %v4320, 0.0
        %v5323 = vmax.f32 %v4322, 0.0
        %v5324 = vmax.f32 %v4772, 0.0
        %v5325 = vmax.f32 %v4774, 0.0
        %v5326 = vmax.f32 %v5224, 0.0
        %v5327 = vmax.f32 %v5226, 0.0
        %v5328 = vmax.f32 %v3872, 0.0
        %v5329 = vmax.f32 %v3874, 0.0
        %v5330 = vmax.f32 %v4324, 0.0
        %v5331 = vmax.f32 %v4326, 0.0
        %v5332 = vmax.f32 %v4776, 0.0
        %v5333 = vmax.f32 %v4778, 0.0
        %v5334 = vmax.f32 %v5228, 0.0
        %v5335 = vmax.f32 %v5230, 0.0
        %v5336 = vmax.f32 %v3878, 0.0
        %v5337 = vmax.f32 %v3880, 0.0
        %v5338 = vmax.f32 %v4330, 0.0
        %v5339 = vmax.f32 %v4332, 0.0
        %v5340 = vmax.f32 %v4782, 0.0
        %v5341 = vmax.f32 %v4784, 0.0
        %v5342 = vmax.f32 %v5234, 0.0
        %v5343 = vmax.f32 %v5236, 0.0
        %v5344 = vmax.f32 %v3882, 0.0
        %v5345 = vmax.f32 %v3884, 0.0
        %v5346 = vmax.f32 %v4334, 0.0
        %v5347 = vmax.f32 %v4336, 0.0
        %v5348 = vmax.f32 %v4786, 0.0
        %v5349 = vmax.f32 %v4788, 0.0
        %v5350 = vmax.f32 %v5238, 0.0
        %v5351 = vmax.f32 %v5240, 0.0
        %v5352 = vmax.f32 %v3888, 0.0
        %v5353 = vmax.f32 %v3890, 0.0
        %v5354 = vmax.f32 %v4340, 0.0
        %v5355 = vmax.f32 %v4342, 0.0
        %v5356 = vmax.f32 %v4792, 0.0
        %v5357 = vmax.f32 %v4794, 0.0
        %v5358 = vmax.f32 %v5244, 0.0
        %v5359 = vmax.f32 %v5246, 0.0
        %v5360 = vmax.f32 %v3892, 0.0
        %v5361 = vmax.f32 %v3894, 0.0
        %v5362 = vmax.f32 %v4344, 0.0
        %v5363 = vmax.f32 %v4346, 0.0
        %v5364 = vmax.f32 %v4796, 0.0
        %v5365 = vmax.f32 %v4798, 0.0
        %v5366 = vmax.f32 %v5248, 0.0
        %v5367 = vmax.f32 %v5250, 0.0
        %v5368 = vmax.f32 %v3898, 0.0
        %v5369 = vmax.f32 %v3900, 0.0
        %v5370 = vmax.f32 %v4350, 0.0
        %v5371 = vmax.f32 %v4352, 0.0
        %v5372 = vmax.f32 %v4802, 0.0
        %v5373 = vmax.f32 %v4804, 0.0
        %v5374 = vmax.f32 %v5254, 0.0
        %v5375 = vmax.f32 %v5256, 0.0
        %v5376 = vmax.f32 %v3902, 0.0
        %v5377 = vmax.f32 %v3904, 0.0
        %v5378 = vmax.f32 %v4354, 0.0
        %v5379 = vmax.f32 %v4356, 0.0
        %v5380 = vmax.f32 %v4806, 0.0
        %v5381 = vmax.f32 %v4808, 0.0
        %v5382 = vmax.f32 %v5258, 0.0
        %v5383 = vmax.f32 %v5260, 0.0
        %v5384 = vmax.f32 %v3908, 0.0
        %v5385 = vmax.f32 %v3910, 0.0
        %v5386 = vmax.f32 %v4360, 0.0
        %v5387 = vmax.f32 %v4362, 0.0
        %v5388 = vmax.f32 %v4812, 0.0
        %v5389 = vmax.f32 %v4814, 0.0
        %v5390 = vmax.f32 %v5264, 0.0
        %v5391 = vmax.f32 %v5266, 0.0
        %v5392 = vmax.f32 %v3912, 0.0
        %v5393 = vmax.f32 %v3914, 0.0
        %v5394 = vmax.f32 %v4364, 0.0
        %v5395 = vmax.f32 %v4366, 0.0
        %v5396 = vmax.f32 %v4816, 0.0
        %v5397 = vmax.f32 %v4818, 0.0
        %v5398 = vmax.f32 %v5268, 0.0
        %v5399 = vmax.f32 %v5270, 0.0
        %v5400 = vpack.c.bf16 %v5280, %v5272
        %v5401 = vpack.c.bf16 %v5281, %v5273
        %v5402 = vpack.c.bf16 %v5282, %v5274
        %v5403 = vpack.c.bf16 %v5283, %v5275
        %v5404 = vpack.c.bf16 %v5284, %v5276
        %v5405 = vpack.c.bf16 %v5285, %v5277
        %v5406 = vpack.c.bf16 %v5286, %v5278
        %v5407 = vpack.c.bf16 %v5287, %v5279
        %v5408 = vpack.c.bf16 %v5296, %v5288
        %v5409 = vpack.c.bf16 %v5297, %v5289
        %v5410 = vpack.c.bf16 %v5298, %v5290
        %v5411 = vpack.c.bf16 %v5299, %v5291
        %v5412 = vpack.c.bf16 %v5300, %v5292
        %v5413 = vpack.c.bf16 %v5301, %v5293
        %v5414 = vpack.c.bf16 %v5302, %v5294
        %v5415 = vpack.c.bf16 %v5303, %v5295
        %v5416 = vpack.c.bf16 %v5312, %v5304
        %v5417 = vpack.c.bf16 %v5313, %v5305
        %v5418 = vpack.c.bf16 %v5314, %v5306
        %v5419 = vpack.c.bf16 %v5315, %v5307
        %v5420 = vpack.c.bf16 %v5316, %v5308
        %v5421 = vpack.c.bf16 %v5317, %v5309
        %v5422 = vpack.c.bf16 %v5318, %v5310
        %v5423 = vpack.c.bf16 %v5319, %v5311
        %v5424 = vpack.c.bf16 %v5328, %v5320
        %v5425 = vpack.c.bf16 %v5329, %v5321
        %v5426 = vpack.c.bf16 %v5330, %v5322
        %v5427 = vpack.c.bf16 %v5331, %v5323
        %v5428 = vpack.c.bf16 %v5332, %v5324
        %v5429 = vpack.c.bf16 %v5333, %v5325
        %v5430 = vpack.c.bf16 %v5334, %v5326
        %v5431 = vpack.c.bf16 %v5335, %v5327
        %v5432 = vpack.c.bf16 %v5344, %v5336
        %v5433 = vpack.c.bf16 %v5345, %v5337
        %v5434 = vpack.c.bf16 %v5346, %v5338
        %v5435 = vpack.c.bf16 %v5347, %v5339
        %v5436 = vpack.c.bf16 %v5348, %v5340
        %v5437 = vpack.c.bf16 %v5349, %v5341
        %v5438 = vpack.c.bf16 %v5350, %v5342
        %v5439 = vpack.c.bf16 %v5351, %v5343
        %v5440 = vpack.c.bf16 %v5360, %v5352
        %v5441 = vpack.c.bf16 %v5361, %v5353
        %v5442 = vpack.c.bf16 %v5362, %v5354
        %v5443 = vpack.c.bf16 %v5363, %v5355
        %v5444 = vpack.c.bf16 %v5364, %v5356
        %v5445 = vpack.c.bf16 %v5365, %v5357
        %v5446 = vpack.c.bf16 %v5366, %v5358
        %v5447 = vpack.c.bf16 %v5367, %v5359
        %v5448 = vpack.c.bf16 %v5376, %v5368
        %v5449 = vpack.c.bf16 %v5377, %v5369
        %v5450 = vpack.c.bf16 %v5378, %v5370
        %v5451 = vpack.c.bf16 %v5379, %v5371
        %v5452 = vpack.c.bf16 %v5380, %v5372
        %v5453 = vpack.c.bf16 %v5381, %v5373
        %v5454 = vpack.c.bf16 %v5382, %v5374
        %v5455 = vpack.c.bf16 %v5383, %v5375
        %v5456 = vpack.c.bf16 %v5392, %v5384
        %v5457 = vpack.c.bf16 %v5393, %v5385
        %v5458 = vpack.c.bf16 %v5394, %v5386
        %v5459 = vpack.c.bf16 %v5395, %v5387
        %v5460 = vpack.c.bf16 %v5396, %v5388
        %v5461 = vpack.c.bf16 %v5397, %v5389
        %v5462 = vpack.c.bf16 %v5398, %v5390
        %v5463 = vpack.c.bf16 %v5399, %v5391
        %v5464 = vld [vmem:[#allocation8] sm:$0xff]
        %v5465 = vld [vmem:[#allocation8 + $0x8] sm:$0xff]
        %v5466 = vld [vmem:[#allocation8 + $0x10] sm:$0xff]
        %v5467 = vld [vmem:[#allocation8 + $0x18] sm:$0xff]
        %v5468 = vld [vmem:[#allocation8 + $0x20] sm:$0xff]
        %v5469 = vld [vmem:[#allocation8 + $0x28] sm:$0xff]
        %v5470 = vld [vmem:[#allocation8 + $0x30] sm:$0xff]
        %v5471 = vld [vmem:[#allocation8 + $0x38] sm:$0xff]
        %v5472 = vld [vmem:[#allocation8 + $0x40] sm:$0xff]
        %v5473 = vld [vmem:[#allocation8 + $0x48] sm:$0xff]
        %v5474 = vld [vmem:[#allocation8 + $0x50] sm:$0xff]
        %v5475 = vld [vmem:[#allocation8 + $0x58] sm:$0xff]
        %v5476 = vld [vmem:[#allocation8 + $0x60] sm:$0xff]
        %v5477 = vld [vmem:[#allocation8 + $0x68] sm:$0xff]
        %v5478 = vld [vmem:[#allocation8 + $0x70] sm:$0xff]
        %v5479 = vld [vmem:[#allocation8 + $0x78] sm:$0xff]
        %v5480 = vld [vmem:[#allocation8 + $0x80] sm:$0xff]
        %v5481 = vld [vmem:[#allocation8 + $0x88] sm:$0xff]
        %v5482 = vld [vmem:[#allocation8 + $0x90] sm:$0xff]
        %v5483 = vld [vmem:[#allocation8 + $0x98] sm:$0xff]
        %v5484 = vld [vmem:[#allocation8 + $0xa0] sm:$0xff]
        %v5485 = vld [vmem:[#allocation8 + $0xa8] sm:$0xff]
        %v5486 = vld [vmem:[#allocation8 + $0xb0] sm:$0xff]
        %v5487 = vld [vmem:[#allocation8 + $0xb8] sm:$0xff]
        %v5488 = vld [vmem:[#allocation8 + $0xc0] sm:$0xff]
        %v5489 = vld [vmem:[#allocation8 + $0xc8] sm:$0xff]
        %v5490 = vld [vmem:[#allocation8 + $0xd0] sm:$0xff]
        %v5491 = vld [vmem:[#allocation8 + $0xd8] sm:$0xff]
        %v5492 = vld [vmem:[#allocation8 + $0xe0] sm:$0xff]
        %v5493 = vld [vmem:[#allocation8 + $0xe8] sm:$0xff]
        %v5494 = vld [vmem:[#allocation8 + $0xf0] sm:$0xff]
        %v5495 = vld [vmem:[#allocation8 + $0xf8] sm:$0xff]
        %v5496 = vld [vmem:[#allocation8 + $0x100] sm:$0xff]
        %v5497 = vld [vmem:[#allocation8 + $0x108] sm:$0xff]
        %v5498 = vld [vmem:[#allocation8 + $0x110] sm:$0xff]
        %v5499 = vld [vmem:[#allocation8 + $0x118] sm:$0xff]
        %v5500 = vld [vmem:[#allocation8 + $0x120] sm:$0xff]
        %v5501 = vld [vmem:[#allocation8 + $0x128] sm:$0xff]
        %v5502 = vld [vmem:[#allocation8 + $0x130] sm:$0xff]
        %v5503 = vld [vmem:[#allocation8 + $0x138] sm:$0xff]
        %v5504 = vld [vmem:[#allocation8 + $0x140] sm:$0xff]
        %v5505 = vld [vmem:[#allocation8 + $0x148] sm:$0xff]
        %v5506 = vld [vmem:[#allocation8 + $0x150] sm:$0xff]
        %v5507 = vld [vmem:[#allocation8 + $0x158] sm:$0xff]
        %v5508 = vld [vmem:[#allocation8 + $0x160] sm:$0xff]
        %v5509 = vld [vmem:[#allocation8 + $0x168] sm:$0xff]
        %v5510 = vld [vmem:[#allocation8 + $0x170] sm:$0xff]
        %v5511 = vld [vmem:[#allocation8 + $0x178] sm:$0xff]
        %v5512 = vld [vmem:[#allocation8 + $0x180] sm:$0xff]
        %v5513 = vld [vmem:[#allocation8 + $0x188] sm:$0xff]
        %v5514 = vld [vmem:[#allocation8 + $0x190] sm:$0xff]
        %v5515 = vld [vmem:[#allocation8 + $0x198] sm:$0xff]
        %v5516 = vld [vmem:[#allocation8 + $0x1a0] sm:$0xff]
        %v5517 = vld [vmem:[#allocation8 + $0x1a8] sm:$0xff]
        %v5518 = vld [vmem:[#allocation8 + $0x1b0] sm:$0xff]
        %v5519 = vld [vmem:[#allocation8 + $0x1b8] sm:$0xff]
        %v5520 = vld [vmem:[#allocation8 + $0x1c0] sm:$0xff]
        %v5521 = vld [vmem:[#allocation8 + $0x1c8] sm:$0xff]
        %v5522 = vld [vmem:[#allocation8 + $0x1d0] sm:$0xff]
        %v5523 = vld [vmem:[#allocation8 + $0x1d8] sm:$0xff]
        %v5524 = vld [vmem:[#allocation8 + $0x1e0] sm:$0xff]
        %v5525 = vld [vmem:[#allocation8 + $0x1e8] sm:$0xff]
        %v5526 = vld [vmem:[#allocation8 + $0x1f0] sm:$0xff]
        %v5527 = vld [vmem:[#allocation8 + $0x1f8] sm:$0xff]
        %v5528 = vld [vmem:[#allocation8 + $0x200] sm:$0xff]
        %v5529 = vld [vmem:[#allocation8 + $0x208] sm:$0xff]
        %v5530 = vld [vmem:[#allocation8 + $0x210] sm:$0xff]
        %v5531 = vld [vmem:[#allocation8 + $0x218] sm:$0xff]
        %v5532 = vld [vmem:[#allocation8 + $0x220] sm:$0xff]
        %v5533 = vld [vmem:[#allocation8 + $0x228] sm:$0xff]
        %v5534 = vld [vmem:[#allocation8 + $0x230] sm:$0xff]
        %v5535 = vld [vmem:[#allocation8 + $0x238] sm:$0xff]
        %v5536 = vld [vmem:[#allocation8 + $0x240] sm:$0xff]
        %v5537 = vld [vmem:[#allocation8 + $0x248] sm:$0xff]
        %v5538 = vld [vmem:[#allocation8 + $0x250] sm:$0xff]
        %v5539 = vld [vmem:[#allocation8 + $0x258] sm:$0xff]
        %v5540 = vld [vmem:[#allocation8 + $0x260] sm:$0xff]
        %v5541 = vld [vmem:[#allocation8 + $0x268] sm:$0xff]
        %v5542 = vld [vmem:[#allocation8 + $0x270] sm:$0xff]
        %v5543 = vld [vmem:[#allocation8 + $0x278] sm:$0xff]
        %v5544 = vld [vmem:[#allocation8 + $0x280] sm:$0xff]
        %v5545 = vld [vmem:[#allocation8 + $0x288] sm:$0xff]
        %v5546 = vld [vmem:[#allocation8 + $0x290] sm:$0xff]
        %v5547 = vld [vmem:[#allocation8 + $0x298] sm:$0xff]
        %v5548 = vld [vmem:[#allocation8 + $0x2a0] sm:$0xff]
        %v5549 = vld [vmem:[#allocation8 + $0x2a8] sm:$0xff]
        %v5550 = vld [vmem:[#allocation8 + $0x2b0] sm:$0xff]
        %v5551 = vld [vmem:[#allocation8 + $0x2b8] sm:$0xff]
        %v5552 = vld [vmem:[#allocation8 + $0x2c0] sm:$0xff]
        %v5553 = vld [vmem:[#allocation8 + $0x2c8] sm:$0xff]
        %v5554 = vld [vmem:[#allocation8 + $0x2d0] sm:$0xff]
        %v5555 = vld [vmem:[#allocation8 + $0x2d8] sm:$0xff]
        %v5556 = vld [vmem:[#allocation8 + $0x2e0] sm:$0xff]
        %v5557 = vld [vmem:[#allocation8 + $0x2e8] sm:$0xff]
        %v5558 = vld [vmem:[#allocation8 + $0x2f0] sm:$0xff]
        %v5559 = vld [vmem:[#allocation8 + $0x2f8] sm:$0xff]
        %v5560 = vld [vmem:[#allocation8 + $0x300] sm:$0xff]
        %v5561 = vld [vmem:[#allocation8 + $0x308] sm:$0xff]
        %v5562 = vld [vmem:[#allocation8 + $0x310] sm:$0xff]
        %v5563 = vld [vmem:[#allocation8 + $0x318] sm:$0xff]
        %v5564 = vld [vmem:[#allocation8 + $0x320] sm:$0xff]
        %v5565 = vld [vmem:[#allocation8 + $0x328] sm:$0xff]
        %v5566 = vld [vmem:[#allocation8 + $0x330] sm:$0xff]
        %v5567 = vld [vmem:[#allocation8 + $0x338] sm:$0xff]
        %v5568 = vld [vmem:[#allocation8 + $0x340] sm:$0xff]
        %v5569 = vld [vmem:[#allocation8 + $0x348] sm:$0xff]
        %v5570 = vld [vmem:[#allocation8 + $0x350] sm:$0xff]
        %v5571 = vld [vmem:[#allocation8 + $0x358] sm:$0xff]
        %v5572 = vld [vmem:[#allocation8 + $0x360] sm:$0xff]
        %v5573 = vld [vmem:[#allocation8 + $0x368] sm:$0xff]
        %v5574 = vld [vmem:[#allocation8 + $0x370] sm:$0xff]
        %v5575 = vld [vmem:[#allocation8 + $0x378] sm:$0xff]
        %v5576 = vld [vmem:[#allocation8 + $0x380] sm:$0xff]
        %v5577 = vld [vmem:[#allocation8 + $0x388] sm:$0xff]
        %v5578 = vld [vmem:[#allocation8 + $0x390] sm:$0xff]
        %v5579 = vld [vmem:[#allocation8 + $0x398] sm:$0xff]
        %v5580 = vld [vmem:[#allocation8 + $0x3a0] sm:$0xff]
        %v5581 = vld [vmem:[#allocation8 + $0x3a8] sm:$0xff]
        %v5582 = vld [vmem:[#allocation8 + $0x3b0] sm:$0xff]
        %v5583 = vld [vmem:[#allocation8 + $0x3b8] sm:$0xff]
        %v5584 = vld [vmem:[#allocation8 + $0x3c0] sm:$0xff]
        %v5585 = vld [vmem:[#allocation8 + $0x3c8] sm:$0xff]
        %v5586 = vld [vmem:[#allocation8 + $0x3d0] sm:$0xff]
        %v5587 = vld [vmem:[#allocation8 + $0x3d8] sm:$0xff]
        %v5588 = vld [vmem:[#allocation8 + $0x3e0] sm:$0xff]
        %v5589 = vld [vmem:[#allocation8 + $0x3e8] sm:$0xff]
        %v5590 = vld [vmem:[#allocation8 + $0x3f0] sm:$0xff]
        %v5591 = vld [vmem:[#allocation8 + $0x3f8] sm:$0xff]
        %v5592 = vld [vmem:[#allocation8 + $0x400] sm:$0xff]
        %v5593 = vld [vmem:[#allocation8 + $0x408] sm:$0xff]
        %v5594 = vld [vmem:[#allocation8 + $0x410] sm:$0xff]
        %v5595 = vld [vmem:[#allocation8 + $0x418] sm:$0xff]
        %v5596 = vld [vmem:[#allocation8 + $0x420] sm:$0xff]
        %v5597 = vld [vmem:[#allocation8 + $0x428] sm:$0xff]
        %v5598 = vld [vmem:[#allocation8 + $0x430] sm:$0xff]
        %v5599 = vld [vmem:[#allocation8 + $0x438] sm:$0xff]
        %v5600 = vld [vmem:[#allocation8 + $0x440] sm:$0xff]
        %v5601 = vld [vmem:[#allocation8 + $0x448] sm:$0xff]
        %v5602 = vld [vmem:[#allocation8 + $0x450] sm:$0xff]
        %v5603 = vld [vmem:[#allocation8 + $0x458] sm:$0xff]
        %v5604 = vld [vmem:[#allocation8 + $0x460] sm:$0xff]
        %v5605 = vld [vmem:[#allocation8 + $0x468] sm:$0xff]
        %v5606 = vld [vmem:[#allocation8 + $0x470] sm:$0xff]
        %v5607 = vld [vmem:[#allocation8 + $0x478] sm:$0xff]
        %v5608 = vld [vmem:[#allocation8 + $0x480] sm:$0xff]
        %v5609 = vld [vmem:[#allocation8 + $0x488] sm:$0xff]
        %v5610 = vld [vmem:[#allocation8 + $0x490] sm:$0xff]
        %v5611 = vld [vmem:[#allocation8 + $0x498] sm:$0xff]
        %v5612 = vld [vmem:[#allocation8 + $0x4a0] sm:$0xff]
        %v5613 = vld [vmem:[#allocation8 + $0x4a8] sm:$0xff]
        %v5614 = vld [vmem:[#allocation8 + $0x4b0] sm:$0xff]
        %v5615 = vld [vmem:[#allocation8 + $0x4b8] sm:$0xff]
        %v5616 = vld [vmem:[#allocation8 + $0x4c0] sm:$0xff]
        %v5617 = vld [vmem:[#allocation8 + $0x4c8] sm:$0xff]
        %v5618 = vld [vmem:[#allocation8 + $0x4d0] sm:$0xff]
        %v5619 = vld [vmem:[#allocation8 + $0x4d8] sm:$0xff]
        %v5620 = vld [vmem:[#allocation8 + $0x4e0] sm:$0xff]
        %v5621 = vld [vmem:[#allocation8 + $0x4e8] sm:$0xff]
        %v5622 = vld [vmem:[#allocation8 + $0x4f0] sm:$0xff]
        %v5623 = vld [vmem:[#allocation8 + $0x4f8] sm:$0xff]
        %v5624 = vld [vmem:[#allocation8 + $0x500] sm:$0xff]
        %v5625 = vld [vmem:[#allocation8 + $0x508] sm:$0xff]
        %v5626 = vld [vmem:[#allocation8 + $0x510] sm:$0xff]
        %v5627 = vld [vmem:[#allocation8 + $0x518] sm:$0xff]
        %v5628 = vld [vmem:[#allocation8 + $0x520] sm:$0xff]
        %v5629 = vld [vmem:[#allocation8 + $0x528] sm:$0xff]
        %v5630 = vld [vmem:[#allocation8 + $0x530] sm:$0xff]
        %v5631 = vld [vmem:[#allocation8 + $0x538] sm:$0xff]
        %v5632 = vld [vmem:[#allocation8 + $0x540] sm:$0xff]
        %v5633 = vld [vmem:[#allocation8 + $0x548] sm:$0xff]
        %v5634 = vld [vmem:[#allocation8 + $0x550] sm:$0xff]
        %v5635 = vld [vmem:[#allocation8 + $0x558] sm:$0xff]
        %v5636 = vld [vmem:[#allocation8 + $0x560] sm:$0xff]
        %v5637 = vld [vmem:[#allocation8 + $0x568] sm:$0xff]
        %v5638 = vld [vmem:[#allocation8 + $0x570] sm:$0xff]
        %v5639 = vld [vmem:[#allocation8 + $0x578] sm:$0xff]
        %v5640 = vld [vmem:[#allocation8 + $0x580] sm:$0xff]
        %v5641 = vld [vmem:[#allocation8 + $0x588] sm:$0xff]
        %v5642 = vld [vmem:[#allocation8 + $0x590] sm:$0xff]
        %v5643 = vld [vmem:[#allocation8 + $0x598] sm:$0xff]
        %v5644 = vld [vmem:[#allocation8 + $0x5a0] sm:$0xff]
        %v5645 = vld [vmem:[#allocation8 + $0x5a8] sm:$0xff]
        %v5646 = vld [vmem:[#allocation8 + $0x5b0] sm:$0xff]
        %v5647 = vld [vmem:[#allocation8 + $0x5b8] sm:$0xff]
        %v5648 = vld [vmem:[#allocation8 + $0x5c0] sm:$0xff]
        %v5649 = vld [vmem:[#allocation8 + $0x5c8] sm:$0xff]
        %v5650 = vld [vmem:[#allocation8 + $0x5d0] sm:$0xff]
        %v5651 = vld [vmem:[#allocation8 + $0x5d8] sm:$0xff]
        %v5652 = vld [vmem:[#allocation8 + $0x5e0] sm:$0xff]
        %v5653 = vld [vmem:[#allocation8 + $0x5e8] sm:$0xff]
        %v5654 = vld [vmem:[#allocation8 + $0x5f0] sm:$0xff]
        %v5655 = vld [vmem:[#allocation8 + $0x5f8] sm:$0xff]
        %v5656 = vld [vmem:[#allocation8 + $0x600] sm:$0xff]
        %v5657 = vld [vmem:[#allocation8 + $0x608] sm:$0xff]
        %v5658 = vld [vmem:[#allocation8 + $0x610] sm:$0xff]
        %v5659 = vld [vmem:[#allocation8 + $0x618] sm:$0xff]
        %v5660 = vld [vmem:[#allocation8 + $0x620] sm:$0xff]
        %v5661 = vld [vmem:[#allocation8 + $0x628] sm:$0xff]
        %v5662 = vld [vmem:[#allocation8 + $0x630] sm:$0xff]
        %v5663 = vld [vmem:[#allocation8 + $0x638] sm:$0xff]
        %v5664 = vld [vmem:[#allocation8 + $0x640] sm:$0xff]
        %v5665 = vld [vmem:[#allocation8 + $0x648] sm:$0xff]
        %v5666 = vld [vmem:[#allocation8 + $0x650] sm:$0xff]
        %v5667 = vld [vmem:[#allocation8 + $0x658] sm:$0xff]
        %v5668 = vld [vmem:[#allocation8 + $0x660] sm:$0xff]
        %v5669 = vld [vmem:[#allocation8 + $0x668] sm:$0xff]
        %v5670 = vld [vmem:[#allocation8 + $0x670] sm:$0xff]
        %v5671 = vld [vmem:[#allocation8 + $0x678] sm:$0xff]
        %v5672 = vld [vmem:[#allocation8 + $0x680] sm:$0xff]
        %v5673 = vld [vmem:[#allocation8 + $0x688] sm:$0xff]
        %v5674 = vld [vmem:[#allocation8 + $0x690] sm:$0xff]
        %v5675 = vld [vmem:[#allocation8 + $0x698] sm:$0xff]
        %v5676 = vld [vmem:[#allocation8 + $0x6a0] sm:$0xff]
        %v5677 = vld [vmem:[#allocation8 + $0x6a8] sm:$0xff]
        %v5678 = vld [vmem:[#allocation8 + $0x6b0] sm:$0xff]
        %v5679 = vld [vmem:[#allocation8 + $0x6b8] sm:$0xff]
        %v5680 = vld [vmem:[#allocation8 + $0x6c0] sm:$0xff]
        %v5681 = vld [vmem:[#allocation8 + $0x6c8] sm:$0xff]
        %v5682 = vld [vmem:[#allocation8 + $0x6d0] sm:$0xff]
        %v5683 = vld [vmem:[#allocation8 + $0x6d8] sm:$0xff]
        %v5684 = vld [vmem:[#allocation8 + $0x6e0] sm:$0xff]
        %v5685 = vld [vmem:[#allocation8 + $0x6e8] sm:$0xff]
        %v5686 = vld [vmem:[#allocation8 + $0x6f0] sm:$0xff]
        %v5687 = vld [vmem:[#allocation8 + $0x6f8] sm:$0xff]
        %v5688 = vld [vmem:[#allocation8 + $0x700] sm:$0xff]
        %v5689 = vld [vmem:[#allocation8 + $0x708] sm:$0xff]
        %v5690 = vld [vmem:[#allocation8 + $0x710] sm:$0xff]
        %v5691 = vld [vmem:[#allocation8 + $0x718] sm:$0xff]
        %v5692 = vld [vmem:[#allocation8 + $0x720] sm:$0xff]
        %v5693 = vld [vmem:[#allocation8 + $0x728] sm:$0xff]
        %v5694 = vld [vmem:[#allocation8 + $0x730] sm:$0xff]
        %v5695 = vld [vmem:[#allocation8 + $0x738] sm:$0xff]
        %v5696 = vld [vmem:[#allocation8 + $0x740] sm:$0xff]
        %v5697 = vld [vmem:[#allocation8 + $0x748] sm:$0xff]
        %v5698 = vld [vmem:[#allocation8 + $0x750] sm:$0xff]
        %v5699 = vld [vmem:[#allocation8 + $0x758] sm:$0xff]
        %v5700 = vld [vmem:[#allocation8 + $0x760] sm:$0xff]
        %v5701 = vld [vmem:[#allocation8 + $0x768] sm:$0xff]
        %v5702 = vld [vmem:[#allocation8 + $0x770] sm:$0xff]
        %v5703 = vld [vmem:[#allocation8 + $0x778] sm:$0xff]
        %v5704 = vld [vmem:[#allocation8 + $0x780] sm:$0xff]
        %v5705 = vld [vmem:[#allocation8 + $0x788] sm:$0xff]
        %v5706 = vld [vmem:[#allocation8 + $0x790] sm:$0xff]
        %v5707 = vld [vmem:[#allocation8 + $0x798] sm:$0xff]
        %v5708 = vld [vmem:[#allocation8 + $0x7a0] sm:$0xff]
        %v5709 = vld [vmem:[#allocation8 + $0x7a8] sm:$0xff]
        %v5710 = vld [vmem:[#allocation8 + $0x7b0] sm:$0xff]
        %v5711 = vld [vmem:[#allocation8 + $0x7b8] sm:$0xff]
        %v5712 = vld [vmem:[#allocation8 + $0x7c0] sm:$0xff]
        %v5713 = vld [vmem:[#allocation8 + $0x7c8] sm:$0xff]
        %v5714 = vld [vmem:[#allocation8 + $0x7d0] sm:$0xff]
        %v5715 = vld [vmem:[#allocation8 + $0x7d8] sm:$0xff]
        %v5716 = vld [vmem:[#allocation8 + $0x7e0] sm:$0xff]
        %v5717 = vld [vmem:[#allocation8 + $0x7e8] sm:$0xff]
        %v5718 = vld [vmem:[#allocation8 + $0x7f0] sm:$0xff]
        %v5719 = vld [vmem:[#allocation8 + $0x7f8] sm:$0xff]
        %v5720 = vld [vmem:[#allocation8 + $0x800] sm:$0xff]
        %v5721 = vld [vmem:[#allocation8 + $0x808] sm:$0xff]
        %v5722 = vld [vmem:[#allocation8 + $0x810] sm:$0xff]
        %v5723 = vld [vmem:[#allocation8 + $0x818] sm:$0xff]
        %v5724 = vld [vmem:[#allocation8 + $0x820] sm:$0xff]
        %v5725 = vld [vmem:[#allocation8 + $0x828] sm:$0xff]
        %v5726 = vld [vmem:[#allocation8 + $0x830] sm:$0xff]
        %v5727 = vld [vmem:[#allocation8 + $0x838] sm:$0xff]
        %v5728 = vld [vmem:[#allocation8 + $0x840] sm:$0xff]
        %v5729 = vld [vmem:[#allocation8 + $0x848] sm:$0xff]
        %v5730 = vld [vmem:[#allocation8 + $0x850] sm:$0xff]
        %v5731 = vld [vmem:[#allocation8 + $0x858] sm:$0xff]
        %v5732 = vld [vmem:[#allocation8 + $0x860] sm:$0xff]
        %v5733 = vld [vmem:[#allocation8 + $0x868] sm:$0xff]
        %v5734 = vld [vmem:[#allocation8 + $0x870] sm:$0xff]
        %v5735 = vld [vmem:[#allocation8 + $0x878] sm:$0xff]
        %v5736 = vld [vmem:[#allocation8 + $0x880] sm:$0xff]
        %v5737 = vld [vmem:[#allocation8 + $0x888] sm:$0xff]
        %v5738 = vld [vmem:[#allocation8 + $0x890] sm:$0xff]
        %v5739 = vld [vmem:[#allocation8 + $0x898] sm:$0xff]
        %v5740 = vld [vmem:[#allocation8 + $0x8a0] sm:$0xff]
        %v5741 = vld [vmem:[#allocation8 + $0x8a8] sm:$0xff]
        %v5742 = vld [vmem:[#allocation8 + $0x8b0] sm:$0xff]
        %v5743 = vld [vmem:[#allocation8 + $0x8b8] sm:$0xff]
        %v5744 = vld [vmem:[#allocation8 + $0x8c0] sm:$0xff]
        %v5745 = vld [vmem:[#allocation8 + $0x8c8] sm:$0xff]
        %v5746 = vld [vmem:[#allocation8 + $0x8d0] sm:$0xff]
        %v5747 = vld [vmem:[#allocation8 + $0x8d8] sm:$0xff]
        %v5748 = vld [vmem:[#allocation8 + $0x8e0] sm:$0xff]
        %v5749 = vld [vmem:[#allocation8 + $0x8e8] sm:$0xff]
        %v5750 = vld [vmem:[#allocation8 + $0x8f0] sm:$0xff]
        %v5751 = vld [vmem:[#allocation8 + $0x8f8] sm:$0xff]
        %v5752 = vld [vmem:[#allocation8 + $0x900] sm:$0xff]
        %v5753 = vld [vmem:[#allocation8 + $0x908] sm:$0xff]
        %v5754 = vld [vmem:[#allocation8 + $0x910] sm:$0xff]
        %v5755 = vld [vmem:[#allocation8 + $0x918] sm:$0xff]
        %v5756 = vld [vmem:[#allocation8 + $0x920] sm:$0xff]
        %v5757 = vld [vmem:[#allocation8 + $0x928] sm:$0xff]
        %v5758 = vld [vmem:[#allocation8 + $0x930] sm:$0xff]
        %v5759 = vld [vmem:[#allocation8 + $0x938] sm:$0xff]
        %v5760 = vld [vmem:[#allocation8 + $0x940] sm:$0xff]
        %v5761 = vld [vmem:[#allocation8 + $0x948] sm:$0xff]
        %v5762 = vld [vmem:[#allocation8 + $0x950] sm:$0xff]
        %v5763 = vld [vmem:[#allocation8 + $0x958] sm:$0xff]
        %v5764 = vld [vmem:[#allocation8 + $0x960] sm:$0xff]
        %v5765 = vld [vmem:[#allocation8 + $0x968] sm:$0xff]
        %v5766 = vld [vmem:[#allocation8 + $0x970] sm:$0xff]
        %v5767 = vld [vmem:[#allocation8 + $0x978] sm:$0xff]
        %v5768 = vld [vmem:[#allocation8 + $0x980] sm:$0xff]
        %v5769 = vld [vmem:[#allocation8 + $0x988] sm:$0xff]
        %v5770 = vld [vmem:[#allocation8 + $0x990] sm:$0xff]
        %v5771 = vld [vmem:[#allocation8 + $0x998] sm:$0xff]
        %v5772 = vld [vmem:[#allocation8 + $0x9a0] sm:$0xff]
        %v5773 = vld [vmem:[#allocation8 + $0x9a8] sm:$0xff]
        %v5774 = vld [vmem:[#allocation8 + $0x9b0] sm:$0xff]
        %v5775 = vld [vmem:[#allocation8 + $0x9b8] sm:$0xff]
        %v5776 = vld [vmem:[#allocation8 + $0x9c0] sm:$0xff]
        %v5777 = vld [vmem:[#allocation8 + $0x9c8] sm:$0xff]
        %v5778 = vld [vmem:[#allocation8 + $0x9d0] sm:$0xff]
        %v5779 = vld [vmem:[#allocation8 + $0x9d8] sm:$0xff]
        %v5780 = vld [vmem:[#allocation8 + $0x9e0] sm:$0xff]
        %v5781 = vld [vmem:[#allocation8 + $0x9e8] sm:$0xff]
        %v5782 = vld [vmem:[#allocation8 + $0x9f0] sm:$0xff]
        %v5783 = vld [vmem:[#allocation8 + $0x9f8] sm:$0xff]
        %v5784 = vld [vmem:[#allocation8 + $0xa00] sm:$0xff]
        %v5785 = vld [vmem:[#allocation8 + $0xa08] sm:$0xff]
        %v5786 = vld [vmem:[#allocation8 + $0xa10] sm:$0xff]
        %v5787 = vld [vmem:[#allocation8 + $0xa18] sm:$0xff]
        %v5788 = vld [vmem:[#allocation8 + $0xa20] sm:$0xff]
        %v5789 = vld [vmem:[#allocation8 + $0xa28] sm:$0xff]
        %v5790 = vld [vmem:[#allocation8 + $0xa30] sm:$0xff]
        %v5791 = vld [vmem:[#allocation8 + $0xa38] sm:$0xff]
        %v5792 = vld [vmem:[#allocation8 + $0xa40] sm:$0xff]
        %v5793 = vld [vmem:[#allocation8 + $0xa48] sm:$0xff]
        %v5794 = vld [vmem:[#allocation8 + $0xa50] sm:$0xff]
        %v5795 = vld [vmem:[#allocation8 + $0xa58] sm:$0xff]
        %v5796 = vld [vmem:[#allocation8 + $0xa60] sm:$0xff]
        %v5797 = vld [vmem:[#allocation8 + $0xa68] sm:$0xff]
        %v5798 = vld [vmem:[#allocation8 + $0xa70] sm:$0xff]
        %v5799 = vld [vmem:[#allocation8 + $0xa78] sm:$0xff]
        %v5800 = vld [vmem:[#allocation8 + $0xa80] sm:$0xff]
        %v5801 = vld [vmem:[#allocation8 + $0xa88] sm:$0xff]
        %v5802 = vld [vmem:[#allocation8 + $0xa90] sm:$0xff]
        %v5803 = vld [vmem:[#allocation8 + $0xa98] sm:$0xff]
        %v5804 = vld [vmem:[#allocation8 + $0xaa0] sm:$0xff]
        %v5805 = vld [vmem:[#allocation8 + $0xaa8] sm:$0xff]
        %v5806 = vld [vmem:[#allocation8 + $0xab0] sm:$0xff]
        %v5807 = vld [vmem:[#allocation8 + $0xab8] sm:$0xff]
        %v5808 = vld [vmem:[#allocation8 + $0xac0] sm:$0xff]
        %v5809 = vld [vmem:[#allocation8 + $0xac8] sm:$0xff]
        %v5810 = vld [vmem:[#allocation8 + $0xad0] sm:$0xff]
        %v5811 = vld [vmem:[#allocation8 + $0xad8] sm:$0xff]
        %v5812 = vld [vmem:[#allocation8 + $0xae0] sm:$0xff]
        %v5813 = vld [vmem:[#allocation8 + $0xae8] sm:$0xff]
        %v5814 = vld [vmem:[#allocation8 + $0xaf0] sm:$0xff]
        %v5815 = vld [vmem:[#allocation8 + $0xaf8] sm:$0xff]
        %v5816 = vld [vmem:[#allocation8 + $0xb00] sm:$0xff]
        %v5817 = vld [vmem:[#allocation8 + $0xb08] sm:$0xff]
        %v5818 = vld [vmem:[#allocation8 + $0xb10] sm:$0xff]
        %v5819 = vld [vmem:[#allocation8 + $0xb18] sm:$0xff]
        %v5820 = vld [vmem:[#allocation8 + $0xb20] sm:$0xff]
        %v5821 = vld [vmem:[#allocation8 + $0xb28] sm:$0xff]
        %v5822 = vld [vmem:[#allocation8 + $0xb30] sm:$0xff]
        %v5823 = vld [vmem:[#allocation8 + $0xb38] sm:$0xff]
        %v5824 = vld [vmem:[#allocation8 + $0xb40] sm:$0xff]
        %v5825 = vld [vmem:[#allocation8 + $0xb48] sm:$0xff]
        %v5826 = vld [vmem:[#allocation8 + $0xb50] sm:$0xff]
        %v5827 = vld [vmem:[#allocation8 + $0xb58] sm:$0xff]
        %v5828 = vld [vmem:[#allocation8 + $0xb60] sm:$0xff]
        %v5829 = vld [vmem:[#allocation8 + $0xb68] sm:$0xff]
        %v5830 = vld [vmem:[#allocation8 + $0xb70] sm:$0xff]
        %v5831 = vld [vmem:[#allocation8 + $0xb78] sm:$0xff]
        %v5832 = vld [vmem:[#allocation8 + $0xb80] sm:$0xff]
        %v5833 = vld [vmem:[#allocation8 + $0xb88] sm:$0xff]
        %v5834 = vld [vmem:[#allocation8 + $0xb90] sm:$0xff]
        %v5835 = vld [vmem:[#allocation8 + $0xb98] sm:$0xff]
        %v5836 = vld [vmem:[#allocation8 + $0xba0] sm:$0xff]
        %v5837 = vld [vmem:[#allocation8 + $0xba8] sm:$0xff]
        %v5838 = vld [vmem:[#allocation8 + $0xbb0] sm:$0xff]
        %v5839 = vld [vmem:[#allocation8 + $0xbb8] sm:$0xff]
        %v5840 = vld [vmem:[#allocation8 + $0xbc0] sm:$0xff]
        %v5841 = vld [vmem:[#allocation8 + $0xbc8] sm:$0xff]
        %v5842 = vld [vmem:[#allocation8 + $0xbd0] sm:$0xff]
        %v5843 = vld [vmem:[#allocation8 + $0xbd8] sm:$0xff]
        %v5844 = vld [vmem:[#allocation8 + $0xbe0] sm:$0xff]
        %v5845 = vld [vmem:[#allocation8 + $0xbe8] sm:$0xff]
        %v5846 = vld [vmem:[#allocation8 + $0xbf0] sm:$0xff]
        %v5847 = vld [vmem:[#allocation8 + $0xbf8] sm:$0xff]
        %v5848 = vld [vmem:[#allocation8 + $0xc00] sm:$0xff]
        %v5849 = vld [vmem:[#allocation8 + $0xc08] sm:$0xff]
        %v5850 = vld [vmem:[#allocation8 + $0xc10] sm:$0xff]
        %v5851 = vld [vmem:[#allocation8 + $0xc18] sm:$0xff]
        %v5852 = vld [vmem:[#allocation8 + $0xc20] sm:$0xff]
        %v5853 = vld [vmem:[#allocation8 + $0xc28] sm:$0xff]
        %v5854 = vld [vmem:[#allocation8 + $0xc30] sm:$0xff]
        %v5855 = vld [vmem:[#allocation8 + $0xc38] sm:$0xff]
        %v5856 = vld [vmem:[#allocation8 + $0xc40] sm:$0xff]
        %v5857 = vld [vmem:[#allocation8 + $0xc48] sm:$0xff]
        %v5858 = vld [vmem:[#allocation8 + $0xc50] sm:$0xff]
        %v5859 = vld [vmem:[#allocation8 + $0xc58] sm:$0xff]
        %v5860 = vld [vmem:[#allocation8 + $0xc60] sm:$0xff]
        %v5861 = vld [vmem:[#allocation8 + $0xc68] sm:$0xff]
        %v5862 = vld [vmem:[#allocation8 + $0xc70] sm:$0xff]
        %v5863 = vld [vmem:[#allocation8 + $0xc78] sm:$0xff]
        %v5864 = vld [vmem:[#allocation8 + $0xc80] sm:$0xff]
        %v5865 = vld [vmem:[#allocation8 + $0xc88] sm:$0xff]
        %v5866 = vld [vmem:[#allocation8 + $0xc90] sm:$0xff]
        %v5867 = vld [vmem:[#allocation8 + $0xc98] sm:$0xff]
        %v5868 = vld [vmem:[#allocation8 + $0xca0] sm:$0xff]
        %v5869 = vld [vmem:[#allocation8 + $0xca8] sm:$0xff]
        %v5870 = vld [vmem:[#allocation8 + $0xcb0] sm:$0xff]
        %v5871 = vld [vmem:[#allocation8 + $0xcb8] sm:$0xff]
        %v5872 = vld [vmem:[#allocation8 + $0xcc0] sm:$0xff]
        %v5873 = vld [vmem:[#allocation8 + $0xcc8] sm:$0xff]
        %v5874 = vld [vmem:[#allocation8 + $0xcd0] sm:$0xff]
        %v5875 = vld [vmem:[#allocation8 + $0xcd8] sm:$0xff]
        %v5876 = vld [vmem:[#allocation8 + $0xce0] sm:$0xff]
        %v5877 = vld [vmem:[#allocation8 + $0xce8] sm:$0xff]
        %v5878 = vld [vmem:[#allocation8 + $0xcf0] sm:$0xff]
        %v5879 = vld [vmem:[#allocation8 + $0xcf8] sm:$0xff]
        %v5880 = vld [vmem:[#allocation8 + $0xd00] sm:$0xff]
        %v5881 = vld [vmem:[#allocation8 + $0xd08] sm:$0xff]
        %v5882 = vld [vmem:[#allocation8 + $0xd10] sm:$0xff]
        %v5883 = vld [vmem:[#allocation8 + $0xd18] sm:$0xff]
        %v5884 = vld [vmem:[#allocation8 + $0xd20] sm:$0xff]
        %v5885 = vld [vmem:[#allocation8 + $0xd28] sm:$0xff]
        %v5886 = vld [vmem:[#allocation8 + $0xd30] sm:$0xff]
        %v5887 = vld [vmem:[#allocation8 + $0xd38] sm:$0xff]
        %v5888 = vld [vmem:[#allocation8 + $0xd40] sm:$0xff]
        %v5889 = vld [vmem:[#allocation8 + $0xd48] sm:$0xff]
        %v5890 = vld [vmem:[#allocation8 + $0xd50] sm:$0xff]
        %v5891 = vld [vmem:[#allocation8 + $0xd58] sm:$0xff]
        %v5892 = vld [vmem:[#allocation8 + $0xd60] sm:$0xff]
        %v5893 = vld [vmem:[#allocation8 + $0xd68] sm:$0xff]
        %v5894 = vld [vmem:[#allocation8 + $0xd70] sm:$0xff]
        %v5895 = vld [vmem:[#allocation8 + $0xd78] sm:$0xff]
        %v5896 = vld [vmem:[#allocation8 + $0xd80] sm:$0xff]
        %v5897 = vld [vmem:[#allocation8 + $0xd88] sm:$0xff]
        %v5898 = vld [vmem:[#allocation8 + $0xd90] sm:$0xff]
        %v5899 = vld [vmem:[#allocation8 + $0xd98] sm:$0xff]
        %v5900 = vld [vmem:[#allocation8 + $0xda0] sm:$0xff]
        %v5901 = vld [vmem:[#allocation8 + $0xda8] sm:$0xff]
        %v5902 = vld [vmem:[#allocation8 + $0xdb0] sm:$0xff]
        %v5903 = vld [vmem:[#allocation8 + $0xdb8] sm:$0xff]
        %v5904 = vld [vmem:[#allocation8 + $0xdc0] sm:$0xff]
        %v5905 = vld [vmem:[#allocation8 + $0xdc8] sm:$0xff]
        %v5906 = vld [vmem:[#allocation8 + $0xdd0] sm:$0xff]
        %v5907 = vld [vmem:[#allocation8 + $0xdd8] sm:$0xff]
        %v5908 = vld [vmem:[#allocation8 + $0xde0] sm:$0xff]
        %v5909 = vld [vmem:[#allocation8 + $0xde8] sm:$0xff]
        %v5910 = vld [vmem:[#allocation8 + $0xdf0] sm:$0xff]
        %v5911 = vld [vmem:[#allocation8 + $0xdf8] sm:$0xff]
        %v5912 = vld [vmem:[#allocation8 + $0xe00] sm:$0xff]
        %v5913 = vld [vmem:[#allocation8 + $0xe08] sm:$0xff]
        %v5914 = vld [vmem:[#allocation8 + $0xe10] sm:$0xff]
        %v5915 = vld [vmem:[#allocation8 + $0xe18] sm:$0xff]
        %v5916 = vld [vmem:[#allocation8 + $0xe20] sm:$0xff]
        %v5917 = vld [vmem:[#allocation8 + $0xe28] sm:$0xff]
        %v5918 = vld [vmem:[#allocation8 + $0xe30] sm:$0xff]
        %v5919 = vld [vmem:[#allocation8 + $0xe38] sm:$0xff]
        %v5920 = vld [vmem:[#allocation8 + $0xe40] sm:$0xff]
        %v5921 = vld [vmem:[#allocation8 + $0xe48] sm:$0xff]
        %v5922 = vld [vmem:[#allocation8 + $0xe50] sm:$0xff]
        %v5923 = vld [vmem:[#allocation8 + $0xe58] sm:$0xff]
        %v5924 = vld [vmem:[#allocation8 + $0xe60] sm:$0xff]
        %v5925 = vld [vmem:[#allocation8 + $0xe68] sm:$0xff]
        %v5926 = vld [vmem:[#allocation8 + $0xe70] sm:$0xff]
        %v5927 = vld [vmem:[#allocation8 + $0xe78] sm:$0xff]
        %v5928 = vld [vmem:[#allocation8 + $0xe80] sm:$0xff]
        %v5929 = vld [vmem:[#allocation8 + $0xe88] sm:$0xff]
        %v5930 = vld [vmem:[#allocation8 + $0xe90] sm:$0xff]
        %v5931 = vld [vmem:[#allocation8 + $0xe98] sm:$0xff]
        %v5932 = vld [vmem:[#allocation8 + $0xea0] sm:$0xff]
        %v5933 = vld [vmem:[#allocation8 + $0xea8] sm:$0xff]
        %v5934 = vld [vmem:[#allocation8 + $0xeb0] sm:$0xff]
        %v5935 = vld [vmem:[#allocation8 + $0xeb8] sm:$0xff]
        %v5936 = vld [vmem:[#allocation8 + $0xec0] sm:$0xff]
        %v5937 = vld [vmem:[#allocation8 + $0xec8] sm:$0xff]
        %v5938 = vld [vmem:[#allocation8 + $0xed0] sm:$0xff]
        %v5939 = vld [vmem:[#allocation8 + $0xed8] sm:$0xff]
        %v5940 = vld [vmem:[#allocation8 + $0xee0] sm:$0xff]
        %v5941 = vld [vmem:[#allocation8 + $0xee8] sm:$0xff]
        %v5942 = vld [vmem:[#allocation8 + $0xef0] sm:$0xff]
        %v5943 = vld [vmem:[#allocation8 + $0xef8] sm:$0xff]
        %v5944 = vld [vmem:[#allocation8 + $0xf00] sm:$0xff]
        %v5945 = vld [vmem:[#allocation8 + $0xf08] sm:$0xff]
        %v5946 = vld [vmem:[#allocation8 + $0xf10] sm:$0xff]
        %v5947 = vld [vmem:[#allocation8 + $0xf18] sm:$0xff]
        %v5948 = vld [vmem:[#allocation8 + $0xf20] sm:$0xff]
        %v5949 = vld [vmem:[#allocation8 + $0xf28] sm:$0xff]
        %v5950 = vld [vmem:[#allocation8 + $0xf30] sm:$0xff]
        %v5951 = vld [vmem:[#allocation8 + $0xf38] sm:$0xff]
        %v5952 = vld [vmem:[#allocation8 + $0xf40] sm:$0xff]
        %v5953 = vld [vmem:[#allocation8 + $0xf48] sm:$0xff]
        %v5954 = vld [vmem:[#allocation8 + $0xf50] sm:$0xff]
        %v5955 = vld [vmem:[#allocation8 + $0xf58] sm:$0xff]
        %v5956 = vld [vmem:[#allocation8 + $0xf60] sm:$0xff]
        %v5957 = vld [vmem:[#allocation8 + $0xf68] sm:$0xff]
        %v5958 = vld [vmem:[#allocation8 + $0xf70] sm:$0xff]
        %v5959 = vld [vmem:[#allocation8 + $0xf78] sm:$0xff]
        %v5960 = vld [vmem:[#allocation8 + $0xf80] sm:$0xff]
        %v5961 = vld [vmem:[#allocation8 + $0xf88] sm:$0xff]
        %v5962 = vld [vmem:[#allocation8 + $0xf90] sm:$0xff]
        %v5963 = vld [vmem:[#allocation8 + $0xf98] sm:$0xff]
        %v5964 = vld [vmem:[#allocation8 + $0xfa0] sm:$0xff]
        %v5965 = vld [vmem:[#allocation8 + $0xfa8] sm:$0xff]
        %v5966 = vld [vmem:[#allocation8 + $0xfb0] sm:$0xff]
        %v5967 = vld [vmem:[#allocation8 + $0xfb8] sm:$0xff]
        %v5968 = vld [vmem:[#allocation8 + $0xfc0] sm:$0xff]
        %v5969 = vld [vmem:[#allocation8 + $0xfc8] sm:$0xff]
        %v5970 = vld [vmem:[#allocation8 + $0xfd0] sm:$0xff]
        %v5971 = vld [vmem:[#allocation8 + $0xfd8] sm:$0xff]
        %v5972 = vld [vmem:[#allocation8 + $0xfe0] sm:$0xff]
        %v5973 = vld [vmem:[#allocation8 + $0xfe8] sm:$0xff]
        %v5974 = vld [vmem:[#allocation8 + $0xff0] sm:$0xff]
        %v5975 = vld [vmem:[#allocation8 + $0xff8] sm:$0xff]
        %v5976 = vld [vmem:[#allocation10] sm:$0xff]
        %v5978 = vlaneseq
        %v5979 = vshrl.u32 %v5978, 7
        %v5980 = vsub.s32 0, %v5979
        %v5981 = vrot.slane %v5976, %v5980
        %v5982 = vlaneseq
        %v5983 = vshrl.u32 %v5982, 7
        %v5984 = vsub.s32 1, %v5983
        %v5985 = vrot.slane %v5976, %v5984
        %v5986 = vlaneseq
        %v5987 = vshrl.u32 %v5986, 7
        %v5988 = vsub.s32 2, %v5987
        %v5989 = vrot.slane %v5976, %v5988
        %v5990 = vlaneseq
        %v5991 = vshrl.u32 %v5990, 7
        %v5992 = vsub.s32 3, %v5991
        %v5993 = vrot.slane %v5976, %v5992
        %v5994 = vlaneseq
        %v5995 = vshrl.u32 %v5994, 7
        %v5996 = vsub.s32 4, %v5995
        %v5997 = vrot.slane %v5976, %v5996
        %v5998 = vlaneseq
        %v5999 = vshrl.u32 %v5998, 7
        %v6000 = vsub.s32 5, %v5999
        %v6001 = vrot.slane %v5976, %v6000
        %v6002 = vlaneseq
        %v6003 = vshrl.u32 %v6002, 7
        %v6004 = vsub.s32 6, %v6003
        %v6005 = vrot.slane %v5976, %v6004
        %v6006 = vlaneseq
        %v6007 = vshrl.u32 %v6006, 7
        %v6008 = vsub.s32 7, %v6007
        %v6009 = vrot.slane %v5976, %v6008
        %v6530 = vunpack.c.l.b16 %v5464
        %v6531 = vunpack.c.h.b16 %v5464
        %v6532 = vunpack.c.l.b16 %v5465
        %v6533 = vunpack.c.h.b16 %v5465
        %v6534 = vunpack.c.l.b16 %v5466
        %v6535 = vunpack.c.h.b16 %v5466
        %v6536 = vunpack.c.l.b16 %v5467
        %v6537 = vunpack.c.h.b16 %v5467
        %v6538 = vunpack.c.l.b16 %v5468
        %v6539 = vunpack.c.h.b16 %v5468
        %v6540 = vunpack.c.l.b16 %v5469
        %v6541 = vunpack.c.h.b16 %v5469
        %v6542 = vunpack.c.l.b16 %v5470
        %v6543 = vunpack.c.h.b16 %v5470
        %v6544 = vunpack.c.l.b16 %v5471
        %v6545 = vunpack.c.h.b16 %v5471
        %v6546 = vunpack.c.l.b16 %v5472
        %v6547 = vunpack.c.h.b16 %v5472
        %v6548 = vunpack.c.l.b16 %v5473
        %v6549 = vunpack.c.h.b16 %v5473
        %v6550 = vunpack.c.l.b16 %v5474
        %v6551 = vunpack.c.h.b16 %v5474
        %v6552 = vunpack.c.l.b16 %v5475
        %v6553 = vunpack.c.h.b16 %v5475
        %v6554 = vunpack.c.l.b16 %v5476
        %v6555 = vunpack.c.h.b16 %v5476
        %v6556 = vunpack.c.l.b16 %v5477
        %v6557 = vunpack.c.h.b16 %v5477
        %v6558 = vunpack.c.l.b16 %v5478
        %v6559 = vunpack.c.h.b16 %v5478
        %v6560 = vunpack.c.l.b16 %v5479
        %v6561 = vunpack.c.h.b16 %v5479
        %v6562 = vunpack.c.l.b16 %v5480
        %v6563 = vunpack.c.h.b16 %v5480
        %v6564 = vunpack.c.l.b16 %v5481
        %v6565 = vunpack.c.h.b16 %v5481
        %v6566 = vunpack.c.l.b16 %v5482
        %v6567 = vunpack.c.h.b16 %v5482
        %v6568 = vunpack.c.l.b16 %v5483
        %v6569 = vunpack.c.h.b16 %v5483
        %v6570 = vunpack.c.l.b16 %v5484
        %v6571 = vunpack.c.h.b16 %v5484
        %v6572 = vunpack.c.l.b16 %v5485
        %v6573 = vunpack.c.h.b16 %v5485
        %v6574 = vunpack.c.l.b16 %v5486
        %v6575 = vunpack.c.h.b16 %v5486
        %v6576 = vunpack.c.l.b16 %v5487
        %v6577 = vunpack.c.h.b16 %v5487
        %v6578 = vunpack.c.l.b16 %v5488
        %v6579 = vunpack.c.h.b16 %v5488
        %v6580 = vunpack.c.l.b16 %v5489
        %v6581 = vunpack.c.h.b16 %v5489
        %v6582 = vunpack.c.l.b16 %v5490
        %v6583 = vunpack.c.h.b16 %v5490
        %v6584 = vunpack.c.l.b16 %v5491
        %v6585 = vunpack.c.h.b16 %v5491
        %v6586 = vunpack.c.l.b16 %v5492
        %v6587 = vunpack.c.h.b16 %v5492
        %v6588 = vunpack.c.l.b16 %v5493
        %v6589 = vunpack.c.h.b16 %v5493
        %v6590 = vunpack.c.l.b16 %v5494
        %v6591 = vunpack.c.h.b16 %v5494
        %v6592 = vunpack.c.l.b16 %v5495
        %v6593 = vunpack.c.h.b16 %v5495
        %v6594 = vunpack.c.l.b16 %v5496
        %v6595 = vunpack.c.h.b16 %v5496
        %v6596 = vunpack.c.l.b16 %v5497
        %v6597 = vunpack.c.h.b16 %v5497
        %v6598 = vunpack.c.l.b16 %v5498
        %v6599 = vunpack.c.h.b16 %v5498
        %v6600 = vunpack.c.l.b16 %v5499
        %v6601 = vunpack.c.h.b16 %v5499
        %v6602 = vunpack.c.l.b16 %v5500
        %v6603 = vunpack.c.h.b16 %v5500
        %v6604 = vunpack.c.l.b16 %v5501
        %v6605 = vunpack.c.h.b16 %v5501
        %v6606 = vunpack.c.l.b16 %v5502
        %v6607 = vunpack.c.h.b16 %v5502
        %v6608 = vunpack.c.l.b16 %v5503
        %v6609 = vunpack.c.h.b16 %v5503
        %v6610 = vunpack.c.l.b16 %v5504
        %v6611 = vunpack.c.h.b16 %v5504
        %v6612 = vunpack.c.l.b16 %v5505
        %v6613 = vunpack.c.h.b16 %v5505
        %v6614 = vunpack.c.l.b16 %v5506
        %v6615 = vunpack.c.h.b16 %v5506
        %v6616 = vunpack.c.l.b16 %v5507
        %v6617 = vunpack.c.h.b16 %v5507
        %v6618 = vunpack.c.l.b16 %v5508
        %v6619 = vunpack.c.h.b16 %v5508
        %v6620 = vunpack.c.l.b16 %v5509
        %v6621 = vunpack.c.h.b16 %v5509
        %v6622 = vunpack.c.l.b16 %v5510
        %v6623 = vunpack.c.h.b16 %v5510
        %v6624 = vunpack.c.l.b16 %v5511
        %v6625 = vunpack.c.h.b16 %v5511
        %v6626 = vunpack.c.l.b16 %v5512
        %v6627 = vunpack.c.h.b16 %v5512
        %v6628 = vunpack.c.l.b16 %v5513
        %v6629 = vunpack.c.h.b16 %v5513
        %v6630 = vunpack.c.l.b16 %v5514
        %v6631 = vunpack.c.h.b16 %v5514
        %v6632 = vunpack.c.l.b16 %v5515
        %v6633 = vunpack.c.h.b16 %v5515
        %v6634 = vunpack.c.l.b16 %v5516
        %v6635 = vunpack.c.h.b16 %v5516
        %v6636 = vunpack.c.l.b16 %v5517
        %v6637 = vunpack.c.h.b16 %v5517
        %v6638 = vunpack.c.l.b16 %v5518
        %v6639 = vunpack.c.h.b16 %v5518
        %v6640 = vunpack.c.l.b16 %v5519
        %v6641 = vunpack.c.h.b16 %v5519
        %v6642 = vunpack.c.l.b16 %v5520
        %v6643 = vunpack.c.h.b16 %v5520
        %v6644 = vunpack.c.l.b16 %v5521
        %v6645 = vunpack.c.h.b16 %v5521
        %v6646 = vunpack.c.l.b16 %v5522
        %v6647 = vunpack.c.h.b16 %v5522
        %v6648 = vunpack.c.l.b16 %v5523
        %v6649 = vunpack.c.h.b16 %v5523
        %v6650 = vunpack.c.l.b16 %v5524
        %v6651 = vunpack.c.h.b16 %v5524
        %v6652 = vunpack.c.l.b16 %v5525
        %v6653 = vunpack.c.h.b16 %v5525
        %v6654 = vunpack.c.l.b16 %v5526
        %v6655 = vunpack.c.h.b16 %v5526
        %v6656 = vunpack.c.l.b16 %v5527
        %v6657 = vunpack.c.h.b16 %v5527
        %v6658 = vunpack.c.l.b16 %v5528
        %v6659 = vunpack.c.h.b16 %v5528
        %v6660 = vunpack.c.l.b16 %v5529
        %v6661 = vunpack.c.h.b16 %v5529
        %v6662 = vunpack.c.l.b16 %v5530
        %v6663 = vunpack.c.h.b16 %v5530
        %v6664 = vunpack.c.l.b16 %v5531
        %v6665 = vunpack.c.h.b16 %v5531
        %v6666 = vunpack.c.l.b16 %v5532
        %v6667 = vunpack.c.h.b16 %v5532
        %v6668 = vunpack.c.l.b16 %v5533
        %v6669 = vunpack.c.h.b16 %v5533
        %v6670 = vunpack.c.l.b16 %v5534
        %v6671 = vunpack.c.h.b16 %v5534
        %v6672 = vunpack.c.l.b16 %v5535
        %v6673 = vunpack.c.h.b16 %v5535
        %v6674 = vunpack.c.l.b16 %v5536
        %v6675 = vunpack.c.h.b16 %v5536
        %v6676 = vunpack.c.l.b16 %v5537
        %v6677 = vunpack.c.h.b16 %v5537
        %v6678 = vunpack.c.l.b16 %v5538
        %v6679 = vunpack.c.h.b16 %v5538
        %v6680 = vunpack.c.l.b16 %v5539
        %v6681 = vunpack.c.h.b16 %v5539
        %v6682 = vunpack.c.l.b16 %v5540
        %v6683 = vunpack.c.h.b16 %v5540
        %v6684 = vunpack.c.l.b16 %v5541
        %v6685 = vunpack.c.h.b16 %v5541
        %v6686 = vunpack.c.l.b16 %v5542
        %v6687 = vunpack.c.h.b16 %v5542
        %v6688 = vunpack.c.l.b16 %v5543
        %v6689 = vunpack.c.h.b16 %v5543
        %v6690 = vunpack.c.l.b16 %v5544
        %v6691 = vunpack.c.h.b16 %v5544
        %v6692 = vunpack.c.l.b16 %v5545
        %v6693 = vunpack.c.h.b16 %v5545
        %v6694 = vunpack.c.l.b16 %v5546
        %v6695 = vunpack.c.h.b16 %v5546
        %v6696 = vunpack.c.l.b16 %v5547
        %v6697 = vunpack.c.h.b16 %v5547
        %v6698 = vunpack.c.l.b16 %v5548
        %v6699 = vunpack.c.h.b16 %v5548
        %v6700 = vunpack.c.l.b16 %v5549
        %v6701 = vunpack.c.h.b16 %v5549
        %v6702 = vunpack.c.l.b16 %v5550
        %v6703 = vunpack.c.h.b16 %v5550
        %v6704 = vunpack.c.l.b16 %v5551
        %v6705 = vunpack.c.h.b16 %v5551
        %v6706 = vunpack.c.l.b16 %v5552
        %v6707 = vunpack.c.h.b16 %v5552
        %v6708 = vunpack.c.l.b16 %v5553
        %v6709 = vunpack.c.h.b16 %v5553
        %v6710 = vunpack.c.l.b16 %v5554
        %v6711 = vunpack.c.h.b16 %v5554
        %v6712 = vunpack.c.l.b16 %v5555
        %v6713 = vunpack.c.h.b16 %v5555
        %v6714 = vunpack.c.l.b16 %v5556
        %v6715 = vunpack.c.h.b16 %v5556
        %v6716 = vunpack.c.l.b16 %v5557
        %v6717 = vunpack.c.h.b16 %v5557
        %v6718 = vunpack.c.l.b16 %v5558
        %v6719 = vunpack.c.h.b16 %v5558
        %v6720 = vunpack.c.l.b16 %v5559
        %v6721 = vunpack.c.h.b16 %v5559
        %v6722 = vunpack.c.l.b16 %v5560
        %v6723 = vunpack.c.h.b16 %v5560
        %v6724 = vunpack.c.l.b16 %v5561
        %v6725 = vunpack.c.h.b16 %v5561
        %v6726 = vunpack.c.l.b16 %v5562
        %v6727 = vunpack.c.h.b16 %v5562
        %v6728 = vunpack.c.l.b16 %v5563
        %v6729 = vunpack.c.h.b16 %v5563
        %v6730 = vunpack.c.l.b16 %v5564
        %v6731 = vunpack.c.h.b16 %v5564
        %v6732 = vunpack.c.l.b16 %v5565
        %v6733 = vunpack.c.h.b16 %v5565
        %v6734 = vunpack.c.l.b16 %v5566
        %v6735 = vunpack.c.h.b16 %v5566
        %v6736 = vunpack.c.l.b16 %v5567
        %v6737 = vunpack.c.h.b16 %v5567
        %v6738 = vunpack.c.l.b16 %v5568
        %v6739 = vunpack.c.h.b16 %v5568
        %v6740 = vunpack.c.l.b16 %v5569
        %v6741 = vunpack.c.h.b16 %v5569
        %v6742 = vunpack.c.l.b16 %v5570
        %v6743 = vunpack.c.h.b16 %v5570
        %v6744 = vunpack.c.l.b16 %v5571
        %v6745 = vunpack.c.h.b16 %v5571
        %v6746 = vunpack.c.l.b16 %v5572
        %v6747 = vunpack.c.h.b16 %v5572
        %v6748 = vunpack.c.l.b16 %v5573
        %v6749 = vunpack.c.h.b16 %v5573
        %v6750 = vunpack.c.l.b16 %v5574
        %v6751 = vunpack.c.h.b16 %v5574
        %v6752 = vunpack.c.l.b16 %v5575
        %v6753 = vunpack.c.h.b16 %v5575
        %v6754 = vunpack.c.l.b16 %v5576
        %v6755 = vunpack.c.h.b16 %v5576
        %v6756 = vunpack.c.l.b16 %v5577
        %v6757 = vunpack.c.h.b16 %v5577
        %v6758 = vunpack.c.l.b16 %v5578
        %v6759 = vunpack.c.h.b16 %v5578
        %v6760 = vunpack.c.l.b16 %v5579
        %v6761 = vunpack.c.h.b16 %v5579
        %v6762 = vunpack.c.l.b16 %v5580
        %v6763 = vunpack.c.h.b16 %v5580
        %v6764 = vunpack.c.l.b16 %v5581
        %v6765 = vunpack.c.h.b16 %v5581
        %v6766 = vunpack.c.l.b16 %v5582
        %v6767 = vunpack.c.h.b16 %v5582
        %v6768 = vunpack.c.l.b16 %v5583
        %v6769 = vunpack.c.h.b16 %v5583
        %v6770 = vunpack.c.l.b16 %v5584
        %v6771 = vunpack.c.h.b16 %v5584
        %v6772 = vunpack.c.l.b16 %v5585
        %v6773 = vunpack.c.h.b16 %v5585
        %v6774 = vunpack.c.l.b16 %v5586
        %v6775 = vunpack.c.h.b16 %v5586
        %v6776 = vunpack.c.l.b16 %v5587
        %v6777 = vunpack.c.h.b16 %v5587
        %v6778 = vunpack.c.l.b16 %v5588
        %v6779 = vunpack.c.h.b16 %v5588
        %v6780 = vunpack.c.l.b16 %v5589
        %v6781 = vunpack.c.h.b16 %v5589
        %v6782 = vunpack.c.l.b16 %v5590
        %v6783 = vunpack.c.h.b16 %v5590
        %v6784 = vunpack.c.l.b16 %v5591
        %v6785 = vunpack.c.h.b16 %v5591
        %v6786 = vunpack.c.l.b16 %v5592
        %v6787 = vunpack.c.h.b16 %v5592
        %v6788 = vunpack.c.l.b16 %v5593
        %v6789 = vunpack.c.h.b16 %v5593
        %v6790 = vunpack.c.l.b16 %v5594
        %v6791 = vunpack.c.h.b16 %v5594
        %v6792 = vunpack.c.l.b16 %v5595
        %v6793 = vunpack.c.h.b16 %v5595
        %v6794 = vunpack.c.l.b16 %v5596
        %v6795 = vunpack.c.h.b16 %v5596
        %v6796 = vunpack.c.l.b16 %v5597
        %v6797 = vunpack.c.h.b16 %v5597
        %v6798 = vunpack.c.l.b16 %v5598
        %v6799 = vunpack.c.h.b16 %v5598
        %v6800 = vunpack.c.l.b16 %v5599
        %v6801 = vunpack.c.h.b16 %v5599
        %v6802 = vunpack.c.l.b16 %v5600
        %v6803 = vunpack.c.h.b16 %v5600
        %v6804 = vunpack.c.l.b16 %v5601
        %v6805 = vunpack.c.h.b16 %v5601
        %v6806 = vunpack.c.l.b16 %v5602
        %v6807 = vunpack.c.h.b16 %v5602
        %v6808 = vunpack.c.l.b16 %v5603
        %v6809 = vunpack.c.h.b16 %v5603
        %v6810 = vunpack.c.l.b16 %v5604
        %v6811 = vunpack.c.h.b16 %v5604
        %v6812 = vunpack.c.l.b16 %v5605
        %v6813 = vunpack.c.h.b16 %v5605
        %v6814 = vunpack.c.l.b16 %v5606
        %v6815 = vunpack.c.h.b16 %v5606
        %v6816 = vunpack.c.l.b16 %v5607
        %v6817 = vunpack.c.h.b16 %v5607
        %v6818 = vunpack.c.l.b16 %v5608
        %v6819 = vunpack.c.h.b16 %v5608
        %v6820 = vunpack.c.l.b16 %v5609
        %v6821 = vunpack.c.h.b16 %v5609
        %v6822 = vunpack.c.l.b16 %v5610
        %v6823 = vunpack.c.h.b16 %v5610
        %v6824 = vunpack.c.l.b16 %v5611
        %v6825 = vunpack.c.h.b16 %v5611
        %v6826 = vunpack.c.l.b16 %v5612
        %v6827 = vunpack.c.h.b16 %v5612
        %v6828 = vunpack.c.l.b16 %v5613
        %v6829 = vunpack.c.h.b16 %v5613
        %v6830 = vunpack.c.l.b16 %v5614
        %v6831 = vunpack.c.h.b16 %v5614
        %v6832 = vunpack.c.l.b16 %v5615
        %v6833 = vunpack.c.h.b16 %v5615
        %v6834 = vunpack.c.l.b16 %v5616
        %v6835 = vunpack.c.h.b16 %v5616
        %v6836 = vunpack.c.l.b16 %v5617
        %v6837 = vunpack.c.h.b16 %v5617
        %v6838 = vunpack.c.l.b16 %v5618
        %v6839 = vunpack.c.h.b16 %v5618
        %v6840 = vunpack.c.l.b16 %v5619
        %v6841 = vunpack.c.h.b16 %v5619
        %v6842 = vunpack.c.l.b16 %v5620
        %v6843 = vunpack.c.h.b16 %v5620
        %v6844 = vunpack.c.l.b16 %v5621
        %v6845 = vunpack.c.h.b16 %v5621
        %v6846 = vunpack.c.l.b16 %v5622
        %v6847 = vunpack.c.h.b16 %v5622
        %v6848 = vunpack.c.l.b16 %v5623
        %v6849 = vunpack.c.h.b16 %v5623
        %v6850 = vunpack.c.l.b16 %v5624
        %v6851 = vunpack.c.h.b16 %v5624
        %v6852 = vunpack.c.l.b16 %v5625
        %v6853 = vunpack.c.h.b16 %v5625
        %v6854 = vunpack.c.l.b16 %v5626
        %v6855 = vunpack.c.h.b16 %v5626
        %v6856 = vunpack.c.l.b16 %v5627
        %v6857 = vunpack.c.h.b16 %v5627
        %v6858 = vunpack.c.l.b16 %v5628
        %v6859 = vunpack.c.h.b16 %v5628
        %v6860 = vunpack.c.l.b16 %v5629
        %v6861 = vunpack.c.h.b16 %v5629
        %v6862 = vunpack.c.l.b16 %v5630
        %v6863 = vunpack.c.h.b16 %v5630
        %v6864 = vunpack.c.l.b16 %v5631
        %v6865 = vunpack.c.h.b16 %v5631
        %v6866 = vunpack.c.l.b16 %v5632
        %v6867 = vunpack.c.h.b16 %v5632
        %v6868 = vunpack.c.l.b16 %v5633
        %v6869 = vunpack.c.h.b16 %v5633
        %v6870 = vunpack.c.l.b16 %v5634
        %v6871 = vunpack.c.h.b16 %v5634
        %v6872 = vunpack.c.l.b16 %v5635
        %v6873 = vunpack.c.h.b16 %v5635
        %v6874 = vunpack.c.l.b16 %v5636
        %v6875 = vunpack.c.h.b16 %v5636
        %v6876 = vunpack.c.l.b16 %v5637
        %v6877 = vunpack.c.h.b16 %v5637
        %v6878 = vunpack.c.l.b16 %v5638
        %v6879 = vunpack.c.h.b16 %v5638
        %v6880 = vunpack.c.l.b16 %v5639
        %v6881 = vunpack.c.h.b16 %v5639
        %v6882 = vunpack.c.l.b16 %v5640
        %v6883 = vunpack.c.h.b16 %v5640
        %v6884 = vunpack.c.l.b16 %v5641
        %v6885 = vunpack.c.h.b16 %v5641
        %v6886 = vunpack.c.l.b16 %v5642
        %v6887 = vunpack.c.h.b16 %v5642
        %v6888 = vunpack.c.l.b16 %v5643
        %v6889 = vunpack.c.h.b16 %v5643
        %v6890 = vunpack.c.l.b16 %v5644
        %v6891 = vunpack.c.h.b16 %v5644
        %v6892 = vunpack.c.l.b16 %v5645
        %v6893 = vunpack.c.h.b16 %v5645
        %v6894 = vunpack.c.l.b16 %v5646
        %v6895 = vunpack.c.h.b16 %v5646
        %v6896 = vunpack.c.l.b16 %v5647
        %v6897 = vunpack.c.h.b16 %v5647
        %v6898 = vunpack.c.l.b16 %v5648
        %v6899 = vunpack.c.h.b16 %v5648
        %v6900 = vunpack.c.l.b16 %v5649
        %v6901 = vunpack.c.h.b16 %v5649
        %v6902 = vunpack.c.l.b16 %v5650
        %v6903 = vunpack.c.h.b16 %v5650
        %v6904 = vunpack.c.l.b16 %v5651
        %v6905 = vunpack.c.h.b16 %v5651
        %v6906 = vunpack.c.l.b16 %v5652
        %v6907 = vunpack.c.h.b16 %v5652
        %v6908 = vunpack.c.l.b16 %v5653
        %v6909 = vunpack.c.h.b16 %v5653
        %v6910 = vunpack.c.l.b16 %v5654
        %v6911 = vunpack.c.h.b16 %v5654
        %v6912 = vunpack.c.l.b16 %v5655
        %v6913 = vunpack.c.h.b16 %v5655
        %v6914 = vunpack.c.l.b16 %v5656
        %v6915 = vunpack.c.h.b16 %v5656
        %v6916 = vunpack.c.l.b16 %v5657
        %v6917 = vunpack.c.h.b16 %v5657
        %v6918 = vunpack.c.l.b16 %v5658
        %v6919 = vunpack.c.h.b16 %v5658
        %v6920 = vunpack.c.l.b16 %v5659
        %v6921 = vunpack.c.h.b16 %v5659
        %v6922 = vunpack.c.l.b16 %v5660
        %v6923 = vunpack.c.h.b16 %v5660
        %v6924 = vunpack.c.l.b16 %v5661
        %v6925 = vunpack.c.h.b16 %v5661
        %v6926 = vunpack.c.l.b16 %v5662
        %v6927 = vunpack.c.h.b16 %v5662
        %v6928 = vunpack.c.l.b16 %v5663
        %v6929 = vunpack.c.h.b16 %v5663
        %v6930 = vunpack.c.l.b16 %v5664
        %v6931 = vunpack.c.h.b16 %v5664
        %v6932 = vunpack.c.l.b16 %v5665
        %v6933 = vunpack.c.h.b16 %v5665
        %v6934 = vunpack.c.l.b16 %v5666
        %v6935 = vunpack.c.h.b16 %v5666
        %v6936 = vunpack.c.l.b16 %v5667
        %v6937 = vunpack.c.h.b16 %v5667
        %v6938 = vunpack.c.l.b16 %v5668
        %v6939 = vunpack.c.h.b16 %v5668
        %v6940 = vunpack.c.l.b16 %v5669
        %v6941 = vunpack.c.h.b16 %v5669
        %v6942 = vunpack.c.l.b16 %v5670
        %v6943 = vunpack.c.h.b16 %v5670
        %v6944 = vunpack.c.l.b16 %v5671
        %v6945 = vunpack.c.h.b16 %v5671
        %v6946 = vunpack.c.l.b16 %v5672
        %v6947 = vunpack.c.h.b16 %v5672
        %v6948 = vunpack.c.l.b16 %v5673
        %v6949 = vunpack.c.h.b16 %v5673
        %v6950 = vunpack.c.l.b16 %v5674
        %v6951 = vunpack.c.h.b16 %v5674
        %v6952 = vunpack.c.l.b16 %v5675
        %v6953 = vunpack.c.h.b16 %v5675
        %v6954 = vunpack.c.l.b16 %v5676
        %v6955 = vunpack.c.h.b16 %v5676
        %v6956 = vunpack.c.l.b16 %v5677
        %v6957 = vunpack.c.h.b16 %v5677
        %v6958 = vunpack.c.l.b16 %v5678
        %v6959 = vunpack.c.h.b16 %v5678
        %v6960 = vunpack.c.l.b16 %v5679
        %v6961 = vunpack.c.h.b16 %v5679
        %v6962 = vunpack.c.l.b16 %v5680
        %v6963 = vunpack.c.h.b16 %v5680
        %v6964 = vunpack.c.l.b16 %v5681
        %v6965 = vunpack.c.h.b16 %v5681
        %v6966 = vunpack.c.l.b16 %v5682
        %v6967 = vunpack.c.h.b16 %v5682
        %v6968 = vunpack.c.l.b16 %v5683
        %v6969 = vunpack.c.h.b16 %v5683
        %v6970 = vunpack.c.l.b16 %v5684
        %v6971 = vunpack.c.h.b16 %v5684
        %v6972 = vunpack.c.l.b16 %v5685
        %v6973 = vunpack.c.h.b16 %v5685
        %v6974 = vunpack.c.l.b16 %v5686
        %v6975 = vunpack.c.h.b16 %v5686
        %v6976 = vunpack.c.l.b16 %v5687
        %v6977 = vunpack.c.h.b16 %v5687
        %v6978 = vunpack.c.l.b16 %v5688
        %v6979 = vunpack.c.h.b16 %v5688
        %v6980 = vunpack.c.l.b16 %v5689
        %v6981 = vunpack.c.h.b16 %v5689
        %v6982 = vunpack.c.l.b16 %v5690
        %v6983 = vunpack.c.h.b16 %v5690
        %v6984 = vunpack.c.l.b16 %v5691
        %v6985 = vunpack.c.h.b16 %v5691
        %v6986 = vunpack.c.l.b16 %v5692
        %v6987 = vunpack.c.h.b16 %v5692
        %v6988 = vunpack.c.l.b16 %v5693
        %v6989 = vunpack.c.h.b16 %v5693
        %v6990 = vunpack.c.l.b16 %v5694
        %v6991 = vunpack.c.h.b16 %v5694
        %v6992 = vunpack.c.l.b16 %v5695
        %v6993 = vunpack.c.h.b16 %v5695
        %v6994 = vunpack.c.l.b16 %v5696
        %v6995 = vunpack.c.h.b16 %v5696
        %v6996 = vunpack.c.l.b16 %v5697
        %v6997 = vunpack.c.h.b16 %v5697
        %v6998 = vunpack.c.l.b16 %v5698
        %v6999 = vunpack.c.h.b16 %v5698
        %v7000 = vunpack.c.l.b16 %v5699
        %v7001 = vunpack.c.h.b16 %v5699
        %v7002 = vunpack.c.l.b16 %v5700
        %v7003 = vunpack.c.h.b16 %v5700
        %v7004 = vunpack.c.l.b16 %v5701
        %v7005 = vunpack.c.h.b16 %v5701
        %v7006 = vunpack.c.l.b16 %v5702
        %v7007 = vunpack.c.h.b16 %v5702
        %v7008 = vunpack.c.l.b16 %v5703
        %v7009 = vunpack.c.h.b16 %v5703
        %v7010 = vunpack.c.l.b16 %v5704
        %v7011 = vunpack.c.h.b16 %v5704
        %v7012 = vunpack.c.l.b16 %v5705
        %v7013 = vunpack.c.h.b16 %v5705
        %v7014 = vunpack.c.l.b16 %v5706
        %v7015 = vunpack.c.h.b16 %v5706
        %v7016 = vunpack.c.l.b16 %v5707
        %v7017 = vunpack.c.h.b16 %v5707
        %v7018 = vunpack.c.l.b16 %v5708
        %v7019 = vunpack.c.h.b16 %v5708
        %v7020 = vunpack.c.l.b16 %v5709
        %v7021 = vunpack.c.h.b16 %v5709
        %v7022 = vunpack.c.l.b16 %v5710
        %v7023 = vunpack.c.h.b16 %v5710
        %v7024 = vunpack.c.l.b16 %v5711
        %v7025 = vunpack.c.h.b16 %v5711
        %v7026 = vunpack.c.l.b16 %v5712
        %v7027 = vunpack.c.h.b16 %v5712
        %v7028 = vunpack.c.l.b16 %v5713
        %v7029 = vunpack.c.h.b16 %v5713
        %v7030 = vunpack.c.l.b16 %v5714
        %v7031 = vunpack.c.h.b16 %v5714
        %v7032 = vunpack.c.l.b16 %v5715
        %v7033 = vunpack.c.h.b16 %v5715
        %v7034 = vunpack.c.l.b16 %v5716
        %v7035 = vunpack.c.h.b16 %v5716
        %v7036 = vunpack.c.l.b16 %v5717
        %v7037 = vunpack.c.h.b16 %v5717
        %v7038 = vunpack.c.l.b16 %v5718
        %v7039 = vunpack.c.h.b16 %v5718
        %v7040 = vunpack.c.l.b16 %v5719
        %v7041 = vunpack.c.h.b16 %v5719
        %v7042 = vunpack.c.l.b16 %v5720
        %v7043 = vunpack.c.h.b16 %v5720
        %v7044 = vunpack.c.l.b16 %v5721
        %v7045 = vunpack.c.h.b16 %v5721
        %v7046 = vunpack.c.l.b16 %v5722
        %v7047 = vunpack.c.h.b16 %v5722
        %v7048 = vunpack.c.l.b16 %v5723
        %v7049 = vunpack.c.h.b16 %v5723
        %v7050 = vunpack.c.l.b16 %v5724
        %v7051 = vunpack.c.h.b16 %v5724
        %v7052 = vunpack.c.l.b16 %v5725
        %v7053 = vunpack.c.h.b16 %v5725
        %v7054 = vunpack.c.l.b16 %v5726
        %v7055 = vunpack.c.h.b16 %v5726
        %v7056 = vunpack.c.l.b16 %v5727
        %v7057 = vunpack.c.h.b16 %v5727
        %v7058 = vunpack.c.l.b16 %v5728
        %v7059 = vunpack.c.h.b16 %v5728
        %v7060 = vunpack.c.l.b16 %v5729
        %v7061 = vunpack.c.h.b16 %v5729
        %v7062 = vunpack.c.l.b16 %v5730
        %v7063 = vunpack.c.h.b16 %v5730
        %v7064 = vunpack.c.l.b16 %v5731
        %v7065 = vunpack.c.h.b16 %v5731
        %v7066 = vunpack.c.l.b16 %v5732
        %v7067 = vunpack.c.h.b16 %v5732
        %v7068 = vunpack.c.l.b16 %v5733
        %v7069 = vunpack.c.h.b16 %v5733
        %v7070 = vunpack.c.l.b16 %v5734
        %v7071 = vunpack.c.h.b16 %v5734
        %v7072 = vunpack.c.l.b16 %v5735
        %v7073 = vunpack.c.h.b16 %v5735
        %v7074 = vunpack.c.l.b16 %v5736
        %v7075 = vunpack.c.h.b16 %v5736
        %v7076 = vunpack.c.l.b16 %v5737
        %v7077 = vunpack.c.h.b16 %v5737
        %v7078 = vunpack.c.l.b16 %v5738
        %v7079 = vunpack.c.h.b16 %v5738
        %v7080 = vunpack.c.l.b16 %v5739
        %v7081 = vunpack.c.h.b16 %v5739
        %v7082 = vunpack.c.l.b16 %v5740
        %v7083 = vunpack.c.h.b16 %v5740
        %v7084 = vunpack.c.l.b16 %v5741
        %v7085 = vunpack.c.h.b16 %v5741
        %v7086 = vunpack.c.l.b16 %v5742
        %v7087 = vunpack.c.h.b16 %v5742
        %v7088 = vunpack.c.l.b16 %v5743
        %v7089 = vunpack.c.h.b16 %v5743
        %v7090 = vunpack.c.l.b16 %v5744
        %v7091 = vunpack.c.h.b16 %v5744
        %v7092 = vunpack.c.l.b16 %v5745
        %v7093 = vunpack.c.h.b16 %v5745
        %v7094 = vunpack.c.l.b16 %v5746
        %v7095 = vunpack.c.h.b16 %v5746
        %v7096 = vunpack.c.l.b16 %v5747
        %v7097 = vunpack.c.h.b16 %v5747
        %v7098 = vunpack.c.l.b16 %v5748
        %v7099 = vunpack.c.h.b16 %v5748
        %v7100 = vunpack.c.l.b16 %v5749
        %v7101 = vunpack.c.h.b16 %v5749
        %v7102 = vunpack.c.l.b16 %v5750
        %v7103 = vunpack.c.h.b16 %v5750
        %v7104 = vunpack.c.l.b16 %v5751
        %v7105 = vunpack.c.h.b16 %v5751
        %v7106 = vunpack.c.l.b16 %v5752
        %v7107 = vunpack.c.h.b16 %v5752
        %v7108 = vunpack.c.l.b16 %v5753
        %v7109 = vunpack.c.h.b16 %v5753
        %v7110 = vunpack.c.l.b16 %v5754
        %v7111 = vunpack.c.h.b16 %v5754
        %v7112 = vunpack.c.l.b16 %v5755
        %v7113 = vunpack.c.h.b16 %v5755
        %v7114 = vunpack.c.l.b16 %v5756
        %v7115 = vunpack.c.h.b16 %v5756
        %v7116 = vunpack.c.l.b16 %v5757
        %v7117 = vunpack.c.h.b16 %v5757
        %v7118 = vunpack.c.l.b16 %v5758
        %v7119 = vunpack.c.h.b16 %v5758
        %v7120 = vunpack.c.l.b16 %v5759
        %v7121 = vunpack.c.h.b16 %v5759
        %v7122 = vunpack.c.l.b16 %v5760
        %v7123 = vunpack.c.h.b16 %v5760
        %v7124 = vunpack.c.l.b16 %v5761
        %v7125 = vunpack.c.h.b16 %v5761
        %v7126 = vunpack.c.l.b16 %v5762
        %v7127 = vunpack.c.h.b16 %v5762
        %v7128 = vunpack.c.l.b16 %v5763
        %v7129 = vunpack.c.h.b16 %v5763
        %v7130 = vunpack.c.l.b16 %v5764
        %v7131 = vunpack.c.h.b16 %v5764
        %v7132 = vunpack.c.l.b16 %v5765
        %v7133 = vunpack.c.h.b16 %v5765
        %v7134 = vunpack.c.l.b16 %v5766
        %v7135 = vunpack.c.h.b16 %v5766
        %v7136 = vunpack.c.l.b16 %v5767
        %v7137 = vunpack.c.h.b16 %v5767
        %v7138 = vunpack.c.l.b16 %v5768
        %v7139 = vunpack.c.h.b16 %v5768
        %v7140 = vunpack.c.l.b16 %v5769
        %v7141 = vunpack.c.h.b16 %v5769
        %v7142 = vunpack.c.l.b16 %v5770
        %v7143 = vunpack.c.h.b16 %v5770
        %v7144 = vunpack.c.l.b16 %v5771
        %v7145 = vunpack.c.h.b16 %v5771
        %v7146 = vunpack.c.l.b16 %v5772
        %v7147 = vunpack.c.h.b16 %v5772
        %v7148 = vunpack.c.l.b16 %v5773
        %v7149 = vunpack.c.h.b16 %v5773
        %v7150 = vunpack.c.l.b16 %v5774
        %v7151 = vunpack.c.h.b16 %v5774
        %v7152 = vunpack.c.l.b16 %v5775
        %v7153 = vunpack.c.h.b16 %v5775
        %v7154 = vunpack.c.l.b16 %v5776
        %v7155 = vunpack.c.h.b16 %v5776
        %v7156 = vunpack.c.l.b16 %v5777
        %v7157 = vunpack.c.h.b16 %v5777
        %v7158 = vunpack.c.l.b16 %v5778
        %v7159 = vunpack.c.h.b16 %v5778
        %v7160 = vunpack.c.l.b16 %v5779
        %v7161 = vunpack.c.h.b16 %v5779
        %v7162 = vunpack.c.l.b16 %v5780
        %v7163 = vunpack.c.h.b16 %v5780
        %v7164 = vunpack.c.l.b16 %v5781
        %v7165 = vunpack.c.h.b16 %v5781
        %v7166 = vunpack.c.l.b16 %v5782
        %v7167 = vunpack.c.h.b16 %v5782
        %v7168 = vunpack.c.l.b16 %v5783
        %v7169 = vunpack.c.h.b16 %v5783
        %v7170 = vunpack.c.l.b16 %v5784
        %v7171 = vunpack.c.h.b16 %v5784
        %v7172 = vunpack.c.l.b16 %v5785
        %v7173 = vunpack.c.h.b16 %v5785
        %v7174 = vunpack.c.l.b16 %v5786
        %v7175 = vunpack.c.h.b16 %v5786
        %v7176 = vunpack.c.l.b16 %v5787
        %v7177 = vunpack.c.h.b16 %v5787
        %v7178 = vunpack.c.l.b16 %v5788
        %v7179 = vunpack.c.h.b16 %v5788
        %v7180 = vunpack.c.l.b16 %v5789
        %v7181 = vunpack.c.h.b16 %v5789
        %v7182 = vunpack.c.l.b16 %v5790
        %v7183 = vunpack.c.h.b16 %v5790
        %v7184 = vunpack.c.l.b16 %v5791
        %v7185 = vunpack.c.h.b16 %v5791
        %v7186 = vunpack.c.l.b16 %v5792
        %v7187 = vunpack.c.h.b16 %v5792
        %v7188 = vunpack.c.l.b16 %v5793
        %v7189 = vunpack.c.h.b16 %v5793
        %v7190 = vunpack.c.l.b16 %v5794
        %v7191 = vunpack.c.h.b16 %v5794
        %v7192 = vunpack.c.l.b16 %v5795
        %v7193 = vunpack.c.h.b16 %v5795
        %v7194 = vunpack.c.l.b16 %v5796
        %v7195 = vunpack.c.h.b16 %v5796
        %v7196 = vunpack.c.l.b16 %v5797
        %v7197 = vunpack.c.h.b16 %v5797
        %v7198 = vunpack.c.l.b16 %v5798
        %v7199 = vunpack.c.h.b16 %v5798
        %v7200 = vunpack.c.l.b16 %v5799
        %v7201 = vunpack.c.h.b16 %v5799
        %v7202 = vunpack.c.l.b16 %v5800
        %v7203 = vunpack.c.h.b16 %v5800
        %v7204 = vunpack.c.l.b16 %v5801
        %v7205 = vunpack.c.h.b16 %v5801
        %v7206 = vunpack.c.l.b16 %v5802
        %v7207 = vunpack.c.h.b16 %v5802
        %v7208 = vunpack.c.l.b16 %v5803
        %v7209 = vunpack.c.h.b16 %v5803
        %v7210 = vunpack.c.l.b16 %v5804
        %v7211 = vunpack.c.h.b16 %v5804
        %v7212 = vunpack.c.l.b16 %v5805
        %v7213 = vunpack.c.h.b16 %v5805
        %v7214 = vunpack.c.l.b16 %v5806
        %v7215 = vunpack.c.h.b16 %v5806
        %v7216 = vunpack.c.l.b16 %v5807
        %v7217 = vunpack.c.h.b16 %v5807
        %v7218 = vunpack.c.l.b16 %v5808
        %v7219 = vunpack.c.h.b16 %v5808
        %v7220 = vunpack.c.l.b16 %v5809
        %v7221 = vunpack.c.h.b16 %v5809
        %v7222 = vunpack.c.l.b16 %v5810
        %v7223 = vunpack.c.h.b16 %v5810
        %v7224 = vunpack.c.l.b16 %v5811
        %v7225 = vunpack.c.h.b16 %v5811
        %v7226 = vunpack.c.l.b16 %v5812
        %v7227 = vunpack.c.h.b16 %v5812
        %v7228 = vunpack.c.l.b16 %v5813
        %v7229 = vunpack.c.h.b16 %v5813
        %v7230 = vunpack.c.l.b16 %v5814
        %v7231 = vunpack.c.h.b16 %v5814
        %v7232 = vunpack.c.l.b16 %v5815
        %v7233 = vunpack.c.h.b16 %v5815
        %v7234 = vunpack.c.l.b16 %v5816
        %v7235 = vunpack.c.h.b16 %v5816
        %v7236 = vunpack.c.l.b16 %v5817
        %v7237 = vunpack.c.h.b16 %v5817
        %v7238 = vunpack.c.l.b16 %v5818
        %v7239 = vunpack.c.h.b16 %v5818
        %v7240 = vunpack.c.l.b16 %v5819
        %v7241 = vunpack.c.h.b16 %v5819
        %v7242 = vunpack.c.l.b16 %v5820
        %v7243 = vunpack.c.h.b16 %v5820
        %v7244 = vunpack.c.l.b16 %v5821
        %v7245 = vunpack.c.h.b16 %v5821
        %v7246 = vunpack.c.l.b16 %v5822
        %v7247 = vunpack.c.h.b16 %v5822
        %v7248 = vunpack.c.l.b16 %v5823
        %v7249 = vunpack.c.h.b16 %v5823
        %v7250 = vunpack.c.l.b16 %v5824
        %v7251 = vunpack.c.h.b16 %v5824
        %v7252 = vunpack.c.l.b16 %v5825
        %v7253 = vunpack.c.h.b16 %v5825
        %v7254 = vunpack.c.l.b16 %v5826
        %v7255 = vunpack.c.h.b16 %v5826
        %v7256 = vunpack.c.l.b16 %v5827
        %v7257 = vunpack.c.h.b16 %v5827
        %v7258 = vunpack.c.l.b16 %v5828
        %v7259 = vunpack.c.h.b16 %v5828
        %v7260 = vunpack.c.l.b16 %v5829
        %v7261 = vunpack.c.h.b16 %v5829
        %v7262 = vunpack.c.l.b16 %v5830
        %v7263 = vunpack.c.h.b16 %v5830
        %v7264 = vunpack.c.l.b16 %v5831
        %v7265 = vunpack.c.h.b16 %v5831
        %v7266 = vunpack.c.l.b16 %v5832
        %v7267 = vunpack.c.h.b16 %v5832
        %v7268 = vunpack.c.l.b16 %v5833
        %v7269 = vunpack.c.h.b16 %v5833
        %v7270 = vunpack.c.l.b16 %v5834
        %v7271 = vunpack.c.h.b16 %v5834
        %v7272 = vunpack.c.l.b16 %v5835
        %v7273 = vunpack.c.h.b16 %v5835
        %v7274 = vunpack.c.l.b16 %v5836
        %v7275 = vunpack.c.h.b16 %v5836
        %v7276 = vunpack.c.l.b16 %v5837
        %v7277 = vunpack.c.h.b16 %v5837
        %v7278 = vunpack.c.l.b16 %v5838
        %v7279 = vunpack.c.h.b16 %v5838
        %v7280 = vunpack.c.l.b16 %v5839
        %v7281 = vunpack.c.h.b16 %v5839
        %v7282 = vunpack.c.l.b16 %v5840
        %v7283 = vunpack.c.h.b16 %v5840
        %v7284 = vunpack.c.l.b16 %v5841
        %v7285 = vunpack.c.h.b16 %v5841
        %v7286 = vunpack.c.l.b16 %v5842
        %v7287 = vunpack.c.h.b16 %v5842
        %v7288 = vunpack.c.l.b16 %v5843
        %v7289 = vunpack.c.h.b16 %v5843
        %v7290 = vunpack.c.l.b16 %v5844
        %v7291 = vunpack.c.h.b16 %v5844
        %v7292 = vunpack.c.l.b16 %v5845
        %v7293 = vunpack.c.h.b16 %v5845
        %v7294 = vunpack.c.l.b16 %v5846
        %v7295 = vunpack.c.h.b16 %v5846
        %v7296 = vunpack.c.l.b16 %v5847
        %v7297 = vunpack.c.h.b16 %v5847
        %v7298 = vunpack.c.l.b16 %v5848
        %v7299 = vunpack.c.h.b16 %v5848
        %v7300 = vunpack.c.l.b16 %v5849
        %v7301 = vunpack.c.h.b16 %v5849
        %v7302 = vunpack.c.l.b16 %v5850
        %v7303 = vunpack.c.h.b16 %v5850
        %v7304 = vunpack.c.l.b16 %v5851
        %v7305 = vunpack.c.h.b16 %v5851
        %v7306 = vunpack.c.l.b16 %v5852
        %v7307 = vunpack.c.h.b16 %v5852
        %v7308 = vunpack.c.l.b16 %v5853
        %v7309 = vunpack.c.h.b16 %v5853
        %v7310 = vunpack.c.l.b16 %v5854
        %v7311 = vunpack.c.h.b16 %v5854
        %v7312 = vunpack.c.l.b16 %v5855
        %v7313 = vunpack.c.h.b16 %v5855
        %v7314 = vunpack.c.l.b16 %v5856
        %v7315 = vunpack.c.h.b16 %v5856
        %v7316 = vunpack.c.l.b16 %v5857
        %v7317 = vunpack.c.h.b16 %v5857
        %v7318 = vunpack.c.l.b16 %v5858
        %v7319 = vunpack.c.h.b16 %v5858
        %v7320 = vunpack.c.l.b16 %v5859
        %v7321 = vunpack.c.h.b16 %v5859
        %v7322 = vunpack.c.l.b16 %v5860
        %v7323 = vunpack.c.h.b16 %v5860
        %v7324 = vunpack.c.l.b16 %v5861
        %v7325 = vunpack.c.h.b16 %v5861
        %v7326 = vunpack.c.l.b16 %v5862
        %v7327 = vunpack.c.h.b16 %v5862
        %v7328 = vunpack.c.l.b16 %v5863
        %v7329 = vunpack.c.h.b16 %v5863
        %v7330 = vunpack.c.l.b16 %v5864
        %v7331 = vunpack.c.h.b16 %v5864
        %v7332 = vunpack.c.l.b16 %v5865
        %v7333 = vunpack.c.h.b16 %v5865
        %v7334 = vunpack.c.l.b16 %v5866
        %v7335 = vunpack.c.h.b16 %v5866
        %v7336 = vunpack.c.l.b16 %v5867
        %v7337 = vunpack.c.h.b16 %v5867
        %v7338 = vunpack.c.l.b16 %v5868
        %v7339 = vunpack.c.h.b16 %v5868
        %v7340 = vunpack.c.l.b16 %v5869
        %v7341 = vunpack.c.h.b16 %v5869
        %v7342 = vunpack.c.l.b16 %v5870
        %v7343 = vunpack.c.h.b16 %v5870
        %v7344 = vunpack.c.l.b16 %v5871
        %v7345 = vunpack.c.h.b16 %v5871
        %v7346 = vunpack.c.l.b16 %v5872
        %v7347 = vunpack.c.h.b16 %v5872
        %v7348 = vunpack.c.l.b16 %v5873
        %v7349 = vunpack.c.h.b16 %v5873
        %v7350 = vunpack.c.l.b16 %v5874
        %v7351 = vunpack.c.h.b16 %v5874
        %v7352 = vunpack.c.l.b16 %v5875
        %v7353 = vunpack.c.h.b16 %v5875
        %v7354 = vunpack.c.l.b16 %v5876
        %v7355 = vunpack.c.h.b16 %v5876
        %v7356 = vunpack.c.l.b16 %v5877
        %v7357 = vunpack.c.h.b16 %v5877
        %v7358 = vunpack.c.l.b16 %v5878
        %v7359 = vunpack.c.h.b16 %v5878
        %v7360 = vunpack.c.l.b16 %v5879
        %v7361 = vunpack.c.h.b16 %v5879
        %v7362 = vunpack.c.l.b16 %v5880
        %v7363 = vunpack.c.h.b16 %v5880
        %v7364 = vunpack.c.l.b16 %v5881
        %v7365 = vunpack.c.h.b16 %v5881
        %v7366 = vunpack.c.l.b16 %v5882
        %v7367 = vunpack.c.h.b16 %v5882
        %v7368 = vunpack.c.l.b16 %v5883
        %v7369 = vunpack.c.h.b16 %v5883
        %v7370 = vunpack.c.l.b16 %v5884
        %v7371 = vunpack.c.h.b16 %v5884
        %v7372 = vunpack.c.l.b16 %v5885
        %v7373 = vunpack.c.h.b16 %v5885
        %v7374 = vunpack.c.l.b16 %v5886
        %v7375 = vunpack.c.h.b16 %v5886
        %v7376 = vunpack.c.l.b16 %v5887
        %v7377 = vunpack.c.h.b16 %v5887
        %v7378 = vunpack.c.l.b16 %v5888
        %v7379 = vunpack.c.h.b16 %v5888
        %v7380 = vunpack.c.l.b16 %v5889
        %v7381 = vunpack.c.h.b16 %v5889
        %v7382 = vunpack.c.l.b16 %v5890
        %v7383 = vunpack.c.h.b16 %v5890
        %v7384 = vunpack.c.l.b16 %v5891
        %v7385 = vunpack.c.h.b16 %v5891
        %v7386 = vunpack.c.l.b16 %v5892
        %v7387 = vunpack.c.h.b16 %v5892
        %v7388 = vunpack.c.l.b16 %v5893
        %v7389 = vunpack.c.h.b16 %v5893
        %v7390 = vunpack.c.l.b16 %v5894
        %v7391 = vunpack.c.h.b16 %v5894
        %v7392 = vunpack.c.l.b16 %v5895
        %v7393 = vunpack.c.h.b16 %v5895
        %v7394 = vunpack.c.l.b16 %v5896
        %v7395 = vunpack.c.h.b16 %v5896
        %v7396 = vunpack.c.l.b16 %v5897
        %v7397 = vunpack.c.h.b16 %v5897
        %v7398 = vunpack.c.l.b16 %v5898
        %v7399 = vunpack.c.h.b16 %v5898
        %v7400 = vunpack.c.l.b16 %v5899
        %v7401 = vunpack.c.h.b16 %v5899
        %v7402 = vunpack.c.l.b16 %v5900
        %v7403 = vunpack.c.h.b16 %v5900
        %v7404 = vunpack.c.l.b16 %v5901
        %v7405 = vunpack.c.h.b16 %v5901
        %v7406 = vunpack.c.l.b16 %v5902
        %v7407 = vunpack.c.h.b16 %v5902
        %v7408 = vunpack.c.l.b16 %v5903
        %v7409 = vunpack.c.h.b16 %v5903
        %v7410 = vunpack.c.l.b16 %v5904
        %v7411 = vunpack.c.h.b16 %v5904
        %v7412 = vunpack.c.l.b16 %v5905
        %v7413 = vunpack.c.h.b16 %v5905
        %v7414 = vunpack.c.l.b16 %v5906
        %v7415 = vunpack.c.h.b16 %v5906
        %v7416 = vunpack.c.l.b16 %v5907
        %v7417 = vunpack.c.h.b16 %v5907
        %v7418 = vunpack.c.l.b16 %v5908
        %v7419 = vunpack.c.h.b16 %v5908
        %v7420 = vunpack.c.l.b16 %v5909
        %v7421 = vunpack.c.h.b16 %v5909
        %v7422 = vunpack.c.l.b16 %v5910
        %v7423 = vunpack.c.h.b16 %v5910
        %v7424 = vunpack.c.l.b16 %v5911
        %v7425 = vunpack.c.h.b16 %v5911
        %v7426 = vunpack.c.l.b16 %v5912
        %v7427 = vunpack.c.h.b16 %v5912
        %v7428 = vunpack.c.l.b16 %v5913
        %v7429 = vunpack.c.h.b16 %v5913
        %v7430 = vunpack.c.l.b16 %v5914
        %v7431 = vunpack.c.h.b16 %v5914
        %v7432 = vunpack.c.l.b16 %v5915
        %v7433 = vunpack.c.h.b16 %v5915
        %v7434 = vunpack.c.l.b16 %v5916
        %v7435 = vunpack.c.h.b16 %v5916
        %v7436 = vunpack.c.l.b16 %v5917
        %v7437 = vunpack.c.h.b16 %v5917
        %v7438 = vunpack.c.l.b16 %v5918
        %v7439 = vunpack.c.h.b16 %v5918
        %v7440 = vunpack.c.l.b16 %v5919
        %v7441 = vunpack.c.h.b16 %v5919
        %v7442 = vunpack.c.l.b16 %v5920
        %v7443 = vunpack.c.h.b16 %v5920
        %v7444 = vunpack.c.l.b16 %v5921
        %v7445 = vunpack.c.h.b16 %v5921
        %v7446 = vunpack.c.l.b16 %v5922
        %v7447 = vunpack.c.h.b16 %v5922
        %v7448 = vunpack.c.l.b16 %v5923
        %v7449 = vunpack.c.h.b16 %v5923
        %v7450 = vunpack.c.l.b16 %v5924
        %v7451 = vunpack.c.h.b16 %v5924
        %v7452 = vunpack.c.l.b16 %v5925
        %v7453 = vunpack.c.h.b16 %v5925
        %v7454 = vunpack.c.l.b16 %v5926
        %v7455 = vunpack.c.h.b16 %v5926
        %v7456 = vunpack.c.l.b16 %v5927
        %v7457 = vunpack.c.h.b16 %v5927
        %v7458 = vunpack.c.l.b16 %v5928
        %v7459 = vunpack.c.h.b16 %v5928
        %v7460 = vunpack.c.l.b16 %v5929
        %v7461 = vunpack.c.h.b16 %v5929
        %v7462 = vunpack.c.l.b16 %v5930
        %v7463 = vunpack.c.h.b16 %v5930
        %v7464 = vunpack.c.l.b16 %v5931
        %v7465 = vunpack.c.h.b16 %v5931
        %v7466 = vunpack.c.l.b16 %v5932
        %v7467 = vunpack.c.h.b16 %v5932
        %v7468 = vunpack.c.l.b16 %v5933
        %v7469 = vunpack.c.h.b16 %v5933
        %v7470 = vunpack.c.l.b16 %v5934
        %v7471 = vunpack.c.h.b16 %v5934
        %v7472 = vunpack.c.l.b16 %v5935
        %v7473 = vunpack.c.h.b16 %v5935
        %v7474 = vunpack.c.l.b16 %v5936
        %v7475 = vunpack.c.h.b16 %v5936
        %v7476 = vunpack.c.l.b16 %v5937
        %v7477 = vunpack.c.h.b16 %v5937
        %v7478 = vunpack.c.l.b16 %v5938
        %v7479 = vunpack.c.h.b16 %v5938
        %v7480 = vunpack.c.l.b16 %v5939
        %v7481 = vunpack.c.h.b16 %v5939
        %v7482 = vunpack.c.l.b16 %v5940
        %v7483 = vunpack.c.h.b16 %v5940
        %v7484 = vunpack.c.l.b16 %v5941
        %v7485 = vunpack.c.h.b16 %v5941
        %v7486 = vunpack.c.l.b16 %v5942
        %v7487 = vunpack.c.h.b16 %v5942
        %v7488 = vunpack.c.l.b16 %v5943
        %v7489 = vunpack.c.h.b16 %v5943
        %v7490 = vunpack.c.l.b16 %v5944
        %v7491 = vunpack.c.h.b16 %v5944
        %v7492 = vunpack.c.l.b16 %v5945
        %v7493 = vunpack.c.h.b16 %v5945
        %v7494 = vunpack.c.l.b16 %v5946
        %v7495 = vunpack.c.h.b16 %v5946
        %v7496 = vunpack.c.l.b16 %v5947
        %v7497 = vunpack.c.h.b16 %v5947
        %v7498 = vunpack.c.l.b16 %v5948
        %v7499 = vunpack.c.h.b16 %v5948
        %v7500 = vunpack.c.l.b16 %v5949
        %v7501 = vunpack.c.h.b16 %v5949
        %v7502 = vunpack.c.l.b16 %v5950
        %v7503 = vunpack.c.h.b16 %v5950
        %v7504 = vunpack.c.l.b16 %v5951
        %v7505 = vunpack.c.h.b16 %v5951
        %v7506 = vunpack.c.l.b16 %v5952
        %v7507 = vunpack.c.h.b16 %v5952
        %v7508 = vunpack.c.l.b16 %v5953
        %v7509 = vunpack.c.h.b16 %v5953
        %v7510 = vunpack.c.l.b16 %v5954
        %v7511 = vunpack.c.h.b16 %v5954
        %v7512 = vunpack.c.l.b16 %v5955
        %v7513 = vunpack.c.h.b16 %v5955
        %v7514 = vunpack.c.l.b16 %v5956
        %v7515 = vunpack.c.h.b16 %v5956
        %v7516 = vunpack.c.l.b16 %v5957
        %v7517 = vunpack.c.h.b16 %v5957
        %v7518 = vunpack.c.l.b16 %v5958
        %v7519 = vunpack.c.h.b16 %v5958
        %v7520 = vunpack.c.l.b16 %v5959
        %v7521 = vunpack.c.h.b16 %v5959
        %v7522 = vunpack.c.l.b16 %v5960
        %v7523 = vunpack.c.h.b16 %v5960
        %v7524 = vunpack.c.l.b16 %v5961
        %v7525 = vunpack.c.h.b16 %v5961
        %v7526 = vunpack.c.l.b16 %v5962
        %v7527 = vunpack.c.h.b16 %v5962
        %v7528 = vunpack.c.l.b16 %v5963
        %v7529 = vunpack.c.h.b16 %v5963
        %v7530 = vunpack.c.l.b16 %v5964
        %v7531 = vunpack.c.h.b16 %v5964
        %v7532 = vunpack.c.l.b16 %v5965
        %v7533 = vunpack.c.h.b16 %v5965
        %v7534 = vunpack.c.l.b16 %v5966
        %v7535 = vunpack.c.h.b16 %v5966
        %v7536 = vunpack.c.l.b16 %v5967
        %v7537 = vunpack.c.h.b16 %v5967
        %v7538 = vunpack.c.l.b16 %v5968
        %v7539 = vunpack.c.h.b16 %v5968
        %v7540 = vunpack.c.l.b16 %v5969
        %v7541 = vunpack.c.h.b16 %v5969
        %v7542 = vunpack.c.l.b16 %v5970
        %v7543 = vunpack.c.h.b16 %v5970
        %v7544 = vunpack.c.l.b16 %v5971
        %v7545 = vunpack.c.h.b16 %v5971
        %v7546 = vunpack.c.l.b16 %v5972
        %v7547 = vunpack.c.h.b16 %v5972
        %v7548 = vunpack.c.l.b16 %v5973
        %v7549 = vunpack.c.h.b16 %v5973
        %v7550 = vunpack.c.l.b16 %v5974
        %v7551 = vunpack.c.h.b16 %v5974
        %v7552 = vunpack.c.l.b16 %v5975
        %v7553 = vunpack.c.h.b16 %v5975
        %v7554 = vpack.c.b16 %v6538, %v6530
        %v7555 = vpack.c.b16 %v6539, %v6531
        %v7556 = vpack.c.b16 %v6540, %v6532
        %v7557 = vpack.c.b16 %v6541, %v6533
        %v7558 = vpack.c.b16 %v6542, %v6534
        %v7559 = vpack.c.b16 %v6543, %v6535
        %v7560 = vpack.c.b16 %v6544, %v6536
        %v7561 = vpack.c.b16 %v6545, %v6537
        %v7562 = vpack.c.b16 %v6554, %v6546
        %v7563 = vpack.c.b16 %v6555, %v6547
        %v7564 = vpack.c.b16 %v6556, %v6548
        %v7565 = vpack.c.b16 %v6557, %v6549
        %v7566 = vpack.c.b16 %v6558, %v6550
        %v7567 = vpack.c.b16 %v6559, %v6551
        %v7568 = vpack.c.b16 %v6560, %v6552
        %v7569 = vpack.c.b16 %v6561, %v6553
        %v7570 = vpack.c.b16 %v6570, %v6562
        %v7571 = vpack.c.b16 %v6571, %v6563
        %v7572 = vpack.c.b16 %v6572, %v6564
        %v7573 = vpack.c.b16 %v6573, %v6565
        %v7574 = vpack.c.b16 %v6574, %v6566
        %v7575 = vpack.c.b16 %v6575, %v6567
        %v7576 = vpack.c.b16 %v6576, %v6568
        %v7577 = vpack.c.b16 %v6577, %v6569
        %v7578 = vpack.c.b16 %v6586, %v6578
        %v7579 = vpack.c.b16 %v6587, %v6579
        %v7580 = vpack.c.b16 %v6588, %v6580
        %v7581 = vpack.c.b16 %v6589, %v6581
        %v7582 = vpack.c.b16 %v6590, %v6582
        %v7583 = vpack.c.b16 %v6591, %v6583
        %v7584 = vpack.c.b16 %v6592, %v6584
        %v7585 = vpack.c.b16 %v6593, %v6585
        %v7586 = vpack.c.b16 %v6602, %v6594
        %v7587 = vpack.c.b16 %v6603, %v6595
        %v7588 = vpack.c.b16 %v6604, %v6596
        %v7589 = vpack.c.b16 %v6605, %v6597
        %v7590 = vpack.c.b16 %v6606, %v6598
        %v7591 = vpack.c.b16 %v6607, %v6599
        %v7592 = vpack.c.b16 %v6608, %v6600
        %v7593 = vpack.c.b16 %v6609, %v6601
        %v7594 = vpack.c.b16 %v6618, %v6610
        %v7595 = vpack.c.b16 %v6619, %v6611
        %v7596 = vpack.c.b16 %v6620, %v6612
        %v7597 = vpack.c.b16 %v6621, %v6613
        %v7598 = vpack.c.b16 %v6622, %v6614
        %v7599 = vpack.c.b16 %v6623, %v6615
        %v7600 = vpack.c.b16 %v6624, %v6616
        %v7601 = vpack.c.b16 %v6625, %v6617
        %v7602 = vpack.c.b16 %v6634, %v6626
        %v7603 = vpack.c.b16 %v6635, %v6627
        %v7604 = vpack.c.b16 %v6636, %v6628
        %v7605 = vpack.c.b16 %v6637, %v6629
        %v7606 = vpack.c.b16 %v6638, %v6630
        %v7607 = vpack.c.b16 %v6639, %v6631
        %v7608 = vpack.c.b16 %v6640, %v6632
        %v7609 = vpack.c.b16 %v6641, %v6633
        %v7610 = vpack.c.b16 %v6650, %v6642
        %v7611 = vpack.c.b16 %v6651, %v6643
        %v7612 = vpack.c.b16 %v6652, %v6644
        %v7613 = vpack.c.b16 %v6653, %v6645
        %v7614 = vpack.c.b16 %v6654, %v6646
        %v7615 = vpack.c.b16 %v6655, %v6647
        %v7616 = vpack.c.b16 %v6656, %v6648
        %v7617 = vpack.c.b16 %v6657, %v6649
        %v7618 = vpack.c.b16 %v6666, %v6658
        %v7619 = vpack.c.b16 %v6667, %v6659
        %v7620 = vpack.c.b16 %v6668, %v6660
        %v7621 = vpack.c.b16 %v6669, %v6661
        %v7622 = vpack.c.b16 %v6670, %v6662
        %v7623 = vpack.c.b16 %v6671, %v6663
        %v7624 = vpack.c.b16 %v6672, %v6664
        %v7625 = vpack.c.b16 %v6673, %v6665
        %v7626 = vpack.c.b16 %v6682, %v6674
        %v7627 = vpack.c.b16 %v6683, %v6675
        %v7628 = vpack.c.b16 %v6684, %v6676
        %v7629 = vpack.c.b16 %v6685, %v6677
        %v7630 = vpack.c.b16 %v6686, %v6678
        %v7631 = vpack.c.b16 %v6687, %v6679
        %v7632 = vpack.c.b16 %v6688, %v6680
        %v7633 = vpack.c.b16 %v6689, %v6681
        %v7634 = vpack.c.b16 %v6698, %v6690
        %v7635 = vpack.c.b16 %v6699, %v6691
        %v7636 = vpack.c.b16 %v6700, %v6692
        %v7637 = vpack.c.b16 %v6701, %v6693
        %v7638 = vpack.c.b16 %v6702, %v6694
        %v7639 = vpack.c.b16 %v6703, %v6695
        %v7640 = vpack.c.b16 %v6704, %v6696
        %v7641 = vpack.c.b16 %v6705, %v6697
        %v7642 = vpack.c.b16 %v6714, %v6706
        %v7643 = vpack.c.b16 %v6715, %v6707
        %v7644 = vpack.c.b16 %v6716, %v6708
        %v7645 = vpack.c.b16 %v6717, %v6709
        %v7646 = vpack.c.b16 %v6718, %v6710
        %v7647 = vpack.c.b16 %v6719, %v6711
        %v7648 = vpack.c.b16 %v6720, %v6712
        %v7649 = vpack.c.b16 %v6721, %v6713
        %v7650 = vpack.c.b16 %v6730, %v6722
        %v7651 = vpack.c.b16 %v6731, %v6723
        %v7652 = vpack.c.b16 %v6732, %v6724
        %v7653 = vpack.c.b16 %v6733, %v6725
        %v7654 = vpack.c.b16 %v6734, %v6726
        %v7655 = vpack.c.b16 %v6735, %v6727
        %v7656 = vpack.c.b16 %v6736, %v6728
        %v7657 = vpack.c.b16 %v6737, %v6729
        %v7658 = vpack.c.b16 %v6746, %v6738
        %v7659 = vpack.c.b16 %v6747, %v6739
        %v7660 = vpack.c.b16 %v6748, %v6740
        %v7661 = vpack.c.b16 %v6749, %v6741
        %v7662 = vpack.c.b16 %v6750, %v6742
        %v7663 = vpack.c.b16 %v6751, %v6743
        %v7664 = vpack.c.b16 %v6752, %v6744
        %v7665 = vpack.c.b16 %v6753, %v6745
        %v7666 = vpack.c.b16 %v6762, %v6754
        %v7667 = vpack.c.b16 %v6763, %v6755
        %v7668 = vpack.c.b16 %v6764, %v6756
        %v7669 = vpack.c.b16 %v6765, %v6757
        %v7670 = vpack.c.b16 %v6766, %v6758
        %v7671 = vpack.c.b16 %v6767, %v6759
        %v7672 = vpack.c.b16 %v6768, %v6760
        %v7673 = vpack.c.b16 %v6769, %v6761
        %v7674 = vpack.c.b16 %v6778, %v6770
        %v7675 = vpack.c.b16 %v6779, %v6771
        %v7676 = vpack.c.b16 %v6780, %v6772
        %v7677 = vpack.c.b16 %v6781, %v6773
        %v7678 = vpack.c.b16 %v6782, %v6774
        %v7679 = vpack.c.b16 %v6783, %v6775
        %v7680 = vpack.c.b16 %v6784, %v6776
        %v7681 = vpack.c.b16 %v6785, %v6777
        %v7682 = vpack.c.b16 %v6794, %v6786
        %v7683 = vpack.c.b16 %v6795, %v6787
        %v7684 = vpack.c.b16 %v6796, %v6788
        %v7685 = vpack.c.b16 %v6797, %v6789
        %v7686 = vpack.c.b16 %v6798, %v6790
        %v7687 = vpack.c.b16 %v6799, %v6791
        %v7688 = vpack.c.b16 %v6800, %v6792
        %v7689 = vpack.c.b16 %v6801, %v6793
        %v7690 = vpack.c.b16 %v6810, %v6802
        %v7691 = vpack.c.b16 %v6811, %v6803
        %v7692 = vpack.c.b16 %v6812, %v6804
        %v7693 = vpack.c.b16 %v6813, %v6805
        %v7694 = vpack.c.b16 %v6814, %v6806
        %v7695 = vpack.c.b16 %v6815, %v6807
        %v7696 = vpack.c.b16 %v6816, %v6808
        %v7697 = vpack.c.b16 %v6817, %v6809
        %v7698 = vpack.c.b16 %v6826, %v6818
        %v7699 = vpack.c.b16 %v6827, %v6819
        %v7700 = vpack.c.b16 %v6828, %v6820
        %v7701 = vpack.c.b16 %v6829, %v6821
        %v7702 = vpack.c.b16 %v6830, %v6822
        %v7703 = vpack.c.b16 %v6831, %v6823
        %v7704 = vpack.c.b16 %v6832, %v6824
        %v7705 = vpack.c.b16 %v6833, %v6825
        %v7706 = vpack.c.b16 %v6842, %v6834
        %v7707 = vpack.c.b16 %v6843, %v6835
        %v7708 = vpack.c.b16 %v6844, %v6836
        %v7709 = vpack.c.b16 %v6845, %v6837
        %v7710 = vpack.c.b16 %v6846, %v6838
        %v7711 = vpack.c.b16 %v6847, %v6839
        %v7712 = vpack.c.b16 %v6848, %v6840
        %v7713 = vpack.c.b16 %v6849, %v6841
        %v7714 = vpack.c.b16 %v6858, %v6850
        %v7715 = vpack.c.b16 %v6859, %v6851
        %v7716 = vpack.c.b16 %v6860, %v6852
        %v7717 = vpack.c.b16 %v6861, %v6853
        %v7718 = vpack.c.b16 %v6862, %v6854
        %v7719 = vpack.c.b16 %v6863, %v6855
        %v7720 = vpack.c.b16 %v6864, %v6856
        %v7721 = vpack.c.b16 %v6865, %v6857
        %v7722 = vpack.c.b16 %v6874, %v6866
        %v7723 = vpack.c.b16 %v6875, %v6867
        %v7724 = vpack.c.b16 %v6876, %v6868
        %v7725 = vpack.c.b16 %v6877, %v6869
        %v7726 = vpack.c.b16 %v6878, %v6870
        %v7727 = vpack.c.b16 %v6879, %v6871
        %v7728 = vpack.c.b16 %v6880, %v6872
        %v7729 = vpack.c.b16 %v6881, %v6873
        %v7730 = vpack.c.b16 %v6890, %v6882
        %v7731 = vpack.c.b16 %v6891, %v6883
        %v7732 = vpack.c.b16 %v6892, %v6884
        %v7733 = vpack.c.b16 %v6893, %v6885
        %v7734 = vpack.c.b16 %v6894, %v6886
        %v7735 = vpack.c.b16 %v6895, %v6887
        %v7736 = vpack.c.b16 %v6896, %v6888
        %v7737 = vpack.c.b16 %v6897, %v6889
        %v7738 = vpack.c.b16 %v6906, %v6898
        %v7739 = vpack.c.b16 %v6907, %v6899
        %v7740 = vpack.c.b16 %v6908, %v6900
        %v7741 = vpack.c.b16 %v6909, %v6901
        %v7742 = vpack.c.b16 %v6910, %v6902
        %v7743 = vpack.c.b16 %v6911, %v6903
        %v7744 = vpack.c.b16 %v6912, %v6904
        %v7745 = vpack.c.b16 %v6913, %v6905
        %v7746 = vpack.c.b16 %v6922, %v6914
        %v7747 = vpack.c.b16 %v6923, %v6915
        %v7748 = vpack.c.b16 %v6924, %v6916
        %v7749 = vpack.c.b16 %v6925, %v6917
        %v7750 = vpack.c.b16 %v6926, %v6918
        %v7751 = vpack.c.b16 %v6927, %v6919
        %v7752 = vpack.c.b16 %v6928, %v6920
        %v7753 = vpack.c.b16 %v6929, %v6921
        %v7754 = vpack.c.b16 %v6938, %v6930
        %v7755 = vpack.c.b16 %v6939, %v6931
        %v7756 = vpack.c.b16 %v6940, %v6932
        %v7757 = vpack.c.b16 %v6941, %v6933
        %v7758 = vpack.c.b16 %v6942, %v6934
        %v7759 = vpack.c.b16 %v6943, %v6935
        %v7760 = vpack.c.b16 %v6944, %v6936
        %v7761 = vpack.c.b16 %v6945, %v6937
        %v7762 = vpack.c.b16 %v6954, %v6946
        %v7763 = vpack.c.b16 %v6955, %v6947
        %v7764 = vpack.c.b16 %v6956, %v6948
        %v7765 = vpack.c.b16 %v6957, %v6949
        %v7766 = vpack.c.b16 %v6958, %v6950
        %v7767 = vpack.c.b16 %v6959, %v6951
        %v7768 = vpack.c.b16 %v6960, %v6952
        %v7769 = vpack.c.b16 %v6961, %v6953
        %v7770 = vpack.c.b16 %v6970, %v6962
        %v7771 = vpack.c.b16 %v6971, %v6963
        %v7772 = vpack.c.b16 %v6972, %v6964
        %v7773 = vpack.c.b16 %v6973, %v6965
        %v7774 = vpack.c.b16 %v6974, %v6966
        %v7775 = vpack.c.b16 %v6975, %v6967
        %v7776 = vpack.c.b16 %v6976, %v6968
        %v7777 = vpack.c.b16 %v6977, %v6969
        %v7778 = vpack.c.b16 %v6986, %v6978
        %v7779 = vpack.c.b16 %v6987, %v6979
        %v7780 = vpack.c.b16 %v6988, %v6980
        %v7781 = vpack.c.b16 %v6989, %v6981
        %v7782 = vpack.c.b16 %v6990, %v6982
        %v7783 = vpack.c.b16 %v6991, %v6983
        %v7784 = vpack.c.b16 %v6992, %v6984
        %v7785 = vpack.c.b16 %v6993, %v6985
        %v7786 = vpack.c.b16 %v7002, %v6994
        %v7787 = vpack.c.b16 %v7003, %v6995
        %v7788 = vpack.c.b16 %v7004, %v6996
        %v7789 = vpack.c.b16 %v7005, %v6997
        %v7790 = vpack.c.b16 %v7006, %v6998
        %v7791 = vpack.c.b16 %v7007, %v6999
        %v7792 = vpack.c.b16 %v7008, %v7000
        %v7793 = vpack.c.b16 %v7009, %v7001
        %v7794 = vpack.c.b16 %v7018, %v7010
        %v7795 = vpack.c.b16 %v7019, %v7011
        %v7796 = vpack.c.b16 %v7020, %v7012
        %v7797 = vpack.c.b16 %v7021, %v7013
        %v7798 = vpack.c.b16 %v7022, %v7014
        %v7799 = vpack.c.b16 %v7023, %v7015
        %v7800 = vpack.c.b16 %v7024, %v7016
        %v7801 = vpack.c.b16 %v7025, %v7017
        %v7802 = vpack.c.b16 %v7034, %v7026
        %v7803 = vpack.c.b16 %v7035, %v7027
        %v7804 = vpack.c.b16 %v7036, %v7028
        %v7805 = vpack.c.b16 %v7037, %v7029
        %v7806 = vpack.c.b16 %v7038, %v7030
        %v7807 = vpack.c.b16 %v7039, %v7031
        %v7808 = vpack.c.b16 %v7040, %v7032
        %v7809 = vpack.c.b16 %v7041, %v7033
        %v7810 = vpack.c.b16 %v7050, %v7042
        %v7811 = vpack.c.b16 %v7051, %v7043
        %v7812 = vpack.c.b16 %v7052, %v7044
        %v7813 = vpack.c.b16 %v7053, %v7045
        %v7814 = vpack.c.b16 %v7054, %v7046
        %v7815 = vpack.c.b16 %v7055, %v7047
        %v7816 = vpack.c.b16 %v7056, %v7048
        %v7817 = vpack.c.b16 %v7057, %v7049
        %v7818 = vpack.c.b16 %v7066, %v7058
        %v7819 = vpack.c.b16 %v7067, %v7059
        %v7820 = vpack.c.b16 %v7068, %v7060
        %v7821 = vpack.c.b16 %v7069, %v7061
        %v7822 = vpack.c.b16 %v7070, %v7062
        %v7823 = vpack.c.b16 %v7071, %v7063
        %v7824 = vpack.c.b16 %v7072, %v7064
        %v7825 = vpack.c.b16 %v7073, %v7065
        %v7826 = vpack.c.b16 %v7082, %v7074
        %v7827 = vpack.c.b16 %v7083, %v7075
        %v7828 = vpack.c.b16 %v7084, %v7076
        %v7829 = vpack.c.b16 %v7085, %v7077
        %v7830 = vpack.c.b16 %v7086, %v7078
        %v7831 = vpack.c.b16 %v7087, %v7079
        %v7832 = vpack.c.b16 %v7088, %v7080
        %v7833 = vpack.c.b16 %v7089, %v7081
        %v7834 = vpack.c.b16 %v7098, %v7090
        %v7835 = vpack.c.b16 %v7099, %v7091
        %v7836 = vpack.c.b16 %v7100, %v7092
        %v7837 = vpack.c.b16 %v7101, %v7093
        %v7838 = vpack.c.b16 %v7102, %v7094
        %v7839 = vpack.c.b16 %v7103, %v7095
        %v7840 = vpack.c.b16 %v7104, %v7096
        %v7841 = vpack.c.b16 %v7105, %v7097
        %v7842 = vpack.c.b16 %v7114, %v7106
        %v7843 = vpack.c.b16 %v7115, %v7107
        %v7844 = vpack.c.b16 %v7116, %v7108
        %v7845 = vpack.c.b16 %v7117, %v7109
        %v7846 = vpack.c.b16 %v7118, %v7110
        %v7847 = vpack.c.b16 %v7119, %v7111
        %v7848 = vpack.c.b16 %v7120, %v7112
        %v7849 = vpack.c.b16 %v7121, %v7113
        %v7850 = vpack.c.b16 %v7130, %v7122
        %v7851 = vpack.c.b16 %v7131, %v7123
        %v7852 = vpack.c.b16 %v7132, %v7124
        %v7853 = vpack.c.b16 %v7133, %v7125
        %v7854 = vpack.c.b16 %v7134, %v7126
        %v7855 = vpack.c.b16 %v7135, %v7127
        %v7856 = vpack.c.b16 %v7136, %v7128
        %v7857 = vpack.c.b16 %v7137, %v7129
        %v7858 = vpack.c.b16 %v7146, %v7138
        %v7859 = vpack.c.b16 %v7147, %v7139
        %v7860 = vpack.c.b16 %v7148, %v7140
        %v7861 = vpack.c.b16 %v7149, %v7141
        %v7862 = vpack.c.b16 %v7150, %v7142
        %v7863 = vpack.c.b16 %v7151, %v7143
        %v7864 = vpack.c.b16 %v7152, %v7144
        %v7865 = vpack.c.b16 %v7153, %v7145
        %v7866 = vpack.c.b16 %v7162, %v7154
        %v7867 = vpack.c.b16 %v7163, %v7155
        %v7868 = vpack.c.b16 %v7164, %v7156
        %v7869 = vpack.c.b16 %v7165, %v7157
        %v7870 = vpack.c.b16 %v7166, %v7158
        %v7871 = vpack.c.b16 %v7167, %v7159
        %v7872 = vpack.c.b16 %v7168, %v7160
        %v7873 = vpack.c.b16 %v7169, %v7161
        %v7874 = vpack.c.b16 %v7178, %v7170
        %v7875 = vpack.c.b16 %v7179, %v7171
        %v7876 = vpack.c.b16 %v7180, %v7172
        %v7877 = vpack.c.b16 %v7181, %v7173
        %v7878 = vpack.c.b16 %v7182, %v7174
        %v7879 = vpack.c.b16 %v7183, %v7175
        %v7880 = vpack.c.b16 %v7184, %v7176
        %v7881 = vpack.c.b16 %v7185, %v7177
        %v7882 = vpack.c.b16 %v7194, %v7186
        %v7883 = vpack.c.b16 %v7195, %v7187
        %v7884 = vpack.c.b16 %v7196, %v7188
        %v7885 = vpack.c.b16 %v7197, %v7189
        %v7886 = vpack.c.b16 %v7198, %v7190
        %v7887 = vpack.c.b16 %v7199, %v7191
        %v7888 = vpack.c.b16 %v7200, %v7192
        %v7889 = vpack.c.b16 %v7201, %v7193
        %v7890 = vpack.c.b16 %v7210, %v7202
        %v7891 = vpack.c.b16 %v7211, %v7203
        %v7892 = vpack.c.b16 %v7212, %v7204
        %v7893 = vpack.c.b16 %v7213, %v7205
        %v7894 = vpack.c.b16 %v7214, %v7206
        %v7895 = vpack.c.b16 %v7215, %v7207
        %v7896 = vpack.c.b16 %v7216, %v7208
        %v7897 = vpack.c.b16 %v7217, %v7209
        %v7898 = vpack.c.b16 %v7226, %v7218
        %v7899 = vpack.c.b16 %v7227, %v7219
        %v7900 = vpack.c.b16 %v7228, %v7220
        %v7901 = vpack.c.b16 %v7229, %v7221
        %v7902 = vpack.c.b16 %v7230, %v7222
        %v7903 = vpack.c.b16 %v7231, %v7223
        %v7904 = vpack.c.b16 %v7232, %v7224
        %v7905 = vpack.c.b16 %v7233, %v7225
        %v7906 = vpack.c.b16 %v7242, %v7234
        %v7907 = vpack.c.b16 %v7243, %v7235
        %v7908 = vpack.c.b16 %v7244, %v7236
        %v7909 = vpack.c.b16 %v7245, %v7237
        %v7910 = vpack.c.b16 %v7246, %v7238
        %v7911 = vpack.c.b16 %v7247, %v7239
        %v7912 = vpack.c.b16 %v7248, %v7240
        %v7913 = vpack.c.b16 %v7249, %v7241
        %v7914 = vpack.c.b16 %v7258, %v7250
        %v7915 = vpack.c.b16 %v7259, %v7251
        %v7916 = vpack.c.b16 %v7260, %v7252
        %v7917 = vpack.c.b16 %v7261, %v7253
        %v7918 = vpack.c.b16 %v7262, %v7254
        %v7919 = vpack.c.b16 %v7263, %v7255
        %v7920 = vpack.c.b16 %v7264, %v7256
        %v7921 = vpack.c.b16 %v7265, %v7257
        %v7922 = vpack.c.b16 %v7274, %v7266
        %v7923 = vpack.c.b16 %v7275, %v7267
        %v7924 = vpack.c.b16 %v7276, %v7268
        %v7925 = vpack.c.b16 %v7277, %v7269
        %v7926 = vpack.c.b16 %v7278, %v7270
        %v7927 = vpack.c.b16 %v7279, %v7271
        %v7928 = vpack.c.b16 %v7280, %v7272
        %v7929 = vpack.c.b16 %v7281, %v7273
        %v7930 = vpack.c.b16 %v7290, %v7282
        %v7931 = vpack.c.b16 %v7291, %v7283
        %v7932 = vpack.c.b16 %v7292, %v7284
        %v7933 = vpack.c.b16 %v7293, %v7285
        %v7934 = vpack.c.b16 %v7294, %v7286
        %v7935 = vpack.c.b16 %v7295, %v7287
        %v7936 = vpack.c.b16 %v7296, %v7288
        %v7937 = vpack.c.b16 %v7297, %v7289
        %v7938 = vpack.c.b16 %v7306, %v7298
        %v7939 = vpack.c.b16 %v7307, %v7299
        %v7940 = vpack.c.b16 %v7308, %v7300
        %v7941 = vpack.c.b16 %v7309, %v7301
        %v7942 = vpack.c.b16 %v7310, %v7302
        %v7943 = vpack.c.b16 %v7311, %v7303
        %v7944 = vpack.c.b16 %v7312, %v7304
        %v7945 = vpack.c.b16 %v7313, %v7305
        %v7946 = vpack.c.b16 %v7322, %v7314
        %v7947 = vpack.c.b16 %v7323, %v7315
        %v7948 = vpack.c.b16 %v7324, %v7316
        %v7949 = vpack.c.b16 %v7325, %v7317
        %v7950 = vpack.c.b16 %v7326, %v7318
        %v7951 = vpack.c.b16 %v7327, %v7319
        %v7952 = vpack.c.b16 %v7328, %v7320
        %v7953 = vpack.c.b16 %v7329, %v7321
        %v7954 = vpack.c.b16 %v7338, %v7330
        %v7955 = vpack.c.b16 %v7339, %v7331
        %v7956 = vpack.c.b16 %v7340, %v7332
        %v7957 = vpack.c.b16 %v7341, %v7333
        %v7958 = vpack.c.b16 %v7342, %v7334
        %v7959 = vpack.c.b16 %v7343, %v7335
        %v7960 = vpack.c.b16 %v7344, %v7336
        %v7961 = vpack.c.b16 %v7345, %v7337
        %v7962 = vpack.c.b16 %v7354, %v7346
        %v7963 = vpack.c.b16 %v7355, %v7347
        %v7964 = vpack.c.b16 %v7356, %v7348
        %v7965 = vpack.c.b16 %v7357, %v7349
        %v7966 = vpack.c.b16 %v7358, %v7350
        %v7967 = vpack.c.b16 %v7359, %v7351
        %v7968 = vpack.c.b16 %v7360, %v7352
        %v7969 = vpack.c.b16 %v7361, %v7353
        %v7970 = vpack.c.b16 %v7370, %v7362
        %v7971 = vpack.c.b16 %v7371, %v7363
        %v7972 = vpack.c.b16 %v7372, %v7364
        %v7973 = vpack.c.b16 %v7373, %v7365
        %v7974 = vpack.c.b16 %v7374, %v7366
        %v7975 = vpack.c.b16 %v7375, %v7367
        %v7976 = vpack.c.b16 %v7376, %v7368
        %v7977 = vpack.c.b16 %v7377, %v7369
        %v7978 = vpack.c.b16 %v7386, %v7378
        %v7979 = vpack.c.b16 %v7387, %v7379
        %v7980 = vpack.c.b16 %v7388, %v7380
        %v7981 = vpack.c.b16 %v7389, %v7381
        %v7982 = vpack.c.b16 %v7390, %v7382
        %v7983 = vpack.c.b16 %v7391, %v7383
        %v7984 = vpack.c.b16 %v7392, %v7384
        %v7985 = vpack.c.b16 %v7393, %v7385
        %v7986 = vpack.c.b16 %v7402, %v7394
        %v7987 = vpack.c.b16 %v7403, %v7395
        %v7988 = vpack.c.b16 %v7404, %v7396
        %v7989 = vpack.c.b16 %v7405, %v7397
        %v7990 = vpack.c.b16 %v7406, %v7398
        %v7991 = vpack.c.b16 %v7407, %v7399
        %v7992 = vpack.c.b16 %v7408, %v7400
        %v7993 = vpack.c.b16 %v7409, %v7401
        %v7994 = vpack.c.b16 %v7418, %v7410
        %v7995 = vpack.c.b16 %v7419, %v7411
        %v7996 = vpack.c.b16 %v7420, %v7412
        %v7997 = vpack.c.b16 %v7421, %v7413
        %v7998 = vpack.c.b16 %v7422, %v7414
        %v7999 = vpack.c.b16 %v7423, %v7415
        %v8000 = vpack.c.b16 %v7424, %v7416
        %v8001 = vpack.c.b16 %v7425, %v7417
        %v8002 = vpack.c.b16 %v7434, %v7426
        %v8003 = vpack.c.b16 %v7435, %v7427
        %v8004 = vpack.c.b16 %v7436, %v7428
        %v8005 = vpack.c.b16 %v7437, %v7429
        %v8006 = vpack.c.b16 %v7438, %v7430
        %v8007 = vpack.c.b16 %v7439, %v7431
        %v8008 = vpack.c.b16 %v7440, %v7432
        %v8009 = vpack.c.b16 %v7441, %v7433
        %v8010 = vpack.c.b16 %v7450, %v7442
        %v8011 = vpack.c.b16 %v7451, %v7443
        %v8012 = vpack.c.b16 %v7452, %v7444
        %v8013 = vpack.c.b16 %v7453, %v7445
        %v8014 = vpack.c.b16 %v7454, %v7446
        %v8015 = vpack.c.b16 %v7455, %v7447
        %v8016 = vpack.c.b16 %v7456, %v7448
        %v8017 = vpack.c.b16 %v7457, %v7449
        %v8018 = vpack.c.b16 %v7466, %v7458
        %v8019 = vpack.c.b16 %v7467, %v7459
        %v8020 = vpack.c.b16 %v7468, %v7460
        %v8021 = vpack.c.b16 %v7469, %v7461
        %v8022 = vpack.c.b16 %v7470, %v7462
        %v8023 = vpack.c.b16 %v7471, %v7463
        %v8024 = vpack.c.b16 %v7472, %v7464
        %v8025 = vpack.c.b16 %v7473, %v7465
        %v8026 = vpack.c.b16 %v7482, %v7474
        %v8027 = vpack.c.b16 %v7483, %v7475
        %v8028 = vpack.c.b16 %v7484, %v7476
        %v8029 = vpack.c.b16 %v7485, %v7477
        %v8030 = vpack.c.b16 %v7486, %v7478
        %v8031 = vpack.c.b16 %v7487, %v7479
        %v8032 = vpack.c.b16 %v7488, %v7480
        %v8033 = vpack.c.b16 %v7489, %v7481
        %v8034 = vpack.c.b16 %v7498, %v7490
        %v8035 = vpack.c.b16 %v7499, %v7491
        %v8036 = vpack.c.b16 %v7500, %v7492
        %v8037 = vpack.c.b16 %v7501, %v7493
        %v8038 = vpack.c.b16 %v7502, %v7494
        %v8039 = vpack.c.b16 %v7503, %v7495
        %v8040 = vpack.c.b16 %v7504, %v7496
        %v8041 = vpack.c.b16 %v7505, %v7497
        %v8042 = vpack.c.b16 %v7514, %v7506
        %v8043 = vpack.c.b16 %v7515, %v7507
        %v8044 = vpack.c.b16 %v7516, %v7508
        %v8045 = vpack.c.b16 %v7517, %v7509
        %v8046 = vpack.c.b16 %v7518, %v7510
        %v8047 = vpack.c.b16 %v7519, %v7511
        %v8048 = vpack.c.b16 %v7520, %v7512
        %v8049 = vpack.c.b16 %v7521, %v7513
        %v8050 = vpack.c.b16 %v7530, %v7522
        %v8051 = vpack.c.b16 %v7531, %v7523
        %v8052 = vpack.c.b16 %v7532, %v7524
        %v8053 = vpack.c.b16 %v7533, %v7525
        %v8054 = vpack.c.b16 %v7534, %v7526
        %v8055 = vpack.c.b16 %v7535, %v7527
        %v8056 = vpack.c.b16 %v7536, %v7528
        %v8057 = vpack.c.b16 %v7537, %v7529
        %v8058 = vpack.c.b16 %v7546, %v7538
        %v8059 = vpack.c.b16 %v7547, %v7539
        %v8060 = vpack.c.b16 %v7548, %v7540
        %v8061 = vpack.c.b16 %v7549, %v7541
        %v8062 = vpack.c.b16 %v7550, %v7542
        %v8063 = vpack.c.b16 %v7551, %v7543
        %v8064 = vpack.c.b16 %v7552, %v7544
        %v8065 = vpack.c.b16 %v7553, %v7545
        %8578 = vmatprep.subr.bf16.mxu0 %v7611
        %8579 = vmatpush1.bf16.msra.mxu0 %v7610
        %8580 = vmatprep.subr.bf16.mxu0 %v7603
        %8581 = vmatpush1.bf16.msra.mxu0 %v7602
        %8582 = vmatprep.subr.bf16.mxu0 %v7595
        %8583 = vmatpush1.bf16.msra.mxu0 %v7594
        %8584 = vmatprep.subr.bf16.mxu0 %v7587
        %8585 = vmatpush1.bf16.msra.mxu0 %v7586
        %8586 = vmatprep.subr.bf16.mxu0 %v7579
        %8587 = vmatpush1.bf16.msra.mxu0 %v7578
        %8588 = vmatprep.subr.bf16.mxu0 %v7571
        %8589 = vmatpush1.bf16.msra.mxu0 %v7570
        %8590 = vmatprep.subr.bf16.mxu0 %v7563
        %8591 = vmatpush1.bf16.msra.mxu0 %v7562
        %8592 = vmatprep.subr.bf16.mxu0 %v7555
        %8593 = vmatpush1.bf16.msra.mxu0 %v7554
        %8594 = vmatprep.subr.bf16.mxu0 %v7675
        %8595 = vmatpush2.bf16.msra.mxu0 %v7674
        %8596 = vmatprep.subr.bf16.mxu0 %v7667
        %8597 = vmatpush2.bf16.msra.mxu0 %v7666
        %8598 = vmatprep.subr.bf16.mxu0 %v7659
        %8599 = vmatpush2.bf16.msra.mxu0 %v7658
        %8600 = vmatprep.subr.bf16.mxu0 %v7651
        %8601 = vmatpush2.bf16.msra.mxu0 %v7650
        %8602 = vmatprep.subr.bf16.mxu0 %v7643
        %8603 = vmatpush2.bf16.msra.mxu0 %v7642
        %8604 = vmatprep.subr.bf16.mxu0 %v7635
        %8605 = vmatpush2.bf16.msra.mxu0 %v7634
        %8606 = vmatprep.subr.bf16.mxu0 %v7627
        %8607 = vmatpush2.bf16.msra.mxu0 %v7626
        %8608 = vmatprep.subr.bf16.mxu0 %v7619
        %8609 = vmatpush2.bf16.msra.mxu0 %v7618
        %8610 = vmatprep.mubr.bf16.mxu0 %v5401
        %8611 = vmatmul.mubr.bf16.gmra.mxu0 %v5400
        %v8612 = vpop.f32.mrf.mxu0
        %v8613 = vadd.f32 %v5981, %v8612
        %v8614 = vpop.f32.mrf.mxu0
        %v8615 = vadd.f32 %v5985, %v8614
        %v8616 = vpop.f32.mrf.mxu0
        %v8617 = vadd.f32 %v5981, %v8616
        %v8618 = vpop.f32.mrf.mxu0
        %v8619 = vadd.f32 %v5985, %v8618
        %8620 = vmatprep.mubr.bf16.mxu0 %v5409
        %8621 = vmatmul.mubr.bf16.gmra.mxu0 %v5408
        %v8622 = vpop.f32.mrf.mxu0
        %v8623 = vadd.f32 %v5981, %v8622
        %v8624 = vpop.f32.mrf.mxu0
        %v8625 = vadd.f32 %v5985, %v8624
        %v8626 = vpop.f32.mrf.mxu0
        %v8627 = vadd.f32 %v5981, %v8626
        %v8628 = vpop.f32.mrf.mxu0
        %v8629 = vadd.f32 %v5985, %v8628
        %8630 = vmatprep.mubr.bf16.mxu0 %v5417
        %8631 = vmatmul.mubr.bf16.gmra.mxu0 %v5416
        %v8632 = vpop.f32.mrf.mxu0
        %v8633 = vadd.f32 %v5981, %v8632
        %v8634 = vpop.f32.mrf.mxu0
        %v8635 = vadd.f32 %v5985, %v8634
        %v8636 = vpop.f32.mrf.mxu0
        %v8637 = vadd.f32 %v5981, %v8636
        %v8638 = vpop.f32.mrf.mxu0
        %v8639 = vadd.f32 %v5985, %v8638
        %8640 = vmatprep.mubr.bf16.mxu0 %v5425
        %8641 = vmatmul.mubr.bf16.gmra.mxu0 %v5424
        %v8642 = vpop.f32.mrf.mxu0
        %v8643 = vadd.f32 %v5981, %v8642
        %v8644 = vpop.f32.mrf.mxu0
        %v8645 = vadd.f32 %v5985, %v8644
        %v8646 = vpop.f32.mrf.mxu0
        %v8647 = vadd.f32 %v5981, %v8646
        %v8648 = vpop.f32.mrf.mxu0
        %v8649 = vadd.f32 %v5985, %v8648
        %8650 = vmatprep.mubr.bf16.mxu0 %v5433
        %8651 = vmatmul.mubr.bf16.gmra.mxu0 %v5432
        %v8652 = vpop.f32.mrf.mxu0
        %v8653 = vadd.f32 %v5981, %v8652
        %v8654 = vpop.f32.mrf.mxu0
        %v8655 = vadd.f32 %v5985, %v8654
        %v8656 = vpop.f32.mrf.mxu0
        %v8657 = vadd.f32 %v5981, %v8656
        %v8658 = vpop.f32.mrf.mxu0
        %v8659 = vadd.f32 %v5985, %v8658
        %8660 = vmatprep.mubr.bf16.mxu0 %v5441
        %8661 = vmatmul.mubr.bf16.gmra.mxu0 %v5440
        %v8662 = vpop.f32.mrf.mxu0
        %v8663 = vadd.f32 %v5981, %v8662
        %v8664 = vpop.f32.mrf.mxu0
        %v8665 = vadd.f32 %v5985, %v8664
        %v8666 = vpop.f32.mrf.mxu0
        %v8667 = vadd.f32 %v5981, %v8666
        %v8668 = vpop.f32.mrf.mxu0
        %v8669 = vadd.f32 %v5985, %v8668
        %8670 = vmatprep.mubr.bf16.mxu0 %v5449
        %8671 = vmatmul.mubr.bf16.gmra.mxu0 %v5448
        %v8672 = vpop.f32.mrf.mxu0
        %v8673 = vadd.f32 %v5981, %v8672
        %v8674 = vpop.f32.mrf.mxu0
        %v8675 = vadd.f32 %v5985, %v8674
        %v8676 = vpop.f32.mrf.mxu0
        %v8677 = vadd.f32 %v5981, %v8676
        %v8678 = vpop.f32.mrf.mxu0
        %v8679 = vadd.f32 %v5985, %v8678
        %8680 = vmatprep.mubr.bf16.mxu0 %v5457
        %8681 = vmatmul.mubr.bf16.gmra.mxu0 %v5456
        %v8682 = vpop.f32.mrf.mxu0
        %v8683 = vadd.f32 %v5981, %v8682
        %v8684 = vpop.f32.mrf.mxu0
        %v8685 = vadd.f32 %v5985, %v8684
        %v8686 = vpop.f32.mrf.mxu0
        %v8687 = vadd.f32 %v5981, %v8686
        %v8688 = vpop.f32.mrf.mxu0
        %v8689 = vadd.f32 %v5985, %v8688
        %8690 = vdwg.mxu0
        %8691 = vmatprep.subr.bf16.mxu0 %v7739
        %8692 = vmatpush1.bf16.msra.mxu0 %v7738
        %8693 = vmatprep.subr.bf16.mxu0 %v7731
        %8694 = vmatpush1.bf16.msra.mxu0 %v7730
        %8695 = vmatprep.subr.bf16.mxu0 %v7723
        %8696 = vmatpush1.bf16.msra.mxu0 %v7722
        %8697 = vmatprep.subr.bf16.mxu0 %v7715
        %8698 = vmatpush1.bf16.msra.mxu0 %v7714
        %8699 = vmatprep.subr.bf16.mxu0 %v7707
        %8700 = vmatpush1.bf16.msra.mxu0 %v7706
        %8701 = vmatprep.subr.bf16.mxu0 %v7699
        %8702 = vmatpush1.bf16.msra.mxu0 %v7698
        %8703 = vmatprep.subr.bf16.mxu0 %v7691
        %8704 = vmatpush1.bf16.msra.mxu0 %v7690
        %8705 = vmatprep.subr.bf16.mxu0 %v7683
        %8706 = vmatpush1.bf16.msra.mxu0 %v7682
        %8707 = vmatprep.subr.bf16.mxu0 %v7803
        %8708 = vmatpush2.bf16.msra.mxu0 %v7802
        %8709 = vmatprep.subr.bf16.mxu0 %v7795
        %8710 = vmatpush2.bf16.msra.mxu0 %v7794
        %8711 = vmatprep.subr.bf16.mxu0 %v7787
        %8712 = vmatpush2.bf16.msra.mxu0 %v7786
        %8713 = vmatprep.subr.bf16.mxu0 %v7779
        %8714 = vmatpush2.bf16.msra.mxu0 %v7778
        %8715 = vmatprep.subr.bf16.mxu0 %v7771
        %8716 = vmatpush2.bf16.msra.mxu0 %v7770
        %8717 = vmatprep.subr.bf16.mxu0 %v7763
        %8718 = vmatpush2.bf16.msra.mxu0 %v7762
        %8719 = vmatprep.subr.bf16.mxu0 %v7755
        %8720 = vmatpush2.bf16.msra.mxu0 %v7754
        %8721 = vmatprep.subr.bf16.mxu0 %v7747
        %8722 = vmatpush2.bf16.msra.mxu0 %v7746
        %8723 = vmatprep.mubr.bf16.mxu0 %v5403
        %8724 = vmatmul.mubr.bf16.gmra.mxu0 %v5402
        %v8725 = vpop.f32.mrf.mxu0
        %v8726 = vadd.f32 %v8613, %v8725
        %v8727 = vpop.f32.mrf.mxu0
        %v8728 = vadd.f32 %v8615, %v8727
        %v8729 = vpop.f32.mrf.mxu0
        %v8730 = vadd.f32 %v8617, %v8729
        %v8731 = vpop.f32.mrf.mxu0
        %v8732 = vadd.f32 %v8619, %v8731
        %8733 = vmatprep.mubr.bf16.mxu0 %v5411
        %8734 = vmatmul.mubr.bf16.gmra.mxu0 %v5410
        %v8735 = vpop.f32.mrf.mxu0
        %v8736 = vadd.f32 %v8623, %v8735
        %v8737 = vpop.f32.mrf.mxu0
        %v8738 = vadd.f32 %v8625, %v8737
        %v8739 = vpop.f32.mrf.mxu0
        %v8740 = vadd.f32 %v8627, %v8739
        %v8741 = vpop.f32.mrf.mxu0
        %v8742 = vadd.f32 %v8629, %v8741
        %8743 = vmatprep.mubr.bf16.mxu0 %v5419
        %8744 = vmatmul.mubr.bf16.gmra.mxu0 %v5418
        %v8745 = vpop.f32.mrf.mxu0
        %v8746 = vadd.f32 %v8633, %v8745
        %v8747 = vpop.f32.mrf.mxu0
        %v8748 = vadd.f32 %v8635, %v8747
        %v8749 = vpop.f32.mrf.mxu0
        %v8750 = vadd.f32 %v8637, %v8749
        %v8751 = vpop.f32.mrf.mxu0
        %v8752 = vadd.f32 %v8639, %v8751
        %8753 = vmatprep.mubr.bf16.mxu0 %v5427
        %8754 = vmatmul.mubr.bf16.gmra.mxu0 %v5426
        %v8755 = vpop.f32.mrf.mxu0
        %v8756 = vadd.f32 %v8643, %v8755
        %v8757 = vpop.f32.mrf.mxu0
        %v8758 = vadd.f32 %v8645, %v8757
        %v8759 = vpop.f32.mrf.mxu0
        %v8760 = vadd.f32 %v8647, %v8759
        %v8761 = vpop.f32.mrf.mxu0
        %v8762 = vadd.f32 %v8649, %v8761
        %8763 = vmatprep.mubr.bf16.mxu0 %v5435
        %8764 = vmatmul.mubr.bf16.gmra.mxu0 %v5434
        %v8765 = vpop.f32.mrf.mxu0
        %v8766 = vadd.f32 %v8653, %v8765
        %v8767 = vpop.f32.mrf.mxu0
        %v8768 = vadd.f32 %v8655, %v8767
        %v8769 = vpop.f32.mrf.mxu0
        %v8770 = vadd.f32 %v8657, %v8769
        %v8771 = vpop.f32.mrf.mxu0
        %v8772 = vadd.f32 %v8659, %v8771
        %8773 = vmatprep.mubr.bf16.mxu0 %v5443
        %8774 = vmatmul.mubr.bf16.gmra.mxu0 %v5442
        %v8775 = vpop.f32.mrf.mxu0
        %v8776 = vadd.f32 %v8663, %v8775
        %v8777 = vpop.f32.mrf.mxu0
        %v8778 = vadd.f32 %v8665, %v8777
        %v8779 = vpop.f32.mrf.mxu0
        %v8780 = vadd.f32 %v8667, %v8779
        %v8781 = vpop.f32.mrf.mxu0
        %v8782 = vadd.f32 %v8669, %v8781
        %8783 = vmatprep.mubr.bf16.mxu0 %v5451
        %8784 = vmatmul.mubr.bf16.gmra.mxu0 %v5450
        %v8785 = vpop.f32.mrf.mxu0
        %v8786 = vadd.f32 %v8673, %v8785
        %v8787 = vpop.f32.mrf.mxu0
        %v8788 = vadd.f32 %v8675, %v8787
        %v8789 = vpop.f32.mrf.mxu0
        %v8790 = vadd.f32 %v8677, %v8789
        %v8791 = vpop.f32.mrf.mxu0
        %v8792 = vadd.f32 %v8679, %v8791
        %8793 = vmatprep.mubr.bf16.mxu0 %v5459
        %8794 = vmatmul.mubr.bf16.gmra.mxu0 %v5458
        %v8795 = vpop.f32.mrf.mxu0
        %v8796 = vadd.f32 %v8683, %v8795
        %v8797 = vpop.f32.mrf.mxu0
        %v8798 = vadd.f32 %v8685, %v8797
        %v8799 = vpop.f32.mrf.mxu0
        %v8800 = vadd.f32 %v8687, %v8799
        %v8801 = vpop.f32.mrf.mxu0
        %v8802 = vadd.f32 %v8689, %v8801
        %8803 = vdwg.mxu0
        %8804 = vmatprep.subr.bf16.mxu0 %v7867
        %8805 = vmatpush1.bf16.msra.mxu0 %v7866
        %8806 = vmatprep.subr.bf16.mxu0 %v7859
        %8807 = vmatpush1.bf16.msra.mxu0 %v7858
        %8808 = vmatprep.subr.bf16.mxu0 %v7851
        %8809 = vmatpush1.bf16.msra.mxu0 %v7850
        %8810 = vmatprep.subr.bf16.mxu0 %v7843
        %8811 = vmatpush1.bf16.msra.mxu0 %v7842
        %8812 = vmatprep.subr.bf16.mxu0 %v7835
        %8813 = vmatpush1.bf16.msra.mxu0 %v7834
        %8814 = vmatprep.subr.bf16.mxu0 %v7827
        %8815 = vmatpush1.bf16.msra.mxu0 %v7826
        %8816 = vmatprep.subr.bf16.mxu0 %v7819
        %8817 = vmatpush1.bf16.msra.mxu0 %v7818
        %8818 = vmatprep.subr.bf16.mxu0 %v7811
        %8819 = vmatpush1.bf16.msra.mxu0 %v7810
        %8820 = vmatprep.subr.bf16.mxu0 %v7931
        %8821 = vmatpush2.bf16.msra.mxu0 %v7930
        %8822 = vmatprep.subr.bf16.mxu0 %v7923
        %8823 = vmatpush2.bf16.msra.mxu0 %v7922
        %8824 = vmatprep.subr.bf16.mxu0 %v7915
        %8825 = vmatpush2.bf16.msra.mxu0 %v7914
        %8826 = vmatprep.subr.bf16.mxu0 %v7907
        %8827 = vmatpush2.bf16.msra.mxu0 %v7906
        %8828 = vmatprep.subr.bf16.mxu0 %v7899
        %8829 = vmatpush2.bf16.msra.mxu0 %v7898
        %8830 = vmatprep.subr.bf16.mxu0 %v7891
        %8831 = vmatpush2.bf16.msra.mxu0 %v7890
        %8832 = vmatprep.subr.bf16.mxu0 %v7883
        %8833 = vmatpush2.bf16.msra.mxu0 %v7882
        %8834 = vmatprep.subr.bf16.mxu0 %v7875
        %8835 = vmatpush2.bf16.msra.mxu0 %v7874
        %8836 = vmatprep.mubr.bf16.mxu0 %v5405
        %8837 = vmatmul.mubr.bf16.gmra.mxu0 %v5404
        %v8838 = vpop.f32.mrf.mxu0
        %v8839 = vadd.f32 %v8726, %v8838
        %v8840 = vpop.f32.mrf.mxu0
        %v8841 = vadd.f32 %v8728, %v8840
        %v8842 = vpop.f32.mrf.mxu0
        %v8843 = vadd.f32 %v8730, %v8842
        %v8844 = vpop.f32.mrf.mxu0
        %v8845 = vadd.f32 %v8732, %v8844
        %8846 = vmatprep.mubr.bf16.mxu0 %v5413
        %8847 = vmatmul.mubr.bf16.gmra.mxu0 %v5412
        %v8848 = vpop.f32.mrf.mxu0
        %v8849 = vadd.f32 %v8736, %v8848
        %v8850 = vpop.f32.mrf.mxu0
        %v8851 = vadd.f32 %v8738, %v8850
        %v8852 = vpop.f32.mrf.mxu0
        %v8853 = vadd.f32 %v8740, %v8852
        %v8854 = vpop.f32.mrf.mxu0
        %v8855 = vadd.f32 %v8742, %v8854
        %8856 = vmatprep.mubr.bf16.mxu0 %v5421
        %8857 = vmatmul.mubr.bf16.gmra.mxu0 %v5420
        %v8858 = vpop.f32.mrf.mxu0
        %v8859 = vadd.f32 %v8746, %v8858
        %v8860 = vpop.f32.mrf.mxu0
        %v8861 = vadd.f32 %v8748, %v8860
        %v8862 = vpop.f32.mrf.mxu0
        %v8863 = vadd.f32 %v8750, %v8862
        %v8864 = vpop.f32.mrf.mxu0
        %v8865 = vadd.f32 %v8752, %v8864
        %8866 = vmatprep.mubr.bf16.mxu0 %v5429
        %8867 = vmatmul.mubr.bf16.gmra.mxu0 %v5428
        %v8868 = vpop.f32.mrf.mxu0
        %v8869 = vadd.f32 %v8756, %v8868
        %v8870 = vpop.f32.mrf.mxu0
        %v8871 = vadd.f32 %v8758, %v8870
        %v8872 = vpop.f32.mrf.mxu0
        %v8873 = vadd.f32 %v8760, %v8872
        %v8874 = vpop.f32.mrf.mxu0
        %v8875 = vadd.f32 %v8762, %v8874
        %8876 = vmatprep.mubr.bf16.mxu0 %v5437
        %8877 = vmatmul.mubr.bf16.gmra.mxu0 %v5436
        %v8878 = vpop.f32.mrf.mxu0
        %v8879 = vadd.f32 %v8766, %v8878
        %v8880 = vpop.f32.mrf.mxu0
        %v8881 = vadd.f32 %v8768, %v8880
        %v8882 = vpop.f32.mrf.mxu0
        %v8883 = vadd.f32 %v8770, %v8882
        %v8884 = vpop.f32.mrf.mxu0
        %v8885 = vadd.f32 %v8772, %v8884
        %8886 = vmatprep.mubr.bf16.mxu0 %v5445
        %8887 = vmatmul.mubr.bf16.gmra.mxu0 %v5444
        %v8888 = vpop.f32.mrf.mxu0
        %v8889 = vadd.f32 %v8776, %v8888
        %v8890 = vpop.f32.mrf.mxu0
        %v8891 = vadd.f32 %v8778, %v8890
        %v8892 = vpop.f32.mrf.mxu0
        %v8893 = vadd.f32 %v8780, %v8892
        %v8894 = vpop.f32.mrf.mxu0
        %v8895 = vadd.f32 %v8782, %v8894
        %8896 = vmatprep.mubr.bf16.mxu0 %v5453
        %8897 = vmatmul.mubr.bf16.gmra.mxu0 %v5452
        %v8898 = vpop.f32.mrf.mxu0
        %v8899 = vadd.f32 %v8786, %v8898
        %v8900 = vpop.f32.mrf.mxu0
        %v8901 = vadd.f32 %v8788, %v8900
        %v8902 = vpop.f32.mrf.mxu0
        %v8903 = vadd.f32 %v8790, %v8902
        %v8904 = vpop.f32.mrf.mxu0
        %v8905 = vadd.f32 %v8792, %v8904
        %8906 = vmatprep.mubr.bf16.mxu0 %v5461
        %8907 = vmatmul.mubr.bf16.gmra.mxu0 %v5460
        %v8908 = vpop.f32.mrf.mxu0
        %v8909 = vadd.f32 %v8796, %v8908
        %v8910 = vpop.f32.mrf.mxu0
        %v8911 = vadd.f32 %v8798, %v8910
        %v8912 = vpop.f32.mrf.mxu0
        %v8913 = vadd.f32 %v8800, %v8912
        %v8914 = vpop.f32.mrf.mxu0
        %v8915 = vadd.f32 %v8802, %v8914
        %8916 = vdwg.mxu0
        %8917 = vmatprep.subr.bf16.mxu0 %v7995
        %8918 = vmatpush1.bf16.msra.mxu0 %v7994
        %8919 = vmatprep.subr.bf16.mxu0 %v7987
        %8920 = vmatpush1.bf16.msra.mxu0 %v7986
        %8921 = vmatprep.subr.bf16.mxu0 %v7979
        %8922 = vmatpush1.bf16.msra.mxu0 %v7978
        %8923 = vmatprep.subr.bf16.mxu0 %v7971
        %8924 = vmatpush1.bf16.msra.mxu0 %v7970
        %8925 = vmatprep.subr.bf16.mxu0 %v7963
        %8926 = vmatpush1.bf16.msra.mxu0 %v7962
        %8927 = vmatprep.subr.bf16.mxu0 %v7955
        %8928 = vmatpush1.bf16.msra.mxu0 %v7954
        %8929 = vmatprep.subr.bf16.mxu0 %v7947
        %8930 = vmatpush1.bf16.msra.mxu0 %v7946
        %8931 = vmatprep.subr.bf16.mxu0 %v7939
        %8932 = vmatpush1.bf16.msra.mxu0 %v7938
        %8933 = vmatprep.subr.bf16.mxu0 %v8059
        %8934 = vmatpush2.bf16.msra.mxu0 %v8058
        %8935 = vmatprep.subr.bf16.mxu0 %v8051
        %8936 = vmatpush2.bf16.msra.mxu0 %v8050
        %8937 = vmatprep.subr.bf16.mxu0 %v8043
        %8938 = vmatpush2.bf16.msra.mxu0 %v8042
        %8939 = vmatprep.subr.bf16.mxu0 %v8035
        %8940 = vmatpush2.bf16.msra.mxu0 %v8034
        %8941 = vmatprep.subr.bf16.mxu0 %v8027
        %8942 = vmatpush2.bf16.msra.mxu0 %v8026
        %8943 = vmatprep.subr.bf16.mxu0 %v8019
        %8944 = vmatpush2.bf16.msra.mxu0 %v8018
        %8945 = vmatprep.subr.bf16.mxu0 %v8011
        %8946 = vmatpush2.bf16.msra.mxu0 %v8010
        %8947 = vmatprep.subr.bf16.mxu0 %v8003
        %8948 = vmatpush2.bf16.msra.mxu0 %v8002
        %8949 = vmatprep.mubr.bf16.mxu0 %v5407
        %8950 = vmatmul.mubr.bf16.gmra.mxu0 %v5406
        %v8951 = vpop.f32.mrf.mxu0
        %v8952 = vadd.f32 %v8839, %v8951
        %v8953 = vpop.f32.mrf.mxu0
        %v8954 = vadd.f32 %v8841, %v8953
        %v8955 = vpop.f32.mrf.mxu0
        %v8956 = vadd.f32 %v8843, %v8955
        %v8957 = vpop.f32.mrf.mxu0
        %v8958 = vadd.f32 %v8845, %v8957
        %8959 = vmatprep.mubr.bf16.mxu0 %v5415
        %8960 = vmatmul.mubr.bf16.gmra.mxu0 %v5414
        %v8961 = vpop.f32.mrf.mxu0
        %v8962 = vadd.f32 %v8849, %v8961
        %v8963 = vpop.f32.mrf.mxu0
        %v8964 = vadd.f32 %v8851, %v8963
        %v8965 = vpop.f32.mrf.mxu0
        %v8966 = vadd.f32 %v8853, %v8965
        %v8967 = vpop.f32.mrf.mxu0
        %v8968 = vadd.f32 %v8855, %v8967
        %8969 = vmatprep.mubr.bf16.mxu0 %v5423
        %8970 = vmatmul.mubr.bf16.gmra.mxu0 %v5422
        %v8971 = vpop.f32.mrf.mxu0
        %v8972 = vadd.f32 %v8859, %v8971
        %v8973 = vpop.f32.mrf.mxu0
        %v8974 = vadd.f32 %v8861, %v8973
        %v8975 = vpop.f32.mrf.mxu0
        %v8976 = vadd.f32 %v8863, %v8975
        %v8977 = vpop.f32.mrf.mxu0
        %v8978 = vadd.f32 %v8865, %v8977
        %8979 = vmatprep.mubr.bf16.mxu0 %v5431
        %8980 = vmatmul.mubr.bf16.gmra.mxu0 %v5430
        %v8981 = vpop.f32.mrf.mxu0
        %v8982 = vadd.f32 %v8869, %v8981
        %v8983 = vpop.f32.mrf.mxu0
        %v8984 = vadd.f32 %v8871, %v8983
        %v8985 = vpop.f32.mrf.mxu0
        %v8986 = vadd.f32 %v8873, %v8985
        %v8987 = vpop.f32.mrf.mxu0
        %v8988 = vadd.f32 %v8875, %v8987
        %8989 = vmatprep.mubr.bf16.mxu0 %v5439
        %8990 = vmatmul.mubr.bf16.gmra.mxu0 %v5438
        %v8991 = vpop.f32.mrf.mxu0
        %v8992 = vadd.f32 %v8879, %v8991
        %v8993 = vpop.f32.mrf.mxu0
        %v8994 = vadd.f32 %v8881, %v8993
        %v8995 = vpop.f32.mrf.mxu0
        %v8996 = vadd.f32 %v8883, %v8995
        %v8997 = vpop.f32.mrf.mxu0
        %v8998 = vadd.f32 %v8885, %v8997
        %8999 = vmatprep.mubr.bf16.mxu0 %v5447
        %9000 = vmatmul.mubr.bf16.gmra.mxu0 %v5446
        %v9001 = vpop.f32.mrf.mxu0
        %v9002 = vadd.f32 %v8889, %v9001
        %v9003 = vpop.f32.mrf.mxu0
        %v9004 = vadd.f32 %v8891, %v9003
        %v9005 = vpop.f32.mrf.mxu0
        %v9006 = vadd.f32 %v8893, %v9005
        %v9007 = vpop.f32.mrf.mxu0
        %v9008 = vadd.f32 %v8895, %v9007
        %9009 = vmatprep.mubr.bf16.mxu0 %v5455
        %9010 = vmatmul.mubr.bf16.gmra.mxu0 %v5454
        %v9011 = vpop.f32.mrf.mxu0
        %v9012 = vadd.f32 %v8899, %v9011
        %v9013 = vpop.f32.mrf.mxu0
        %v9014 = vadd.f32 %v8901, %v9013
        %v9015 = vpop.f32.mrf.mxu0
        %v9016 = vadd.f32 %v8903, %v9015
        %v9017 = vpop.f32.mrf.mxu0
        %v9018 = vadd.f32 %v8905, %v9017
        %9019 = vmatprep.mubr.bf16.mxu0 %v5463
        %9020 = vmatmul.mubr.bf16.gmra.mxu0 %v5462
        %v9021 = vpop.f32.mrf.mxu0
        %v9022 = vadd.f32 %v8909, %v9021
        %v9023 = vpop.f32.mrf.mxu0
        %v9024 = vadd.f32 %v8911, %v9023
        %v9025 = vpop.f32.mrf.mxu0
        %v9026 = vadd.f32 %v8913, %v9025
        %v9027 = vpop.f32.mrf.mxu0
        %v9028 = vadd.f32 %v8915, %v9027
        %9029 = vdwg.mxu0
        %9030 = vmatprep.subr.bf16.mxu0 %v7613
        %9031 = vmatpush1.bf16.msra.mxu0 %v7612
        %9032 = vmatprep.subr.bf16.mxu0 %v7605
        %9033 = vmatpush1.bf16.msra.mxu0 %v7604
        %9034 = vmatprep.subr.bf16.mxu0 %v7597
        %9035 = vmatpush1.bf16.msra.mxu0 %v7596
        %9036 = vmatprep.subr.bf16.mxu0 %v7589
        %9037 = vmatpush1.bf16.msra.mxu0 %v7588
        %9038 = vmatprep.subr.bf16.mxu0 %v7581
        %9039 = vmatpush1.bf16.msra.mxu0 %v7580
        %9040 = vmatprep.subr.bf16.mxu0 %v7573
        %9041 = vmatpush1.bf16.msra.mxu0 %v7572
        %9042 = vmatprep.subr.bf16.mxu0 %v7565
        %9043 = vmatpush1.bf16.msra.mxu0 %v7564
        %9044 = vmatprep.subr.bf16.mxu0 %v7557
        %9045 = vmatpush1.bf16.msra.mxu0 %v7556
        %9046 = vmatprep.subr.bf16.mxu0 %v7677
        %9047 = vmatpush2.bf16.msra.mxu0 %v7676
        %9048 = vmatprep.subr.bf16.mxu0 %v7669
        %9049 = vmatpush2.bf16.msra.mxu0 %v7668
        %9050 = vmatprep.subr.bf16.mxu0 %v7661
        %9051 = vmatpush2.bf16.msra.mxu0 %v7660
        %9052 = vmatprep.subr.bf16.mxu0 %v7653
        %9053 = vmatpush2.bf16.msra.mxu0 %v7652
        %9054 = vmatprep.subr.bf16.mxu0 %v7645
        %9055 = vmatpush2.bf16.msra.mxu0 %v7644
        %9056 = vmatprep.subr.bf16.mxu0 %v7637
        %9057 = vmatpush2.bf16.msra.mxu0 %v7636
        %9058 = vmatprep.subr.bf16.mxu0 %v7629
        %9059 = vmatpush2.bf16.msra.mxu0 %v7628
        %9060 = vmatprep.subr.bf16.mxu0 %v7621
        %9061 = vmatpush2.bf16.msra.mxu0 %v7620
        %9062 = vmatprep.mubr.bf16.mxu0 %v5401
        %9063 = vmatmul.mubr.bf16.gmra.mxu0 %v5400
        %v9064 = vpop.f32.mrf.mxu0
        %v9065 = vadd.f32 %v5989, %v9064
        %v9066 = vpop.f32.mrf.mxu0
        %v9067 = vadd.f32 %v5993, %v9066
        %v9068 = vpop.f32.mrf.mxu0
        %v9069 = vadd.f32 %v5989, %v9068
        %v9070 = vpop.f32.mrf.mxu0
        %v9071 = vadd.f32 %v5993, %v9070
        %9072 = vmatprep.mubr.bf16.mxu0 %v5409
        %9073 = vmatmul.mubr.bf16.gmra.mxu0 %v5408
        %v9074 = vpop.f32.mrf.mxu0
        %v9075 = vadd.f32 %v5989, %v9074
        %v9076 = vpop.f32.mrf.mxu0
        %v9077 = vadd.f32 %v5993, %v9076
        %v9078 = vpop.f32.mrf.mxu0
        %v9079 = vadd.f32 %v5989, %v9078
        %v9080 = vpop.f32.mrf.mxu0
        %v9081 = vadd.f32 %v5993, %v9080
        %9082 = vmatprep.mubr.bf16.mxu0 %v5417
        %9083 = vmatmul.mubr.bf16.gmra.mxu0 %v5416
        %v9084 = vpop.f32.mrf.mxu0
        %v9085 = vadd.f32 %v5989, %v9084
        %v9086 = vpop.f32.mrf.mxu0
        %v9087 = vadd.f32 %v5993, %v9086
        %v9088 = vpop.f32.mrf.mxu0
        %v9089 = vadd.f32 %v5989, %v9088
        %v9090 = vpop.f32.mrf.mxu0
        %v9091 = vadd.f32 %v5993, %v9090
        %9092 = vmatprep.mubr.bf16.mxu0 %v5425
        %9093 = vmatmul.mubr.bf16.gmra.mxu0 %v5424
        %v9094 = vpop.f32.mrf.mxu0
        %v9095 = vadd.f32 %v5989, %v9094
        %v9096 = vpop.f32.mrf.mxu0
        %v9097 = vadd.f32 %v5993, %v9096
        %v9098 = vpop.f32.mrf.mxu0
        %v9099 = vadd.f32 %v5989, %v9098
        %v9100 = vpop.f32.mrf.mxu0
        %v9101 = vadd.f32 %v5993, %v9100
        %9102 = vmatprep.mubr.bf16.mxu0 %v5433
        %9103 = vmatmul.mubr.bf16.gmra.mxu0 %v5432
        %v9104 = vpop.f32.mrf.mxu0
        %v9105 = vadd.f32 %v5989, %v9104
        %v9106 = vpop.f32.mrf.mxu0
        %v9107 = vadd.f32 %v5993, %v9106
        %v9108 = vpop.f32.mrf.mxu0
        %v9109 = vadd.f32 %v5989, %v9108
        %v9110 = vpop.f32.mrf.mxu0
        %v9111 = vadd.f32 %v5993, %v9110
        %9112 = vmatprep.mubr.bf16.mxu0 %v5441
        %9113 = vmatmul.mubr.bf16.gmra.mxu0 %v5440
        %v9114 = vpop.f32.mrf.mxu0
        %v9115 = vadd.f32 %v5989, %v9114
        %v9116 = vpop.f32.mrf.mxu0
        %v9117 = vadd.f32 %v5993, %v9116
        %v9118 = vpop.f32.mrf.mxu0
        %v9119 = vadd.f32 %v5989, %v9118
        %v9120 = vpop.f32.mrf.mxu0
        %v9121 = vadd.f32 %v5993, %v9120
        %9122 = vmatprep.mubr.bf16.mxu0 %v5449
        %9123 = vmatmul.mubr.bf16.gmra.mxu0 %v5448
        %v9124 = vpop.f32.mrf.mxu0
        %v9125 = vadd.f32 %v5989, %v9124
        %v9126 = vpop.f32.mrf.mxu0
        %v9127 = vadd.f32 %v5993, %v9126
        %v9128 = vpop.f32.mrf.mxu0
        %v9129 = vadd.f32 %v5989, %v9128
        %v9130 = vpop.f32.mrf.mxu0
        %v9131 = vadd.f32 %v5993, %v9130
        %9132 = vmatprep.mubr.bf16.mxu0 %v5457
        %9133 = vmatmul.mubr.bf16.gmra.mxu0 %v5456
        %v9134 = vpop.f32.mrf.mxu0
        %v9135 = vadd.f32 %v5989, %v9134
        %v9136 = vpop.f32.mrf.mxu0
        %v9137 = vadd.f32 %v5993, %v9136
        %v9138 = vpop.f32.mrf.mxu0
        %v9139 = vadd.f32 %v5989, %v9138
        %v9140 = vpop.f32.mrf.mxu0
        %v9141 = vadd.f32 %v5993, %v9140
        %9142 = vdwg.mxu0
        %9143 = vmatprep.subr.bf16.mxu0 %v7741
        %9144 = vmatpush1.bf16.msra.mxu0 %v7740
        %9145 = vmatprep.subr.bf16.mxu0 %v7733
        %9146 = vmatpush1.bf16.msra.mxu0 %v7732
        %9147 = vmatprep.subr.bf16.mxu0 %v7725
        %9148 = vmatpush1.bf16.msra.mxu0 %v7724
        %9149 = vmatprep.subr.bf16.mxu0 %v7717
        %9150 = vmatpush1.bf16.msra.mxu0 %v7716
        %9151 = vmatprep.subr.bf16.mxu0 %v7709
        %9152 = vmatpush1.bf16.msra.mxu0 %v7708
        %9153 = vmatprep.subr.bf16.mxu0 %v7701
        %9154 = vmatpush1.bf16.msra.mxu0 %v7700
        %9155 = vmatprep.subr.bf16.mxu0 %v7693
        %9156 = vmatpush1.bf16.msra.mxu0 %v7692
        %9157 = vmatprep.subr.bf16.mxu0 %v7685
        %9158 = vmatpush1.bf16.msra.mxu0 %v7684
        %9159 = vmatprep.subr.bf16.mxu0 %v7805
        %9160 = vmatpush2.bf16.msra.mxu0 %v7804
        %9161 = vmatprep.subr.bf16.mxu0 %v7797
        %9162 = vmatpush2.bf16.msra.mxu0 %v7796
        %9163 = vmatprep.subr.bf16.mxu0 %v7789
        %9164 = vmatpush2.bf16.msra.mxu0 %v7788
        %9165 = vmatprep.subr.bf16.mxu0 %v7781
        %9166 = vmatpush2.bf16.msra.mxu0 %v7780
        %9167 = vmatprep.subr.bf16.mxu0 %v7773
        %9168 = vmatpush2.bf16.msra.mxu0 %v7772
        %9169 = vmatprep.subr.bf16.mxu0 %v7765
        %9170 = vmatpush2.bf16.msra.mxu0 %v7764
        %9171 = vmatprep.subr.bf16.mxu0 %v7757
        %9172 = vmatpush2.bf16.msra.mxu0 %v7756
        %9173 = vmatprep.subr.bf16.mxu0 %v7749
        %9174 = vmatpush2.bf16.msra.mxu0 %v7748
        %9175 = vmatprep.mubr.bf16.mxu0 %v5403
        %9176 = vmatmul.mubr.bf16.gmra.mxu0 %v5402
        %v9177 = vpop.f32.mrf.mxu0
        %v9178 = vadd.f32 %v9065, %v9177
        %v9179 = vpop.f32.mrf.mxu0
        %v9180 = vadd.f32 %v9067, %v9179
        %v9181 = vpop.f32.mrf.mxu0
        %v9182 = vadd.f32 %v9069, %v9181
        %v9183 = vpop.f32.mrf.mxu0
        %v9184 = vadd.f32 %v9071, %v9183
        %9185 = vmatprep.mubr.bf16.mxu0 %v5411
        %9186 = vmatmul.mubr.bf16.gmra.mxu0 %v5410
        %v9187 = vpop.f32.mrf.mxu0
        %v9188 = vadd.f32 %v9075, %v9187
        %v9189 = vpop.f32.mrf.mxu0
        %v9190 = vadd.f32 %v9077, %v9189
        %v9191 = vpop.f32.mrf.mxu0
        %v9192 = vadd.f32 %v9079, %v9191
        %v9193 = vpop.f32.mrf.mxu0
        %v9194 = vadd.f32 %v9081, %v9193
        %9195 = vmatprep.mubr.bf16.mxu0 %v5419
        %9196 = vmatmul.mubr.bf16.gmra.mxu0 %v5418
        %v9197 = vpop.f32.mrf.mxu0
        %v9198 = vadd.f32 %v9085, %v9197
        %v9199 = vpop.f32.mrf.mxu0
        %v9200 = vadd.f32 %v9087, %v9199
        %v9201 = vpop.f32.mrf.mxu0
        %v9202 = vadd.f32 %v9089, %v9201
        %v9203 = vpop.f32.mrf.mxu0
        %v9204 = vadd.f32 %v9091, %v9203
        %9205 = vmatprep.mubr.bf16.mxu0 %v5427
        %9206 = vmatmul.mubr.bf16.gmra.mxu0 %v5426
        %v9207 = vpop.f32.mrf.mxu0
        %v9208 = vadd.f32 %v9095, %v9207
        %v9209 = vpop.f32.mrf.mxu0
        %v9210 = vadd.f32 %v9097, %v9209
        %v9211 = vpop.f32.mrf.mxu0
        %v9212 = vadd.f32 %v9099, %v9211
        %v9213 = vpop.f32.mrf.mxu0
        %v9214 = vadd.f32 %v9101, %v9213
        %9215 = vmatprep.mubr.bf16.mxu0 %v5435
        %9216 = vmatmul.mubr.bf16.gmra.mxu0 %v5434
        %v9217 = vpop.f32.mrf.mxu0
        %v9218 = vadd.f32 %v9105, %v9217
        %v9219 = vpop.f32.mrf.mxu0
        %v9220 = vadd.f32 %v9107, %v9219
        %v9221 = vpop.f32.mrf.mxu0
        %v9222 = vadd.f32 %v9109, %v9221
        %v9223 = vpop.f32.mrf.mxu0
        %v9224 = vadd.f32 %v9111, %v9223
        %9225 = vmatprep.mubr.bf16.mxu0 %v5443
        %9226 = vmatmul.mubr.bf16.gmra.mxu0 %v5442
        %v9227 = vpop.f32.mrf.mxu0
        %v9228 = vadd.f32 %v9115, %v9227
        %v9229 = vpop.f32.mrf.mxu0
        %v9230 = vadd.f32 %v9117, %v9229
        %v9231 = vpop.f32.mrf.mxu0
        %v9232 = vadd.f32 %v9119, %v9231
        %v9233 = vpop.f32.mrf.mxu0
        %v9234 = vadd.f32 %v9121, %v9233
        %9235 = vmatprep.mubr.bf16.mxu0 %v5451
        %9236 = vmatmul.mubr.bf16.gmra.mxu0 %v5450
        %v9237 = vpop.f32.mrf.mxu0
        %v9238 = vadd.f32 %v9125, %v9237
        %v9239 = vpop.f32.mrf.mxu0
        %v9240 = vadd.f32 %v9127, %v9239
        %v9241 = vpop.f32.mrf.mxu0
        %v9242 = vadd.f32 %v9129, %v9241
        %v9243 = vpop.f32.mrf.mxu0
        %v9244 = vadd.f32 %v9131, %v9243
        %9245 = vmatprep.mubr.bf16.mxu0 %v5459
        %9246 = vmatmul.mubr.bf16.gmra.mxu0 %v5458
        %v9247 = vpop.f32.mrf.mxu0
        %v9248 = vadd.f32 %v9135, %v9247
        %v9249 = vpop.f32.mrf.mxu0
        %v9250 = vadd.f32 %v9137, %v9249
        %v9251 = vpop.f32.mrf.mxu0
        %v9252 = vadd.f32 %v9139, %v9251
        %v9253 = vpop.f32.mrf.mxu0
        %v9254 = vadd.f32 %v9141, %v9253
        %9255 = vdwg.mxu0
        %9256 = vmatprep.subr.bf16.mxu0 %v7869
        %9257 = vmatpush1.bf16.msra.mxu0 %v7868
        %9258 = vmatprep.subr.bf16.mxu0 %v7861
        %9259 = vmatpush1.bf16.msra.mxu0 %v7860
        %9260 = vmatprep.subr.bf16.mxu0 %v7853
        %9261 = vmatpush1.bf16.msra.mxu0 %v7852
        %9262 = vmatprep.subr.bf16.mxu0 %v7845
        %9263 = vmatpush1.bf16.msra.mxu0 %v7844
        %9264 = vmatprep.subr.bf16.mxu0 %v7837
        %9265 = vmatpush1.bf16.msra.mxu0 %v7836
        %9266 = vmatprep.subr.bf16.mxu0 %v7829
        %9267 = vmatpush1.bf16.msra.mxu0 %v7828
        %9268 = vmatprep.subr.bf16.mxu0 %v7821
        %9269 = vmatpush1.bf16.msra.mxu0 %v7820
        %9270 = vmatprep.subr.bf16.mxu0 %v7813
        %9271 = vmatpush1.bf16.msra.mxu0 %v7812
        %9272 = vmatprep.subr.bf16.mxu0 %v7933
        %9273 = vmatpush2.bf16.msra.mxu0 %v7932
        %9274 = vmatprep.subr.bf16.mxu0 %v7925
        %9275 = vmatpush2.bf16.msra.mxu0 %v7924
        %9276 = vmatprep.subr.bf16.mxu0 %v7917
        %9277 = vmatpush2.bf16.msra.mxu0 %v7916
        %9278 = vmatprep.subr.bf16.mxu0 %v7909
        %9279 = vmatpush2.bf16.msra.mxu0 %v7908
        %9280 = vmatprep.subr.bf16.mxu0 %v7901
        %9281 = vmatpush2.bf16.msra.mxu0 %v7900
        %9282 = vmatprep.subr.bf16.mxu0 %v7893
        %9283 = vmatpush2.bf16.msra.mxu0 %v7892
        %9284 = vmatprep.subr.bf16.mxu0 %v7885
        %9285 = vmatpush2.bf16.msra.mxu0 %v7884
        %9286 = vmatprep.subr.bf16.mxu0 %v7877
        %9287 = vmatpush2.bf16.msra.mxu0 %v7876
        %9288 = vmatprep.mubr.bf16.mxu0 %v5405
        %9289 = vmatmul.mubr.bf16.gmra.mxu0 %v5404
        %v9290 = vpop.f32.mrf.mxu0
        %v9291 = vadd.f32 %v9178, %v9290
        %v9292 = vpop.f32.mrf.mxu0
        %v9293 = vadd.f32 %v9180, %v9292
        %v9294 = vpop.f32.mrf.mxu0
        %v9295 = vadd.f32 %v9182, %v9294
        %v9296 = vpop.f32.mrf.mxu0
        %v9297 = vadd.f32 %v9184, %v9296
        %9298 = vmatprep.mubr.bf16.mxu0 %v5413
        %9299 = vmatmul.mubr.bf16.gmra.mxu0 %v5412
        %v9300 = vpop.f32.mrf.mxu0
        %v9301 = vadd.f32 %v9188, %v9300
        %v9302 = vpop.f32.mrf.mxu0
        %v9303 = vadd.f32 %v9190, %v9302
        %v9304 = vpop.f32.mrf.mxu0
        %v9305 = vadd.f32 %v9192, %v9304
        %v9306 = vpop.f32.mrf.mxu0
        %v9307 = vadd.f32 %v9194, %v9306
        %9308 = vmatprep.mubr.bf16.mxu0 %v5421
        %9309 = vmatmul.mubr.bf16.gmra.mxu0 %v5420
        %v9310 = vpop.f32.mrf.mxu0
        %v9311 = vadd.f32 %v9198, %v9310
        %v9312 = vpop.f32.mrf.mxu0
        %v9313 = vadd.f32 %v9200, %v9312
        %v9314 = vpop.f32.mrf.mxu0
        %v9315 = vadd.f32 %v9202, %v9314
        %v9316 = vpop.f32.mrf.mxu0
        %v9317 = vadd.f32 %v9204, %v9316
        %9318 = vmatprep.mubr.bf16.mxu0 %v5429
        %9319 = vmatmul.mubr.bf16.gmra.mxu0 %v5428
        %v9320 = vpop.f32.mrf.mxu0
        %v9321 = vadd.f32 %v9208, %v9320
        %v9322 = vpop.f32.mrf.mxu0
        %v9323 = vadd.f32 %v9210, %v9322
        %v9324 = vpop.f32.mrf.mxu0
        %v9325 = vadd.f32 %v9212, %v9324
        %v9326 = vpop.f32.mrf.mxu0
        %v9327 = vadd.f32 %v9214, %v9326
        %9328 = vmatprep.mubr.bf16.mxu0 %v5437
        %9329 = vmatmul.mubr.bf16.gmra.mxu0 %v5436
        %v9330 = vpop.f32.mrf.mxu0
        %v9331 = vadd.f32 %v9218, %v9330
        %v9332 = vpop.f32.mrf.mxu0
        %v9333 = vadd.f32 %v9220, %v9332
        %v9334 = vpop.f32.mrf.mxu0
        %v9335 = vadd.f32 %v9222, %v9334
        %v9336 = vpop.f32.mrf.mxu0
        %v9337 = vadd.f32 %v9224, %v9336
        %9338 = vmatprep.mubr.bf16.mxu0 %v5445
        %9339 = vmatmul.mubr.bf16.gmra.mxu0 %v5444
        %v9340 = vpop.f32.mrf.mxu0
        %v9341 = vadd.f32 %v9228, %v9340
        %v9342 = vpop.f32.mrf.mxu0
        %v9343 = vadd.f32 %v9230, %v9342
        %v9344 = vpop.f32.mrf.mxu0
        %v9345 = vadd.f32 %v9232, %v9344
        %v9346 = vpop.f32.mrf.mxu0
        %v9347 = vadd.f32 %v9234, %v9346
        %9348 = vmatprep.mubr.bf16.mxu0 %v5453
        %9349 = vmatmul.mubr.bf16.gmra.mxu0 %v5452
        %v9350 = vpop.f32.mrf.mxu0
        %v9351 = vadd.f32 %v9238, %v9350
        %v9352 = vpop.f32.mrf.mxu0
        %v9353 = vadd.f32 %v9240, %v9352
        %v9354 = vpop.f32.mrf.mxu0
        %v9355 = vadd.f32 %v9242, %v9354
        %v9356 = vpop.f32.mrf.mxu0
        %v9357 = vadd.f32 %v9244, %v9356
        %9358 = vmatprep.mubr.bf16.mxu0 %v5461
        %9359 = vmatmul.mubr.bf16.gmra.mxu0 %v5460
        %v9360 = vpop.f32.mrf.mxu0
        %v9361 = vadd.f32 %v9248, %v9360
        %v9362 = vpop.f32.mrf.mxu0
        %v9363 = vadd.f32 %v9250, %v9362
        %v9364 = vpop.f32.mrf.mxu0
        %v9365 = vadd.f32 %v9252, %v9364
        %v9366 = vpop.f32.mrf.mxu0
        %v9367 = vadd.f32 %v9254, %v9366
        %9368 = vdwg.mxu0
        %9369 = vmatprep.subr.bf16.mxu0 %v7997
        %9370 = vmatpush1.bf16.msra.mxu0 %v7996
        %9371 = vmatprep.subr.bf16.mxu0 %v7989
        %9372 = vmatpush1.bf16.msra.mxu0 %v7988
        %9373 = vmatprep.subr.bf16.mxu0 %v7981
        %9374 = vmatpush1.bf16.msra.mxu0 %v7980
        %9375 = vmatprep.subr.bf16.mxu0 %v7973
        %9376 = vmatpush1.bf16.msra.mxu0 %v7972
        %9377 = vmatprep.subr.bf16.mxu0 %v7965
        %9378 = vmatpush1.bf16.msra.mxu0 %v7964
        %9379 = vmatprep.subr.bf16.mxu0 %v7957
        %9380 = vmatpush1.bf16.msra.mxu0 %v7956
        %9381 = vmatprep.subr.bf16.mxu0 %v7949
        %9382 = vmatpush1.bf16.msra.mxu0 %v7948
        %9383 = vmatprep.subr.bf16.mxu0 %v7941
        %9384 = vmatpush1.bf16.msra.mxu0 %v7940
        %9385 = vmatprep.subr.bf16.mxu0 %v8061
        %9386 = vmatpush2.bf16.msra.mxu0 %v8060
        %9387 = vmatprep.subr.bf16.mxu0 %v8053
        %9388 = vmatpush2.bf16.msra.mxu0 %v8052
        %9389 = vmatprep.subr.bf16.mxu0 %v8045
        %9390 = vmatpush2.bf16.msra.mxu0 %v8044
        %9391 = vmatprep.subr.bf16.mxu0 %v8037
        %9392 = vmatpush2.bf16.msra.mxu0 %v8036
        %9393 = vmatprep.subr.bf16.mxu0 %v8029
        %9394 = vmatpush2.bf16.msra.mxu0 %v8028
        %9395 = vmatprep.subr.bf16.mxu0 %v8021
        %9396 = vmatpush2.bf16.msra.mxu0 %v8020
        %9397 = vmatprep.subr.bf16.mxu0 %v8013
        %9398 = vmatpush2.bf16.msra.mxu0 %v8012
        %9399 = vmatprep.subr.bf16.mxu0 %v8005
        %9400 = vmatpush2.bf16.msra.mxu0 %v8004
        %9401 = vmatprep.mubr.bf16.mxu0 %v5407
        %9402 = vmatmul.mubr.bf16.gmra.mxu0 %v5406
        %v9403 = vpop.f32.mrf.mxu0
        %v9404 = vadd.f32 %v9291, %v9403
        %v9405 = vpop.f32.mrf.mxu0
        %v9406 = vadd.f32 %v9293, %v9405
        %v9407 = vpop.f32.mrf.mxu0
        %v9408 = vadd.f32 %v9295, %v9407
        %v9409 = vpop.f32.mrf.mxu0
        %v9410 = vadd.f32 %v9297, %v9409
        %9411 = vmatprep.mubr.bf16.mxu0 %v5415
        %9412 = vmatmul.mubr.bf16.gmra.mxu0 %v5414
        %v9413 = vpop.f32.mrf.mxu0
        %v9414 = vadd.f32 %v9301, %v9413
        %v9415 = vpop.f32.mrf.mxu0
        %v9416 = vadd.f32 %v9303, %v9415
        %v9417 = vpop.f32.mrf.mxu0
        %v9418 = vadd.f32 %v9305, %v9417
        %v9419 = vpop.f32.mrf.mxu0
        %v9420 = vadd.f32 %v9307, %v9419
        %9421 = vmatprep.mubr.bf16.mxu0 %v5423
        %9422 = vmatmul.mubr.bf16.gmra.mxu0 %v5422
        %v9423 = vpop.f32.mrf.mxu0
        %v9424 = vadd.f32 %v9311, %v9423
        %v9425 = vpop.f32.mrf.mxu0
        %v9426 = vadd.f32 %v9313, %v9425
        %v9427 = vpop.f32.mrf.mxu0
        %v9428 = vadd.f32 %v9315, %v9427
        %v9429 = vpop.f32.mrf.mxu0
        %v9430 = vadd.f32 %v9317, %v9429
        %9431 = vmatprep.mubr.bf16.mxu0 %v5431
        %9432 = vmatmul.mubr.bf16.gmra.mxu0 %v5430
        %v9433 = vpop.f32.mrf.mxu0
        %v9434 = vadd.f32 %v9321, %v9433
        %v9435 = vpop.f32.mrf.mxu0
        %v9436 = vadd.f32 %v9323, %v9435
        %v9437 = vpop.f32.mrf.mxu0
        %v9438 = vadd.f32 %v9325, %v9437
        %v9439 = vpop.f32.mrf.mxu0
        %v9440 = vadd.f32 %v9327, %v9439
        %9441 = vmatprep.mubr.bf16.mxu0 %v5439
        %9442 = vmatmul.mubr.bf16.gmra.mxu0 %v5438
        %v9443 = vpop.f32.mrf.mxu0
        %v9444 = vadd.f32 %v9331, %v9443
        %v9445 = vpop.f32.mrf.mxu0
        %v9446 = vadd.f32 %v9333, %v9445
        %v9447 = vpop.f32.mrf.mxu0
        %v9448 = vadd.f32 %v9335, %v9447
        %v9449 = vpop.f32.mrf.mxu0
        %v9450 = vadd.f32 %v9337, %v9449
        %9451 = vmatprep.mubr.bf16.mxu0 %v5447
        %9452 = vmatmul.mubr.bf16.gmra.mxu0 %v5446
        %v9453 = vpop.f32.mrf.mxu0
        %v9454 = vadd.f32 %v9341, %v9453
        %v9455 = vpop.f32.mrf.mxu0
        %v9456 = vadd.f32 %v9343, %v9455
        %v9457 = vpop.f32.mrf.mxu0
        %v9458 = vadd.f32 %v9345, %v9457
        %v9459 = vpop.f32.mrf.mxu0
        %v9460 = vadd.f32 %v9347, %v9459
        %9461 = vmatprep.mubr.bf16.mxu0 %v5455
        %9462 = vmatmul.mubr.bf16.gmra.mxu0 %v5454
        %v9463 = vpop.f32.mrf.mxu0
        %v9464 = vadd.f32 %v9351, %v9463
        %v9465 = vpop.f32.mrf.mxu0
        %v9466 = vadd.f32 %v9353, %v9465
        %v9467 = vpop.f32.mrf.mxu0
        %v9468 = vadd.f32 %v9355, %v9467
        %v9469 = vpop.f32.mrf.mxu0
        %v9470 = vadd.f32 %v9357, %v9469
        %9471 = vmatprep.mubr.bf16.mxu0 %v5463
        %9472 = vmatmul.mubr.bf16.gmra.mxu0 %v5462
        %v9473 = vpop.f32.mrf.mxu0
        %v9474 = vadd.f32 %v9361, %v9473
        %v9475 = vpop.f32.mrf.mxu0
        %v9476 = vadd.f32 %v9363, %v9475
        %v9477 = vpop.f32.mrf.mxu0
        %v9478 = vadd.f32 %v9365, %v9477
        %v9479 = vpop.f32.mrf.mxu0
        %v9480 = vadd.f32 %v9367, %v9479
        %9481 = vdwg.mxu0
        %9482 = vmatprep.subr.bf16.mxu0 %v7615
        %9483 = vmatpush1.bf16.msra.mxu0 %v7614
        %9484 = vmatprep.subr.bf16.mxu0 %v7607
        %9485 = vmatpush1.bf16.msra.mxu0 %v7606
        %9486 = vmatprep.subr.bf16.mxu0 %v7599
        %9487 = vmatpush1.bf16.msra.mxu0 %v7598
        %9488 = vmatprep.subr.bf16.mxu0 %v7591
        %9489 = vmatpush1.bf16.msra.mxu0 %v7590
        %9490 = vmatprep.subr.bf16.mxu0 %v7583
        %9491 = vmatpush1.bf16.msra.mxu0 %v7582
        %9492 = vmatprep.subr.bf16.mxu0 %v7575
        %9493 = vmatpush1.bf16.msra.mxu0 %v7574
        %9494 = vmatprep.subr.bf16.mxu0 %v7567
        %9495 = vmatpush1.bf16.msra.mxu0 %v7566
        %9496 = vmatprep.subr.bf16.mxu0 %v7559
        %9497 = vmatpush1.bf16.msra.mxu0 %v7558
        %9498 = vmatprep.subr.bf16.mxu0 %v7679
        %9499 = vmatpush2.bf16.msra.mxu0 %v7678
        %9500 = vmatprep.subr.bf16.mxu0 %v7671
        %9501 = vmatpush2.bf16.msra.mxu0 %v7670
        %9502 = vmatprep.subr.bf16.mxu0 %v7663
        %9503 = vmatpush2.bf16.msra.mxu0 %v7662
        %9504 = vmatprep.subr.bf16.mxu0 %v7655
        %9505 = vmatpush2.bf16.msra.mxu0 %v7654
        %9506 = vmatprep.subr.bf16.mxu0 %v7647
        %9507 = vmatpush2.bf16.msra.mxu0 %v7646
        %9508 = vmatprep.subr.bf16.mxu0 %v7639
        %9509 = vmatpush2.bf16.msra.mxu0 %v7638
        %9510 = vmatprep.subr.bf16.mxu0 %v7631
        %9511 = vmatpush2.bf16.msra.mxu0 %v7630
        %9512 = vmatprep.subr.bf16.mxu0 %v7623
        %9513 = vmatpush2.bf16.msra.mxu0 %v7622
        %9514 = vmatprep.mubr.bf16.mxu0 %v5401
        %9515 = vmatmul.mubr.bf16.gmra.mxu0 %v5400
        %v9516 = vpop.f32.mrf.mxu0
        %v9517 = vadd.f32 %v5997, %v9516
        %v9518 = vpop.f32.mrf.mxu0
        %v9519 = vadd.f32 %v6001, %v9518
        %v9520 = vpop.f32.mrf.mxu0
        %v9521 = vadd.f32 %v5997, %v9520
        %v9522 = vpop.f32.mrf.mxu0
        %v9523 = vadd.f32 %v6001, %v9522
        %9524 = vmatprep.mubr.bf16.mxu0 %v5409
        %9525 = vmatmul.mubr.bf16.gmra.mxu0 %v5408
        %v9526 = vpop.f32.mrf.mxu0
        %v9527 = vadd.f32 %v5997, %v9526
        %v9528 = vpop.f32.mrf.mxu0
        %v9529 = vadd.f32 %v6001, %v9528
        %v9530 = vpop.f32.mrf.mxu0
        %v9531 = vadd.f32 %v5997, %v9530
        %v9532 = vpop.f32.mrf.mxu0
        %v9533 = vadd.f32 %v6001, %v9532
        %9534 = vmatprep.mubr.bf16.mxu0 %v5417
        %9535 = vmatmul.mubr.bf16.gmra.mxu0 %v5416
        %v9536 = vpop.f32.mrf.mxu0
        %v9537 = vadd.f32 %v5997, %v9536
        %v9538 = vpop.f32.mrf.mxu0
        %v9539 = vadd.f32 %v6001, %v9538
        %v9540 = vpop.f32.mrf.mxu0
        %v9541 = vadd.f32 %v5997, %v9540
        %v9542 = vpop.f32.mrf.mxu0
        %v9543 = vadd.f32 %v6001, %v9542
        %9544 = vmatprep.mubr.bf16.mxu0 %v5425
        %9545 = vmatmul.mubr.bf16.gmra.mxu0 %v5424
        %v9546 = vpop.f32.mrf.mxu0
        %v9547 = vadd.f32 %v5997, %v9546
        %v9548 = vpop.f32.mrf.mxu0
        %v9549 = vadd.f32 %v6001, %v9548
        %v9550 = vpop.f32.mrf.mxu0
        %v9551 = vadd.f32 %v5997, %v9550
        %v9552 = vpop.f32.mrf.mxu0
        %v9553 = vadd.f32 %v6001, %v9552
        %9554 = vmatprep.mubr.bf16.mxu0 %v5433
        %9555 = vmatmul.mubr.bf16.gmra.mxu0 %v5432
        %v9556 = vpop.f32.mrf.mxu0
        %v9557 = vadd.f32 %v5997, %v9556
        %v9558 = vpop.f32.mrf.mxu0
        %v9559 = vadd.f32 %v6001, %v9558
        %v9560 = vpop.f32.mrf.mxu0
        %v9561 = vadd.f32 %v5997, %v9560
        %v9562 = vpop.f32.mrf.mxu0
        %v9563 = vadd.f32 %v6001, %v9562
        %9564 = vmatprep.mubr.bf16.mxu0 %v5441
        %9565 = vmatmul.mubr.bf16.gmra.mxu0 %v5440
        %v9566 = vpop.f32.mrf.mxu0
        %v9567 = vadd.f32 %v5997, %v9566
        %v9568 = vpop.f32.mrf.mxu0
        %v9569 = vadd.f32 %v6001, %v9568
        %v9570 = vpop.f32.mrf.mxu0
        %v9571 = vadd.f32 %v5997, %v9570
        %v9572 = vpop.f32.mrf.mxu0
        %v9573 = vadd.f32 %v6001, %v9572
        %9574 = vmatprep.mubr.bf16.mxu0 %v5449
        %9575 = vmatmul.mubr.bf16.gmra.mxu0 %v5448
        %v9576 = vpop.f32.mrf.mxu0
        %v9577 = vadd.f32 %v5997, %v9576
        %v9578 = vpop.f32.mrf.mxu0
        %v9579 = vadd.f32 %v6001, %v9578
        %v9580 = vpop.f32.mrf.mxu0
        %v9581 = vadd.f32 %v5997, %v9580
        %v9582 = vpop.f32.mrf.mxu0
        %v9583 = vadd.f32 %v6001, %v9582
        %9584 = vmatprep.mubr.bf16.mxu0 %v5457
        %9585 = vmatmul.mubr.bf16.gmra.mxu0 %v5456
        %v9586 = vpop.f32.mrf.mxu0
        %v9587 = vadd.f32 %v5997, %v9586
        %v9588 = vpop.f32.mrf.mxu0
        %v9589 = vadd.f32 %v6001, %v9588
        %v9590 = vpop.f32.mrf.mxu0
        %v9591 = vadd.f32 %v5997, %v9590
        %v9592 = vpop.f32.mrf.mxu0
        %v9593 = vadd.f32 %v6001, %v9592
        %9594 = vdwg.mxu0
        %9595 = vmatprep.subr.bf16.mxu0 %v7743
        %9596 = vmatpush1.bf16.msra.mxu0 %v7742
        %9597 = vmatprep.subr.bf16.mxu0 %v7735
        %9598 = vmatpush1.bf16.msra.mxu0 %v7734
        %9599 = vmatprep.subr.bf16.mxu0 %v7727
        %9600 = vmatpush1.bf16.msra.mxu0 %v7726
        %9601 = vmatprep.subr.bf16.mxu0 %v7719
        %9602 = vmatpush1.bf16.msra.mxu0 %v7718
        %9603 = vmatprep.subr.bf16.mxu0 %v7711
        %9604 = vmatpush1.bf16.msra.mxu0 %v7710
        %9605 = vmatprep.subr.bf16.mxu0 %v7703
        %9606 = vmatpush1.bf16.msra.mxu0 %v7702
        %9607 = vmatprep.subr.bf16.mxu0 %v7695
        %9608 = vmatpush1.bf16.msra.mxu0 %v7694
        %9609 = vmatprep.subr.bf16.mxu0 %v7687
        %9610 = vmatpush1.bf16.msra.mxu0 %v7686
        %9611 = vmatprep.subr.bf16.mxu0 %v7807
        %9612 = vmatpush2.bf16.msra.mxu0 %v7806
        %9613 = vmatprep.subr.bf16.mxu0 %v7799
        %9614 = vmatpush2.bf16.msra.mxu0 %v7798
        %9615 = vmatprep.subr.bf16.mxu0 %v7791
        %9616 = vmatpush2.bf16.msra.mxu0 %v7790
        %9617 = vmatprep.subr.bf16.mxu0 %v7783
        %9618 = vmatpush2.bf16.msra.mxu0 %v7782
        %9619 = vmatprep.subr.bf16.mxu0 %v7775
        %9620 = vmatpush2.bf16.msra.mxu0 %v7774
        %9621 = vmatprep.subr.bf16.mxu0 %v7767
        %9622 = vmatpush2.bf16.msra.mxu0 %v7766
        %9623 = vmatprep.subr.bf16.mxu0 %v7759
        %9624 = vmatpush2.bf16.msra.mxu0 %v7758
        %9625 = vmatprep.subr.bf16.mxu0 %v7751
        %9626 = vmatpush2.bf16.msra.mxu0 %v7750
        %9627 = vmatprep.mubr.bf16.mxu0 %v5403
        %9628 = vmatmul.mubr.bf16.gmra.mxu0 %v5402
        %v9629 = vpop.f32.mrf.mxu0
        %v9630 = vadd.f32 %v9517, %v9629
        %v9631 = vpop.f32.mrf.mxu0
        %v9632 = vadd.f32 %v9519, %v9631
        %v9633 = vpop.f32.mrf.mxu0
        %v9634 = vadd.f32 %v9521, %v9633
        %v9635 = vpop.f32.mrf.mxu0
        %v9636 = vadd.f32 %v9523, %v9635
        %9637 = vmatprep.mubr.bf16.mxu0 %v5411
        %9638 = vmatmul.mubr.bf16.gmra.mxu0 %v5410
        %v9639 = vpop.f32.mrf.mxu0
        %v9640 = vadd.f32 %v9527, %v9639
        %v9641 = vpop.f32.mrf.mxu0
        %v9642 = vadd.f32 %v9529, %v9641
        %v9643 = vpop.f32.mrf.mxu0
        %v9644 = vadd.f32 %v9531, %v9643
        %v9645 = vpop.f32.mrf.mxu0
        %v9646 = vadd.f32 %v9533, %v9645
        %9647 = vmatprep.mubr.bf16.mxu0 %v5419
        %9648 = vmatmul.mubr.bf16.gmra.mxu0 %v5418
        %v9649 = vpop.f32.mrf.mxu0
        %v9650 = vadd.f32 %v9537, %v9649
        %v9651 = vpop.f32.mrf.mxu0
        %v9652 = vadd.f32 %v9539, %v9651
        %v9653 = vpop.f32.mrf.mxu0
        %v9654 = vadd.f32 %v9541, %v9653
        %v9655 = vpop.f32.mrf.mxu0
        %v9656 = vadd.f32 %v9543, %v9655
        %9657 = vmatprep.mubr.bf16.mxu0 %v5427
        %9658 = vmatmul.mubr.bf16.gmra.mxu0 %v5426
        %v9659 = vpop.f32.mrf.mxu0
        %v9660 = vadd.f32 %v9547, %v9659
        %v9661 = vpop.f32.mrf.mxu0
        %v9662 = vadd.f32 %v9549, %v9661
        %v9663 = vpop.f32.mrf.mxu0
        %v9664 = vadd.f32 %v9551, %v9663
        %v9665 = vpop.f32.mrf.mxu0
        %v9666 = vadd.f32 %v9553, %v9665
        %9667 = vmatprep.mubr.bf16.mxu0 %v5435
        %9668 = vmatmul.mubr.bf16.gmra.mxu0 %v5434
        %v9669 = vpop.f32.mrf.mxu0
        %v9670 = vadd.f32 %v9557, %v9669
        %v9671 = vpop.f32.mrf.mxu0
        %v9672 = vadd.f32 %v9559, %v9671
        %v9673 = vpop.f32.mrf.mxu0
        %v9674 = vadd.f32 %v9561, %v9673
        %v9675 = vpop.f32.mrf.mxu0
        %v9676 = vadd.f32 %v9563, %v9675
        %9677 = vmatprep.mubr.bf16.mxu0 %v5443
        %9678 = vmatmul.mubr.bf16.gmra.mxu0 %v5442
        %v9679 = vpop.f32.mrf.mxu0
        %v9680 = vadd.f32 %v9567, %v9679
        %v9681 = vpop.f32.mrf.mxu0
        %v9682 = vadd.f32 %v9569, %v9681
        %v9683 = vpop.f32.mrf.mxu0
        %v9684 = vadd.f32 %v9571, %v9683
        %v9685 = vpop.f32.mrf.mxu0
        %v9686 = vadd.f32 %v9573, %v9685
        %9687 = vmatprep.mubr.bf16.mxu0 %v5451
        %9688 = vmatmul.mubr.bf16.gmra.mxu0 %v5450
        %v9689 = vpop.f32.mrf.mxu0
        %v9690 = vadd.f32 %v9577, %v9689
        %v9691 = vpop.f32.mrf.mxu0
        %v9692 = vadd.f32 %v9579, %v9691
        %v9693 = vpop.f32.mrf.mxu0
        %v9694 = vadd.f32 %v9581, %v9693
        %v9695 = vpop.f32.mrf.mxu0
        %v9696 = vadd.f32 %v9583, %v9695
        %9697 = vmatprep.mubr.bf16.mxu0 %v5459
        %9698 = vmatmul.mubr.bf16.gmra.mxu0 %v5458
        %v9699 = vpop.f32.mrf.mxu0
        %v9700 = vadd.f32 %v9587, %v9699
        %v9701 = vpop.f32.mrf.mxu0
        %v9702 = vadd.f32 %v9589, %v9701
        %v9703 = vpop.f32.mrf.mxu0
        %v9704 = vadd.f32 %v9591, %v9703
        %v9705 = vpop.f32.mrf.mxu0
        %v9706 = vadd.f32 %v9593, %v9705
        %9707 = vdwg.mxu0
        %9708 = vmatprep.subr.bf16.mxu0 %v7871
        %9709 = vmatpush1.bf16.msra.mxu0 %v7870
        %9710 = vmatprep.subr.bf16.mxu0 %v7863
        %9711 = vmatpush1.bf16.msra.mxu0 %v7862
        %9712 = vmatprep.subr.bf16.mxu0 %v7855
        %9713 = vmatpush1.bf16.msra.mxu0 %v7854
        %9714 = vmatprep.subr.bf16.mxu0 %v7847
        %9715 = vmatpush1.bf16.msra.mxu0 %v7846
        %9716 = vmatprep.subr.bf16.mxu0 %v7839
        %9717 = vmatpush1.bf16.msra.mxu0 %v7838
        %9718 = vmatprep.subr.bf16.mxu0 %v7831
        %9719 = vmatpush1.bf16.msra.mxu0 %v7830
        %9720 = vmatprep.subr.bf16.mxu0 %v7823
        %9721 = vmatpush1.bf16.msra.mxu0 %v7822
        %9722 = vmatprep.subr.bf16.mxu0 %v7815
        %9723 = vmatpush1.bf16.msra.mxu0 %v7814
        %9724 = vmatprep.subr.bf16.mxu0 %v7935
        %9725 = vmatpush2.bf16.msra.mxu0 %v7934
        %9726 = vmatprep.subr.bf16.mxu0 %v7927
        %9727 = vmatpush2.bf16.msra.mxu0 %v7926
        %9728 = vmatprep.subr.bf16.mxu0 %v7919
        %9729 = vmatpush2.bf16.msra.mxu0 %v7918
        %9730 = vmatprep.subr.bf16.mxu0 %v7911
        %9731 = vmatpush2.bf16.msra.mxu0 %v7910
        %9732 = vmatprep.subr.bf16.mxu0 %v7903
        %9733 = vmatpush2.bf16.msra.mxu0 %v7902
        %9734 = vmatprep.subr.bf16.mxu0 %v7895
        %9735 = vmatpush2.bf16.msra.mxu0 %v7894
        %9736 = vmatprep.subr.bf16.mxu0 %v7887
        %9737 = vmatpush2.bf16.msra.mxu0 %v7886
        %9738 = vmatprep.subr.bf16.mxu0 %v7879
        %9739 = vmatpush2.bf16.msra.mxu0 %v7878
        %9740 = vmatprep.mubr.bf16.mxu0 %v5405
        %9741 = vmatmul.mubr.bf16.gmra.mxu0 %v5404
        %v9742 = vpop.f32.mrf.mxu0
        %v9743 = vadd.f32 %v9630, %v9742
        %v9744 = vpop.f32.mrf.mxu0
        %v9745 = vadd.f32 %v9632, %v9744
        %v9746 = vpop.f32.mrf.mxu0
        %v9747 = vadd.f32 %v9634, %v9746
        %v9748 = vpop.f32.mrf.mxu0
        %v9749 = vadd.f32 %v9636, %v9748
        %9750 = vmatprep.mubr.bf16.mxu0 %v5413
        %9751 = vmatmul.mubr.bf16.gmra.mxu0 %v5412
        %v9752 = vpop.f32.mrf.mxu0
        %v9753 = vadd.f32 %v9640, %v9752
        %v9754 = vpop.f32.mrf.mxu0
        %v9755 = vadd.f32 %v9642, %v9754
        %v9756 = vpop.f32.mrf.mxu0
        %v9757 = vadd.f32 %v9644, %v9756
        %v9758 = vpop.f32.mrf.mxu0
        %v9759 = vadd.f32 %v9646, %v9758
        %9760 = vmatprep.mubr.bf16.mxu0 %v5421
        %9761 = vmatmul.mubr.bf16.gmra.mxu0 %v5420
        %v9762 = vpop.f32.mrf.mxu0
        %v9763 = vadd.f32 %v9650, %v9762
        %v9764 = vpop.f32.mrf.mxu0
        %v9765 = vadd.f32 %v9652, %v9764
        %v9766 = vpop.f32.mrf.mxu0
        %v9767 = vadd.f32 %v9654, %v9766
        %v9768 = vpop.f32.mrf.mxu0
        %v9769 = vadd.f32 %v9656, %v9768
        %9770 = vmatprep.mubr.bf16.mxu0 %v5429
        %9771 = vmatmul.mubr.bf16.gmra.mxu0 %v5428
        %v9772 = vpop.f32.mrf.mxu0
        %v9773 = vadd.f32 %v9660, %v9772
        %v9774 = vpop.f32.mrf.mxu0
        %v9775 = vadd.f32 %v9662, %v9774
        %v9776 = vpop.f32.mrf.mxu0
        %v9777 = vadd.f32 %v9664, %v9776
        %v9778 = vpop.f32.mrf.mxu0
        %v9779 = vadd.f32 %v9666, %v9778
        %9780 = vmatprep.mubr.bf16.mxu0 %v5437
        %9781 = vmatmul.mubr.bf16.gmra.mxu0 %v5436
        %v9782 = vpop.f32.mrf.mxu0
        %v9783 = vadd.f32 %v9670, %v9782
        %v9784 = vpop.f32.mrf.mxu0
        %v9785 = vadd.f32 %v9672, %v9784
        %v9786 = vpop.f32.mrf.mxu0
        %v9787 = vadd.f32 %v9674, %v9786
        %v9788 = vpop.f32.mrf.mxu0
        %v9789 = vadd.f32 %v9676, %v9788
        %9790 = vmatprep.mubr.bf16.mxu0 %v5445
        %9791 = vmatmul.mubr.bf16.gmra.mxu0 %v5444
        %v9792 = vpop.f32.mrf.mxu0
        %v9793 = vadd.f32 %v9680, %v9792
        %v9794 = vpop.f32.mrf.mxu0
        %v9795 = vadd.f32 %v9682, %v9794
        %v9796 = vpop.f32.mrf.mxu0
        %v9797 = vadd.f32 %v9684, %v9796
        %v9798 = vpop.f32.mrf.mxu0
        %v9799 = vadd.f32 %v9686, %v9798
        %9800 = vmatprep.mubr.bf16.mxu0 %v5453
        %9801 = vmatmul.mubr.bf16.gmra.mxu0 %v5452
        %v9802 = vpop.f32.mrf.mxu0
        %v9803 = vadd.f32 %v9690, %v9802
        %v9804 = vpop.f32.mrf.mxu0
        %v9805 = vadd.f32 %v9692, %v9804
        %v9806 = vpop.f32.mrf.mxu0
        %v9807 = vadd.f32 %v9694, %v9806
        %v9808 = vpop.f32.mrf.mxu0
        %v9809 = vadd.f32 %v9696, %v9808
        %9810 = vmatprep.mubr.bf16.mxu0 %v5461
        %9811 = vmatmul.mubr.bf16.gmra.mxu0 %v5460
        %v9812 = vpop.f32.mrf.mxu0
        %v9813 = vadd.f32 %v9700, %v9812
        %v9814 = vpop.f32.mrf.mxu0
        %v9815 = vadd.f32 %v9702, %v9814
        %v9816 = vpop.f32.mrf.mxu0
        %v9817 = vadd.f32 %v9704, %v9816
        %v9818 = vpop.f32.mrf.mxu0
        %v9819 = vadd.f32 %v9706, %v9818
        %9820 = vdwg.mxu0
        %9821 = vmatprep.subr.bf16.mxu0 %v7999
        %9822 = vmatpush1.bf16.msra.mxu0 %v7998
        %9823 = vmatprep.subr.bf16.mxu0 %v7991
        %9824 = vmatpush1.bf16.msra.mxu0 %v7990
        %9825 = vmatprep.subr.bf16.mxu0 %v7983
        %9826 = vmatpush1.bf16.msra.mxu0 %v7982
        %9827 = vmatprep.subr.bf16.mxu0 %v7975
        %9828 = vmatpush1.bf16.msra.mxu0 %v7974
        %9829 = vmatprep.subr.bf16.mxu0 %v7967
        %9830 = vmatpush1.bf16.msra.mxu0 %v7966
        %9831 = vmatprep.subr.bf16.mxu0 %v7959
        %9832 = vmatpush1.bf16.msra.mxu0 %v7958
        %9833 = vmatprep.subr.bf16.mxu0 %v7951
        %9834 = vmatpush1.bf16.msra.mxu0 %v7950
        %9835 = vmatprep.subr.bf16.mxu0 %v7943
        %9836 = vmatpush1.bf16.msra.mxu0 %v7942
        %9837 = vmatprep.subr.bf16.mxu0 %v8063
        %9838 = vmatpush2.bf16.msra.mxu0 %v8062
        %9839 = vmatprep.subr.bf16.mxu0 %v8055
        %9840 = vmatpush2.bf16.msra.mxu0 %v8054
        %9841 = vmatprep.subr.bf16.mxu0 %v8047
        %9842 = vmatpush2.bf16.msra.mxu0 %v8046
        %9843 = vmatprep.subr.bf16.mxu0 %v8039
        %9844 = vmatpush2.bf16.msra.mxu0 %v8038
        %9845 = vmatprep.subr.bf16.mxu0 %v8031
        %9846 = vmatpush2.bf16.msra.mxu0 %v8030
        %9847 = vmatprep.subr.bf16.mxu0 %v8023
        %9848 = vmatpush2.bf16.msra.mxu0 %v8022
        %9849 = vmatprep.subr.bf16.mxu0 %v8015
        %9850 = vmatpush2.bf16.msra.mxu0 %v8014
        %9851 = vmatprep.subr.bf16.mxu0 %v8007
        %9852 = vmatpush2.bf16.msra.mxu0 %v8006
        %9853 = vmatprep.mubr.bf16.mxu0 %v5407
        %9854 = vmatmul.mubr.bf16.gmra.mxu0 %v5406
        %v9855 = vpop.f32.mrf.mxu0
        %v9856 = vadd.f32 %v9743, %v9855
        %v9857 = vpop.f32.mrf.mxu0
        %v9858 = vadd.f32 %v9745, %v9857
        %v9859 = vpop.f32.mrf.mxu0
        %v9860 = vadd.f32 %v9747, %v9859
        %v9861 = vpop.f32.mrf.mxu0
        %v9862 = vadd.f32 %v9749, %v9861
        %9863 = vmatprep.mubr.bf16.mxu0 %v5415
        %9864 = vmatmul.mubr.bf16.gmra.mxu0 %v5414
        %v9865 = vpop.f32.mrf.mxu0
        %v9866 = vadd.f32 %v9753, %v9865
        %v9867 = vpop.f32.mrf.mxu0
        %v9868 = vadd.f32 %v9755, %v9867
        %v9869 = vpop.f32.mrf.mxu0
        %v9870 = vadd.f32 %v9757, %v9869
        %v9871 = vpop.f32.mrf.mxu0
        %v9872 = vadd.f32 %v9759, %v9871
        %9873 = vmatprep.mubr.bf16.mxu0 %v5423
        %9874 = vmatmul.mubr.bf16.gmra.mxu0 %v5422
        %v9875 = vpop.f32.mrf.mxu0
        %v9876 = vadd.f32 %v9763, %v9875
        %v9877 = vpop.f32.mrf.mxu0
        %v9878 = vadd.f32 %v9765, %v9877
        %v9879 = vpop.f32.mrf.mxu0
        %v9880 = vadd.f32 %v9767, %v9879
        %v9881 = vpop.f32.mrf.mxu0
        %v9882 = vadd.f32 %v9769, %v9881
        %9883 = vmatprep.mubr.bf16.mxu0 %v5431
        %9884 = vmatmul.mubr.bf16.gmra.mxu0 %v5430
        %v9885 = vpop.f32.mrf.mxu0
        %v9886 = vadd.f32 %v9773, %v9885
        %v9887 = vpop.f32.mrf.mxu0
        %v9888 = vadd.f32 %v9775, %v9887
        %v9889 = vpop.f32.mrf.mxu0
        %v9890 = vadd.f32 %v9777, %v9889
        %v9891 = vpop.f32.mrf.mxu0
        %v9892 = vadd.f32 %v9779, %v9891
        %9893 = vmatprep.mubr.bf16.mxu0 %v5439
        %9894 = vmatmul.mubr.bf16.gmra.mxu0 %v5438
        %v9895 = vpop.f32.mrf.mxu0
        %v9896 = vadd.f32 %v9783, %v9895
        %v9897 = vpop.f32.mrf.mxu0
        %v9898 = vadd.f32 %v9785, %v9897
        %v9899 = vpop.f32.mrf.mxu0
        %v9900 = vadd.f32 %v9787, %v9899
        %v9901 = vpop.f32.mrf.mxu0
        %v9902 = vadd.f32 %v9789, %v9901
        %9903 = vmatprep.mubr.bf16.mxu0 %v5447
        %9904 = vmatmul.mubr.bf16.gmra.mxu0 %v5446
        %v9905 = vpop.f32.mrf.mxu0
        %v9906 = vadd.f32 %v9793, %v9905
        %v9907 = vpop.f32.mrf.mxu0
        %v9908 = vadd.f32 %v9795, %v9907
        %v9909 = vpop.f32.mrf.mxu0
        %v9910 = vadd.f32 %v9797, %v9909
        %v9911 = vpop.f32.mrf.mxu0
        %v9912 = vadd.f32 %v9799, %v9911
        %9913 = vmatprep.mubr.bf16.mxu0 %v5455
        %9914 = vmatmul.mubr.bf16.gmra.mxu0 %v5454
        %v9915 = vpop.f32.mrf.mxu0
        %v9916 = vadd.f32 %v9803, %v9915
        %v9917 = vpop.f32.mrf.mxu0
        %v9918 = vadd.f32 %v9805, %v9917
        %v9919 = vpop.f32.mrf.mxu0
        %v9920 = vadd.f32 %v9807, %v9919
        %v9921 = vpop.f32.mrf.mxu0
        %v9922 = vadd.f32 %v9809, %v9921
        %9923 = vmatprep.mubr.bf16.mxu0 %v5463
        %9924 = vmatmul.mubr.bf16.gmra.mxu0 %v5462
        %v9925 = vpop.f32.mrf.mxu0
        %v9926 = vadd.f32 %v9813, %v9925
        %v9927 = vpop.f32.mrf.mxu0
        %v9928 = vadd.f32 %v9815, %v9927
        %v9929 = vpop.f32.mrf.mxu0
        %v9930 = vadd.f32 %v9817, %v9929
        %v9931 = vpop.f32.mrf.mxu0
        %v9932 = vadd.f32 %v9819, %v9931
        %9933 = vdwg.mxu0
        %9934 = vmatprep.subr.bf16.mxu0 %v7617
        %9935 = vmatpush1.bf16.msra.mxu0 %v7616
        %9936 = vmatprep.subr.bf16.mxu0 %v7609
        %9937 = vmatpush1.bf16.msra.mxu0 %v7608
        %9938 = vmatprep.subr.bf16.mxu0 %v7601
        %9939 = vmatpush1.bf16.msra.mxu0 %v7600
        %9940 = vmatprep.subr.bf16.mxu0 %v7593
        %9941 = vmatpush1.bf16.msra.mxu0 %v7592
        %9942 = vmatprep.subr.bf16.mxu0 %v7585
        %9943 = vmatpush1.bf16.msra.mxu0 %v7584
        %9944 = vmatprep.subr.bf16.mxu0 %v7577
        %9945 = vmatpush1.bf16.msra.mxu0 %v7576
        %9946 = vmatprep.subr.bf16.mxu0 %v7569
        %9947 = vmatpush1.bf16.msra.mxu0 %v7568
        %9948 = vmatprep.subr.bf16.mxu0 %v7561
        %9949 = vmatpush1.bf16.msra.mxu0 %v7560
        %9950 = vmatprep.subr.bf16.mxu0 %v7681
        %9951 = vmatpush2.bf16.msra.mxu0 %v7680
        %9952 = vmatprep.subr.bf16.mxu0 %v7673
        %9953 = vmatpush2.bf16.msra.mxu0 %v7672
        %9954 = vmatprep.subr.bf16.mxu0 %v7665
        %9955 = vmatpush2.bf16.msra.mxu0 %v7664
        %9956 = vmatprep.subr.bf16.mxu0 %v7657
        %9957 = vmatpush2.bf16.msra.mxu0 %v7656
        %9958 = vmatprep.subr.bf16.mxu0 %v7649
        %9959 = vmatpush2.bf16.msra.mxu0 %v7648
        %9960 = vmatprep.subr.bf16.mxu0 %v7641
        %9961 = vmatpush2.bf16.msra.mxu0 %v7640
        %9962 = vmatprep.subr.bf16.mxu0 %v7633
        %9963 = vmatpush2.bf16.msra.mxu0 %v7632
        %9964 = vmatprep.subr.bf16.mxu0 %v7625
        %9965 = vmatpush2.bf16.msra.mxu0 %v7624
        %9966 = vmatprep.mubr.bf16.mxu0 %v5401
        %9967 = vmatmul.mubr.bf16.gmra.mxu0 %v5400
        %v9968 = vpop.f32.mrf.mxu0
        %v9969 = vadd.f32 %v6005, %v9968
        %v9970 = vpop.f32.mrf.mxu0
        %v9971 = vadd.f32 %v6009, %v9970
        %v9972 = vpop.f32.mrf.mxu0
        %v9973 = vadd.f32 %v6005, %v9972
        %v9974 = vpop.f32.mrf.mxu0
        %v9975 = vadd.f32 %v6009, %v9974
        %9976 = vmatprep.mubr.bf16.mxu0 %v5409
        %9977 = vmatmul.mubr.bf16.gmra.mxu0 %v5408
        %v9978 = vpop.f32.mrf.mxu0
        %v9979 = vadd.f32 %v6005, %v9978
        %v9980 = vpop.f32.mrf.mxu0
        %v9981 = vadd.f32 %v6009, %v9980
        %v9982 = vpop.f32.mrf.mxu0
        %v9983 = vadd.f32 %v6005, %v9982
        %v9984 = vpop.f32.mrf.mxu0
        %v9985 = vadd.f32 %v6009, %v9984
        %9986 = vmatprep.mubr.bf16.mxu0 %v5417
        %9987 = vmatmul.mubr.bf16.gmra.mxu0 %v5416
        %v9988 = vpop.f32.mrf.mxu0
        %v9989 = vadd.f32 %v6005, %v9988
        %v9990 = vpop.f32.mrf.mxu0
        %v9991 = vadd.f32 %v6009, %v9990
        %v9992 = vpop.f32.mrf.mxu0
        %v9993 = vadd.f32 %v6005, %v9992
        %v9994 = vpop.f32.mrf.mxu0
        %v9995 = vadd.f32 %v6009, %v9994
        %9996 = vmatprep.mubr.bf16.mxu0 %v5425
        %9997 = vmatmul.mubr.bf16.gmra.mxu0 %v5424
        %v9998 = vpop.f32.mrf.mxu0
        %v9999 = vadd.f32 %v6005, %v9998
        %v10000 = vpop.f32.mrf.mxu0
        %v10001 = vadd.f32 %v6009, %v10000
        %v10002 = vpop.f32.mrf.mxu0
        %v10003 = vadd.f32 %v6005, %v10002
        %v10004 = vpop.f32.mrf.mxu0
        %v10005 = vadd.f32 %v6009, %v10004
        %10006 = vmatprep.mubr.bf16.mxu0 %v5433
        %10007 = vmatmul.mubr.bf16.gmra.mxu0 %v5432
        %v10008 = vpop.f32.mrf.mxu0
        %v10009 = vadd.f32 %v6005, %v10008
        %v10010 = vpop.f32.mrf.mxu0
        %v10011 = vadd.f32 %v6009, %v10010
        %v10012 = vpop.f32.mrf.mxu0
        %v10013 = vadd.f32 %v6005, %v10012
        %v10014 = vpop.f32.mrf.mxu0
        %v10015 = vadd.f32 %v6009, %v10014
        %10016 = vmatprep.mubr.bf16.mxu0 %v5441
        %10017 = vmatmul.mubr.bf16.gmra.mxu0 %v5440
        %v10018 = vpop.f32.mrf.mxu0
        %v10019 = vadd.f32 %v6005, %v10018
        %v10020 = vpop.f32.mrf.mxu0
        %v10021 = vadd.f32 %v6009, %v10020
        %v10022 = vpop.f32.mrf.mxu0
        %v10023 = vadd.f32 %v6005, %v10022
        %v10024 = vpop.f32.mrf.mxu0
        %v10025 = vadd.f32 %v6009, %v10024
        %10026 = vmatprep.mubr.bf16.mxu0 %v5449
        %10027 = vmatmul.mubr.bf16.gmra.mxu0 %v5448
        %v10028 = vpop.f32.mrf.mxu0
        %v10029 = vadd.f32 %v6005, %v10028
        %v10030 = vpop.f32.mrf.mxu0
        %v10031 = vadd.f32 %v6009, %v10030
        %v10032 = vpop.f32.mrf.mxu0
        %v10033 = vadd.f32 %v6005, %v10032
        %v10034 = vpop.f32.mrf.mxu0
        %v10035 = vadd.f32 %v6009, %v10034
        %10036 = vmatprep.mubr.bf16.mxu0 %v5457
        %10037 = vmatmul.mubr.bf16.gmra.mxu0 %v5456
        %v10038 = vpop.f32.mrf.mxu0
        %v10039 = vadd.f32 %v6005, %v10038
        %v10040 = vpop.f32.mrf.mxu0
        %v10041 = vadd.f32 %v6009, %v10040
        %v10042 = vpop.f32.mrf.mxu0
        %v10043 = vadd.f32 %v6005, %v10042
        %v10044 = vpop.f32.mrf.mxu0
        %v10045 = vadd.f32 %v6009, %v10044
        %10046 = vdwg.mxu0
        %10047 = vmatprep.subr.bf16.mxu0 %v7745
        %10048 = vmatpush1.bf16.msra.mxu0 %v7744
        %10049 = vmatprep.subr.bf16.mxu0 %v7737
        %10050 = vmatpush1.bf16.msra.mxu0 %v7736
        %10051 = vmatprep.subr.bf16.mxu0 %v7729
        %10052 = vmatpush1.bf16.msra.mxu0 %v7728
        %10053 = vmatprep.subr.bf16.mxu0 %v7721
        %10054 = vmatpush1.bf16.msra.mxu0 %v7720
        %10055 = vmatprep.subr.bf16.mxu0 %v7713
        %10056 = vmatpush1.bf16.msra.mxu0 %v7712
        %10057 = vmatprep.subr.bf16.mxu0 %v7705
        %10058 = vmatpush1.bf16.msra.mxu0 %v7704
        %10059 = vmatprep.subr.bf16.mxu0 %v7697
        %10060 = vmatpush1.bf16.msra.mxu0 %v7696
        %10061 = vmatprep.subr.bf16.mxu0 %v7689
        %10062 = vmatpush1.bf16.msra.mxu0 %v7688
        %10063 = vmatprep.subr.bf16.mxu0 %v7809
        %10064 = vmatpush2.bf16.msra.mxu0 %v7808
        %10065 = vmatprep.subr.bf16.mxu0 %v7801
        %10066 = vmatpush2.bf16.msra.mxu0 %v7800
        %10067 = vmatprep.subr.bf16.mxu0 %v7793
        %10068 = vmatpush2.bf16.msra.mxu0 %v7792
        %10069 = vmatprep.subr.bf16.mxu0 %v7785
        %10070 = vmatpush2.bf16.msra.mxu0 %v7784
        %10071 = vmatprep.subr.bf16.mxu0 %v7777
        %10072 = vmatpush2.bf16.msra.mxu0 %v7776
        %10073 = vmatprep.subr.bf16.mxu0 %v7769
        %10074 = vmatpush2.bf16.msra.mxu0 %v7768
        %10075 = vmatprep.subr.bf16.mxu0 %v7761
        %10076 = vmatpush2.bf16.msra.mxu0 %v7760
        %10077 = vmatprep.subr.bf16.mxu0 %v7753
        %10078 = vmatpush2.bf16.msra.mxu0 %v7752
        %10079 = vmatprep.mubr.bf16.mxu0 %v5403
        %10080 = vmatmul.mubr.bf16.gmra.mxu0 %v5402
        %v10081 = vpop.f32.mrf.mxu0
        %v10082 = vadd.f32 %v9969, %v10081
        %v10083 = vpop.f32.mrf.mxu0
        %v10084 = vadd.f32 %v9971, %v10083
        %v10085 = vpop.f32.mrf.mxu0
        %v10086 = vadd.f32 %v9973, %v10085
        %v10087 = vpop.f32.mrf.mxu0
        %v10088 = vadd.f32 %v9975, %v10087
        %10089 = vmatprep.mubr.bf16.mxu0 %v5411
        %10090 = vmatmul.mubr.bf16.gmra.mxu0 %v5410
        %v10091 = vpop.f32.mrf.mxu0
        %v10092 = vadd.f32 %v9979, %v10091
        %v10093 = vpop.f32.mrf.mxu0
        %v10094 = vadd.f32 %v9981, %v10093
        %v10095 = vpop.f32.mrf.mxu0
        %v10096 = vadd.f32 %v9983, %v10095
        %v10097 = vpop.f32.mrf.mxu0
        %v10098 = vadd.f32 %v9985, %v10097
        %10099 = vmatprep.mubr.bf16.mxu0 %v5419
        %10100 = vmatmul.mubr.bf16.gmra.mxu0 %v5418
        %v10101 = vpop.f32.mrf.mxu0
        %v10102 = vadd.f32 %v9989, %v10101
        %v10103 = vpop.f32.mrf.mxu0
        %v10104 = vadd.f32 %v9991, %v10103
        %v10105 = vpop.f32.mrf.mxu0
        %v10106 = vadd.f32 %v9993, %v10105
        %v10107 = vpop.f32.mrf.mxu0
        %v10108 = vadd.f32 %v9995, %v10107
        %10109 = vmatprep.mubr.bf16.mxu0 %v5427
        %10110 = vmatmul.mubr.bf16.gmra.mxu0 %v5426
        %v10111 = vpop.f32.mrf.mxu0
        %v10112 = vadd.f32 %v9999, %v10111
        %v10113 = vpop.f32.mrf.mxu0
        %v10114 = vadd.f32 %v10001, %v10113
        %v10115 = vpop.f32.mrf.mxu0
        %v10116 = vadd.f32 %v10003, %v10115
        %v10117 = vpop.f32.mrf.mxu0
        %v10118 = vadd.f32 %v10005, %v10117
        %10119 = vmatprep.mubr.bf16.mxu0 %v5435
        %10120 = vmatmul.mubr.bf16.gmra.mxu0 %v5434
        %v10121 = vpop.f32.mrf.mxu0
        %v10122 = vadd.f32 %v10009, %v10121
        %v10123 = vpop.f32.mrf.mxu0
        %v10124 = vadd.f32 %v10011, %v10123
        %v10125 = vpop.f32.mrf.mxu0
        %v10126 = vadd.f32 %v10013, %v10125
        %v10127 = vpop.f32.mrf.mxu0
        %v10128 = vadd.f32 %v10015, %v10127
        %10129 = vmatprep.mubr.bf16.mxu0 %v5443
        %10130 = vmatmul.mubr.bf16.gmra.mxu0 %v5442
        %v10131 = vpop.f32.mrf.mxu0
        %v10132 = vadd.f32 %v10019, %v10131
        %v10133 = vpop.f32.mrf.mxu0
        %v10134 = vadd.f32 %v10021, %v10133
        %v10135 = vpop.f32.mrf.mxu0
        %v10136 = vadd.f32 %v10023, %v10135
        %v10137 = vpop.f32.mrf.mxu0
        %v10138 = vadd.f32 %v10025, %v10137
        %10139 = vmatprep.mubr.bf16.mxu0 %v5451
        %10140 = vmatmul.mubr.bf16.gmra.mxu0 %v5450
        %v10141 = vpop.f32.mrf.mxu0
        %v10142 = vadd.f32 %v10029, %v10141
        %v10143 = vpop.f32.mrf.mxu0
        %v10144 = vadd.f32 %v10031, %v10143
        %v10145 = vpop.f32.mrf.mxu0
        %v10146 = vadd.f32 %v10033, %v10145
        %v10147 = vpop.f32.mrf.mxu0
        %v10148 = vadd.f32 %v10035, %v10147
        %10149 = vmatprep.mubr.bf16.mxu0 %v5459
        %10150 = vmatmul.mubr.bf16.gmra.mxu0 %v5458
        %v10151 = vpop.f32.mrf.mxu0
        %v10152 = vadd.f32 %v10039, %v10151
        %v10153 = vpop.f32.mrf.mxu0
        %v10154 = vadd.f32 %v10041, %v10153
        %v10155 = vpop.f32.mrf.mxu0
        %v10156 = vadd.f32 %v10043, %v10155
        %v10157 = vpop.f32.mrf.mxu0
        %v10158 = vadd.f32 %v10045, %v10157
        %10159 = vdwg.mxu0
        %10160 = vmatprep.subr.bf16.mxu0 %v7873
        %10161 = vmatpush1.bf16.msra.mxu0 %v7872
        %10162 = vmatprep.subr.bf16.mxu0 %v7865
        %10163 = vmatpush1.bf16.msra.mxu0 %v7864
        %10164 = vmatprep.subr.bf16.mxu0 %v7857
        %10165 = vmatpush1.bf16.msra.mxu0 %v7856
        %10166 = vmatprep.subr.bf16.mxu0 %v7849
        %10167 = vmatpush1.bf16.msra.mxu0 %v7848
        %10168 = vmatprep.subr.bf16.mxu0 %v7841
        %10169 = vmatpush1.bf16.msra.mxu0 %v7840
        %10170 = vmatprep.subr.bf16.mxu0 %v7833
        %10171 = vmatpush1.bf16.msra.mxu0 %v7832
        %10172 = vmatprep.subr.bf16.mxu0 %v7825
        %10173 = vmatpush1.bf16.msra.mxu0 %v7824
        %10174 = vmatprep.subr.bf16.mxu0 %v7817
        %10175 = vmatpush1.bf16.msra.mxu0 %v7816
        %10176 = vmatprep.subr.bf16.mxu0 %v7937
        %10177 = vmatpush2.bf16.msra.mxu0 %v7936
        %10178 = vmatprep.subr.bf16.mxu0 %v7929
        %10179 = vmatpush2.bf16.msra.mxu0 %v7928
        %10180 = vmatprep.subr.bf16.mxu0 %v7921
        %10181 = vmatpush2.bf16.msra.mxu0 %v7920
        %10182 = vmatprep.subr.bf16.mxu0 %v7913
        %10183 = vmatpush2.bf16.msra.mxu0 %v7912
        %10184 = vmatprep.subr.bf16.mxu0 %v7905
        %10185 = vmatpush2.bf16.msra.mxu0 %v7904
        %10186 = vmatprep.subr.bf16.mxu0 %v7897
        %10187 = vmatpush2.bf16.msra.mxu0 %v7896
        %10188 = vmatprep.subr.bf16.mxu0 %v7889
        %10189 = vmatpush2.bf16.msra.mxu0 %v7888
        %10190 = vmatprep.subr.bf16.mxu0 %v7881
        %10191 = vmatpush2.bf16.msra.mxu0 %v7880
        %10192 = vmatprep.mubr.bf16.mxu0 %v5405
        %10193 = vmatmul.mubr.bf16.gmra.mxu0 %v5404
        %v10194 = vpop.f32.mrf.mxu0
        %v10195 = vadd.f32 %v10082, %v10194
        %v10196 = vpop.f32.mrf.mxu0
        %v10197 = vadd.f32 %v10084, %v10196
        %v10198 = vpop.f32.mrf.mxu0
        %v10199 = vadd.f32 %v10086, %v10198
        %v10200 = vpop.f32.mrf.mxu0
        %v10201 = vadd.f32 %v10088, %v10200
        %10202 = vmatprep.mubr.bf16.mxu0 %v5413
        %10203 = vmatmul.mubr.bf16.gmra.mxu0 %v5412
        %v10204 = vpop.f32.mrf.mxu0
        %v10205 = vadd.f32 %v10092, %v10204
        %v10206 = vpop.f32.mrf.mxu0
        %v10207 = vadd.f32 %v10094, %v10206
        %v10208 = vpop.f32.mrf.mxu0
        %v10209 = vadd.f32 %v10096, %v10208
        %v10210 = vpop.f32.mrf.mxu0
        %v10211 = vadd.f32 %v10098, %v10210
        %10212 = vmatprep.mubr.bf16.mxu0 %v5421
        %10213 = vmatmul.mubr.bf16.gmra.mxu0 %v5420
        %v10214 = vpop.f32.mrf.mxu0
        %v10215 = vadd.f32 %v10102, %v10214
        %v10216 = vpop.f32.mrf.mxu0
        %v10217 = vadd.f32 %v10104, %v10216
        %v10218 = vpop.f32.mrf.mxu0
        %v10219 = vadd.f32 %v10106, %v10218
        %v10220 = vpop.f32.mrf.mxu0
        %v10221 = vadd.f32 %v10108, %v10220
        %10222 = vmatprep.mubr.bf16.mxu0 %v5429
        %10223 = vmatmul.mubr.bf16.gmra.mxu0 %v5428
        %v10224 = vpop.f32.mrf.mxu0
        %v10225 = vadd.f32 %v10112, %v10224
        %v10226 = vpop.f32.mrf.mxu0
        %v10227 = vadd.f32 %v10114, %v10226
        %v10228 = vpop.f32.mrf.mxu0
        %v10229 = vadd.f32 %v10116, %v10228
        %v10230 = vpop.f32.mrf.mxu0
        %v10231 = vadd.f32 %v10118, %v10230
        %10232 = vmatprep.mubr.bf16.mxu0 %v5437
        %10233 = vmatmul.mubr.bf16.gmra.mxu0 %v5436
        %v10234 = vpop.f32.mrf.mxu0
        %v10235 = vadd.f32 %v10122, %v10234
        %v10236 = vpop.f32.mrf.mxu0
        %v10237 = vadd.f32 %v10124, %v10236
        %v10238 = vpop.f32.mrf.mxu0
        %v10239 = vadd.f32 %v10126, %v10238
        %v10240 = vpop.f32.mrf.mxu0
        %v10241 = vadd.f32 %v10128, %v10240
        %10242 = vmatprep.mubr.bf16.mxu0 %v5445
        %10243 = vmatmul.mubr.bf16.gmra.mxu0 %v5444
        %v10244 = vpop.f32.mrf.mxu0
        %v10245 = vadd.f32 %v10132, %v10244
        %v10246 = vpop.f32.mrf.mxu0
        %v10247 = vadd.f32 %v10134, %v10246
        %v10248 = vpop.f32.mrf.mxu0
        %v10249 = vadd.f32 %v10136, %v10248
        %v10250 = vpop.f32.mrf.mxu0
        %v10251 = vadd.f32 %v10138, %v10250
        %10252 = vmatprep.mubr.bf16.mxu0 %v5453
        %10253 = vmatmul.mubr.bf16.gmra.mxu0 %v5452
        %v10254 = vpop.f32.mrf.mxu0
        %v10255 = vadd.f32 %v10142, %v10254
        %v10256 = vpop.f32.mrf.mxu0
        %v10257 = vadd.f32 %v10144, %v10256
        %v10258 = vpop.f32.mrf.mxu0
        %v10259 = vadd.f32 %v10146, %v10258
        %v10260 = vpop.f32.mrf.mxu0
        %v10261 = vadd.f32 %v10148, %v10260
        %10262 = vmatprep.mubr.bf16.mxu0 %v5461
        %10263 = vmatmul.mubr.bf16.gmra.mxu0 %v5460
        %v10264 = vpop.f32.mrf.mxu0
        %v10265 = vadd.f32 %v10152, %v10264
        %v10266 = vpop.f32.mrf.mxu0
        %v10267 = vadd.f32 %v10154, %v10266
        %v10268 = vpop.f32.mrf.mxu0
        %v10269 = vadd.f32 %v10156, %v10268
        %v10270 = vpop.f32.mrf.mxu0
        %v10271 = vadd.f32 %v10158, %v10270
        %10272 = vdwg.mxu0
        %10273 = vmatprep.subr.bf16.mxu0 %v8001
        %10274 = vmatpush1.bf16.msra.mxu0 %v8000
        %10275 = vmatprep.subr.bf16.mxu0 %v7993
        %10276 = vmatpush1.bf16.msra.mxu0 %v7992
        %10277 = vmatprep.subr.bf16.mxu0 %v7985
        %10278 = vmatpush1.bf16.msra.mxu0 %v7984
        %10279 = vmatprep.subr.bf16.mxu0 %v7977
        %10280 = vmatpush1.bf16.msra.mxu0 %v7976
        %10281 = vmatprep.subr.bf16.mxu0 %v7969
        %10282 = vmatpush1.bf16.msra.mxu0 %v7968
        %10283 = vmatprep.subr.bf16.mxu0 %v7961
        %10284 = vmatpush1.bf16.msra.mxu0 %v7960
        %10285 = vmatprep.subr.bf16.mxu0 %v7953
        %10286 = vmatpush1.bf16.msra.mxu0 %v7952
        %10287 = vmatprep.subr.bf16.mxu0 %v7945
        %10288 = vmatpush1.bf16.msra.mxu0 %v7944
        %10289 = vmatprep.subr.bf16.mxu0 %v8065
        %10290 = vmatpush2.bf16.msra.mxu0 %v8064
        %10291 = vmatprep.subr.bf16.mxu0 %v8057
        %10292 = vmatpush2.bf16.msra.mxu0 %v8056
        %10293 = vmatprep.subr.bf16.mxu0 %v8049
        %10294 = vmatpush2.bf16.msra.mxu0 %v8048
        %10295 = vmatprep.subr.bf16.mxu0 %v8041
        %10296 = vmatpush2.bf16.msra.mxu0 %v8040
        %10297 = vmatprep.subr.bf16.mxu0 %v8033
        %10298 = vmatpush2.bf16.msra.mxu0 %v8032
        %10299 = vmatprep.subr.bf16.mxu0 %v8025
        %10300 = vmatpush2.bf16.msra.mxu0 %v8024
        %10301 = vmatprep.subr.bf16.mxu0 %v8017
        %10302 = vmatpush2.bf16.msra.mxu0 %v8016
        %10303 = vmatprep.subr.bf16.mxu0 %v8009
        %10304 = vmatpush2.bf16.msra.mxu0 %v8008
        %10305 = vmatprep.mubr.bf16.mxu0 %v5407
        %10306 = vmatmul.mubr.bf16.gmra.mxu0 %v5406
        %v10307 = vpop.f32.mrf.mxu0
        %v10308 = vadd.f32 %v10195, %v10307
        %v10309 = vpop.f32.mrf.mxu0
        %v10310 = vadd.f32 %v10197, %v10309
        %v10311 = vpop.f32.mrf.mxu0
        %v10312 = vadd.f32 %v10199, %v10311
        %v10313 = vpop.f32.mrf.mxu0
        %v10314 = vadd.f32 %v10201, %v10313
        %10315 = vmatprep.mubr.bf16.mxu0 %v5415
        %10316 = vmatmul.mubr.bf16.gmra.mxu0 %v5414
        %v10317 = vpop.f32.mrf.mxu0
        %v10318 = vadd.f32 %v10205, %v10317
        %v10319 = vpop.f32.mrf.mxu0
        %v10320 = vadd.f32 %v10207, %v10319
        %v10321 = vpop.f32.mrf.mxu0
        %v10322 = vadd.f32 %v10209, %v10321
        %v10323 = vpop.f32.mrf.mxu0
        %v10324 = vadd.f32 %v10211, %v10323
        %10325 = vmatprep.mubr.bf16.mxu0 %v5423
        %10326 = vmatmul.mubr.bf16.gmra.mxu0 %v5422
        %v10327 = vpop.f32.mrf.mxu0
        %v10328 = vadd.f32 %v10215, %v10327
        %v10329 = vpop.f32.mrf.mxu0
        %v10330 = vadd.f32 %v10217, %v10329
        %v10331 = vpop.f32.mrf.mxu0
        %v10332 = vadd.f32 %v10219, %v10331
        %v10333 = vpop.f32.mrf.mxu0
        %v10334 = vadd.f32 %v10221, %v10333
        %10335 = vmatprep.mubr.bf16.mxu0 %v5431
        %10336 = vmatmul.mubr.bf16.gmra.mxu0 %v5430
        %v10337 = vpop.f32.mrf.mxu0
        %v10338 = vadd.f32 %v10225, %v10337
        %v10339 = vpop.f32.mrf.mxu0
        %v10340 = vadd.f32 %v10227, %v10339
        %v10341 = vpop.f32.mrf.mxu0
        %v10342 = vadd.f32 %v10229, %v10341
        %v10343 = vpop.f32.mrf.mxu0
        %v10344 = vadd.f32 %v10231, %v10343
        %10345 = vmatprep.mubr.bf16.mxu0 %v5439
        %10346 = vmatmul.mubr.bf16.gmra.mxu0 %v5438
        %v10347 = vpop.f32.mrf.mxu0
        %v10348 = vadd.f32 %v10235, %v10347
        %v10349 = vpop.f32.mrf.mxu0
        %v10350 = vadd.f32 %v10237, %v10349
        %v10351 = vpop.f32.mrf.mxu0
        %v10352 = vadd.f32 %v10239, %v10351
        %v10353 = vpop.f32.mrf.mxu0
        %v10354 = vadd.f32 %v10241, %v10353
        %10355 = vmatprep.mubr.bf16.mxu0 %v5447
        %10356 = vmatmul.mubr.bf16.gmra.mxu0 %v5446
        %v10357 = vpop.f32.mrf.mxu0
        %v10358 = vadd.f32 %v10245, %v10357
        %v10359 = vpop.f32.mrf.mxu0
        %v10360 = vadd.f32 %v10247, %v10359
        %v10361 = vpop.f32.mrf.mxu0
        %v10362 = vadd.f32 %v10249, %v10361
        %v10363 = vpop.f32.mrf.mxu0
        %v10364 = vadd.f32 %v10251, %v10363
        %10365 = vmatprep.mubr.bf16.mxu0 %v5455
        %10366 = vmatmul.mubr.bf16.gmra.mxu0 %v5454
        %v10367 = vpop.f32.mrf.mxu0
        %v10368 = vadd.f32 %v10255, %v10367
        %v10369 = vpop.f32.mrf.mxu0
        %v10370 = vadd.f32 %v10257, %v10369
        %v10371 = vpop.f32.mrf.mxu0
        %v10372 = vadd.f32 %v10259, %v10371
        %v10373 = vpop.f32.mrf.mxu0
        %v10374 = vadd.f32 %v10261, %v10373
        %10375 = vmatprep.mubr.bf16.mxu0 %v5463
        %10376 = vmatmul.mubr.bf16.gmra.mxu0 %v5462
        %v10377 = vpop.f32.mrf.mxu0
        %v10378 = vadd.f32 %v10265, %v10377
        %v10379 = vpop.f32.mrf.mxu0
        %v10380 = vadd.f32 %v10267, %v10379
        %v10381 = vpop.f32.mrf.mxu0
        %v10382 = vadd.f32 %v10269, %v10381
        %v10383 = vpop.f32.mrf.mxu0
        %v10384 = vadd.f32 %v10271, %v10383
        %10385 = vdwg.mxu0
        %v10386 = vmax.f32 %v8952, 0.0
        %v10387 = vmax.f32 %v8954, 0.0
        %v10388 = vmax.f32 %v9404, 0.0
        %v10389 = vmax.f32 %v9406, 0.0
        %v10390 = vmax.f32 %v9856, 0.0
        %v10391 = vmax.f32 %v9858, 0.0
        %v10392 = vmax.f32 %v10308, 0.0
        %v10393 = vmax.f32 %v10310, 0.0
        %v10394 = vmax.f32 %v8956, 0.0
        %v10395 = vmax.f32 %v8958, 0.0
        %v10396 = vmax.f32 %v9408, 0.0
        %v10397 = vmax.f32 %v9410, 0.0
        %v10398 = vmax.f32 %v9860, 0.0
        %v10399 = vmax.f32 %v9862, 0.0
        %v10400 = vmax.f32 %v10312, 0.0
        %v10401 = vmax.f32 %v10314, 0.0
        %v10402 = vmax.f32 %v8962, 0.0
        %v10403 = vmax.f32 %v8964, 0.0
        %v10404 = vmax.f32 %v9414, 0.0
        %v10405 = vmax.f32 %v9416, 0.0
        %v10406 = vmax.f32 %v9866, 0.0
        %v10407 = vmax.f32 %v9868, 0.0
        %v10408 = vmax.f32 %v10318, 0.0
        %v10409 = vmax.f32 %v10320, 0.0
        %v10410 = vmax.f32 %v8966, 0.0
        %v10411 = vmax.f32 %v8968, 0.0
        %v10412 = vmax.f32 %v9418, 0.0
        %v10413 = vmax.f32 %v9420, 0.0
        %v10414 = vmax.f32 %v9870, 0.0
        %v10415 = vmax.f32 %v9872, 0.0
        %v10416 = vmax.f32 %v10322, 0.0
        %v10417 = vmax.f32 %v10324, 0.0
        %v10418 = vmax.f32 %v8972, 0.0
        %v10419 = vmax.f32 %v8974, 0.0
        %v10420 = vmax.f32 %v9424, 0.0
        %v10421 = vmax.f32 %v9426, 0.0
        %v10422 = vmax.f32 %v9876, 0.0
        %v10423 = vmax.f32 %v9878, 0.0
        %v10424 = vmax.f32 %v10328, 0.0
        %v10425 = vmax.f32 %v10330, 0.0
        %v10426 = vmax.f32 %v8976, 0.0
        %v10427 = vmax.f32 %v8978, 0.0
        %v10428 = vmax.f32 %v9428, 0.0
        %v10429 = vmax.f32 %v9430, 0.0
        %v10430 = vmax.f32 %v9880, 0.0
        %v10431 = vmax.f32 %v9882, 0.0
        %v10432 = vmax.f32 %v10332, 0.0
        %v10433 = vmax.f32 %v10334, 0.0
        %v10434 = vmax.f32 %v8982, 0.0
        %v10435 = vmax.f32 %v8984, 0.0
        %v10436 = vmax.f32 %v9434, 0.0
        %v10437 = vmax.f32 %v9436, 0.0
        %v10438 = vmax.f32 %v9886, 0.0
        %v10439 = vmax.f32 %v9888, 0.0
        %v10440 = vmax.f32 %v10338, 0.0
        %v10441 = vmax.f32 %v10340, 0.0
        %v10442 = vmax.f32 %v8986, 0.0
        %v10443 = vmax.f32 %v8988, 0.0
        %v10444 = vmax.f32 %v9438, 0.0
        %v10445 = vmax.f32 %v9440, 0.0
        %v10446 = vmax.f32 %v9890, 0.0
        %v10447 = vmax.f32 %v9892, 0.0
        %v10448 = vmax.f32 %v10342, 0.0
        %v10449 = vmax.f32 %v10344, 0.0
        %v10450 = vmax.f32 %v8992, 0.0
        %v10451 = vmax.f32 %v8994, 0.0
        %v10452 = vmax.f32 %v9444, 0.0
        %v10453 = vmax.f32 %v9446, 0.0
        %v10454 = vmax.f32 %v9896, 0.0
        %v10455 = vmax.f32 %v9898, 0.0
        %v10456 = vmax.f32 %v10348, 0.0
        %v10457 = vmax.f32 %v10350, 0.0
        %v10458 = vmax.f32 %v8996, 0.0
        %v10459 = vmax.f32 %v8998, 0.0
        %v10460 = vmax.f32 %v9448, 0.0
        %v10461 = vmax.f32 %v9450, 0.0
        %v10462 = vmax.f32 %v9900, 0.0
        %v10463 = vmax.f32 %v9902, 0.0
        %v10464 = vmax.f32 %v10352, 0.0
        %v10465 = vmax.f32 %v10354, 0.0
        %v10466 = vmax.f32 %v9002, 0.0
        %v10467 = vmax.f32 %v9004, 0.0
        %v10468 = vmax.f32 %v9454, 0.0
        %v10469 = vmax.f32 %v9456, 0.0
        %v10470 = vmax.f32 %v9906, 0.0
        %v10471 = vmax.f32 %v9908, 0.0
        %v10472 = vmax.f32 %v10358, 0.0
        %v10473 = vmax.f32 %v10360, 0.0
        %v10474 = vmax.f32 %v9006, 0.0
        %v10475 = vmax.f32 %v9008, 0.0
        %v10476 = vmax.f32 %v9458, 0.0
        %v10477 = vmax.f32 %v9460, 0.0
        %v10478 = vmax.f32 %v9910, 0.0
        %v10479 = vmax.f32 %v9912, 0.0
        %v10480 = vmax.f32 %v10362, 0.0
        %v10481 = vmax.f32 %v10364, 0.0
        %v10482 = vmax.f32 %v9012, 0.0
        %v10483 = vmax.f32 %v9014, 0.0
        %v10484 = vmax.f32 %v9464, 0.0
        %v10485 = vmax.f32 %v9466, 0.0
        %v10486 = vmax.f32 %v9916, 0.0
        %v10487 = vmax.f32 %v9918, 0.0
        %v10488 = vmax.f32 %v10368, 0.0
        %v10489 = vmax.f32 %v10370, 0.0
        %v10490 = vmax.f32 %v9016, 0.0
        %v10491 = vmax.f32 %v9018, 0.0
        %v10492 = vmax.f32 %v9468, 0.0
        %v10493 = vmax.f32 %v9470, 0.0
        %v10494 = vmax.f32 %v9920, 0.0
        %v10495 = vmax.f32 %v9922, 0.0
        %v10496 = vmax.f32 %v10372, 0.0
        %v10497 = vmax.f32 %v10374, 0.0
        %v10498 = vmax.f32 %v9022, 0.0
        %v10499 = vmax.f32 %v9024, 0.0
        %v10500 = vmax.f32 %v9474, 0.0
        %v10501 = vmax.f32 %v9476, 0.0
        %v10502 = vmax.f32 %v9926, 0.0
        %v10503 = vmax.f32 %v9928, 0.0
        %v10504 = vmax.f32 %v10378, 0.0
        %v10505 = vmax.f32 %v10380, 0.0
        %v10506 = vmax.f32 %v9026, 0.0
        %v10507 = vmax.f32 %v9028, 0.0
        %v10508 = vmax.f32 %v9478, 0.0
        %v10509 = vmax.f32 %v9480, 0.0
        %v10510 = vmax.f32 %v9930, 0.0
        %v10511 = vmax.f32 %v9932, 0.0
        %v10512 = vmax.f32 %v10382, 0.0
        %v10513 = vmax.f32 %v10384, 0.0
        %v10514 = vpack.c.bf16 %v10394, %v10386
        %v10515 = vpack.c.bf16 %v10395, %v10387
        %v10516 = vpack.c.bf16 %v10396, %v10388
        %v10517 = vpack.c.bf16 %v10397, %v10389
        %v10518 = vpack.c.bf16 %v10398, %v10390
        %v10519 = vpack.c.bf16 %v10399, %v10391
        %v10520 = vpack.c.bf16 %v10400, %v10392
        %v10521 = vpack.c.bf16 %v10401, %v10393
        %v10522 = vpack.c.bf16 %v10410, %v10402
        %v10523 = vpack.c.bf16 %v10411, %v10403
        %v10524 = vpack.c.bf16 %v10412, %v10404
        %v10525 = vpack.c.bf16 %v10413, %v10405
        %v10526 = vpack.c.bf16 %v10414, %v10406
        %v10527 = vpack.c.bf16 %v10415, %v10407
        %v10528 = vpack.c.bf16 %v10416, %v10408
        %v10529 = vpack.c.bf16 %v10417, %v10409
        %v10530 = vpack.c.bf16 %v10426, %v10418
        %v10531 = vpack.c.bf16 %v10427, %v10419
        %v10532 = vpack.c.bf16 %v10428, %v10420
        %v10533 = vpack.c.bf16 %v10429, %v10421
        %v10534 = vpack.c.bf16 %v10430, %v10422
        %v10535 = vpack.c.bf16 %v10431, %v10423
        %v10536 = vpack.c.bf16 %v10432, %v10424
        %v10537 = vpack.c.bf16 %v10433, %v10425
        %v10538 = vpack.c.bf16 %v10442, %v10434
        %v10539 = vpack.c.bf16 %v10443, %v10435
        %v10540 = vpack.c.bf16 %v10444, %v10436
        %v10541 = vpack.c.bf16 %v10445, %v10437
        %v10542 = vpack.c.bf16 %v10446, %v10438
        %v10543 = vpack.c.bf16 %v10447, %v10439
        %v10544 = vpack.c.bf16 %v10448, %v10440
        %v10545 = vpack.c.bf16 %v10449, %v10441
        %v10546 = vpack.c.bf16 %v10458, %v10450
        %v10547 = vpack.c.bf16 %v10459, %v10451
        %v10548 = vpack.c.bf16 %v10460, %v10452
        %v10549 = vpack.c.bf16 %v10461, %v10453
        %v10550 = vpack.c.bf16 %v10462, %v10454
        %v10551 = vpack.c.bf16 %v10463, %v10455
        %v10552 = vpack.c.bf16 %v10464, %v10456
        %v10553 = vpack.c.bf16 %v10465, %v10457
        %v10554 = vpack.c.bf16 %v10474, %v10466
        %v10555 = vpack.c.bf16 %v10475, %v10467
        %v10556 = vpack.c.bf16 %v10476, %v10468
        %v10557 = vpack.c.bf16 %v10477, %v10469
        %v10558 = vpack.c.bf16 %v10478, %v10470
        %v10559 = vpack.c.bf16 %v10479, %v10471
        %v10560 = vpack.c.bf16 %v10480, %v10472
        %v10561 = vpack.c.bf16 %v10481, %v10473
        %v10562 = vpack.c.bf16 %v10490, %v10482
        %v10563 = vpack.c.bf16 %v10491, %v10483
        %v10564 = vpack.c.bf16 %v10492, %v10484
        %v10565 = vpack.c.bf16 %v10493, %v10485
        %v10566 = vpack.c.bf16 %v10494, %v10486
        %v10567 = vpack.c.bf16 %v10495, %v10487
        %v10568 = vpack.c.bf16 %v10496, %v10488
        %v10569 = vpack.c.bf16 %v10497, %v10489
        %v10570 = vpack.c.bf16 %v10506, %v10498
        %v10571 = vpack.c.bf16 %v10507, %v10499
        %v10572 = vpack.c.bf16 %v10508, %v10500
        %v10573 = vpack.c.bf16 %v10509, %v10501
        %v10574 = vpack.c.bf16 %v10510, %v10502
        %v10575 = vpack.c.bf16 %v10511, %v10503
        %v10576 = vpack.c.bf16 %v10512, %v10504
        %v10577 = vpack.c.bf16 %v10513, %v10505
        %v10578 = vld [vmem:[#allocation11] sm:$0xf]
        %v10579 = vld [vmem:[#allocation11 + $0x4] sm:$0xf]
        %v10580 = vld [vmem:[#allocation11 + $0x8] sm:$0xf]
        %v10581 = vld [vmem:[#allocation11 + $0xc] sm:$0xf]
        %v10582 = vld [vmem:[#allocation11 + $0x10] sm:$0xf]
        %v10583 = vld [vmem:[#allocation11 + $0x14] sm:$0xf]
        %v10584 = vld [vmem:[#allocation11 + $0x18] sm:$0xf]
        %v10585 = vld [vmem:[#allocation11 + $0x1c] sm:$0xf]
        %v10586 = vld [vmem:[#allocation11 + $0x20] sm:$0xf]
        %v10587 = vld [vmem:[#allocation11 + $0x24] sm:$0xf]
        %v10588 = vld [vmem:[#allocation11 + $0x28] sm:$0xf]
        %v10589 = vld [vmem:[#allocation11 + $0x2c] sm:$0xf]
        %v10590 = vld [vmem:[#allocation11 + $0x30] sm:$0xf]
        %v10591 = vld [vmem:[#allocation11 + $0x34] sm:$0xf]
        %v10592 = vld [vmem:[#allocation11 + $0x38] sm:$0xf]
        %v10593 = vld [vmem:[#allocation11 + $0x3c] sm:$0xf]
        %v10594 = vld [vmem:[#allocation11 + $0x40] sm:$0xf]
        %v10595 = vld [vmem:[#allocation11 + $0x44] sm:$0xf]
        %v10596 = vld [vmem:[#allocation11 + $0x48] sm:$0xf]
        %v10597 = vld [vmem:[#allocation11 + $0x4c] sm:$0xf]
        %v10598 = vld [vmem:[#allocation11 + $0x50] sm:$0xf]
        %v10599 = vld [vmem:[#allocation11 + $0x54] sm:$0xf]
        %v10600 = vld [vmem:[#allocation11 + $0x58] sm:$0xf]
        %v10601 = vld [vmem:[#allocation11 + $0x5c] sm:$0xf]
        %v10602 = vld [vmem:[#allocation11 + $0x60] sm:$0xf]
        %v10603 = vld [vmem:[#allocation11 + $0x64] sm:$0xf]
        %v10604 = vld [vmem:[#allocation11 + $0x68] sm:$0xf]
        %v10605 = vld [vmem:[#allocation11 + $0x6c] sm:$0xf]
        %v10606 = vld [vmem:[#allocation11 + $0x70] sm:$0xf]
        %v10607 = vld [vmem:[#allocation11 + $0x74] sm:$0xf]
        %v10608 = vld [vmem:[#allocation11 + $0x78] sm:$0xf]
        %v10609 = vld [vmem:[#allocation11 + $0x7c] sm:$0xf]
        %v10610 = vld [vmem:[#allocation11 + $0x80] sm:$0xf]
        %v10611 = vld [vmem:[#allocation11 + $0x84] sm:$0xf]
        %v10612 = vld [vmem:[#allocation11 + $0x88] sm:$0xf]
        %v10613 = vld [vmem:[#allocation11 + $0x8c] sm:$0xf]
        %v10614 = vld [vmem:[#allocation11 + $0x90] sm:$0xf]
        %v10615 = vld [vmem:[#allocation11 + $0x94] sm:$0xf]
        %v10616 = vld [vmem:[#allocation11 + $0x98] sm:$0xf]
        %v10617 = vld [vmem:[#allocation11 + $0x9c] sm:$0xf]
        %v10618 = vld [vmem:[#allocation11 + $0xa0] sm:$0xf]
        %v10619 = vld [vmem:[#allocation11 + $0xa4] sm:$0xf]
        %v10620 = vld [vmem:[#allocation11 + $0xa8] sm:$0xf]
        %v10621 = vld [vmem:[#allocation11 + $0xac] sm:$0xf]
        %v10622 = vld [vmem:[#allocation11 + $0xb0] sm:$0xf]
        %v10623 = vld [vmem:[#allocation11 + $0xb4] sm:$0xf]
        %v10624 = vld [vmem:[#allocation11 + $0xb8] sm:$0xf]
        %v10625 = vld [vmem:[#allocation11 + $0xbc] sm:$0xf]
        %v10626 = vld [vmem:[#allocation11 + $0xc0] sm:$0xf]
        %v10627 = vld [vmem:[#allocation11 + $0xc4] sm:$0xf]
        %v10628 = vld [vmem:[#allocation11 + $0xc8] sm:$0xf]
        %v10629 = vld [vmem:[#allocation11 + $0xcc] sm:$0xf]
        %v10630 = vld [vmem:[#allocation11 + $0xd0] sm:$0xf]
        %v10631 = vld [vmem:[#allocation11 + $0xd4] sm:$0xf]
        %v10632 = vld [vmem:[#allocation11 + $0xd8] sm:$0xf]
        %v10633 = vld [vmem:[#allocation11 + $0xdc] sm:$0xf]
        %v10634 = vld [vmem:[#allocation11 + $0xe0] sm:$0xf]
        %v10635 = vld [vmem:[#allocation11 + $0xe4] sm:$0xf]
        %v10636 = vld [vmem:[#allocation11 + $0xe8] sm:$0xf]
        %v10637 = vld [vmem:[#allocation11 + $0xec] sm:$0xf]
        %v10638 = vld [vmem:[#allocation11 + $0xf0] sm:$0xf]
        %v10639 = vld [vmem:[#allocation11 + $0xf4] sm:$0xf]
        %v10640 = vld [vmem:[#allocation11 + $0xf8] sm:$0xf]
        %v10641 = vld [vmem:[#allocation11 + $0xfc] sm:$0xf]
        %v10642 = vld [vmem:[#allocation11 + $0x100] sm:$0xf]
        %v10643 = vld [vmem:[#allocation11 + $0x104] sm:$0xf]
        %v10644 = vld [vmem:[#allocation11 + $0x108] sm:$0xf]
        %v10645 = vld [vmem:[#allocation11 + $0x10c] sm:$0xf]
        %v10646 = vld [vmem:[#allocation11 + $0x110] sm:$0xf]
        %v10647 = vld [vmem:[#allocation11 + $0x114] sm:$0xf]
        %v10648 = vld [vmem:[#allocation11 + $0x118] sm:$0xf]
        %v10649 = vld [vmem:[#allocation11 + $0x11c] sm:$0xf]
        %v10650 = vld [vmem:[#allocation11 + $0x120] sm:$0xf]
        %v10651 = vld [vmem:[#allocation11 + $0x124] sm:$0xf]
        %v10652 = vld [vmem:[#allocation11 + $0x128] sm:$0xf]
        %v10653 = vld [vmem:[#allocation11 + $0x12c] sm:$0xf]
        %v10654 = vld [vmem:[#allocation11 + $0x130] sm:$0xf]
        %v10655 = vld [vmem:[#allocation11 + $0x134] sm:$0xf]
        %v10656 = vld [vmem:[#allocation11 + $0x138] sm:$0xf]
        %v10657 = vld [vmem:[#allocation11 + $0x13c] sm:$0xf]
        %v10658 = vld [vmem:[#allocation11 + $0x140] sm:$0xf]
        %v10659 = vld [vmem:[#allocation11 + $0x144] sm:$0xf]
        %v10660 = vld [vmem:[#allocation11 + $0x148] sm:$0xf]
        %v10661 = vld [vmem:[#allocation11 + $0x14c] sm:$0xf]
        %v10662 = vld [vmem:[#allocation11 + $0x150] sm:$0xf]
        %v10663 = vld [vmem:[#allocation11 + $0x154] sm:$0xf]
        %v10664 = vld [vmem:[#allocation11 + $0x158] sm:$0xf]
        %v10665 = vld [vmem:[#allocation11 + $0x15c] sm:$0xf]
        %v10666 = vld [vmem:[#allocation11 + $0x160] sm:$0xf]
        %v10667 = vld [vmem:[#allocation11 + $0x164] sm:$0xf]
        %v10668 = vld [vmem:[#allocation11 + $0x168] sm:$0xf]
        %v10669 = vld [vmem:[#allocation11 + $0x16c] sm:$0xf]
        %v10670 = vld [vmem:[#allocation11 + $0x170] sm:$0xf]
        %v10671 = vld [vmem:[#allocation11 + $0x174] sm:$0xf]
        %v10672 = vld [vmem:[#allocation11 + $0x178] sm:$0xf]
        %v10673 = vld [vmem:[#allocation11 + $0x17c] sm:$0xf]
        %v10674 = vld [vmem:[#allocation11 + $0x180] sm:$0xf]
        %v10675 = vld [vmem:[#allocation11 + $0x184] sm:$0xf]
        %v10676 = vld [vmem:[#allocation11 + $0x188] sm:$0xf]
        %v10677 = vld [vmem:[#allocation11 + $0x18c] sm:$0xf]
        %v10678 = vld [vmem:[#allocation11 + $0x190] sm:$0xf]
        %v10679 = vld [vmem:[#allocation11 + $0x194] sm:$0xf]
        %v10680 = vld [vmem:[#allocation11 + $0x198] sm:$0xf]
        %v10681 = vld [vmem:[#allocation11 + $0x19c] sm:$0xf]
        %v10682 = vld [vmem:[#allocation11 + $0x1a0] sm:$0xf]
        %v10683 = vld [vmem:[#allocation11 + $0x1a4] sm:$0xf]
        %v10684 = vld [vmem:[#allocation11 + $0x1a8] sm:$0xf]
        %v10685 = vld [vmem:[#allocation11 + $0x1ac] sm:$0xf]
        %v10686 = vld [vmem:[#allocation11 + $0x1b0] sm:$0xf]
        %v10687 = vld [vmem:[#allocation11 + $0x1b4] sm:$0xf]
        %v10688 = vld [vmem:[#allocation11 + $0x1b8] sm:$0xf]
        %v10689 = vld [vmem:[#allocation11 + $0x1bc] sm:$0xf]
        %v10690 = vld [vmem:[#allocation11 + $0x1c0] sm:$0xf]
        %v10691 = vld [vmem:[#allocation11 + $0x1c4] sm:$0xf]
        %v10692 = vld [vmem:[#allocation11 + $0x1c8] sm:$0xf]
        %v10693 = vld [vmem:[#allocation11 + $0x1cc] sm:$0xf]
        %v10694 = vld [vmem:[#allocation11 + $0x1d0] sm:$0xf]
        %v10695 = vld [vmem:[#allocation11 + $0x1d4] sm:$0xf]
        %v10696 = vld [vmem:[#allocation11 + $0x1d8] sm:$0xf]
        %v10697 = vld [vmem:[#allocation11 + $0x1dc] sm:$0xf]
        %v10698 = vld [vmem:[#allocation11 + $0x1e0] sm:$0xf]
        %v10699 = vld [vmem:[#allocation11 + $0x1e4] sm:$0xf]
        %v10700 = vld [vmem:[#allocation11 + $0x1e8] sm:$0xf]
        %v10701 = vld [vmem:[#allocation11 + $0x1ec] sm:$0xf]
        %v10702 = vld [vmem:[#allocation11 + $0x1f0] sm:$0xf]
        %v10703 = vld [vmem:[#allocation11 + $0x1f4] sm:$0xf]
        %v10704 = vld [vmem:[#allocation11 + $0x1f8] sm:$0xf]
        %v10705 = vld [vmem:[#allocation11 + $0x1fc] sm:$0xf]
        %v10706 = vld [vmem:[#allocation13] sm:$0x1]
        %v10708 = vlaneseq
        %v10709 = vshrl.u32 %v10708, 7
        %v10710 = vsub.s32 0, %v10709
        %v10711 = vrot.slane %v10706, %v10710
        %v10841 = vunpack.c.l.b16 %v10578
        %v10842 = vunpack.c.l.b16 %v10579
        %v10843 = vunpack.c.l.b16 %v10580
        %v10844 = vunpack.c.l.b16 %v10581
        %v10845 = vunpack.c.l.b16 %v10582
        %v10846 = vunpack.c.l.b16 %v10583
        %v10847 = vunpack.c.l.b16 %v10584
        %v10848 = vunpack.c.l.b16 %v10585
        %v10849 = vunpack.c.l.b16 %v10586
        %v10850 = vunpack.c.l.b16 %v10587
        %v10851 = vunpack.c.l.b16 %v10588
        %v10852 = vunpack.c.l.b16 %v10589
        %v10853 = vunpack.c.l.b16 %v10590
        %v10854 = vunpack.c.l.b16 %v10591
        %v10855 = vunpack.c.l.b16 %v10592
        %v10856 = vunpack.c.l.b16 %v10593
        %v10857 = vunpack.c.l.b16 %v10594
        %v10858 = vunpack.c.l.b16 %v10595
        %v10859 = vunpack.c.l.b16 %v10596
        %v10860 = vunpack.c.l.b16 %v10597
        %v10861 = vunpack.c.l.b16 %v10598
        %v10862 = vunpack.c.l.b16 %v10599
        %v10863 = vunpack.c.l.b16 %v10600
        %v10864 = vunpack.c.l.b16 %v10601
        %v10865 = vunpack.c.l.b16 %v10602
        %v10866 = vunpack.c.l.b16 %v10603
        %v10867 = vunpack.c.l.b16 %v10604
        %v10868 = vunpack.c.l.b16 %v10605
        %v10869 = vunpack.c.l.b16 %v10606
        %v10870 = vunpack.c.l.b16 %v10607
        %v10871 = vunpack.c.l.b16 %v10608
        %v10872 = vunpack.c.l.b16 %v10609
        %v10873 = vunpack.c.l.b16 %v10610
        %v10874 = vunpack.c.l.b16 %v10611
        %v10875 = vunpack.c.l.b16 %v10612
        %v10876 = vunpack.c.l.b16 %v10613
        %v10877 = vunpack.c.l.b16 %v10614
        %v10878 = vunpack.c.l.b16 %v10615
        %v10879 = vunpack.c.l.b16 %v10616
        %v10880 = vunpack.c.l.b16 %v10617
        %v10881 = vunpack.c.l.b16 %v10618
        %v10882 = vunpack.c.l.b16 %v10619
        %v10883 = vunpack.c.l.b16 %v10620
        %v10884 = vunpack.c.l.b16 %v10621
        %v10885 = vunpack.c.l.b16 %v10622
        %v10886 = vunpack.c.l.b16 %v10623
        %v10887 = vunpack.c.l.b16 %v10624
        %v10888 = vunpack.c.l.b16 %v10625
        %v10889 = vunpack.c.l.b16 %v10626
        %v10890 = vunpack.c.l.b16 %v10627
        %v10891 = vunpack.c.l.b16 %v10628
        %v10892 = vunpack.c.l.b16 %v10629
        %v10893 = vunpack.c.l.b16 %v10630
        %v10894 = vunpack.c.l.b16 %v10631
        %v10895 = vunpack.c.l.b16 %v10632
        %v10896 = vunpack.c.l.b16 %v10633
        %v10897 = vunpack.c.l.b16 %v10634
        %v10898 = vunpack.c.l.b16 %v10635
        %v10899 = vunpack.c.l.b16 %v10636
        %v10900 = vunpack.c.l.b16 %v10637
        %v10901 = vunpack.c.l.b16 %v10638
        %v10902 = vunpack.c.l.b16 %v10639
        %v10903 = vunpack.c.l.b16 %v10640
        %v10904 = vunpack.c.l.b16 %v10641
        %v10905 = vunpack.c.l.b16 %v10642
        %v10906 = vunpack.c.l.b16 %v10643
        %v10907 = vunpack.c.l.b16 %v10644
        %v10908 = vunpack.c.l.b16 %v10645
        %v10909 = vunpack.c.l.b16 %v10646
        %v10910 = vunpack.c.l.b16 %v10647
        %v10911 = vunpack.c.l.b16 %v10648
        %v10912 = vunpack.c.l.b16 %v10649
        %v10913 = vunpack.c.l.b16 %v10650
        %v10914 = vunpack.c.l.b16 %v10651
        %v10915 = vunpack.c.l.b16 %v10652
        %v10916 = vunpack.c.l.b16 %v10653
        %v10917 = vunpack.c.l.b16 %v10654
        %v10918 = vunpack.c.l.b16 %v10655
        %v10919 = vunpack.c.l.b16 %v10656
        %v10920 = vunpack.c.l.b16 %v10657
        %v10921 = vunpack.c.l.b16 %v10658
        %v10922 = vunpack.c.l.b16 %v10659
        %v10923 = vunpack.c.l.b16 %v10660
        %v10924 = vunpack.c.l.b16 %v10661
        %v10925 = vunpack.c.l.b16 %v10662
        %v10926 = vunpack.c.l.b16 %v10663
        %v10927 = vunpack.c.l.b16 %v10664
        %v10928 = vunpack.c.l.b16 %v10665
        %v10929 = vunpack.c.l.b16 %v10666
        %v10930 = vunpack.c.l.b16 %v10667
        %v10931 = vunpack.c.l.b16 %v10668
        %v10932 = vunpack.c.l.b16 %v10669
        %v10933 = vunpack.c.l.b16 %v10670
        %v10934 = vunpack.c.l.b16 %v10671
        %v10935 = vunpack.c.l.b16 %v10672
        %v10936 = vunpack.c.l.b16 %v10673
        %v10937 = vunpack.c.l.b16 %v10674
        %v10938 = vunpack.c.l.b16 %v10675
        %v10939 = vunpack.c.l.b16 %v10676
        %v10940 = vunpack.c.l.b16 %v10677
        %v10941 = vunpack.c.l.b16 %v10678
        %v10942 = vunpack.c.l.b16 %v10679
        %v10943 = vunpack.c.l.b16 %v10680
        %v10944 = vunpack.c.l.b16 %v10681
        %v10945 = vunpack.c.l.b16 %v10682
        %v10946 = vunpack.c.l.b16 %v10683
        %v10947 = vunpack.c.l.b16 %v10684
        %v10948 = vunpack.c.l.b16 %v10685
        %v10949 = vunpack.c.l.b16 %v10686
        %v10950 = vunpack.c.l.b16 %v10687
        %v10951 = vunpack.c.l.b16 %v10688
        %v10952 = vunpack.c.l.b16 %v10689
        %v10953 = vunpack.c.l.b16 %v10690
        %v10954 = vunpack.c.l.b16 %v10691
        %v10955 = vunpack.c.l.b16 %v10692
        %v10956 = vunpack.c.l.b16 %v10693
        %v10957 = vunpack.c.l.b16 %v10694
        %v10958 = vunpack.c.l.b16 %v10695
        %v10959 = vunpack.c.l.b16 %v10696
        %v10960 = vunpack.c.l.b16 %v10697
        %v10961 = vunpack.c.l.b16 %v10698
        %v10962 = vunpack.c.l.b16 %v10699
        %v10963 = vunpack.c.l.b16 %v10700
        %v10964 = vunpack.c.l.b16 %v10701
        %v10965 = vunpack.c.l.b16 %v10702
        %v10966 = vunpack.c.l.b16 %v10703
        %v10967 = vunpack.c.l.b16 %v10704
        %v10968 = vunpack.c.l.b16 %v10705
        %v10969 = vpack.c.b16 %v10842, %v10841
        %v10970 = vpack.c.b16 %v10844, %v10843
        %v10971 = vpack.c.b16 %v10846, %v10845
        %v10972 = vpack.c.b16 %v10848, %v10847
        %v10973 = vpack.c.b16 %v10850, %v10849
        %v10974 = vpack.c.b16 %v10852, %v10851
        %v10975 = vpack.c.b16 %v10854, %v10853
        %v10976 = vpack.c.b16 %v10856, %v10855
        %v10977 = vpack.c.b16 %v10858, %v10857
        %v10978 = vpack.c.b16 %v10860, %v10859
        %v10979 = vpack.c.b16 %v10862, %v10861
        %v10980 = vpack.c.b16 %v10864, %v10863
        %v10981 = vpack.c.b16 %v10866, %v10865
        %v10982 = vpack.c.b16 %v10868, %v10867
        %v10983 = vpack.c.b16 %v10870, %v10869
        %v10984 = vpack.c.b16 %v10872, %v10871
        %v10985 = vpack.c.b16 %v10874, %v10873
        %v10986 = vpack.c.b16 %v10876, %v10875
        %v10987 = vpack.c.b16 %v10878, %v10877
        %v10988 = vpack.c.b16 %v10880, %v10879
        %v10989 = vpack.c.b16 %v10882, %v10881
        %v10990 = vpack.c.b16 %v10884, %v10883
        %v10991 = vpack.c.b16 %v10886, %v10885
        %v10992 = vpack.c.b16 %v10888, %v10887
        %v10993 = vpack.c.b16 %v10890, %v10889
        %v10994 = vpack.c.b16 %v10892, %v10891
        %v10995 = vpack.c.b16 %v10894, %v10893
        %v10996 = vpack.c.b16 %v10896, %v10895
        %v10997 = vpack.c.b16 %v10898, %v10897
        %v10998 = vpack.c.b16 %v10900, %v10899
        %v10999 = vpack.c.b16 %v10902, %v10901
        %v11000 = vpack.c.b16 %v10904, %v10903
        %v11001 = vpack.c.b16 %v10906, %v10905
        %v11002 = vpack.c.b16 %v10908, %v10907
        %v11003 = vpack.c.b16 %v10910, %v10909
        %v11004 = vpack.c.b16 %v10912, %v10911
        %v11005 = vpack.c.b16 %v10914, %v10913
        %v11006 = vpack.c.b16 %v10916, %v10915
        %v11007 = vpack.c.b16 %v10918, %v10917
        %v11008 = vpack.c.b16 %v10920, %v10919
        %v11009 = vpack.c.b16 %v10922, %v10921
        %v11010 = vpack.c.b16 %v10924, %v10923
        %v11011 = vpack.c.b16 %v10926, %v10925
        %v11012 = vpack.c.b16 %v10928, %v10927
        %v11013 = vpack.c.b16 %v10930, %v10929
        %v11014 = vpack.c.b16 %v10932, %v10931
        %v11015 = vpack.c.b16 %v10934, %v10933
        %v11016 = vpack.c.b16 %v10936, %v10935
        %v11017 = vpack.c.b16 %v10938, %v10937
        %v11018 = vpack.c.b16 %v10940, %v10939
        %v11019 = vpack.c.b16 %v10942, %v10941
        %v11020 = vpack.c.b16 %v10944, %v10943
        %v11021 = vpack.c.b16 %v10946, %v10945
        %v11022 = vpack.c.b16 %v10948, %v10947
        %v11023 = vpack.c.b16 %v10950, %v10949
        %v11024 = vpack.c.b16 %v10952, %v10951
        %v11025 = vpack.c.b16 %v10954, %v10953
        %v11026 = vpack.c.b16 %v10956, %v10955
        %v11027 = vpack.c.b16 %v10958, %v10957
        %v11028 = vpack.c.b16 %v10960, %v10959
        %v11029 = vpack.c.b16 %v10962, %v10961
        %v11030 = vpack.c.b16 %v10964, %v10963
        %v11031 = vpack.c.b16 %v10966, %v10965
        %v11032 = vpack.c.b16 %v10968, %v10967
        %11097 = vmatprep.subr.bf16.mxu0 0
        %11098 = vmatpush1.bf16.msra.mxu0 %v10976
        %11099 = vmatprep.subr.bf16.mxu0 0
        %11100 = vmatpush1.bf16.msra.mxu0 %v10975
        %11101 = vmatprep.subr.bf16.mxu0 0
        %11102 = vmatpush1.bf16.msra.mxu0 %v10974
        %11103 = vmatprep.subr.bf16.mxu0 0
        %11104 = vmatpush1.bf16.msra.mxu0 %v10973
        %11105 = vmatprep.subr.bf16.mxu0 0
        %11106 = vmatpush1.bf16.msra.mxu0 %v10972
        %11107 = vmatprep.subr.bf16.mxu0 0
        %11108 = vmatpush1.bf16.msra.mxu0 %v10971
        %11109 = vmatprep.subr.bf16.mxu0 0
        %11110 = vmatpush1.bf16.msra.mxu0 %v10970
        %11111 = vmatprep.subr.bf16.mxu0 0
        %11112 = vmatpush1.bf16.msra.mxu0 %v10969
        %11113 = vmatprep.subr.bf16.mxu0 0
        %11114 = vmatpush2.bf16.msra.mxu0 %v10984
        %11115 = vmatprep.subr.bf16.mxu0 0
        %11116 = vmatpush2.bf16.msra.mxu0 %v10983
        %11117 = vmatprep.subr.bf16.mxu0 0
        %11118 = vmatpush2.bf16.msra.mxu0 %v10982
        %11119 = vmatprep.subr.bf16.mxu0 0
        %11120 = vmatpush2.bf16.msra.mxu0 %v10981
        %11121 = vmatprep.subr.bf16.mxu0 0
        %11122 = vmatpush2.bf16.msra.mxu0 %v10980
        %11123 = vmatprep.subr.bf16.mxu0 0
        %11124 = vmatpush2.bf16.msra.mxu0 %v10979
        %11125 = vmatprep.subr.bf16.mxu0 0
        %11126 = vmatpush2.bf16.msra.mxu0 %v10978
        %11127 = vmatprep.subr.bf16.mxu0 0
        %11128 = vmatpush2.bf16.msra.mxu0 %v10977
        %11129 = vmatprep.mubr.bf16.mxu0 %v10515
        %11130 = vmatmul.mubr.bf16.gmra.mxu0 %v10514
        %v11131 = vpop.f32.mrf.mxu0
        %v11132 = vadd.f32 %v10711, %v11131
        %v11133 = vpop.f32.mrf.mxu0
        %v11134 = vpop.f32.mrf.mxu0
        %v11135 = vadd.f32 %v10711, %v11134
        %v11136 = vpop.f32.mrf.mxu0
        %11137 = vmatprep.mubr.bf16.mxu0 %v10523
        %11138 = vmatmul.mubr.bf16.gmra.mxu0 %v10522
        %v11139 = vpop.f32.mrf.mxu0
        %v11140 = vadd.f32 %v10711, %v11139
        %v11141 = vpop.f32.mrf.mxu0
        %v11142 = vpop.f32.mrf.mxu0
        %v11143 = vadd.f32 %v10711, %v11142
        %v11144 = vpop.f32.mrf.mxu0
        %11145 = vmatprep.mubr.bf16.mxu0 %v10531
        %11146 = vmatmul.mubr.bf16.gmra.mxu0 %v10530
        %v11147 = vpop.f32.mrf.mxu0
        %v11148 = vadd.f32 %v10711, %v11147
        %v11149 = vpop.f32.mrf.mxu0
        %v11150 = vpop.f32.mrf.mxu0
        %v11151 = vadd.f32 %v10711, %v11150
        %v11152 = vpop.f32.mrf.mxu0
        %11153 = vmatprep.mubr.bf16.mxu0 %v10539
        %11154 = vmatmul.mubr.bf16.gmra.mxu0 %v10538
        %v11155 = vpop.f32.mrf.mxu0
        %v11156 = vadd.f32 %v10711, %v11155
        %v11157 = vpop.f32.mrf.mxu0
        %v11158 = vpop.f32.mrf.mxu0
        %v11159 = vadd.f32 %v10711, %v11158
        %v11160 = vpop.f32.mrf.mxu0
        %11161 = vmatprep.mubr.bf16.mxu0 %v10547
        %11162 = vmatmul.mubr.bf16.gmra.mxu0 %v10546
        %v11163 = vpop.f32.mrf.mxu0
        %v11164 = vadd.f32 %v10711, %v11163
        %v11165 = vpop.f32.mrf.mxu0
        %v11166 = vpop.f32.mrf.mxu0
        %v11167 = vadd.f32 %v10711, %v11166
        %v11168 = vpop.f32.mrf.mxu0
        %11169 = vmatprep.mubr.bf16.mxu0 %v10555
        %11170 = vmatmul.mubr.bf16.gmra.mxu0 %v10554
        %v11171 = vpop.f32.mrf.mxu0
        %v11172 = vadd.f32 %v10711, %v11171
        %v11173 = vpop.f32.mrf.mxu0
        %v11174 = vpop.f32.mrf.mxu0
        %v11175 = vadd.f32 %v10711, %v11174
        %v11176 = vpop.f32.mrf.mxu0
        %11177 = vmatprep.mubr.bf16.mxu0 %v10563
        %11178 = vmatmul.mubr.bf16.gmra.mxu0 %v10562
        %v11179 = vpop.f32.mrf.mxu0
        %v11180 = vadd.f32 %v10711, %v11179
        %v11181 = vpop.f32.mrf.mxu0
        %v11182 = vpop.f32.mrf.mxu0
        %v11183 = vadd.f32 %v10711, %v11182
        %v11184 = vpop.f32.mrf.mxu0
        %11185 = vmatprep.mubr.bf16.mxu0 %v10571
        %11186 = vmatmul.mubr.bf16.gmra.mxu0 %v10570
        %v11187 = vpop.f32.mrf.mxu0
        %v11188 = vadd.f32 %v10711, %v11187
        %v11189 = vpop.f32.mrf.mxu0
        %v11190 = vpop.f32.mrf.mxu0
        %v11191 = vadd.f32 %v10711, %v11190
        %v11192 = vpop.f32.mrf.mxu0
        %11193 = vdwg.mxu0
        %11194 = vmatprep.subr.bf16.mxu0 0
        %11195 = vmatpush1.bf16.msra.mxu0 %v10992
        %11196 = vmatprep.subr.bf16.mxu0 0
        %11197 = vmatpush1.bf16.msra.mxu0 %v10991
        %11198 = vmatprep.subr.bf16.mxu0 0
        %11199 = vmatpush1.bf16.msra.mxu0 %v10990
        %11200 = vmatprep.subr.bf16.mxu0 0
        %11201 = vmatpush1.bf16.msra.mxu0 %v10989
        %11202 = vmatprep.subr.bf16.mxu0 0
        %11203 = vmatpush1.bf16.msra.mxu0 %v10988
        %11204 = vmatprep.subr.bf16.mxu0 0
        %11205 = vmatpush1.bf16.msra.mxu0 %v10987
        %11206 = vmatprep.subr.bf16.mxu0 0
        %11207 = vmatpush1.bf16.msra.mxu0 %v10986
        %11208 = vmatprep.subr.bf16.mxu0 0
        %11209 = vmatpush1.bf16.msra.mxu0 %v10985
        %11210 = vmatprep.subr.bf16.mxu0 0
        %11211 = vmatpush2.bf16.msra.mxu0 %v11000
        %11212 = vmatprep.subr.bf16.mxu0 0
        %11213 = vmatpush2.bf16.msra.mxu0 %v10999
        %11214 = vmatprep.subr.bf16.mxu0 0
        %11215 = vmatpush2.bf16.msra.mxu0 %v10998
        %11216 = vmatprep.subr.bf16.mxu0 0
        %11217 = vmatpush2.bf16.msra.mxu0 %v10997
        %11218 = vmatprep.subr.bf16.mxu0 0
        %11219 = vmatpush2.bf16.msra.mxu0 %v10996
        %11220 = vmatprep.subr.bf16.mxu0 0
        %11221 = vmatpush2.bf16.msra.mxu0 %v10995
        %11222 = vmatprep.subr.bf16.mxu0 0
        %11223 = vmatpush2.bf16.msra.mxu0 %v10994
        %11224 = vmatprep.subr.bf16.mxu0 0
        %11225 = vmatpush2.bf16.msra.mxu0 %v10993
        %11226 = vmatprep.mubr.bf16.mxu0 %v10517
        %11227 = vmatmul.mubr.bf16.gmra.mxu0 %v10516
        %v11228 = vpop.f32.mrf.mxu0
        %v11229 = vadd.f32 %v11132, %v11228
        %v11230 = vpop.f32.mrf.mxu0
        %v11231 = vpop.f32.mrf.mxu0
        %v11232 = vadd.f32 %v11135, %v11231
        %v11233 = vpop.f32.mrf.mxu0
        %11234 = vmatprep.mubr.bf16.mxu0 %v10525
        %11235 = vmatmul.mubr.bf16.gmra.mxu0 %v10524
        %v11236 = vpop.f32.mrf.mxu0
        %v11237 = vadd.f32 %v11140, %v11236
        %v11238 = vpop.f32.mrf.mxu0
        %v11239 = vpop.f32.mrf.mxu0
        %v11240 = vadd.f32 %v11143, %v11239
        %v11241 = vpop.f32.mrf.mxu0
        %11242 = vmatprep.mubr.bf16.mxu0 %v10533
        %11243 = vmatmul.mubr.bf16.gmra.mxu0 %v10532
        %v11244 = vpop.f32.mrf.mxu0
        %v11245 = vadd.f32 %v11148, %v11244
        %v11246 = vpop.f32.mrf.mxu0
        %v11247 = vpop.f32.mrf.mxu0
        %v11248 = vadd.f32 %v11151, %v11247
        %v11249 = vpop.f32.mrf.mxu0
        %11250 = vmatprep.mubr.bf16.mxu0 %v10541
        %11251 = vmatmul.mubr.bf16.gmra.mxu0 %v10540
        %v11252 = vpop.f32.mrf.mxu0
        %v11253 = vadd.f32 %v11156, %v11252
        %v11254 = vpop.f32.mrf.mxu0
        %v11255 = vpop.f32.mrf.mxu0
        %v11256 = vadd.f32 %v11159, %v11255
        %v11257 = vpop.f32.mrf.mxu0
        %11258 = vmatprep.mubr.bf16.mxu0 %v10549
        %11259 = vmatmul.mubr.bf16.gmra.mxu0 %v10548
        %v11260 = vpop.f32.mrf.mxu0
        %v11261 = vadd.f32 %v11164, %v11260
        %v11262 = vpop.f32.mrf.mxu0
        %v11263 = vpop.f32.mrf.mxu0
        %v11264 = vadd.f32 %v11167, %v11263
        %v11265 = vpop.f32.mrf.mxu0
        %11266 = vmatprep.mubr.bf16.mxu0 %v10557
        %11267 = vmatmul.mubr.bf16.gmra.mxu0 %v10556
        %v11268 = vpop.f32.mrf.mxu0
        %v11269 = vadd.f32 %v11172, %v11268
        %v11270 = vpop.f32.mrf.mxu0
        %v11271 = vpop.f32.mrf.mxu0
        %v11272 = vadd.f32 %v11175, %v11271
        %v11273 = vpop.f32.mrf.mxu0
        %11274 = vmatprep.mubr.bf16.mxu0 %v10565
        %11275 = vmatmul.mubr.bf16.gmra.mxu0 %v10564
        %v11276 = vpop.f32.mrf.mxu0
        %v11277 = vadd.f32 %v11180, %v11276
        %v11278 = vpop.f32.mrf.mxu0
        %v11279 = vpop.f32.mrf.mxu0
        %v11280 = vadd.f32 %v11183, %v11279
        %v11281 = vpop.f32.mrf.mxu0
        %11282 = vmatprep.mubr.bf16.mxu0 %v10573
        %11283 = vmatmul.mubr.bf16.gmra.mxu0 %v10572
        %v11284 = vpop.f32.mrf.mxu0
        %v11285 = vadd.f32 %v11188, %v11284
        %v11286 = vpop.f32.mrf.mxu0
        %v11287 = vpop.f32.mrf.mxu0
        %v11288 = vadd.f32 %v11191, %v11287
        %v11289 = vpop.f32.mrf.mxu0
        %11290 = vdwg.mxu0
        %11291 = vmatprep.subr.bf16.mxu0 0
        %11292 = vmatpush1.bf16.msra.mxu0 %v11008
        %11293 = vmatprep.subr.bf16.mxu0 0
        %11294 = vmatpush1.bf16.msra.mxu0 %v11007
        %11295 = vmatprep.subr.bf16.mxu0 0
        %11296 = vmatpush1.bf16.msra.mxu0 %v11006
        %11297 = vmatprep.subr.bf16.mxu0 0
        %11298 = vmatpush1.bf16.msra.mxu0 %v11005
        %11299 = vmatprep.subr.bf16.mxu0 0
        %11300 = vmatpush1.bf16.msra.mxu0 %v11004
        %11301 = vmatprep.subr.bf16.mxu0 0
        %11302 = vmatpush1.bf16.msra.mxu0 %v11003
        %11303 = vmatprep.subr.bf16.mxu0 0
        %11304 = vmatpush1.bf16.msra.mxu0 %v11002
        %11305 = vmatprep.subr.bf16.mxu0 0
        %11306 = vmatpush1.bf16.msra.mxu0 %v11001
        %11307 = vmatprep.subr.bf16.mxu0 0
        %11308 = vmatpush2.bf16.msra.mxu0 %v11016
        %11309 = vmatprep.subr.bf16.mxu0 0
        %11310 = vmatpush2.bf16.msra.mxu0 %v11015
        %11311 = vmatprep.subr.bf16.mxu0 0
        %11312 = vmatpush2.bf16.msra.mxu0 %v11014
        %11313 = vmatprep.subr.bf16.mxu0 0
        %11314 = vmatpush2.bf16.msra.mxu0 %v11013
        %11315 = vmatprep.subr.bf16.mxu0 0
        %11316 = vmatpush2.bf16.msra.mxu0 %v11012
        %11317 = vmatprep.subr.bf16.mxu0 0
        %11318 = vmatpush2.bf16.msra.mxu0 %v11011
        %11319 = vmatprep.subr.bf16.mxu0 0
        %11320 = vmatpush2.bf16.msra.mxu0 %v11010
        %11321 = vmatprep.subr.bf16.mxu0 0
        %11322 = vmatpush2.bf16.msra.mxu0 %v11009
        %11323 = vmatprep.mubr.bf16.mxu0 %v10519
        %11324 = vmatmul.mubr.bf16.gmra.mxu0 %v10518
        %v11325 = vpop.f32.mrf.mxu0
        %v11326 = vadd.f32 %v11229, %v11325
        %v11327 = vpop.f32.mrf.mxu0
        %v11328 = vpop.f32.mrf.mxu0
        %v11329 = vadd.f32 %v11232, %v11328
        %v11330 = vpop.f32.mrf.mxu0
        %11331 = vmatprep.mubr.bf16.mxu0 %v10527
        %11332 = vmatmul.mubr.bf16.gmra.mxu0 %v10526
        %v11333 = vpop.f32.mrf.mxu0
        %v11334 = vadd.f32 %v11237, %v11333
        %v11335 = vpop.f32.mrf.mxu0
        %v11336 = vpop.f32.mrf.mxu0
        %v11337 = vadd.f32 %v11240, %v11336
        %v11338 = vpop.f32.mrf.mxu0
        %11339 = vmatprep.mubr.bf16.mxu0 %v10535
        %11340 = vmatmul.mubr.bf16.gmra.mxu0 %v10534
        %v11341 = vpop.f32.mrf.mxu0
        %v11342 = vadd.f32 %v11245, %v11341
        %v11343 = vpop.f32.mrf.mxu0
        %v11344 = vpop.f32.mrf.mxu0
        %v11345 = vadd.f32 %v11248, %v11344
        %v11346 = vpop.f32.mrf.mxu0
        %11347 = vmatprep.mubr.bf16.mxu0 %v10543
        %11348 = vmatmul.mubr.bf16.gmra.mxu0 %v10542
        %v11349 = vpop.f32.mrf.mxu0
        %v11350 = vadd.f32 %v11253, %v11349
        %v11351 = vpop.f32.mrf.mxu0
        %v11352 = vpop.f32.mrf.mxu0
        %v11353 = vadd.f32 %v11256, %v11352
        %v11354 = vpop.f32.mrf.mxu0
        %11355 = vmatprep.mubr.bf16.mxu0 %v10551
        %11356 = vmatmul.mubr.bf16.gmra.mxu0 %v10550
        %v11357 = vpop.f32.mrf.mxu0
        %v11358 = vadd.f32 %v11261, %v11357
        %v11359 = vpop.f32.mrf.mxu0
        %v11360 = vpop.f32.mrf.mxu0
        %v11361 = vadd.f32 %v11264, %v11360
        %v11362 = vpop.f32.mrf.mxu0
        %11363 = vmatprep.mubr.bf16.mxu0 %v10559
        %11364 = vmatmul.mubr.bf16.gmra.mxu0 %v10558
        %v11365 = vpop.f32.mrf.mxu0
        %v11366 = vadd.f32 %v11269, %v11365
        %v11367 = vpop.f32.mrf.mxu0
        %v11368 = vpop.f32.mrf.mxu0
        %v11369 = vadd.f32 %v11272, %v11368
        %v11370 = vpop.f32.mrf.mxu0
        %11371 = vmatprep.mubr.bf16.mxu0 %v10567
        %11372 = vmatmul.mubr.bf16.gmra.mxu0 %v10566
        %v11373 = vpop.f32.mrf.mxu0
        %v11374 = vadd.f32 %v11277, %v11373
        %v11375 = vpop.f32.mrf.mxu0
        %v11376 = vpop.f32.mrf.mxu0
        %v11377 = vadd.f32 %v11280, %v11376
        %v11378 = vpop.f32.mrf.mxu0
        %11379 = vmatprep.mubr.bf16.mxu0 %v10575
        %11380 = vmatmul.mubr.bf16.gmra.mxu0 %v10574
        %v11381 = vpop.f32.mrf.mxu0
        %v11382 = vadd.f32 %v11285, %v11381
        %v11383 = vpop.f32.mrf.mxu0
        %v11384 = vpop.f32.mrf.mxu0
        %v11385 = vadd.f32 %v11288, %v11384
        %v11386 = vpop.f32.mrf.mxu0
        %11387 = vdwg.mxu0
        %11388 = vmatprep.subr.bf16.mxu0 0
        %11389 = vmatpush1.bf16.msra.mxu0 %v11024
        %11390 = vmatprep.subr.bf16.mxu0 0
        %11391 = vmatpush1.bf16.msra.mxu0 %v11023
        %11392 = vmatprep.subr.bf16.mxu0 0
        %11393 = vmatpush1.bf16.msra.mxu0 %v11022
        %11394 = vmatprep.subr.bf16.mxu0 0
        %11395 = vmatpush1.bf16.msra.mxu0 %v11021
        %11396 = vmatprep.subr.bf16.mxu0 0
        %11397 = vmatpush1.bf16.msra.mxu0 %v11020
        %11398 = vmatprep.subr.bf16.mxu0 0
        %11399 = vmatpush1.bf16.msra.mxu0 %v11019
        %11400 = vmatprep.subr.bf16.mxu0 0
        %11401 = vmatpush1.bf16.msra.mxu0 %v11018
        %11402 = vmatprep.subr.bf16.mxu0 0
        %11403 = vmatpush1.bf16.msra.mxu0 %v11017
        %11404 = vmatprep.subr.bf16.mxu0 0
        %11405 = vmatpush2.bf16.msra.mxu0 %v11032
        %11406 = vmatprep.subr.bf16.mxu0 0
        %11407 = vmatpush2.bf16.msra.mxu0 %v11031
        %11408 = vmatprep.subr.bf16.mxu0 0
        %11409 = vmatpush2.bf16.msra.mxu0 %v11030
        %11410 = vmatprep.subr.bf16.mxu0 0
        %11411 = vmatpush2.bf16.msra.mxu0 %v11029
        %11412 = vmatprep.subr.bf16.mxu0 0
        %11413 = vmatpush2.bf16.msra.mxu0 %v11028
        %11414 = vmatprep.subr.bf16.mxu0 0
        %11415 = vmatpush2.bf16.msra.mxu0 %v11027
        %11416 = vmatprep.subr.bf16.mxu0 0
        %11417 = vmatpush2.bf16.msra.mxu0 %v11026
        %11418 = vmatprep.subr.bf16.mxu0 0
        %11419 = vmatpush2.bf16.msra.mxu0 %v11025
        %11420 = vmatprep.mubr.bf16.mxu0 %v10521
        %11421 = vmatmul.mubr.bf16.gmra.mxu0 %v10520
        %v11422 = vpop.f32.mrf.mxu0
        %v11423 = vadd.f32 %v11326, %v11422
        %v11424 = vpop.f32.mrf.mxu0
        %v11425 = vpop.f32.mrf.mxu0
        %v11426 = vadd.f32 %v11329, %v11425
        %v11427 = vpop.f32.mrf.mxu0
        %11428 = vmatprep.mubr.bf16.mxu0 %v10529
        %11429 = vmatmul.mubr.bf16.gmra.mxu0 %v10528
        %v11430 = vpop.f32.mrf.mxu0
        %v11431 = vadd.f32 %v11334, %v11430
        %v11432 = vpop.f32.mrf.mxu0
        %v11433 = vpop.f32.mrf.mxu0
        %v11434 = vadd.f32 %v11337, %v11433
        %v11435 = vpop.f32.mrf.mxu0
        %11436 = vmatprep.mubr.bf16.mxu0 %v10537
        %11437 = vmatmul.mubr.bf16.gmra.mxu0 %v10536
        %v11438 = vpop.f32.mrf.mxu0
        %v11439 = vadd.f32 %v11342, %v11438
        %v11440 = vpop.f32.mrf.mxu0
        %v11441 = vpop.f32.mrf.mxu0
        %v11442 = vadd.f32 %v11345, %v11441
        %v11443 = vpop.f32.mrf.mxu0
        %11444 = vmatprep.mubr.bf16.mxu0 %v10545
        %11445 = vmatmul.mubr.bf16.gmra.mxu0 %v10544
        %v11446 = vpop.f32.mrf.mxu0
        %v11447 = vadd.f32 %v11350, %v11446
        %v11448 = vpop.f32.mrf.mxu0
        %v11449 = vpop.f32.mrf.mxu0
        %v11450 = vadd.f32 %v11353, %v11449
        %v11451 = vpop.f32.mrf.mxu0
        %11452 = vmatprep.mubr.bf16.mxu0 %v10553
        %11453 = vmatmul.mubr.bf16.gmra.mxu0 %v10552
        %v11454 = vpop.f32.mrf.mxu0
        %v11455 = vadd.f32 %v11358, %v11454
        %v11456 = vpop.f32.mrf.mxu0
        %v11457 = vpop.f32.mrf.mxu0
        %v11458 = vadd.f32 %v11361, %v11457
        %v11459 = vpop.f32.mrf.mxu0
        %11460 = vmatprep.mubr.bf16.mxu0 %v10561
        %11461 = vmatmul.mubr.bf16.gmra.mxu0 %v10560
        %v11462 = vpop.f32.mrf.mxu0
        %v11463 = vadd.f32 %v11366, %v11462
        %v11464 = vpop.f32.mrf.mxu0
        %v11465 = vpop.f32.mrf.mxu0
        %v11466 = vadd.f32 %v11369, %v11465
        %v11467 = vpop.f32.mrf.mxu0
        %11468 = vmatprep.mubr.bf16.mxu0 %v10569
        %11469 = vmatmul.mubr.bf16.gmra.mxu0 %v10568
        %v11470 = vpop.f32.mrf.mxu0
        %v11471 = vadd.f32 %v11374, %v11470
        %v11472 = vpop.f32.mrf.mxu0
        %v11473 = vpop.f32.mrf.mxu0
        %v11474 = vadd.f32 %v11377, %v11473
        %v11475 = vpop.f32.mrf.mxu0
        %11476 = vmatprep.mubr.bf16.mxu0 %v10577
        %11477 = vmatmul.mubr.bf16.gmra.mxu0 %v10576
        %v11478 = vpop.f32.mrf.mxu0
        %v11479 = vadd.f32 %v11382, %v11478
        %v11480 = vpop.f32.mrf.mxu0
        %v11481 = vpop.f32.mrf.mxu0
        %v11482 = vadd.f32 %v11385, %v11481
        %v11483 = vpop.f32.mrf.mxu0
        %11484 = vdwg.mxu0
        %11485 = vmax.xlane.f32.xlu0 %v11423
        %v11486 = vpop.xlane.xlu0 %11485
        %11487 = vmax.xlane.f32.xlu0 %v11426
        %v11488 = vpop.xlane.xlu0 %11487
        %11489 = vmax.xlane.f32.xlu0 %v11431
        %v11490 = vpop.xlane.xlu0 %11489
        %11491 = vmax.xlane.f32.xlu0 %v11434
        %v11492 = vpop.xlane.xlu0 %11491
        %11493 = vmax.xlane.f32.xlu0 %v11439
        %v11494 = vpop.xlane.xlu0 %11493
        %11495 = vmax.xlane.f32.xlu0 %v11442
        %v11496 = vpop.xlane.xlu0 %11495
        %11497 = vmax.xlane.f32.xlu0 %v11447
        %v11498 = vpop.xlane.xlu0 %11497
        %11499 = vmax.xlane.f32.xlu0 %v11450
        %v11500 = vpop.xlane.xlu0 %11499
        %11501 = vmax.xlane.f32.xlu0 %v11455
        %v11502 = vpop.xlane.xlu0 %11501
        %11503 = vmax.xlane.f32.xlu0 %v11458
        %v11504 = vpop.xlane.xlu0 %11503
        %11505 = vmax.xlane.f32.xlu0 %v11463
        %v11506 = vpop.xlane.xlu0 %11505
        %11507 = vmax.xlane.f32.xlu0 %v11466
        %v11508 = vpop.xlane.xlu0 %11507
        %11509 = vmax.xlane.f32.xlu0 %v11471
        %v11510 = vpop.xlane.xlu0 %11509
        %11511 = vmax.xlane.f32.xlu0 %v11474
        %v11512 = vpop.xlane.xlu0 %11511
        %11513 = vmax.xlane.f32.xlu0 %v11479
        %v11514 = vpop.xlane.xlu0 %11513
        %11515 = vmax.xlane.f32.xlu0 %v11482
        %v11516 = vpop.xlane.xlu0 %11515
        %v11517 = vsub.f32 %v11423, %v11486
        %v11518 = vsub.f32 %v11426, %v11488
        %v11519 = vsub.f32 %v11431, %v11490
        %v11520 = vsub.f32 %v11434, %v11492
        %v11521 = vsub.f32 %v11439, %v11494
        %v11522 = vsub.f32 %v11442, %v11496
        %v11523 = vsub.f32 %v11447, %v11498
        %v11524 = vsub.f32 %v11450, %v11500
        %v11525 = vsub.f32 %v11455, %v11502
        %v11526 = vsub.f32 %v11458, %v11504
        %v11527 = vsub.f32 %v11463, %v11506
        %v11528 = vsub.f32 %v11466, %v11508
        %v11529 = vsub.f32 %v11471, %v11510
        %v11530 = vsub.f32 %v11474, %v11512
        %v11531 = vsub.f32 %v11479, %v11514
        %v11532 = vsub.f32 %v11482, %v11516
        %v11533 = vmul.f32 %v11517, 1.442695
        %v11534 = vpow.pop %v11533
        %v11535 = vmul.f32 %v11518, 1.442695
        %v11536 = vpow.pop %v11535
        %v11537 = vmul.f32 %v11519, 1.442695
        %v11538 = vpow.pop %v11537
        %v11539 = vmul.f32 %v11520, 1.442695
        %v11540 = vpow.pop %v11539
        %v11541 = vmul.f32 %v11521, 1.442695
        %v11542 = vpow.pop %v11541
        %v11543 = vmul.f32 %v11522, 1.442695
        %v11544 = vpow.pop %v11543
        %v11545 = vmul.f32 %v11523, 1.442695
        %v11546 = vpow.pop %v11545
        %v11547 = vmul.f32 %v11524, 1.442695
        %v11548 = vpow.pop %v11547
        %v11549 = vmul.f32 %v11525, 1.442695
        %v11550 = vpow.pop %v11549
        %v11551 = vmul.f32 %v11526, 1.442695
        %v11552 = vpow.pop %v11551
        %v11553 = vmul.f32 %v11527, 1.442695
        %v11554 = vpow.pop %v11553
        %v11555 = vmul.f32 %v11528, 1.442695
        %v11556 = vpow.pop %v11555
        %v11557 = vmul.f32 %v11529, 1.442695
        %v11558 = vpow.pop %v11557
        %v11559 = vmul.f32 %v11530, 1.442695
        %v11560 = vpow.pop %v11559
        %v11561 = vmul.f32 %v11531, 1.442695
        %v11562 = vpow.pop %v11561
        %v11563 = vmul.f32 %v11532, 1.442695
        %v11564 = vpow.pop %v11563
        %11565 = vadd.xlane.f32.xlu0 %v11534
        %v11566 = vpop.xlane.xlu0 %11565
        %11567 = vadd.xlane.f32.xlu0 %v11536
        %v11568 = vpop.xlane.xlu0 %11567
        %11569 = vadd.xlane.f32.xlu0 %v11538
        %v11570 = vpop.xlane.xlu0 %11569
        %11571 = vadd.xlane.f32.xlu0 %v11540
        %v11572 = vpop.xlane.xlu0 %11571
        %11573 = vadd.xlane.f32.xlu0 %v11542
        %v11574 = vpop.xlane.xlu0 %11573
        %11575 = vadd.xlane.f32.xlu0 %v11544
        %v11576 = vpop.xlane.xlu0 %11575
        %11577 = vadd.xlane.f32.xlu0 %v11546
        %v11578 = vpop.xlane.xlu0 %11577
        %11579 = vadd.xlane.f32.xlu0 %v11548
        %v11580 = vpop.xlane.xlu0 %11579
        %11581 = vadd.xlane.f32.xlu0 %v11550
        %v11582 = vpop.xlane.xlu0 %11581
        %11583 = vadd.xlane.f32.xlu0 %v11552
        %v11584 = vpop.xlane.xlu0 %11583
        %11585 = vadd.xlane.f32.xlu0 %v11554
        %v11586 = vpop.xlane.xlu0 %11585
        %11587 = vadd.xlane.f32.xlu0 %v11556
        %v11588 = vpop.xlane.xlu0 %11587
        %11589 = vadd.xlane.f32.xlu0 %v11558
        %v11590 = vpop.xlane.xlu0 %11589
        %11591 = vadd.xlane.f32.xlu0 %v11560
        %v11592 = vpop.xlane.xlu0 %11591
        %11593 = vadd.xlane.f32.xlu0 %v11562
        %v11594 = vpop.xlane.xlu0 %11593
        %11595 = vadd.xlane.f32.xlu0 %v11564
        %v11596 = vpop.xlane.xlu0 %11595
        %v11597 = vlog2.pop %v11566
        %v11598 = vmul.f32 %v11597, 0.6931472
        %v11599 = vlog2.pop %v11568
        %v11600 = vmul.f32 %v11599, 0.6931472
        %v11601 = vlog2.pop %v11570
        %v11602 = vmul.f32 %v11601, 0.6931472
        %v11603 = vlog2.pop %v11572
        %v11604 = vmul.f32 %v11603, 0.6931472
        %v11605 = vlog2.pop %v11574
        %v11606 = vmul.f32 %v11605, 0.6931472
        %v11607 = vlog2.pop %v11576
        %v11608 = vmul.f32 %v11607, 0.6931472
        %v11609 = vlog2.pop %v11578
        %v11610 = vmul.f32 %v11609, 0.6931472
        %v11611 = vlog2.pop %v11580
        %v11612 = vmul.f32 %v11611, 0.6931472
        %v11613 = vlog2.pop %v11582
        %v11614 = vmul.f32 %v11613, 0.6931472
        %v11615 = vlog2.pop %v11584
        %v11616 = vmul.f32 %v11615, 0.6931472
        %v11617 = vlog2.pop %v11586
        %v11618 = vmul.f32 %v11617, 0.6931472
        %v11619 = vlog2.pop %v11588
        %v11620 = vmul.f32 %v11619, 0.6931472
        %v11621 = vlog2.pop %v11590
        %v11622 = vmul.f32 %v11621, 0.6931472
        %v11623 = vlog2.pop %v11592
        %v11624 = vmul.f32 %v11623, 0.6931472
        %v11625 = vlog2.pop %v11594
        %v11626 = vmul.f32 %v11625, 0.6931472
        %v11627 = vlog2.pop %v11596
        %v11628 = vmul.f32 %v11627, 0.6931472
        %v11629 = vsub.f32 %v11517, %v11598
        %v11630 = vsub.f32 %v11518, %v11600
        %v11631 = vsub.f32 %v11519, %v11602
        %v11632 = vsub.f32 %v11520, %v11604
        %v11633 = vsub.f32 %v11521, %v11606
        %v11634 = vsub.f32 %v11522, %v11608
        %v11635 = vsub.f32 %v11523, %v11610
        %v11636 = vsub.f32 %v11524, %v11612
        %v11637 = vsub.f32 %v11525, %v11614
        %v11638 = vsub.f32 %v11526, %v11616
        %v11639 = vsub.f32 %v11527, %v11618
        %v11640 = vsub.f32 %v11528, %v11620
        %v11641 = vsub.f32 %v11529, %v11622
        %v11642 = vsub.f32 %v11530, %v11624
        %v11643 = vsub.f32 %v11531, %v11626
        %v11644 = vsub.f32 %v11532, %v11628
        %11645 = vst [vmem:[%s378] sm:$0xff] %v11629
        %11646 = vst [vmem:[%s378 + $0x8] sm:$0xff] %v11630
        %11647 = vst [vmem:[%s378 + $0x10] sm:$0xff] %v11631
        %11648 = vst [vmem:[%s378 + $0x18] sm:$0xff] %v11632
        %11649 = vst [vmem:[%s378 + $0x20] sm:$0xff] %v11633
        %11650 = vst [vmem:[%s378 + $0x28] sm:$0xff] %v11634
        %11651 = vst [vmem:[%s378 + $0x30] sm:$0xff] %v11635
        %11652 = vst [vmem:[%s378 + $0x38] sm:$0xff] %v11636
        %11653 = vst [vmem:[%s378 + $0x40] sm:$0xff] %v11637
        %11654 = vst [vmem:[%s378 + $0x48] sm:$0xff] %v11638
        %11655 = vst [vmem:[%s378 + $0x50] sm:$0xff] %v11639
        %11656 = vst [vmem:[%s378 + $0x58] sm:$0xff] %v11640
        %11657 = vst [vmem:[%s378 + $0x60] sm:$0xff] %v11641
        %11658 = vst [vmem:[%s378 + $0x68] sm:$0xff] %v11642
        %11659 = vst [vmem:[%s378 + $0x70] sm:$0xff] %v11643
        %11660 = vst [vmem:[%s378 + $0x78] sm:$0xff] %v11644
        %s11661 = sand.u32 %s187, 1
        %s11662 = scalar_lea.sflag [#allocation4], %s11661
        %s11663 = sand.u32 %s187, 1
        %s11664 = smul.addr %s11663, 128
        %s11665 = scalar_lea.vmem [#allocation14], %s11664
        // Predicated region
        $region77: #{tpu_custom_call.1} parent=47 // pred_check
          %p11666 = pneg %p197
        $region78: #{tpu_custom_call.1} parent=47 // pred_check_branch
          %11668 = sbr.rel (%p11666) target = $region80
        $region79: #{tpu_custom_call.1} parent=47 // pred_region
          %s11669 = smul.u32 16, %s27
          %s11671 = ssub.s32 2048, 2048
          %11672 = vsyncadd %s11662, %s11671
          %s11673 = smul.addr %s11669, 128
          %s11674 = scalar_lea.hbm %s7, %s11673
          %s11675 = sshll.u32 %s11665, 4
          %s11676 = int_to_ptr.vmem [resolvable:$true] %s11675
          %11681 = dma.vmem_to_hbm [thread:$0]  %s11676, 2048, %s11674, %s11662, 128, 128, 8
        $region80: #{tpu_custom_call.1} parent=47 // pred_fallthru
          _
      $region48: #{tpu_custom_call.1} parent=5 // pred_fallthru
        _
      %p11682 = scmp.le.s32.totalorder 2, %s22
      // Predicated region
      $region81: #{tpu_custom_call.1} parent=5 // pred_check
        %p11683 = pneg %p11682
      $region82: #{tpu_custom_call.1} parent=5 // pred_check_branch
        %11685 = sbr.rel (%p11683) target = $region84
      $region83: #{tpu_custom_call.1} parent=5 // pred_region
        %s11686 = ssub.s32 %s22, 2
        // Predicated region
        $region85: #{tpu_custom_call.1} parent=83 // pred_check
          %p11687 = pneg %p203
        $region86: #{tpu_custom_call.1} parent=83 // pred_check_branch
          %11689 = sbr.rel (%p11687) target = $region88
        $region87: #{tpu_custom_call.1} parent=83 // pred_region
          %s11690 = sand.u32 %s188, 1
          %s11691 = scalar_lea.sflag [#allocation4], %s11690
          %s11692 = sand.u32 %s188, 1
          %s11693 = smul.addr %s11692, 128
          %s11694 = scalar_lea.vmem [#allocation14], %s11693
          %11695 = dma.done %s11691, 2048
        $region88: #{tpu_custom_call.1} parent=83 // pred_fallthru
          _
      $region84: #{tpu_custom_call.1} parent=5 // pred_fallthru
        _
    $region6: #{tpu_custom_call.1} parent=1 // loop_footer
      %s26 = sadd.s32 1, %s22
    $region7: #{tpu_custom_call.1} parent=1 // loop_footer_branch
      %21 = sbr.rel target = $region3
    $region8: #{tpu_custom_call.1} parent=1 // loop_exit
      _
    %11696 = vsyncpa [#allocation3], 1
    %s11697 = scalar_lea.sflag [#allocation3], 1
    %11698 = vsyncpa %s11697, 1
    %11699 = vsyncpa [#allocation6], 1
    %11700 = vsyncpa [#allocation9], 1
    %11701 = vsyncpa [#allocation12], 1
    %11702 = vsyncpa [#allocation4], 1
    %s11703 = scalar_lea.sflag [#allocation4], 1
    %11704 = vsyncpa %s11703, 1

</llo_original>
